<compile_context>
chip_gen: v7x
topology: tpu7x:2x2x1
jax: 0.10.0
libtpu: 0.0.40
codegen_flags: <defaults>
</compile_context>

<pallas_src>
import jax
import jax.numpy as jnp
import numpy as np
from jax.experimental import pallas as pl
from jax.experimental.pallas import tpu as pltpu

# ---------------- speechbrain MFCC defaults ----------------
SAMPLE_RATE = 16000
N_FFT = 400
WIN_LENGTH = 400          # 25 ms @ 16 kHz
HOP = 160                 # 10 ms @ 16 kHz
N_FREQ = N_FFT // 2 + 1   # 201 (one-sided)
HALF = 256                # lane-aligned spectrum width (>= N_FREQ)
N_MELS = 23
N_MFCC = 20
F_MIN = 0.0
F_MAX = SAMPLE_RATE / 2.0
AMIN = 1e-10
TOP_DB = 80.0
MULTIPLIER = 10.0         # power spectrogram -> dB
DB_MULTIPLIER = 0.0       # log10(max(amin, ref=1.0)) == 0
LEFT = 5
RIGHT = 5
CTX = LEFT + RIGHT + 1    # 11
N_GROUPS = 3              # mfcc, delta1, delta2
N_FEATS = N_GROUPS * N_MFCC   # 60
N_OUT = N_FEATS * CTX         # 660
N_OUT_PAD = 768               # 660 rounded up to a lane-group multiple


def _mfcc_kernel(wav_ref, w_ref, fbank_ref, dct_ref, emb_ref, out_ref, sp_ref):
    """One batch element per grid step.  Time on sublanes, features on lanes."""
    T = wav_ref.shape[1] - 2

    # ---- STFT.  Frame t = padded samples [t*160, t*160+400), i.e. hop rows
    # t, t+1 and the first half of row t+2.  The Hamming window and the
    # one-sided cos/-sin DFT are fused into a single (480, 512) bf16 weight
    # (cos in lanes 0:201, -sin in lanes 256:457, rows 400:480 zero), so the
    # STFT is 3 chunked MXU matmuls with f32 accumulation.
    w2 = wav_ref[0]                                            # (T+2, 160) f32
    # slice-then-cast keeps the packed bf16 operands sublane-aligned.
    a0 = w2[0:T, :].astype(jnp.bfloat16)                       # samples [0,160)
    a1 = w2[1:T + 1, :].astype(jnp.bfloat16)                   # samples [160,320)
    a2 = w2[2:T + 2, :].astype(jnp.bfloat16)                   # samples [320,480) (tail rows of W are 0)

    x = (jnp.dot(a0, w_ref[0:HOP, :], preferred_element_type=jnp.float32)
         + jnp.dot(a1, w_ref[HOP:2 * HOP, :], preferred_element_type=jnp.float32)
         + jnp.dot(a2, w_ref[2 * HOP:3 * HOP, :], preferred_element_type=jnp.float32))
    xx = x * x                                                 # (T, 512)
    # spectral_magnitude with power=1 -> |X|^2.  Lanes 201:256 are exactly 0.
    power = xx[:, 0:HALF] + xx[:, HALF:2 * HALF]               # (T, 256)

    # Mel filterbank (rows 201:256 of fbank are zero) + amplitude_to_DB
    # (per-sequence top_db clamp), all f32.
    fb = jnp.dot(power, fbank_ref[...], preferred_element_type=jnp.float32)   # (T, 23)
    x_db = MULTIPLIER * jnp.log10(jnp.maximum(fb, AMIN)) - MULTIPLIER * DB_MULTIPLIER
    x_db = jnp.maximum(x_db, jnp.max(x_db) - TOP_DB)

    # Ortho DCT-II -> MFCCs.
    mfcc = jnp.dot(x_db, dct_ref[...], preferred_element_type=jnp.float32)    # (T, 20)

    # Deltas: kernel [-2,-1,0,1,2]/10 with replicate padding, as a 5-tap
    # shifted-sum on the VPU (no (T,T) matmul).  Applied twice.
    def deltas(f):
        top = f[0:1]
        bot = f[T - 1:T]
        p = jnp.concatenate([top, top, f, bot, bot], axis=0)   # (T+4, 20)
        return 0.2 * (p[4:4 + T] - p[0:T]) + 0.1 * (p[3:3 + T] - p[1:1 + T])

    d1 = deltas(mfcc)
    d2 = deltas(d1)

    # ContextWindow, emitted directly in the speechbrain layout:
    #   out[t, (g*20 + j)*11 + k] = feats_g[t + k - 5, j]   (zero-padded in time)
    # Step 1: one small f32 matmul places feature (g, j) at lane (g*20+j)*11
    # of a lane-dense 768-wide slab (all lanes >= 650 are zero).
    allfeats = jnp.concatenate([mfcc, d1, d2], axis=1)                         # (T, 60)
    strided = jnp.dot(allfeats, emb_ref[...], preferred_element_type=jnp.float32)  # (T, 768)

    # Step 2: stage the time-padded slab once in VMEM scratch:
    #   rows 0:5 = 0, rows 5:5+T = strided, rows T+5:T+10 = 0.
    sp_ref[0:LEFT, :] = jnp.zeros((LEFT, N_OUT_PAD), jnp.float32)
    sp_ref[LEFT + T:LEFT + T + RIGHT, :] = jnp.zeros((RIGHT, N_OUT_PAD), jnp.float32)
    sp_ref[LEFT:LEFT + T, :] = strided

    # Step 3: accumulate the 11 context shifts directly into out_ref.  Shift k
    # is a time shift of (k - 5) rows (a read from sp_ref) plus a +k lane
    # rotation on the XLU.  Wrapped lanes (768-k .. 767) are provably zero and
    # j*11 + k <= 659, so rotations never collide; terms are added pairwise to
    # halve the out_ref load/store round trips.
    def ctx_term(k):
        src = strided if k == LEFT else sp_ref[k:k + T, :]
        return pltpu.roll(src, shift=k, axis=1) if k else src

    out_ref[0] = (ctx_term(0) + ctx_term(1))[:, 0:N_OUT]
    for k in range(2, CTX - 1, 2):
        out_ref[0] += (ctx_term(k) + ctx_term(k + 1))[:, 0:N_OUT]
    out_ref[0] += ctx_term(CTX - 1)[:, 0:N_OUT]


def _constants():
    # Hamming window (torch.hamming_window, periodic=True).
    n = np.arange(WIN_LENGTH, dtype=np.float64)
    window = 0.54 - 0.46 * np.cos(2.0 * np.pi * n / WIN_LENGTH)

    # One-sided DFT with the window folded in (torch.stft, not normalized),
    # fused into a single (480, 512) weight: cos in lanes 0:201, -sin in lanes
    # 256:457 (sign irrelevant for |X|^2), rows 400:480 zero so the third
    # 160-sample hop chunk is used un-sliced.
    nn = np.arange(N_FFT, dtype=np.float64)[:, None]
    ff = np.arange(N_FREQ, dtype=np.float64)[None, :]
    ang = 2.0 * np.pi * nn * ff / N_FFT
    w_fused = np.zeros((3 * HOP, 2 * HALF), np.float64)
    w_fused[:N_FFT, :N_FREQ] = window[:, None] * np.cos(ang)
    w_fused[:N_FFT, HALF:HALF + N_FREQ] = window[:, None] * (-np.sin(ang))

    # Triangular mel filterbank (speechbrain Filterbank, freeze=True),
    # zero-padded to 256 input bins to match the lane-aligned power slab.
    def to_mel(hz):
        return 2595.0 * np.log10(1.0 + hz / 700.0)

    def to_hz(mel):
        return 700.0 * (10.0 ** (mel / 2595.0) - 1.0)

    mel_pts = np.linspace(to_mel(F_MIN), to_mel(F_MAX), N_MELS + 2)
    hz = to_hz(mel_pts)
    band = (hz[1:] - hz[:-1])[:-1]                    # (N_MELS,)
    f_central = hz[1:-1]                              # (N_MELS,)
    all_freqs = np.linspace(0, SAMPLE_RATE // 2, N_FREQ)
    slope = (all_freqs[None, :] - f_central[:, None]) / band[:, None]
    tri = np.maximum(0.0, np.minimum(slope + 1.0, -slope + 1.0)).T   # (201, 23)
    fbank = np.zeros((HALF, N_MELS), np.float64)
    fbank[:N_FREQ] = tri

    # Ortho-normalized DCT-II matrix (speechbrain DCT).
    nmel = np.arange(N_MELS, dtype=np.float64)
    kk = np.arange(N_MFCC, dtype=np.float64)[:, None]
    dct = np.cos(np.pi / N_MELS * (nmel + 0.5) * kk)
    dct[0] *= 1.0 / np.sqrt(2.0)
    dct *= np.sqrt(2.0 / N_MELS)
    dct_mat = dct.T                                   # (23, 20)

    # Stride-11 lane embedding used to build the (g*20+j)*11 + k interleave,
    # emitted into a lane-dense 768-wide slab (max non-zero lane = 649).
    emb = np.zeros((N_FEATS, N_OUT_PAD), np.float32)
    emb[np.arange(N_FEATS), np.arange(N_FEATS) * CTX] = 1.0

    return (jnp.asarray(w_fused, jnp.bfloat16),
            jnp.asarray(fbank, jnp.float32),
            jnp.asarray(dct_mat, jnp.float32),
            jnp.asarray(emb, jnp.float32))


@jax.jit
def mfcc_pallas(wav):
    """wav: (B, L) float32 -> MFCC + deltas + context features, (B, T, 660)."""
    B, L = wav.shape
    T = 1 + L // HOP                          # torch.stft frame count (center=True)

    # Hop-major layout: row t holds padded samples [t*HOP, (t+1)*HOP).  Only the
    # waveform (not pre-gathered frames) crosses HBM; framing is in-kernel.
    total = (T + 2) * HOP
    pad_left = N_FFT // 2                     # center=True, 'constant' pad
    pad_right = total - L - pad_left          # >= 121 always; extra zeros unused
    padded = jnp.pad(wav, ((0, 0), (pad_left, pad_right)))
    wav2 = padded.reshape(B, T + 2, HOP)

    w_fused, fbank, dct_mat, emb = _constants()

    flops = 2 * B * T * (3 * HOP * 2 * HALF          # fused re+im DFT (3 matmuls)
                         + HALF * N_MELS             # mel filterbank
                         + N_MELS * N_MFCC           # DCT
                         + N_FEATS * N_OUT_PAD)      # lane embedding
    cost = pl.CostEstimate(
        flops=int(flops),
        transcendentals=int(B * T * N_MELS),
        bytes_accessed=int(4 * B * ((T + 2) * HOP + T * N_OUT)
                           + 2 * 3 * HOP * 2 * HALF
                           + 4 * (HALF * N_MELS + N_MELS * N_MFCC
                                  + N_FEATS * N_OUT_PAD)))

    # Need-based VMEM limit (a few MiB at typical T), capped at 48 MiB so it
    # stays well inside v7x's 64 MiB per-core VMEM (v5e/v6e have 128 MiB).
    slab = (T + 2 * LEFT) * N_OUT_PAD * 4
    vmem_limit = int(min(48 * 1024 * 1024, max(16 * 1024 * 1024, 24 * slab)))

    return pl.pallas_call(
        _mfcc_kernel,
        out_shape=jax.ShapeDtypeStruct((B, T, N_OUT), jnp.float32),
        grid=(B,),
        in_specs=[
            pl.BlockSpec((1, T + 2, HOP), lambda b: (b, 0, 0)),      # hop-major waveform
            pl.BlockSpec((3 * HOP, 2 * HALF), lambda b: (0, 0)),     # fused windowed DFT (bf16)
            pl.BlockSpec((HALF, N_MELS), lambda b: (0, 0)),          # mel filterbank (f32)
            pl.BlockSpec((N_MELS, N_MFCC), lambda b: (0, 0)),        # DCT (f32)
            pl.BlockSpec((N_FEATS, N_OUT_PAD), lambda b: (0, 0)),    # stride-11 embedding
        ],
        out_specs=pl.BlockSpec((1, T, N_OUT), lambda b: (b, 0, 0)),
        scratch_shapes=[pltpu.VMEM((T + 2 * LEFT, N_OUT_PAD), jnp.float32)],
        compiler_params=pltpu.CompilerParams(
            dimension_semantics=("parallel",),
            vmem_limit_bytes=vmem_limit),
        cost_estimate=cost,
    )(wav2, w_fused, fbank, dct_mat, emb)


if __name__ == "__main__":
    key = jax.random.PRNGKey(0)
    wav = jax.random.normal(key, (2, 16000), dtype=jnp.float32)   # batch=2, 1 s @ 16 kHz
    feats = jax.block_until_ready(mfcc_pallas(wav))
    # T = 1 + 16000 // 160 = 101 frames; 20 mfcc * 3 groups * 11 context = 660
    assert feats.shape == (2, 101, 660), feats.shape
    assert bool(jnp.all(jnp.isfinite(feats)))
    print("KERNEL_OK")
</pallas_src>

<mosaic_0001>
module attributes {stable_mosaic.version = 11 : i64} {
  func.func @_mfcc_kernel(%arg0: i32, %arg1: memref<1x103x160xf32, #tpu.memory_space<vmem>>, %arg2: memref<480x512xbf16, #tpu.memory_space<vmem>>, %arg3: memref<256x23xf32, #tpu.memory_space<vmem>>, %arg4: memref<23x20xf32, #tpu.memory_space<vmem>>, %arg5: memref<60x768xf32, #tpu.memory_space<vmem>>, %arg6: memref<1x101x660xf32, #tpu.memory_space<vmem>>, %arg7: memref<111x768xf32, #tpu.memory_space<vmem>>) attributes {dimension_semantics = [#tpu.dimension_semantics<parallel>], iteration_bounds = array<i64: 2>, scalar_prefetch = 0 : i64, scratch_operands = 1 : i64, tpu.core_type = #tpu.core_type<tc>, window_params = [{transform_indices = @transform_0, window_bounds = array<i64: 1, 103, 160>}, {pipeline_mode = #tpu.pipeline_mode<synchronous>, transform_indices = @transform_1, window_bounds = array<i64: 480, 512>}, {pipeline_mode = #tpu.pipeline_mode<synchronous>, transform_indices = @transform_2, window_bounds = array<i64: 256, 23>}, {pipeline_mode = #tpu.pipeline_mode<synchronous>, transform_indices = @transform_3, window_bounds = array<i64: 23, 20>}, {pipeline_mode = #tpu.pipeline_mode<synchronous>, transform_indices = @transform_4, window_bounds = array<i64: 60, 768>}, {transform_indices = @transform_5, window_bounds = array<i64: 1, 101, 660>}]} {
    %c0 = arith.constant 0 : index
    %c0_0 = arith.constant 0 : index
    %c0_1 = arith.constant 0 : index
    %0 = vector.load %arg1[%c0, %c0_0, %c0_1] : memref<1x103x160xf32, #tpu.memory_space<vmem>>, vector<1x103x160xf32>
    %1 = vector.shape_cast %0 : vector<1x103x160xf32> to vector<103x160xf32>
    %2 = vector.extract_strided_slice %1 {offsets = [0, 0], sizes = [101, 160], strides = [1, 1]} : vector<103x160xf32> to vector<101x160xf32>
    %3 = arith.truncf %2 : vector<101x160xf32> to vector<101x160xbf16>
    %4 = vector.extract_strided_slice %1 {offsets = [1, 0], sizes = [101, 160], strides = [1, 1]} : vector<103x160xf32> to vector<101x160xf32>
    %5 = arith.truncf %4 : vector<101x160xf32> to vector<101x160xbf16>
    %6 = vector.extract_strided_slice %1 {offsets = [2, 0], sizes = [101, 160], strides = [1, 1]} : vector<103x160xf32> to vector<101x160xf32>
    %7 = arith.truncf %6 : vector<101x160xf32> to vector<101x160xbf16>
    %c0_2 = arith.constant 0 : index
    %c0_3 = arith.constant 0 : index
    %8 = vector.load %arg2[%c0_2, %c0_3] : memref<480x512xbf16, #tpu.memory_space<vmem>>, vector<160x512xbf16>
    %cst = arith.constant dense<0.000000e+00> : vector<101x512xf32>
    %9 = tpu.matmul %3, %8, %cst {dimension_numbers = #tpu.dot_dimension_numbers<[1], [0], [0], [1], [0, 0, 1, 1], [], []>} : vector<101x160xbf16>, vector<160x512xbf16>, vector<101x512xf32> -> vector<101x512xf32>
    %c160 = arith.constant 160 : index
    %c0_4 = arith.constant 0 : index
    %10 = vector.load %arg2[%c160, %c0_4] : memref<480x512xbf16, #tpu.memory_space<vmem>>, vector<160x512xbf16>
    %cst_5 = arith.constant dense<0.000000e+00> : vector<101x512xf32>
    %11 = tpu.matmul %5, %10, %cst_5 {dimension_numbers = #tpu.dot_dimension_numbers<[1], [0], [0], [1], [0, 0, 1, 1], [], []>} : vector<101x160xbf16>, vector<160x512xbf16>, vector<101x512xf32> -> vector<101x512xf32>
    %12 = arith.addf %9, %11 : vector<101x512xf32>
    %c320 = arith.constant 320 : index
    %c0_6 = arith.constant 0 : index
    %13 = vector.load %arg2[%c320, %c0_6] : memref<480x512xbf16, #tpu.memory_space<vmem>>, vector<160x512xbf16>
    %cst_7 = arith.constant dense<0.000000e+00> : vector<101x512xf32>
    %14 = tpu.matmul %7, %13, %cst_7 {dimension_numbers = #tpu.dot_dimension_numbers<[1], [0], [0], [1], [0, 0, 1, 1], [], []>} : vector<101x160xbf16>, vector<160x512xbf16>, vector<101x512xf32> -> vector<101x512xf32>
    %15 = arith.addf %12, %14 : vector<101x512xf32>
    %16 = arith.mulf %15, %15 : vector<101x512xf32>
    %17 = vector.extract_strided_slice %16 {offsets = [0, 0], sizes = [101, 256], strides = [1, 1]} : vector<101x512xf32> to vector<101x256xf32>
    %18 = vector.extract_strided_slice %16 {offsets = [0, 256], sizes = [101, 256], strides = [1, 1]} : vector<101x512xf32> to vector<101x256xf32>
    %19 = arith.addf %17, %18 : vector<101x256xf32>
    %c0_8 = arith.constant 0 : index
    %c0_9 = arith.constant 0 : index
    %20 = vector.load %arg3[%c0_8, %c0_9] : memref<256x23xf32, #tpu.memory_space<vmem>>, vector<256x23xf32>
    %cst_10 = arith.constant dense<0.000000e+00> : vector<101x23xf32>
    %21 = tpu.matmul %19, %20, %cst_10 {dimension_numbers = #tpu.dot_dimension_numbers<[1], [0], [0], [1], [0, 0, 1, 1], [], []>} : vector<101x256xf32>, vector<256x23xf32>, vector<101x23xf32> -> vector<101x23xf32>
    %cst_11 = arith.constant 1.000000e-10 : f32
    %22 = vector.broadcast %cst_11 : f32 to vector<101x23xf32>
    %23 = arith.maximumf %21, %22 : vector<101x23xf32>
    %24 = math.log %23 : vector<101x23xf32>
    %cst_12 = arith.constant 0.434294492 : f32
    %25 = vector.broadcast %cst_12 : f32 to vector<101x23xf32>
    %26 = arith.mulf %24, %25 : vector<101x23xf32>
    %cst_13 = arith.constant 1.000000e+01 : f32
    %27 = vector.broadcast %cst_13 : f32 to vector<101x23xf32>
    %28 = arith.mulf %27, %26 : vector<101x23xf32>
    %cst_14 = arith.constant 0.000000e+00 : f32
    %29 = vector.broadcast %cst_14 : f32 to vector<101x23xf32>
    %30 = arith.subf %28, %29 : vector<101x23xf32>
    %31 = vector.shape_cast %30 : vector<101x23xf32> to vector<1x101x23xf32>
    %cst_15 = arith.constant dense<0xFF800000> : vector<1xf32>
    %32 = vector.multi_reduction <maximumf>, %31, %cst_15 [1, 2] : vector<1x101x23xf32> to vector<1xf32>
    %33 = vector.shape_cast %32 : vector<1xf32> to vector<1x1x1xf32>
    %34 = vector.extract %33[0, 0, 0] : f32 from vector<1x1x1xf32>
    %cst_16 = arith.constant 8.000000e+01 : f32
    %35 = arith.subf %34, %cst_16 : f32
    %36 = vector.broadcast %35 : f32 to vector<101x23xf32>
    %37 = arith.maximumf %30, %36 : vector<101x23xf32>
    %c0_17 = arith.constant 0 : index
    %c0_18 = arith.constant 0 : index
    %38 = vector.load %arg4[%c0_17, %c0_18] : memref<23x20xf32, #tpu.memory_space<vmem>>, vector<23x20xf32>
    %cst_19 = arith.constant dense<0.000000e+00> : vector<101x20xf32>
    %39 = tpu.matmul %37, %38, %cst_19 {dimension_numbers = #tpu.dot_dimension_numbers<[1], [0], [0], [1], [0, 0, 1, 1], [], []>} : vector<101x23xf32>, vector<23x20xf32>, vector<101x20xf32> -> vector<101x20xf32>
    %40 = vector.extract_strided_slice %39 {offsets = [0, 0], sizes = [1, 20], strides = [1, 1]} : vector<101x20xf32> to vector<1x20xf32>
    %41 = vector.extract_strided_slice %39 {offsets = [100, 0], sizes = [1, 20], strides = [1, 1]} : vector<101x20xf32> to vector<1x20xf32>
    %42 = tpu.concatenate %40, %40, %39, %41, %41 in 0 : vector<1x20xf32>, vector<1x20xf32>, vector<101x20xf32>, vector<1x20xf32>, vector<1x20xf32> -> vector<105x20xf32>
    %43 = vector.extract_strided_slice %42 {offsets = [4, 0], sizes = [101, 20], strides = [1, 1]} : vector<105x20xf32> to vector<101x20xf32>
    %44 = vector.extract_strided_slice %42 {offsets = [0, 0], sizes = [101, 20], strides = [1, 1]} : vector<105x20xf32> to vector<101x20xf32>
    %45 = arith.subf %43, %44 : vector<101x20xf32>
    %cst_20 = arith.constant 2.000000e-01 : f32
    %46 = vector.broadcast %cst_20 : f32 to vector<101x20xf32>
    %47 = arith.mulf %46, %45 : vector<101x20xf32>
    %48 = vector.extract_strided_slice %42 {offsets = [3, 0], sizes = [101, 20], strides = [1, 1]} : vector<105x20xf32> to vector<101x20xf32>
    %49 = vector.extract_strided_slice %42 {offsets = [1, 0], sizes = [101, 20], strides = [1, 1]} : vector<105x20xf32> to vector<101x20xf32>
    %50 = arith.subf %48, %49 : vector<101x20xf32>
    %cst_21 = arith.constant 1.000000e-01 : f32
    %51 = vector.broadcast %cst_21 : f32 to vector<101x20xf32>
    %52 = arith.mulf %51, %50 : vector<101x20xf32>
    %53 = arith.addf %47, %52 : vector<101x20xf32>
    %54 = vector.extract_strided_slice %53 {offsets = [0, 0], sizes = [1, 20], strides = [1, 1]} : vector<101x20xf32> to vector<1x20xf32>
    %55 = vector.extract_strided_slice %53 {offsets = [100, 0], sizes = [1, 20], strides = [1, 1]} : vector<101x20xf32> to vector<1x20xf32>
    %56 = tpu.concatenate %54, %54, %53, %55, %55 in 0 : vector<1x20xf32>, vector<1x20xf32>, vector<101x20xf32>, vector<1x20xf32>, vector<1x20xf32> -> vector<105x20xf32>
    %57 = vector.extract_strided_slice %56 {offsets = [4, 0], sizes = [101, 20], strides = [1, 1]} : vector<105x20xf32> to vector<101x20xf32>
    %58 = vector.extract_strided_slice %56 {offsets = [0, 0], sizes = [101, 20], strides = [1, 1]} : vector<105x20xf32> to vector<101x20xf32>
    %59 = arith.subf %57, %58 : vector<101x20xf32>
    %cst_22 = arith.constant 2.000000e-01 : f32
    %60 = vector.broadcast %cst_22 : f32 to vector<101x20xf32>
    %61 = arith.mulf %60, %59 : vector<101x20xf32>
    %62 = vector.extract_strided_slice %56 {offsets = [3, 0], sizes = [101, 20], strides = [1, 1]} : vector<105x20xf32> to vector<101x20xf32>
    %63 = vector.extract_strided_slice %56 {offsets = [1, 0], sizes = [101, 20], strides = [1, 1]} : vector<105x20xf32> to vector<101x20xf32>
    %64 = arith.subf %62, %63 : vector<101x20xf32>
    %cst_23 = arith.constant 1.000000e-01 : f32
    %65 = vector.broadcast %cst_23 : f32 to vector<101x20xf32>
    %66 = arith.mulf %65, %64 : vector<101x20xf32>
    %67 = arith.addf %61, %66 : vector<101x20xf32>
    %68 = tpu.concatenate %39, %53, %67 in 1 : vector<101x20xf32>, vector<101x20xf32>, vector<101x20xf32> -> vector<101x60xf32>
    %c0_24 = arith.constant 0 : index
    %c0_25 = arith.constant 0 : index
    %69 = vector.load %arg5[%c0_24, %c0_25] : memref<60x768xf32, #tpu.memory_space<vmem>>, vector<60x768xf32>
    %cst_26 = arith.constant dense<0.000000e+00> : vector<101x768xf32>
    %70 = tpu.matmul %68, %69, %cst_26 {dimension_numbers = #tpu.dot_dimension_numbers<[1], [0], [0], [1], [0, 0, 1, 1], [], []>} : vector<101x60xf32>, vector<60x768xf32>, vector<101x768xf32> -> vector<101x768xf32>
    %cst_27 = arith.constant 0.000000e+00 : f32
    %71 = vector.broadcast %cst_27 : f32 to vector<5x768xf32>
    %c0_28 = arith.constant 0 : index
    %c0_29 = arith.constant 0 : index
    %72 = vector.load %arg7[%c0_28, %c0_29] : memref<111x768xf32, #tpu.memory_space<vmem>>, vector<5x768xf32>
    tpu.vector_store %arg7[%c0_28, %c0_29], %71 {strides = array<i32>} : memref<111x768xf32, #tpu.memory_space<vmem>>, vector<5x768xf32>,
    %cst_30 = arith.constant 0.000000e+00 : f32
    %73 = vector.broadcast %cst_30 : f32 to vector<5x768xf32>
    %c106 = arith.constant 106 : index
    %c0_31 = arith.constant 0 : index
    %74 = vector.load %arg7[%c106, %c0_31] : memref<111x768xf32, #tpu.memory_space<vmem>>, vector<5x768xf32>
    tpu.vector_store %arg7[%c106, %c0_31], %73 {strides = array<i32>} : memref<111x768xf32, #tpu.memory_space<vmem>>, vector<5x768xf32>,
    %c5 = arith.constant 5 : index
    %c0_32 = arith.constant 0 : index
    %75 = vector.load %arg7[%c5, %c0_32] : memref<111x768xf32, #tpu.memory_space<vmem>>, vector<101x768xf32>
    tpu.vector_store %arg7[%c5, %c0_32], %70 {strides = array<i32>} : memref<111x768xf32, #tpu.memory_space<vmem>>, vector<101x768xf32>,
    %c0_33 = arith.constant 0 : index
    %c0_34 = arith.constant 0 : index
    %76 = vector.load %arg7[%c0_33, %c0_34] : memref<111x768xf32, #tpu.memory_space<vmem>>, vector<101x768xf32>
    %c1 = arith.constant 1 : index
    %c0_35 = arith.constant 0 : index
    %77 = vector.load %arg7[%c1, %c0_35] : memref<111x768xf32, #tpu.memory_space<vmem>>, vector<101x768xf32>
    %c1_i32 = arith.constant 1 : i32
    %78 = tpu.dynamic_rotate %77 by %c1_i32 dim 1 : vector<101x768xf32>, i32 -> vector<101x768xf32>
    %79 = arith.addf %76, %78 : vector<101x768xf32>
    %80 = vector.extract_strided_slice %79 {offsets = [0, 0], sizes = [101, 660], strides = [1, 1]} : vector<101x768xf32> to vector<101x660xf32>
    %c0_36 = arith.constant 0 : index
    %c0_37 = arith.constant 0 : index
    %c0_38 = arith.constant 0 : index
    %81 = vector.load %arg6[%c0_36, %c0_37, %c0_38] : memref<1x101x660xf32, #tpu.memory_space<vmem>>, vector<1x101x660xf32>
    %82 = vector.shape_cast %81 : vector<1x101x660xf32> to vector<101x660xf32>
    %83 = vector.shape_cast %80 : vector<101x660xf32> to vector<1x101x660xf32>
    tpu.vector_store %arg6[%c0_36, %c0_37, %c0_38], %83 {strides = array<i32>} : memref<1x101x660xf32, #tpu.memory_space<vmem>>, vector<1x101x660xf32>,
    %c0_39 = arith.constant 0 : index
    %c0_40 = arith.constant 0 : index
    %c0_41 = arith.constant 0 : index
    %84 = vector.load %arg6[%c0_39, %c0_40, %c0_41] : memref<1x101x660xf32, #tpu.memory_space<vmem>>, vector<1x101x660xf32>
    %85 = vector.shape_cast %84 : vector<1x101x660xf32> to vector<101x660xf32>
    %c2 = arith.constant 2 : index
    %c0_42 = arith.constant 0 : index
    %86 = vector.load %arg7[%c2, %c0_42] : memref<111x768xf32, #tpu.memory_space<vmem>>, vector<101x768xf32>
    %c2_i32 = arith.constant 2 : i32
    %87 = tpu.dynamic_rotate %86 by %c2_i32 dim 1 : vector<101x768xf32>, i32 -> vector<101x768xf32>
    %c3 = arith.constant 3 : index
    %c0_43 = arith.constant 0 : index
    %88 = vector.load %arg7[%c3, %c0_43] : memref<111x768xf32, #tpu.memory_space<vmem>>, vector<101x768xf32>
    %c3_i32 = arith.constant 3 : i32
    %89 = tpu.dynamic_rotate %88 by %c3_i32 dim 1 : vector<101x768xf32>, i32 -> vector<101x768xf32>
    %90 = arith.addf %87, %89 : vector<101x768xf32>
    %91 = vector.extract_strided_slice %90 {offsets = [0, 0], sizes = [101, 660], strides = [1, 1]} : vector<101x768xf32> to vector<101x660xf32>
    %92 = arith.addf %85, %91 : vector<101x660xf32>
    %c0_44 = arith.constant 0 : index
    %c0_45 = arith.constant 0 : index
    %c0_46 = arith.constant 0 : index
    %93 = vector.load %arg6[%c0_44, %c0_45, %c0_46] : memref<1x101x660xf32, #tpu.memory_space<vmem>>, vector<1x101x660xf32>
    %94 = vector.shape_cast %93 : vector<1x101x660xf32> to vector<101x660xf32>
    %95 = vector.shape_cast %92 : vector<101x660xf32> to vector<1x101x660xf32>
    tpu.vector_store %arg6[%c0_44, %c0_45, %c0_46], %95 {strides = array<i32>} : memref<1x101x660xf32, #tpu.memory_space<vmem>>, vector<1x101x660xf32>,
    %c0_47 = arith.constant 0 : index
    %c0_48 = arith.constant 0 : index
    %c0_49 = arith.constant 0 : index
    %96 = vector.load %arg6[%c0_47, %c0_48, %c0_49] : memref<1x101x660xf32, #tpu.memory_space<vmem>>, vector<1x101x660xf32>
    %97 = vector.shape_cast %96 : vector<1x101x660xf32> to vector<101x660xf32>
    %c4 = arith.constant 4 : index
    %c0_50 = arith.constant 0 : index
    %98 = vector.load %arg7[%c4, %c0_50] : memref<111x768xf32, #tpu.memory_space<vmem>>, vector<101x768xf32>
    %c4_i32 = arith.constant 4 : i32
    %99 = tpu.dynamic_rotate %98 by %c4_i32 dim 1 : vector<101x768xf32>, i32 -> vector<101x768xf32>
    %c5_i32 = arith.constant 5 : i32
    %100 = tpu.dynamic_rotate %70 by %c5_i32 dim 1 : vector<101x768xf32>, i32 -> vector<101x768xf32>
    %101 = arith.addf %99, %100 : vector<101x768xf32>
    %102 = vector.extract_strided_slice %101 {offsets = [0, 0], sizes = [101, 660], strides = [1, 1]} : vector<101x768xf32> to vector<101x660xf32>
    %103 = arith.addf %97, %102 : vector<101x660xf32>
    %c0_51 = arith.constant 0 : index
    %c0_52 = arith.constant 0 : index
    %c0_53 = arith.constant 0 : index
    %104 = vector.load %arg6[%c0_51, %c0_52, %c0_53] : memref<1x101x660xf32, #tpu.memory_space<vmem>>, vector<1x101x660xf32>
    %105 = vector.shape_cast %104 : vector<1x101x660xf32> to vector<101x660xf32>
    %106 = vector.shape_cast %103 : vector<101x660xf32> to vector<1x101x660xf32>
    tpu.vector_store %arg6[%c0_51, %c0_52, %c0_53], %106 {strides = array<i32>} : memref<1x101x660xf32, #tpu.memory_space<vmem>>, vector<1x101x660xf32>,
    %c0_54 = arith.constant 0 : index
    %c0_55 = arith.constant 0 : index
    %c0_56 = arith.constant 0 : index
    %107 = vector.load %arg6[%c0_54, %c0_55, %c0_56] : memref<1x101x660xf32, #tpu.memory_space<vmem>>, vector<1x101x660xf32>
    %108 = vector.shape_cast %107 : vector<1x101x660xf32> to vector<101x660xf32>
    %c6 = arith.constant 6 : index
    %c0_57 = arith.constant 0 : index
    %109 = vector.load %arg7[%c6, %c0_57] : memref<111x768xf32, #tpu.memory_space<vmem>>, vector<101x768xf32>
    %c6_i32 = arith.constant 6 : i32
    %110 = tpu.dynamic_rotate %109 by %c6_i32 dim 1 : vector<101x768xf32>, i32 -> vector<101x768xf32>
    %c7 = arith.constant 7 : index
    %c0_58 = arith.constant 0 : index
    %111 = vector.load %arg7[%c7, %c0_58] : memref<111x768xf32, #tpu.memory_space<vmem>>, vector<101x768xf32>
    %c7_i32 = arith.constant 7 : i32
    %112 = tpu.dynamic_rotate %111 by %c7_i32 dim 1 : vector<101x768xf32>, i32 -> vector<101x768xf32>
    %113 = arith.addf %110, %112 : vector<101x768xf32>
    %114 = vector.extract_strided_slice %113 {offsets = [0, 0], sizes = [101, 660], strides = [1, 1]} : vector<101x768xf32> to vector<101x660xf32>
    %115 = arith.addf %108, %114 : vector<101x660xf32>
    %c0_59 = arith.constant 0 : index
    %c0_60 = arith.constant 0 : index
    %c0_61 = arith.constant 0 : index
    %116 = vector.load %arg6[%c0_59, %c0_60, %c0_61] : memref<1x101x660xf32, #tpu.memory_space<vmem>>, vector<1x101x660xf32>
    %117 = vector.shape_cast %116 : vector<1x101x660xf32> to vector<101x660xf32>
    %118 = vector.shape_cast %115 : vector<101x660xf32> to vector<1x101x660xf32>
    tpu.vector_store %arg6[%c0_59, %c0_60, %c0_61], %118 {strides = array<i32>} : memref<1x101x660xf32, #tpu.memory_space<vmem>>, vector<1x101x660xf32>,
    %c0_62 = arith.constant 0 : index
    %c0_63 = arith.constant 0 : index
    %c0_64 = arith.constant 0 : index
    %119 = vector.load %arg6[%c0_62, %c0_63, %c0_64] : memref<1x101x660xf32, #tpu.memory_space<vmem>>, vector<1x101x660xf32>
    %120 = vector.shape_cast %119 : vector<1x101x660xf32> to vector<101x660xf32>
    %c8 = arith.constant 8 : index
    %c0_65 = arith.constant 0 : index
    %121 = vector.load %arg7[%c8, %c0_65] : memref<111x768xf32, #tpu.memory_space<vmem>>, vector<101x768xf32>
    %c8_i32 = arith.constant 8 : i32
    %122 = tpu.dynamic_rotate %121 by %c8_i32 dim 1 : vector<101x768xf32>, i32 -> vector<101x768xf32>
    %c9 = arith.constant 9 : index
    %c0_66 = arith.constant 0 : index
    %123 = vector.load %arg7[%c9, %c0_66] : memref<111x768xf32, #tpu.memory_space<vmem>>, vector<101x768xf32>
    %c9_i32 = arith.constant 9 : i32
    %124 = tpu.dynamic_rotate %123 by %c9_i32 dim 1 : vector<101x768xf32>, i32 -> vector<101x768xf32>
    %125 = arith.addf %122, %124 : vector<101x768xf32>
    %126 = vector.extract_strided_slice %125 {offsets = [0, 0], sizes = [101, 660], strides = [1, 1]} : vector<101x768xf32> to vector<101x660xf32>
    %127 = arith.addf %120, %126 : vector<101x660xf32>
    %c0_67 = arith.constant 0 : index
    %c0_68 = arith.constant 0 : index
    %c0_69 = arith.constant 0 : index
    %128 = vector.load %arg6[%c0_67, %c0_68, %c0_69] : memref<1x101x660xf32, #tpu.memory_space<vmem>>, vector<1x101x660xf32>
    %129 = vector.shape_cast %128 : vector<1x101x660xf32> to vector<101x660xf32>
    %130 = vector.shape_cast %127 : vector<101x660xf32> to vector<1x101x660xf32>
    tpu.vector_store %arg6[%c0_67, %c0_68, %c0_69], %130 {strides = array<i32>} : memref<1x101x660xf32, #tpu.memory_space<vmem>>, vector<1x101x660xf32>,
    %c0_70 = arith.constant 0 : index
    %c0_71 = arith.constant 0 : index
    %c0_72 = arith.constant 0 : index
    %131 = vector.load %arg6[%c0_70, %c0_71, %c0_72] : memref<1x101x660xf32, #tpu.memory_space<vmem>>, vector<1x101x660xf32>
    %132 = vector.shape_cast %131 : vector<1x101x660xf32> to vector<101x660xf32>
    %c10 = arith.constant 10 : index
    %c0_73 = arith.constant 0 : index
    %133 = vector.load %arg7[%c10, %c0_73] : memref<111x768xf32, #tpu.memory_space<vmem>>, vector<101x768xf32>
    %c10_i32 = arith.constant 10 : i32
    %134 = tpu.dynamic_rotate %133 by %c10_i32 dim 1 : vector<101x768xf32>, i32 -> vector<101x768xf32>
    %135 = vector.extract_strided_slice %134 {offsets = [0, 0], sizes = [101, 660], strides = [1, 1]} : vector<101x768xf32> to vector<101x660xf32>
    %136 = arith.addf %132, %135 : vector<101x660xf32>
    %c0_74 = arith.constant 0 : index
    %c0_75 = arith.constant 0 : index
    %c0_76 = arith.constant 0 : index
    %137 = vector.load %arg6[%c0_74, %c0_75, %c0_76] : memref<1x101x660xf32, #tpu.memory_space<vmem>>, vector<1x101x660xf32>
    %138 = vector.shape_cast %137 : vector<1x101x660xf32> to vector<101x660xf32>
    %139 = vector.shape_cast %136 : vector<101x660xf32> to vector<1x101x660xf32>
    tpu.vector_store %arg6[%c0_74, %c0_75, %c0_76], %139 {strides = array<i32>} : memref<1x101x660xf32, #tpu.memory_space<vmem>>, vector<1x101x660xf32>,
    return
  }
  func.func @transform_0(%arg0: i32) -> (i32, i32, i32) {
    %c0_i32 = arith.constant 0 : i32
    %c0_i32_0 = arith.constant 0 : i32
    %c0_i32_1 = arith.constant 0 : i32
    return %arg0, %c0_i32, %c0_i32_0 : i32, i32, i32
  }
  func.func @transform_1(%arg0: i32) -> (i32, i32) {
    %c0_i32 = arith.constant 0 : i32
    %c0_i32_0 = arith.constant 0 : i32
    %c0_i32_1 = arith.constant 0 : i32
    return %c0_i32, %c0_i32_0 : i32, i32
  }
  func.func @transform_2(%arg0: i32) -> (i32, i32) {
    %c0_i32 = arith.constant 0 : i32
    %c0_i32_0 = arith.constant 0 : i32
    %c0_i32_1 = arith.constant 0 : i32
    return %c0_i32, %c0_i32_0 : i32, i32
  }
  func.func @transform_3(%arg0: i32) -> (i32, i32) {
    %c0_i32 = arith.constant 0 : i32
    %c0_i32_0 = arith.constant 0 : i32
    %c0_i32_1 = arith.constant 0 : i32
    return %c0_i32, %c0_i32_0 : i32, i32
  }
  func.func @transform_4(%arg0: i32) -> (i32, i32) {
    %c0_i32 = arith.constant 0 : i32
    %c0_i32_0 = arith.constant 0 : i32
    %c0_i32_1 = arith.constant 0 : i32
    return %c0_i32, %c0_i32_0 : i32, i32
  }
  func.func @transform_5(%arg0: i32) -> (i32, i32, i32) {
    %c0_i32 = arith.constant 0 : i32
    %c0_i32_0 = arith.constant 0 : i32
    %c0_i32_1 = arith.constant 0 : i32
    return %arg0, %c0_i32, %c0_i32_0 : i32, i32, i32
  }
}

</mosaic_0001>

<llo_original>
// kernel: mfcc_pallas.1
$region0: #{mfcc_pallas.1}
  #allocation0 [shape = 'u32[]', space=smem, size = 0x4, offset = 0x4, fixed_abs, tag = 'smem constant byte address 0x4 - core index']
  #allocation1 [shape = 'u32[144,128]{1,0:T(1,128)}', space=vmem, size = 0x12000, scoped, tag = 'internal scratch']
  #allocation2 [shape = 'f32[111,768]{1,0:T(8,128)}', space=vmem, size = 0x54000, scoped, tag = 'scratch operand']
  %s0 = inlined_call_operand.vmem [shape: f32[2,103,160], index: 0, kind: input, shape index: {}]
  %s1 = inlined_call_operand.vmem [shape: bf16[480,512], index: 1, kind: input, shape index: {}]
  %s2 = inlined_call_operand.vmem [shape: f32[256,23], index: 2, kind: input, shape index: {}]
  %s3 = inlined_call_operand.vmem [shape: f32[23,20], index: 3, kind: input, shape index: {}]
  %s4 = inlined_call_operand.vmem [shape: f32[60,768], index: 4, kind: input, shape index: {}]
  %s5 = inlined_call_operand.vmem [shape: f32[2,101,660], index: 5, kind: output, shape index: {}]
  %s6 = sld [smem:[#allocation0]]
  $region53: #{mfcc_pallas.1} parent=0
    _
  %s8 = ssub.s32 1, %s6
  %s9 = scalar_select 0, %s8, %s6
  loop: start=0, step=1, limit=4
  $region2: #{mfcc_pallas.1} parent=0 // loop_pre_header
    _
  $region3: #{mfcc_pallas.1} parent=0 // loop_header
    %s11 = sphi 0, %s15
    %p12 = scmp.ge.s32.totalorder %s11, 4
    %s21 = sphi 0, %s23
    %s24 = sphi 0, %s21
    %s25 = sphi 0, %s24
    %s41 = sphi 0, %s25
    %s45 = sphi 0, %s45
    %s47 = sphi 0, %s45
    %s48 = sphi 0, %s47
    %s62 = sphi 0, %s48
    %s66 = sphi 0, %s66
    %s68 = sphi 0, %s66
    %s69 = sphi 0, %s68
    %s83 = sphi 0, %s69
    %s87 = sphi 0, %s87
    %s89 = sphi 0, %s87
    %s90 = sphi 0, %s89
    %s104 = sphi 0, %s90
    %s108 = sphi 0, %s108
    %s110 = sphi 0, %s108
    %s111 = sphi 0, %s110
    %s125 = sphi 0, %s111
    %s131 = sphi 0, %s133
    %s134 = sphi 0, %s131
    %s135 = sphi 0, %s134
    %s151 = sphi 0, %s135
  $region4: #{mfcc_pallas.1} parent=0 // loop_header_branch
    %14 = sbr.rel (%p12) target = $region8
  $region5: #{mfcc_pallas.1} parent=0 // loop_body
    %s16 = ssub.s32 %s11, 1
    %s17 = ssub.s32 %s11, 2
    %s18 = sadd.s32 %s11, 1
    %s19 = ssub.s32 %s11, %s18
    %p20 = scmp.eq.s32.totalorder %s19, 0
    %s22 = sadd.s32 %s21, 1
    %s23 = scalar_select %p20, %s21, %s22
    %p26 = pneg %p20
    %p27 = scmp.eq.s32.totalorder %s11, 1
    %p28 = por %p26, %p27
    %p29 = scmp.ne.s32.totalorder %s21, %s24
    %p30 = scmp.eq.s32.totalorder %s11, 0
    %p31 = por %p29, %p30
    %p32 = scmp.ne.s32.totalorder %s21, %s24
    %p33 = scmp.eq.s32.totalorder %s16, 1
    %p34 = por %p32, %p33
    %p35 = scmp.ne.s32.totalorder %s24, %s25
    %p36 = scmp.eq.s32.totalorder %s16, 0
    %p37 = por %p35, %p36
    %p38 = scmp.ne.s32.totalorder %s24, %s25
    %p39 = scmp.eq.s32.totalorder %s17, 1
    %p40 = por %p38, %p39
    %p42 = scmp.ne.s32.totalorder %s25, %s41
    %p43 = scmp.eq.s32.totalorder %s17, 0
    %p44 = por %p42, %p43
    %s46 = sadd.s32 %s45, 1
    %p49 = scmp.eq.s32.totalorder %s11, 1
    %p50 = scmp.ne.s32.totalorder %s45, %s47
    %p51 = scmp.eq.s32.totalorder %s11, 0
    %p52 = por %p50, %p51
    %p53 = scmp.ne.s32.totalorder %s45, %s47
    %p54 = scmp.eq.s32.totalorder %s16, 1
    %p55 = por %p53, %p54
    %p56 = scmp.ne.s32.totalorder %s47, %s48
    %p57 = scmp.eq.s32.totalorder %s16, 0
    %p58 = por %p56, %p57
    %p59 = scmp.ne.s32.totalorder %s47, %s48
    %p60 = scmp.eq.s32.totalorder %s17, 1
    %p61 = por %p59, %p60
    %p63 = scmp.ne.s32.totalorder %s48, %s62
    %p64 = scmp.eq.s32.totalorder %s17, 0
    %p65 = por %p63, %p64
    %s67 = sadd.s32 %s66, 1
    %p70 = scmp.eq.s32.totalorder %s11, 1
    %p71 = scmp.ne.s32.totalorder %s66, %s68
    %p72 = scmp.eq.s32.totalorder %s11, 0
    %p73 = por %p71, %p72
    %p74 = scmp.ne.s32.totalorder %s66, %s68
    %p75 = scmp.eq.s32.totalorder %s16, 1
    %p76 = por %p74, %p75
    %p77 = scmp.ne.s32.totalorder %s68, %s69
    %p78 = scmp.eq.s32.totalorder %s16, 0
    %p79 = por %p77, %p78
    %p80 = scmp.ne.s32.totalorder %s68, %s69
    %p81 = scmp.eq.s32.totalorder %s17, 1
    %p82 = por %p80, %p81
    %p84 = scmp.ne.s32.totalorder %s69, %s83
    %p85 = scmp.eq.s32.totalorder %s17, 0
    %p86 = por %p84, %p85
    %s88 = sadd.s32 %s87, 1
    %p91 = scmp.eq.s32.totalorder %s11, 1
    %p92 = scmp.ne.s32.totalorder %s87, %s89
    %p93 = scmp.eq.s32.totalorder %s11, 0
    %p94 = por %p92, %p93
    %p95 = scmp.ne.s32.totalorder %s87, %s89
    %p96 = scmp.eq.s32.totalorder %s16, 1
    %p97 = por %p95, %p96
    %p98 = scmp.ne.s32.totalorder %s89, %s90
    %p99 = scmp.eq.s32.totalorder %s16, 0
    %p100 = por %p98, %p99
    %p101 = scmp.ne.s32.totalorder %s89, %s90
    %p102 = scmp.eq.s32.totalorder %s17, 1
    %p103 = por %p101, %p102
    %p105 = scmp.ne.s32.totalorder %s90, %s104
    %p106 = scmp.eq.s32.totalorder %s17, 0
    %p107 = por %p105, %p106
    %s109 = sadd.s32 %s108, 1
    %p112 = scmp.eq.s32.totalorder %s11, 1
    %p113 = scmp.ne.s32.totalorder %s108, %s110
    %p114 = scmp.eq.s32.totalorder %s11, 0
    %p115 = por %p113, %p114
    %p116 = scmp.ne.s32.totalorder %s108, %s110
    %p117 = scmp.eq.s32.totalorder %s16, 1
    %p118 = por %p116, %p117
    %p119 = scmp.ne.s32.totalorder %s110, %s111
    %p120 = scmp.eq.s32.totalorder %s16, 0
    %p121 = por %p119, %p120
    %p122 = scmp.ne.s32.totalorder %s110, %s111
    %p123 = scmp.eq.s32.totalorder %s17, 1
    %p124 = por %p122, %p123
    %p126 = scmp.ne.s32.totalorder %s111, %s125
    %p127 = scmp.eq.s32.totalorder %s17, 0
    %p128 = por %p126, %p127
    %s129 = ssub.s32 %s11, %s18
    %p130 = scmp.eq.s32.totalorder %s129, 0
    %s132 = sadd.s32 %s131, 1
    %s133 = scalar_select %p130, %s131, %s132
    %p136 = pneg %p130
    %p137 = scmp.eq.s32.totalorder %s11, 1
    %p138 = por %p136, %p137
    %p139 = scmp.ne.s32.totalorder %s131, %s134
    %p140 = scmp.eq.s32.totalorder %s11, 0
    %p141 = por %p139, %p140
    %p142 = scmp.ne.s32.totalorder %s131, %s134
    %p143 = scmp.eq.s32.totalorder %s16, 1
    %p144 = por %p142, %p143
    %p145 = scmp.ne.s32.totalorder %s134, %s135
    %p146 = scmp.eq.s32.totalorder %s16, 0
    %p147 = por %p145, %p146
    %p148 = scmp.ne.s32.totalorder %s134, %s135
    %p149 = scmp.eq.s32.totalorder %s17, 1
    %p150 = por %p148, %p149
    %p152 = scmp.ne.s32.totalorder %s135, %s151
    %p153 = scmp.eq.s32.totalorder %s17, 0
    %p154 = por %p152, %p153
    %p155 = scmp.le.s32.totalorder 1, %s11
    %p156 = scmp.lt.s32.totalorder %s11, 3
    %p157 = pnand %p155, %p156
    %p158 = pneg %p157
    // Predicated region
    $region9: #{mfcc_pallas.1} parent=5 // pred_check
      _
    $region10: #{mfcc_pallas.1} parent=5 // pred_check_branch
      %160 = sbr.rel (%p157) target = $region12
    $region11: #{mfcc_pallas.1} parent=5 // pred_region
      %s161 = ssub.s32 %s11, 1
      // Predicated region
      $region13: #{mfcc_pallas.1} parent=11 // pred_check
        %p162 = pneg %p58
      $region14: #{mfcc_pallas.1} parent=11 // pred_check_branch
        %164 = sbr.rel (%p162) target = $region16
      $region15: #{mfcc_pallas.1} parent=11 // pred_region
        _
      $region16: #{mfcc_pallas.1} parent=11 // pred_fallthru
        _
      // Predicated region
      $region17: #{mfcc_pallas.1} parent=11 // pred_check
        %p165 = pneg %p79
      $region18: #{mfcc_pallas.1} parent=11 // pred_check_branch
        %167 = sbr.rel (%p165) target = $region20
      $region19: #{mfcc_pallas.1} parent=11 // pred_region
        _
      $region20: #{mfcc_pallas.1} parent=11 // pred_fallthru
        _
      // Predicated region
      $region21: #{mfcc_pallas.1} parent=11 // pred_check
        %p168 = pneg %p100
      $region22: #{mfcc_pallas.1} parent=11 // pred_check_branch
        %170 = sbr.rel (%p168) target = $region24
      $region23: #{mfcc_pallas.1} parent=11 // pred_region
        _
      $region24: #{mfcc_pallas.1} parent=11 // pred_fallthru
        _
      // Predicated region
      $region25: #{mfcc_pallas.1} parent=11 // pred_check
        %p171 = pneg %p121
      $region26: #{mfcc_pallas.1} parent=11 // pred_check_branch
        %173 = sbr.rel (%p171) target = $region28
      $region27: #{mfcc_pallas.1} parent=11 // pred_region
        _
      $region28: #{mfcc_pallas.1} parent=11 // pred_fallthru
        _
    $region12: #{mfcc_pallas.1} parent=5 // pred_fallthru
      _
    %p174 = scmp.lt.s32.totalorder %s11, 2
    // Predicated region
    $region29: #{mfcc_pallas.1} parent=5 // pred_check
      %p175 = pneg %p174
    $region30: #{mfcc_pallas.1} parent=5 // pred_check_branch
      %177 = sbr.rel (%p175) target = $region32
    $region31: #{mfcc_pallas.1} parent=5 // pred_region
      // Predicated region
      $region33: #{mfcc_pallas.1} parent=31 // pred_check
        %p178 = pneg %p31
      $region34: #{mfcc_pallas.1} parent=31 // pred_check_branch
        %180 = sbr.rel (%p178) target = $region36
      $region35: #{mfcc_pallas.1} parent=31 // pred_region
        %p181 = scmp.lt.s32.totalorder %s11, 1
        %s182 = scalar_select %p181, %s11, 1
        %s183 = smul.addr %s182, 26
        %s184 = smul.addr %s183, 8
        %s185 = scalar_lea.vmem %s0, %s184
      $region36: #{mfcc_pallas.1} parent=31 // pred_fallthru
        _
    $region32: #{mfcc_pallas.1} parent=5 // pred_fallthru
      _
    %p186 = scmp.le.s32.totalorder 1, %s11
    %p187 = scmp.lt.s32.totalorder %s11, 3
    %p188 = pnand %p186, %p187
    %p189 = pneg %p188
    // Predicated region
    $region37: #{mfcc_pallas.1} parent=5 // pred_check
      _
    $region38: #{mfcc_pallas.1} parent=5 // pred_check_branch
      %191 = sbr.rel (%p188) target = $region40
    $region39: #{mfcc_pallas.1} parent=5 // pred_region
      %s192 = ssub.s32 %s11, 1
      %p193 = scmp.lt.s32.totalorder %s16, 1
      %s194 = scalar_select %p193, %s16, 1
      %s195 = smul.addr %s194, 26
      %s196 = smul.addr %s195, 8
      %s197 = scalar_lea.vmem %s0, %s196
      %p198 = pneg %p37
      %p199 = pneg %p34
      %p200 = pneg %p58
      %p201 = pneg %p55
      %p202 = pneg %p79
      %p203 = pneg %p76
      %p204 = pneg %p100
      %p205 = pneg %p97
      %p206 = pneg %p121
      %p207 = pneg %p118
      %p208 = pneg %p147
      %p209 = pneg %p144
      %p210 = scmp.lt.s32.totalorder %s16, 1
      %s211 = scalar_select %p210, %s16, 1
      %s212 = smul.addr %s211, 78
      %s213 = smul.addr %s212, 8
      %s214 = scalar_lea.vmem %s5, %s213
      %p215 = scmp.lt.s32.totalorder %s16, 1
      %s216 = scalar_select %p215, %s16, 1
      %s217 = smul.addr %s216, 26
      %s218 = smul.addr %s217, 8
      %s219 = scalar_lea.vmem %s0, %s218
      %p220 = scmp.lt.s32.totalorder %s16, 1
      %s221 = scalar_select %p220, %s16, 1
      %s222 = smul.addr %s221, 78
      %s223 = smul.addr %s222, 8
      %s224 = scalar_lea.vmem %s5, %s223
      %v226 = vld [vmem:[%s219] sm:$0xff]
      %v227 = vld [vmem:[%s219 + $0x8] sm:$0xff]
      %v228 = vld [vmem:[%s219 + $0x10] sm:$0xff]
      %v229 = vld [vmem:[%s219 + $0x18] sm:$0xff]
      %v230 = vld [vmem:[%s219 + $0x20] sm:$0xff]
      %v231 = vld [vmem:[%s219 + $0x28] sm:$0xff]
      %v232 = vld [vmem:[%s219 + $0x30] sm:$0xff]
      %v233 = vld [vmem:[%s219 + $0x38] sm:$0xff]
      %v234 = vld [vmem:[%s219 + $0x40] sm:$0xff]
      %v235 = vld [vmem:[%s219 + $0x48] sm:$0xff]
      %v236 = vld [vmem:[%s219 + $0x50] sm:$0xff]
      %v237 = vld [vmem:[%s219 + $0x58] sm:$0xff]
      %v238 = vld [vmem:[%s219 + $0x60] sm:$0xff]
      %v239 = vld [vmem:[%s219 + $0x68] sm:$0xff]
      %v240 = vld [vmem:[%s219 + $0x70] sm:$0xff]
      %v241 = vld [vmem:[%s219 + $0x78] sm:$0xff]
      %v242 = vld [vmem:[%s219 + $0x80] sm:$0xff]
      %v243 = vld [vmem:[%s219 + $0x88] sm:$0xff]
      %v244 = vld [vmem:[%s219 + $0x90] sm:$0xff]
      %v245 = vld [vmem:[%s219 + $0x98] sm:$0xff]
      %v246 = vld [vmem:[%s219 + $0xa0] sm:$0xff]
      %v247 = vld [vmem:[%s219 + $0xa8] sm:$0xff]
      %v248 = vld [vmem:[%s219 + $0xb0] sm:$0xff]
      %v249 = vld [vmem:[%s219 + $0xb8] sm:$0xff]
      %v250 = vld [vmem:[%s219 + $0xc0] sm:$0x7f]
      %v251 = vld [vmem:[%s219 + $0xc8] sm:$0x7f]
      %v252 = vpack.c.bf16 %v228, %v226
      %v253 = vpack.c.bf16 %v229, %v227
      %v254 = vpack.c.bf16 %v232, %v230
      %v255 = vpack.c.bf16 %v233, %v231
      %v256 = vpack.c.bf16 %v236, %v234
      %v257 = vpack.c.bf16 %v237, %v235
      %v258 = vpack.c.bf16 %v240, %v238
      %v259 = vpack.c.bf16 %v241, %v239
      %v260 = vpack.c.bf16 %v244, %v242
      %v261 = vpack.c.bf16 %v245, %v243
      %v262 = vpack.c.bf16 %v248, %v246
      %v263 = vpack.c.bf16 %v249, %v247
      %v264 = vpack.c.bf16 %v250, %v250
      %v265 = vpack.c.bf16 %v251, %v251
      %v266 = vld [vmem:[%s1] sm:$0xff]
      %v267 = vld [vmem:[%s1 + $0x8] sm:$0xff]
      %v268 = vld [vmem:[%s1 + $0x10] sm:$0xff]
      %v269 = vld [vmem:[%s1 + $0x18] sm:$0xff]
      %v270 = vld [vmem:[%s1 + $0x20] sm:$0xff]
      %v271 = vld [vmem:[%s1 + $0x28] sm:$0xff]
      %v272 = vld [vmem:[%s1 + $0x30] sm:$0xff]
      %v273 = vld [vmem:[%s1 + $0x38] sm:$0xff]
      %v274 = vld [vmem:[%s1 + $0x40] sm:$0xff]
      %v275 = vld [vmem:[%s1 + $0x48] sm:$0xff]
      %v276 = vld [vmem:[%s1 + $0x50] sm:$0xff]
      %v277 = vld [vmem:[%s1 + $0x58] sm:$0xff]
      %v278 = vld [vmem:[%s1 + $0x60] sm:$0xff]
      %v279 = vld [vmem:[%s1 + $0x68] sm:$0xff]
      %v280 = vld [vmem:[%s1 + $0x70] sm:$0xff]
      %v281 = vld [vmem:[%s1 + $0x78] sm:$0xff]
      %v282 = vld [vmem:[%s1 + $0x80] sm:$0xff]
      %v283 = vld [vmem:[%s1 + $0x88] sm:$0xff]
      %v284 = vld [vmem:[%s1 + $0x90] sm:$0xff]
      %v285 = vld [vmem:[%s1 + $0x98] sm:$0xff]
      %v286 = vld [vmem:[%s1 + $0xa0] sm:$0xff]
      %v287 = vld [vmem:[%s1 + $0xa8] sm:$0xff]
      %v288 = vld [vmem:[%s1 + $0xb0] sm:$0xff]
      %v289 = vld [vmem:[%s1 + $0xb8] sm:$0xff]
      %v290 = vld [vmem:[%s1 + $0xc0] sm:$0xff]
      %v291 = vld [vmem:[%s1 + $0xc8] sm:$0xff]
      %v292 = vld [vmem:[%s1 + $0xd0] sm:$0xff]
      %v293 = vld [vmem:[%s1 + $0xd8] sm:$0xff]
      %v294 = vld [vmem:[%s1 + $0xe0] sm:$0xff]
      %v295 = vld [vmem:[%s1 + $0xe8] sm:$0xff]
      %v296 = vld [vmem:[%s1 + $0xf0] sm:$0xff]
      %v297 = vld [vmem:[%s1 + $0xf8] sm:$0xff]
      %v298 = vld [vmem:[%s1 + $0x100] sm:$0xff]
      %v299 = vld [vmem:[%s1 + $0x108] sm:$0xff]
      %v300 = vld [vmem:[%s1 + $0x110] sm:$0xff]
      %v301 = vld [vmem:[%s1 + $0x118] sm:$0xff]
      %v302 = vld [vmem:[%s1 + $0x120] sm:$0xff]
      %v303 = vld [vmem:[%s1 + $0x128] sm:$0xff]
      %v304 = vld [vmem:[%s1 + $0x130] sm:$0xff]
      %v305 = vld [vmem:[%s1 + $0x138] sm:$0xff]
      %v306 = vld [vmem:[%s1 + $0x140] sm:$0xff]
      %v307 = vld [vmem:[%s1 + $0x148] sm:$0xff]
      %v308 = vld [vmem:[%s1 + $0x150] sm:$0xff]
      %v309 = vld [vmem:[%s1 + $0x158] sm:$0xff]
      %v310 = vld [vmem:[%s1 + $0x160] sm:$0xff]
      %v311 = vld [vmem:[%s1 + $0x168] sm:$0xff]
      %v312 = vld [vmem:[%s1 + $0x170] sm:$0xff]
      %v313 = vld [vmem:[%s1 + $0x178] sm:$0xff]
      %v314 = vld [vmem:[%s1 + $0x180] sm:$0xff]
      %v315 = vld [vmem:[%s1 + $0x188] sm:$0xff]
      %v316 = vld [vmem:[%s1 + $0x190] sm:$0xff]
      %v317 = vld [vmem:[%s1 + $0x198] sm:$0xff]
      %v318 = vld [vmem:[%s1 + $0x1a0] sm:$0xff]
      %v319 = vld [vmem:[%s1 + $0x1a8] sm:$0xff]
      %v320 = vld [vmem:[%s1 + $0x1b0] sm:$0xff]
      %v321 = vld [vmem:[%s1 + $0x1b8] sm:$0xff]
      %v322 = vld [vmem:[%s1 + $0x1c0] sm:$0xff]
      %v323 = vld [vmem:[%s1 + $0x1c8] sm:$0xff]
      %v324 = vld [vmem:[%s1 + $0x1d0] sm:$0xff]
      %v325 = vld [vmem:[%s1 + $0x1d8] sm:$0xff]
      %v326 = vld [vmem:[%s1 + $0x1e0] sm:$0xff]
      %v327 = vld [vmem:[%s1 + $0x1e8] sm:$0xff]
      %v328 = vld [vmem:[%s1 + $0x1f0] sm:$0xff]
      %v329 = vld [vmem:[%s1 + $0x1f8] sm:$0xff]
      %v330 = vld [vmem:[%s1 + $0x200] sm:$0xff]
      %v331 = vld [vmem:[%s1 + $0x208] sm:$0xff]
      %v332 = vld [vmem:[%s1 + $0x210] sm:$0xff]
      %v333 = vld [vmem:[%s1 + $0x218] sm:$0xff]
      %v334 = vld [vmem:[%s1 + $0x220] sm:$0xff]
      %v335 = vld [vmem:[%s1 + $0x228] sm:$0xff]
      %v336 = vld [vmem:[%s1 + $0x230] sm:$0xff]
      %v337 = vld [vmem:[%s1 + $0x238] sm:$0xff]
      %v338 = vld [vmem:[%s1 + $0x240] sm:$0xff]
      %v339 = vld [vmem:[%s1 + $0x248] sm:$0xff]
      %v340 = vld [vmem:[%s1 + $0x250] sm:$0xff]
      %v341 = vld [vmem:[%s1 + $0x258] sm:$0xff]
      %v342 = vld [vmem:[%s1 + $0x260] sm:$0xff]
      %v343 = vld [vmem:[%s1 + $0x268] sm:$0xff]
      %v344 = vld [vmem:[%s1 + $0x270] sm:$0xff]
      %v345 = vld [vmem:[%s1 + $0x278] sm:$0xff]
      %vm346 = vsmask.f32 7424
      %v348 = vshrl.u32 %v252, 16
      %v350 = vshll.u32 %v252, 16
      %v352 = vrot.slane %v350, 1
      %v353 = vor.u32 %v348, %v352
      %v355 = vshll.u32 %v254, 16
      %v357 = vrot.slane %v355, 1
      %v358 = vsel %vm346, %v353, %v357
      %v360 = vshrl.u32 %v253, 16
      %v362 = vshll.u32 %v253, 16
      %v364 = vrot.slane %v362, 1
      %v365 = vor.u32 %v360, %v364
      %v367 = vshll.u32 %v255, 16
      %v369 = vrot.slane %v367, 1
      %v370 = vsel %vm346, %v365, %v369
      %v371 = vshrl.u32 %v254, 16
      %v373 = vor.u32 %v371, %v357
      %v375 = vshll.u32 %v256, 16
      %v377 = vrot.slane %v375, 1
      %v378 = vsel %vm346, %v373, %v377
      %v379 = vshrl.u32 %v255, 16
      %v381 = vor.u32 %v379, %v369
      %v383 = vshll.u32 %v257, 16
      %v385 = vrot.slane %v383, 1
      %v386 = vsel %vm346, %v381, %v385
      %v387 = vshrl.u32 %v256, 16
      %v389 = vor.u32 %v387, %v377
      %v391 = vshll.u32 %v258, 16
      %v393 = vrot.slane %v391, 1
      %v394 = vsel %vm346, %v389, %v393
      %v395 = vshrl.u32 %v257, 16
      %v397 = vor.u32 %v395, %v385
      %v399 = vshll.u32 %v259, 16
      %v401 = vrot.slane %v399, 1
      %v402 = vsel %vm346, %v397, %v401
      %v403 = vshrl.u32 %v258, 16
      %v405 = vor.u32 %v403, %v393
      %v407 = vshll.u32 %v260, 16
      %v409 = vrot.slane %v407, 1
      %v410 = vsel %vm346, %v405, %v409
      %v411 = vshrl.u32 %v259, 16
      %v413 = vor.u32 %v411, %v401
      %v415 = vshll.u32 %v261, 16
      %v417 = vrot.slane %v415, 1
      %v418 = vsel %vm346, %v413, %v417
      %v419 = vshrl.u32 %v260, 16
      %v421 = vor.u32 %v419, %v409
      %v423 = vshll.u32 %v262, 16
      %v425 = vrot.slane %v423, 1
      %v426 = vsel %vm346, %v421, %v425
      %v427 = vshrl.u32 %v261, 16
      %v429 = vor.u32 %v427, %v417
      %v431 = vshll.u32 %v263, 16
      %v433 = vrot.slane %v431, 1
      %v434 = vsel %vm346, %v429, %v433
      %v435 = vshrl.u32 %v262, 16
      %v437 = vor.u32 %v435, %v425
      %v439 = vshll.u32 %v264, 16
      %v441 = vrot.slane %v439, 1
      %v442 = vsel %vm346, %v437, %v441
      %v443 = vshrl.u32 %v263, 16
      %v445 = vor.u32 %v443, %v433
      %v447 = vshll.u32 %v265, 16
      %v449 = vrot.slane %v447, 1
      %v450 = vsel %vm346, %v445, %v449
      %v451 = vshrl.u32 %v264, 16
      %v453 = vor.u32 %v451, %v441
      %v454 = vshrl.u32 %v265, 16
      %v456 = vor.u32 %v454, %v449
      %v504 = vunpack.c.l.b16 %v306
      %v505 = vunpack.c.h.b16 %v306
      %v506 = vunpack.c.l.b16 %v307
      %v507 = vunpack.c.h.b16 %v307
      %v508 = vunpack.c.l.b16 %v308
      %v509 = vunpack.c.h.b16 %v308
      %v510 = vunpack.c.l.b16 %v309
      %v511 = vunpack.c.h.b16 %v309
      %v512 = vunpack.c.l.b16 %v310
      %v513 = vunpack.c.h.b16 %v310
      %v514 = vunpack.c.l.b16 %v311
      %v515 = vunpack.c.h.b16 %v311
      %v516 = vunpack.c.l.b16 %v312
      %v517 = vunpack.c.h.b16 %v312
      %v518 = vunpack.c.l.b16 %v313
      %v519 = vunpack.c.h.b16 %v313
      %v520 = vunpack.c.l.b16 %v314
      %v521 = vunpack.c.h.b16 %v314
      %v522 = vunpack.c.l.b16 %v315
      %v523 = vunpack.c.h.b16 %v315
      %v524 = vunpack.c.l.b16 %v316
      %v525 = vunpack.c.h.b16 %v316
      %v526 = vunpack.c.l.b16 %v317
      %v527 = vunpack.c.h.b16 %v317
      %v528 = vunpack.c.l.b16 %v318
      %v529 = vunpack.c.h.b16 %v318
      %v530 = vunpack.c.l.b16 %v319
      %v531 = vunpack.c.h.b16 %v319
      %v532 = vunpack.c.l.b16 %v320
      %v533 = vunpack.c.h.b16 %v320
      %v534 = vunpack.c.l.b16 %v321
      %v535 = vunpack.c.h.b16 %v321
      %v536 = vunpack.c.l.b16 %v322
      %v537 = vunpack.c.h.b16 %v322
      %v538 = vunpack.c.l.b16 %v323
      %v539 = vunpack.c.h.b16 %v323
      %v540 = vunpack.c.l.b16 %v324
      %v541 = vunpack.c.h.b16 %v324
      %v542 = vunpack.c.l.b16 %v325
      %v543 = vunpack.c.h.b16 %v325
      %v544 = vunpack.c.l.b16 %v326
      %v545 = vunpack.c.h.b16 %v326
      %v546 = vunpack.c.l.b16 %v327
      %v547 = vunpack.c.h.b16 %v327
      %v548 = vunpack.c.l.b16 %v328
      %v549 = vunpack.c.h.b16 %v328
      %v550 = vunpack.c.l.b16 %v329
      %v551 = vunpack.c.h.b16 %v329
      %v552 = vunpack.c.l.b16 %v330
      %v553 = vunpack.c.h.b16 %v330
      %v554 = vunpack.c.l.b16 %v331
      %v555 = vunpack.c.h.b16 %v331
      %v556 = vunpack.c.l.b16 %v332
      %v557 = vunpack.c.h.b16 %v332
      %v558 = vunpack.c.l.b16 %v333
      %v559 = vunpack.c.h.b16 %v333
      %v560 = vunpack.c.l.b16 %v334
      %v561 = vunpack.c.h.b16 %v334
      %v562 = vunpack.c.l.b16 %v335
      %v563 = vunpack.c.h.b16 %v335
      %v564 = vunpack.c.l.b16 %v336
      %v565 = vunpack.c.h.b16 %v336
      %v566 = vunpack.c.l.b16 %v337
      %v567 = vunpack.c.h.b16 %v337
      %v568 = vunpack.c.l.b16 %v338
      %v569 = vunpack.c.h.b16 %v338
      %v570 = vunpack.c.l.b16 %v339
      %v571 = vunpack.c.h.b16 %v339
      %v572 = vunpack.c.l.b16 %v340
      %v573 = vunpack.c.h.b16 %v340
      %v574 = vunpack.c.l.b16 %v341
      %v575 = vunpack.c.h.b16 %v341
      %v576 = vunpack.c.l.b16 %v342
      %v577 = vunpack.c.h.b16 %v342
      %v578 = vunpack.c.l.b16 %v343
      %v579 = vunpack.c.h.b16 %v343
      %v580 = vunpack.c.l.b16 %v344
      %v581 = vunpack.c.h.b16 %v344
      %v582 = vunpack.c.l.b16 %v345
      %v583 = vunpack.c.h.b16 %v345
      %v584 = vpack.c.b16 %v508, %v504
      %v585 = vpack.c.b16 %v509, %v505
      %v586 = vpack.c.b16 %v510, %v506
      %v587 = vpack.c.b16 %v511, %v507
      %v588 = vpack.c.b16 %v516, %v512
      %v589 = vpack.c.b16 %v517, %v513
      %v590 = vpack.c.b16 %v518, %v514
      %v591 = vpack.c.b16 %v519, %v515
      %v592 = vpack.c.b16 %v524, %v520
      %v593 = vpack.c.b16 %v525, %v521
      %v594 = vpack.c.b16 %v526, %v522
      %v595 = vpack.c.b16 %v527, %v523
      %v596 = vpack.c.b16 %v532, %v528
      %v597 = vpack.c.b16 %v533, %v529
      %v598 = vpack.c.b16 %v534, %v530
      %v599 = vpack.c.b16 %v535, %v531
      %v600 = vpack.c.b16 %v540, %v536
      %v601 = vpack.c.b16 %v541, %v537
      %v602 = vpack.c.b16 %v542, %v538
      %v603 = vpack.c.b16 %v543, %v539
      %v604 = vpack.c.b16 %v548, %v544
      %v605 = vpack.c.b16 %v549, %v545
      %v606 = vpack.c.b16 %v550, %v546
      %v607 = vpack.c.b16 %v551, %v547
      %v608 = vpack.c.b16 %v556, %v552
      %v609 = vpack.c.b16 %v557, %v553
      %v610 = vpack.c.b16 %v558, %v554
      %v611 = vpack.c.b16 %v559, %v555
      %v612 = vpack.c.b16 %v564, %v560
      %v613 = vpack.c.b16 %v565, %v561
      %v614 = vpack.c.b16 %v566, %v562
      %v615 = vpack.c.b16 %v567, %v563
      %v616 = vpack.c.b16 %v572, %v568
      %v617 = vpack.c.b16 %v573, %v569
      %v618 = vpack.c.b16 %v574, %v570
      %v619 = vpack.c.b16 %v575, %v571
      %v620 = vpack.c.b16 %v580, %v576
      %v621 = vpack.c.b16 %v581, %v577
      %v622 = vpack.c.b16 %v582, %v578
      %v623 = vpack.c.b16 %v583, %v579
      %vm664 = vcmask 261120
      %v666 = vsel %vm664, %v370, 0
      %v669 = vsel %vm664, %v386, 0
      %v672 = vsel %vm664, %v402, 0
      %v675 = vsel %vm664, %v418, 0
      %v678 = vsel %vm664, %v434, 0
      %v681 = vsel %vm664, %v450, 0
      %v684 = vsel %vm664, %v456, 0
      %686 = vmatprep.subr.bf16.mxu0 %v585
      %687 = vmatpush1.bf16.msra.mxu0 %v584
      %688 = vmatprep.subr.bf16.mxu0 %v589
      %689 = vmatpush1.bf16.msra.mxu0 %v588
      %690 = vmatprep.subr.bf16.mxu0 %v593
      %691 = vmatpush1.bf16.msra.mxu0 %v592
      %692 = vmatprep.subr.bf16.mxu0 %v597
      %693 = vmatpush1.bf16.msra.mxu0 %v596
      %694 = vmatprep.subr.bf16.mxu0 %v601
      %695 = vmatpush1.bf16.msra.mxu0 %v600
      %696 = vmatprep.subr.bf16.mxu0 %v605
      %697 = vmatpush1.bf16.msra.mxu0 %v604
      %698 = vmatprep.subr.bf16.mxu0 %v609
      %699 = vmatpush1.bf16.msra.mxu0 %v608
      %700 = vmatprep.subr.bf16.mxu0 %v613
      %701 = vmatpush1.bf16.msra.mxu0 %v612
      %702 = vmatprep.subr.bf16.mxu0 %v617
      %703 = vmatpush1.bf16.msra.mxu0 %v616
      %704 = vmatprep.subr.bf16.mxu0 %v621
      %705 = vmatpush1.bf16.msra.mxu0 %v620
      %706 = vmatprep.subr.bf16.mxu0 0
      %707 = vmatpush1.bf16.msra.mxu0 0
      %708 = vmatprep.subr.bf16.mxu0 0
      %709 = vmatpush1.bf16.msra.mxu0 0
      %710 = vmatprep.subr.bf16.mxu0 0
      %711 = vmatpush1.bf16.msra.mxu0 0
      %712 = vmatprep.subr.bf16.mxu0 0
      %713 = vmatpush1.bf16.msra.mxu0 0
      %714 = vmatprep.subr.bf16.mxu0 0
      %715 = vmatpush1.bf16.msra.mxu0 0
      %716 = vmatprep.subr.bf16.mxu0 0
      %717 = vmatpush1.bf16.msra.mxu0 0
      %718 = vmatprep.mubr.bf16.mxu0 %v666
      %719 = vmatmul.mubr.bf16.gmra.mrb[0].mxu0 %v358
      %v720 = vpop.f32.mrb[0].mxu0
      %v721 = vadd.f32 0.0, %v720
      %v722 = vpop.f32.mrb[0].mxu0
      %v723 = vadd.f32 0.0, %v722
      %v724 = vpop.f32.mrb[0].mxu0
      %v725 = vadd.f32 0.0, %v724
      %v726 = vpop.f32.mrb[0].mxu0
      %v727 = vadd.f32 0.0, %v726
      %728 = vmatprep.mubr.bf16.mxu0 %v669
      %729 = vmatmul.mubr.bf16.gmra.mrb[0].mxu0 %v378
      %v730 = vpop.f32.mrb[0].mxu0
      %v731 = vadd.f32 0.0, %v730
      %v732 = vpop.f32.mrb[0].mxu0
      %v733 = vadd.f32 0.0, %v732
      %v734 = vpop.f32.mrb[0].mxu0
      %v735 = vadd.f32 0.0, %v734
      %v736 = vpop.f32.mrb[0].mxu0
      %v737 = vadd.f32 0.0, %v736
      %738 = vmatprep.mubr.bf16.mxu0 %v672
      %739 = vmatmul.mubr.bf16.gmra.mrb[0].mxu0 %v394
      %v740 = vpop.f32.mrb[0].mxu0
      %v741 = vadd.f32 0.0, %v740
      %v742 = vpop.f32.mrb[0].mxu0
      %v743 = vadd.f32 0.0, %v742
      %v744 = vpop.f32.mrb[0].mxu0
      %v745 = vadd.f32 0.0, %v744
      %v746 = vpop.f32.mrb[0].mxu0
      %v747 = vadd.f32 0.0, %v746
      %748 = vmatprep.mubr.bf16.mxu0 %v675
      %749 = vmatmul.mubr.bf16.gmra.mrb[0].mxu0 %v410
      %v750 = vpop.f32.mrb[0].mxu0
      %v751 = vadd.f32 0.0, %v750
      %v752 = vpop.f32.mrb[0].mxu0
      %v753 = vadd.f32 0.0, %v752
      %v754 = vpop.f32.mrb[0].mxu0
      %v755 = vadd.f32 0.0, %v754
      %v756 = vpop.f32.mrb[0].mxu0
      %v757 = vadd.f32 0.0, %v756
      %758 = vmatprep.mubr.bf16.mxu0 %v678
      %759 = vmatmul.mubr.bf16.gmra.mrb[0].mxu0 %v426
      %v760 = vpop.f32.mrb[0].mxu0
      %v761 = vadd.f32 0.0, %v760
      %v762 = vpop.f32.mrb[0].mxu0
      %v763 = vadd.f32 0.0, %v762
      %v764 = vpop.f32.mrb[0].mxu0
      %v765 = vadd.f32 0.0, %v764
      %v766 = vpop.f32.mrb[0].mxu0
      %v767 = vadd.f32 0.0, %v766
      %768 = vmatprep.mubr.bf16.mxu0 %v681
      %769 = vmatmul.mubr.bf16.gmra.mrb[0].mxu0 %v442
      %v770 = vpop.f32.mrb[0].mxu0
      %v771 = vadd.f32 0.0, %v770
      %v772 = vpop.f32.mrb[0].mxu0
      %v773 = vadd.f32 0.0, %v772
      %v774 = vpop.f32.mrb[0].mxu0
      %v775 = vadd.f32 0.0, %v774
      %v776 = vpop.f32.mrb[0].mxu0
      %v777 = vadd.f32 0.0, %v776
      %778 = vmatprep.mubr.bf16.mxu0 %v684
      %779 = vmatmul.mubr.bf16.gmra.mrb[0].mxu0 %v453
      %v780 = vpop.f32.mrb[0].mxu0
      %v781 = vadd.f32 0.0, %v780
      %v782 = vpop.f32.mrb[0].mxu0
      %v783 = vadd.f32 0.0, %v782
      %v784 = vpop.f32.mrb[0].mxu0
      %v785 = vpop.f32.mrb[0].mxu0
      %786 = vdwg.mxu0
      %787 = vmatprep.subr.bf16.mxu0 %v587
      %788 = vmatpush1.bf16.msra.mxu0 %v586
      %789 = vmatprep.subr.bf16.mxu0 %v591
      %790 = vmatpush1.bf16.msra.mxu0 %v590
      %791 = vmatprep.subr.bf16.mxu0 %v595
      %792 = vmatpush1.bf16.msra.mxu0 %v594
      %793 = vmatprep.subr.bf16.mxu0 %v599
      %794 = vmatpush1.bf16.msra.mxu0 %v598
      %795 = vmatprep.subr.bf16.mxu0 %v603
      %796 = vmatpush1.bf16.msra.mxu0 %v602
      %797 = vmatprep.subr.bf16.mxu0 %v607
      %798 = vmatpush1.bf16.msra.mxu0 %v606
      %799 = vmatprep.subr.bf16.mxu0 %v611
      %800 = vmatpush1.bf16.msra.mxu0 %v610
      %801 = vmatprep.subr.bf16.mxu0 %v615
      %802 = vmatpush1.bf16.msra.mxu0 %v614
      %803 = vmatprep.subr.bf16.mxu0 %v619
      %804 = vmatpush1.bf16.msra.mxu0 %v618
      %805 = vmatprep.subr.bf16.mxu0 %v623
      %806 = vmatpush1.bf16.msra.mxu0 %v622
      %807 = vmatprep.subr.bf16.mxu0 0
      %808 = vmatpush1.bf16.msra.mxu0 0
      %809 = vmatprep.subr.bf16.mxu0 0
      %810 = vmatpush1.bf16.msra.mxu0 0
      %811 = vmatprep.subr.bf16.mxu0 0
      %812 = vmatpush1.bf16.msra.mxu0 0
      %813 = vmatprep.subr.bf16.mxu0 0
      %814 = vmatpush1.bf16.msra.mxu0 0
      %815 = vmatprep.subr.bf16.mxu0 0
      %816 = vmatpush1.bf16.msra.mxu0 0
      %817 = vmatprep.subr.bf16.mxu0 0
      %818 = vmatpush1.bf16.msra.mxu0 0
      %819 = vmatprep.mubr.bf16.mxu0 %v666
      %820 = vmatmul.mubr.bf16.gmra.mrb[0].mxu0 %v358
      %v821 = vpop.f32.mrb[0].mxu0
      %v822 = vadd.f32 0.0, %v821
      %v823 = vpop.f32.mrb[0].mxu0
      %v824 = vadd.f32 0.0, %v823
      %v825 = vpop.f32.mrb[0].mxu0
      %v826 = vadd.f32 0.0, %v825
      %v827 = vpop.f32.mrb[0].mxu0
      %v828 = vadd.f32 0.0, %v827
      %829 = vmatprep.mubr.bf16.mxu0 %v669
      %830 = vmatmul.mubr.bf16.gmra.mrb[0].mxu0 %v378
      %v831 = vpop.f32.mrb[0].mxu0
      %v832 = vadd.f32 0.0, %v831
      %v833 = vpop.f32.mrb[0].mxu0
      %v834 = vadd.f32 0.0, %v833
      %v835 = vpop.f32.mrb[0].mxu0
      %v836 = vadd.f32 0.0, %v835
      %v837 = vpop.f32.mrb[0].mxu0
      %v838 = vadd.f32 0.0, %v837
      %839 = vmatprep.mubr.bf16.mxu0 %v672
      %840 = vmatmul.mubr.bf16.gmra.mrb[0].mxu0 %v394
      %v841 = vpop.f32.mrb[0].mxu0
      %v842 = vadd.f32 0.0, %v841
      %v843 = vpop.f32.mrb[0].mxu0
      %v844 = vadd.f32 0.0, %v843
      %v845 = vpop.f32.mrb[0].mxu0
      %v846 = vadd.f32 0.0, %v845
      %v847 = vpop.f32.mrb[0].mxu0
      %v848 = vadd.f32 0.0, %v847
      %849 = vmatprep.mubr.bf16.mxu0 %v675
      %850 = vmatmul.mubr.bf16.gmra.mrb[0].mxu0 %v410
      %v851 = vpop.f32.mrb[0].mxu0
      %v852 = vadd.f32 0.0, %v851
      %v853 = vpop.f32.mrb[0].mxu0
      %v854 = vadd.f32 0.0, %v853
      %v855 = vpop.f32.mrb[0].mxu0
      %v856 = vadd.f32 0.0, %v855
      %v857 = vpop.f32.mrb[0].mxu0
      %v858 = vadd.f32 0.0, %v857
      %859 = vmatprep.mubr.bf16.mxu0 %v678
      %860 = vmatmul.mubr.bf16.gmra.mrb[0].mxu0 %v426
      %v861 = vpop.f32.mrb[0].mxu0
      %v862 = vadd.f32 0.0, %v861
      %v863 = vpop.f32.mrb[0].mxu0
      %v864 = vadd.f32 0.0, %v863
      %v865 = vpop.f32.mrb[0].mxu0
      %v866 = vadd.f32 0.0, %v865
      %v867 = vpop.f32.mrb[0].mxu0
      %v868 = vadd.f32 0.0, %v867
      %869 = vmatprep.mubr.bf16.mxu0 %v681
      %870 = vmatmul.mubr.bf16.gmra.mrb[0].mxu0 %v442
      %v871 = vpop.f32.mrb[0].mxu0
      %v872 = vadd.f32 0.0, %v871
      %v873 = vpop.f32.mrb[0].mxu0
      %v874 = vadd.f32 0.0, %v873
      %v875 = vpop.f32.mrb[0].mxu0
      %v876 = vadd.f32 0.0, %v875
      %v877 = vpop.f32.mrb[0].mxu0
      %v878 = vadd.f32 0.0, %v877
      %879 = vmatprep.mubr.bf16.mxu0 %v684
      %880 = vmatmul.mubr.bf16.gmra.mrb[0].mxu0 %v453
      %v881 = vpop.f32.mrb[0].mxu0
      %v882 = vadd.f32 0.0, %v881
      %v883 = vpop.f32.mrb[0].mxu0
      %v884 = vadd.f32 0.0, %v883
      %v885 = vpop.f32.mrb[0].mxu0
      %v886 = vpop.f32.mrb[0].mxu0
      %887 = vdwg.mxu0
      %v928 = vunpack.c.l.b16 %v266
      %v929 = vunpack.c.h.b16 %v266
      %v930 = vunpack.c.l.b16 %v267
      %v931 = vunpack.c.h.b16 %v267
      %v932 = vunpack.c.l.b16 %v268
      %v933 = vunpack.c.h.b16 %v268
      %v934 = vunpack.c.l.b16 %v269
      %v935 = vunpack.c.h.b16 %v269
      %v936 = vunpack.c.l.b16 %v270
      %v937 = vunpack.c.h.b16 %v270
      %v938 = vunpack.c.l.b16 %v271
      %v939 = vunpack.c.h.b16 %v271
      %v940 = vunpack.c.l.b16 %v272
      %v941 = vunpack.c.h.b16 %v272
      %v942 = vunpack.c.l.b16 %v273
      %v943 = vunpack.c.h.b16 %v273
      %v944 = vunpack.c.l.b16 %v274
      %v945 = vunpack.c.h.b16 %v274
      %v946 = vunpack.c.l.b16 %v275
      %v947 = vunpack.c.h.b16 %v275
      %v948 = vunpack.c.l.b16 %v276
      %v949 = vunpack.c.h.b16 %v276
      %v950 = vunpack.c.l.b16 %v277
      %v951 = vunpack.c.h.b16 %v277
      %v952 = vunpack.c.l.b16 %v278
      %v953 = vunpack.c.h.b16 %v278
      %v954 = vunpack.c.l.b16 %v279
      %v955 = vunpack.c.h.b16 %v279
      %v956 = vunpack.c.l.b16 %v280
      %v957 = vunpack.c.h.b16 %v280
      %v958 = vunpack.c.l.b16 %v281
      %v959 = vunpack.c.h.b16 %v281
      %v960 = vunpack.c.l.b16 %v282
      %v961 = vunpack.c.h.b16 %v282
      %v962 = vunpack.c.l.b16 %v283
      %v963 = vunpack.c.h.b16 %v283
      %v964 = vunpack.c.l.b16 %v284
      %v965 = vunpack.c.h.b16 %v284
      %v966 = vunpack.c.l.b16 %v285
      %v967 = vunpack.c.h.b16 %v285
      %v968 = vunpack.c.l.b16 %v286
      %v969 = vunpack.c.h.b16 %v286
      %v970 = vunpack.c.l.b16 %v287
      %v971 = vunpack.c.h.b16 %v287
      %v972 = vunpack.c.l.b16 %v288
      %v973 = vunpack.c.h.b16 %v288
      %v974 = vunpack.c.l.b16 %v289
      %v975 = vunpack.c.h.b16 %v289
      %v976 = vunpack.c.l.b16 %v290
      %v977 = vunpack.c.h.b16 %v290
      %v978 = vunpack.c.l.b16 %v291
      %v979 = vunpack.c.h.b16 %v291
      %v980 = vunpack.c.l.b16 %v292
      %v981 = vunpack.c.h.b16 %v292
      %v982 = vunpack.c.l.b16 %v293
      %v983 = vunpack.c.h.b16 %v293
      %v984 = vunpack.c.l.b16 %v294
      %v985 = vunpack.c.h.b16 %v294
      %v986 = vunpack.c.l.b16 %v295
      %v987 = vunpack.c.h.b16 %v295
      %v988 = vunpack.c.l.b16 %v296
      %v989 = vunpack.c.h.b16 %v296
      %v990 = vunpack.c.l.b16 %v297
      %v991 = vunpack.c.h.b16 %v297
      %v992 = vunpack.c.l.b16 %v298
      %v993 = vunpack.c.h.b16 %v298
      %v994 = vunpack.c.l.b16 %v299
      %v995 = vunpack.c.h.b16 %v299
      %v996 = vunpack.c.l.b16 %v300
      %v997 = vunpack.c.h.b16 %v300
      %v998 = vunpack.c.l.b16 %v301
      %v999 = vunpack.c.h.b16 %v301
      %v1000 = vunpack.c.l.b16 %v302
      %v1001 = vunpack.c.h.b16 %v302
      %v1002 = vunpack.c.l.b16 %v303
      %v1003 = vunpack.c.h.b16 %v303
      %v1004 = vunpack.c.l.b16 %v304
      %v1005 = vunpack.c.h.b16 %v304
      %v1006 = vunpack.c.l.b16 %v305
      %v1007 = vunpack.c.h.b16 %v305
      %v1008 = vpack.c.b16 %v932, %v928
      %v1009 = vpack.c.b16 %v933, %v929
      %v1010 = vpack.c.b16 %v934, %v930
      %v1011 = vpack.c.b16 %v935, %v931
      %v1012 = vpack.c.b16 %v940, %v936
      %v1013 = vpack.c.b16 %v941, %v937
      %v1014 = vpack.c.b16 %v942, %v938
      %v1015 = vpack.c.b16 %v943, %v939
      %v1016 = vpack.c.b16 %v948, %v944
      %v1017 = vpack.c.b16 %v949, %v945
      %v1018 = vpack.c.b16 %v950, %v946
      %v1019 = vpack.c.b16 %v951, %v947
      %v1020 = vpack.c.b16 %v956, %v952
      %v1021 = vpack.c.b16 %v957, %v953
      %v1022 = vpack.c.b16 %v958, %v954
      %v1023 = vpack.c.b16 %v959, %v955
      %v1024 = vpack.c.b16 %v964, %v960
      %v1025 = vpack.c.b16 %v965, %v961
      %v1026 = vpack.c.b16 %v966, %v962
      %v1027 = vpack.c.b16 %v967, %v963
      %v1028 = vpack.c.b16 %v972, %v968
      %v1029 = vpack.c.b16 %v973, %v969
      %v1030 = vpack.c.b16 %v974, %v970
      %v1031 = vpack.c.b16 %v975, %v971
      %v1032 = vpack.c.b16 %v980, %v976
      %v1033 = vpack.c.b16 %v981, %v977
      %v1034 = vpack.c.b16 %v982, %v978
      %v1035 = vpack.c.b16 %v983, %v979
      %v1036 = vpack.c.b16 %v988, %v984
      %v1037 = vpack.c.b16 %v989, %v985
      %v1038 = vpack.c.b16 %v990, %v986
      %v1039 = vpack.c.b16 %v991, %v987
      %v1040 = vpack.c.b16 %v996, %v992
      %v1041 = vpack.c.b16 %v997, %v993
      %v1042 = vpack.c.b16 %v998, %v994
      %v1043 = vpack.c.b16 %v999, %v995
      %v1044 = vpack.c.b16 %v1004, %v1000
      %v1045 = vpack.c.b16 %v1005, %v1001
      %v1046 = vpack.c.b16 %v1006, %v1002
      %v1047 = vpack.c.b16 %v1007, %v1003
      %v1088 = vsel %vm664, %v253, 0
      %v1090 = vsel %vm664, %v255, 0
      %v1092 = vsel %vm664, %v257, 0
      %v1094 = vsel %vm664, %v259, 0
      %v1096 = vsel %vm664, %v261, 0
      %v1098 = vsel %vm664, %v263, 0
      %v1100 = vsel %vm664, %v265, 0
      %1102 = vmatprep.subr.bf16.mxu0 %v1009
      %1103 = vmatpush1.bf16.msra.mxu0 %v1008
      %1104 = vmatprep.subr.bf16.mxu0 %v1013
      %1105 = vmatpush1.bf16.msra.mxu0 %v1012
      %1106 = vmatprep.subr.bf16.mxu0 %v1017
      %1107 = vmatpush1.bf16.msra.mxu0 %v1016
      %1108 = vmatprep.subr.bf16.mxu0 %v1021
      %1109 = vmatpush1.bf16.msra.mxu0 %v1020
      %1110 = vmatprep.subr.bf16.mxu0 %v1025
      %1111 = vmatpush1.bf16.msra.mxu0 %v1024
      %1112 = vmatprep.subr.bf16.mxu0 %v1029
      %1113 = vmatpush1.bf16.msra.mxu0 %v1028
      %1114 = vmatprep.subr.bf16.mxu0 %v1033
      %1115 = vmatpush1.bf16.msra.mxu0 %v1032
      %1116 = vmatprep.subr.bf16.mxu0 %v1037
      %1117 = vmatpush1.bf16.msra.mxu0 %v1036
      %1118 = vmatprep.subr.bf16.mxu0 %v1041
      %1119 = vmatpush1.bf16.msra.mxu0 %v1040
      %1120 = vmatprep.subr.bf16.mxu0 %v1045
      %1121 = vmatpush1.bf16.msra.mxu0 %v1044
      %1122 = vmatprep.subr.bf16.mxu0 0
      %1123 = vmatpush1.bf16.msra.mxu0 0
      %1124 = vmatprep.subr.bf16.mxu0 0
      %1125 = vmatpush1.bf16.msra.mxu0 0
      %1126 = vmatprep.subr.bf16.mxu0 0
      %1127 = vmatpush1.bf16.msra.mxu0 0
      %1128 = vmatprep.subr.bf16.mxu0 0
      %1129 = vmatpush1.bf16.msra.mxu0 0
      %1130 = vmatprep.subr.bf16.mxu0 0
      %1131 = vmatpush1.bf16.msra.mxu0 0
      %1132 = vmatprep.subr.bf16.mxu0 0
      %1133 = vmatpush1.bf16.msra.mxu0 0
      %1134 = vmatprep.mubr.bf16.mxu0 %v1088
      %1135 = vmatmul.mubr.bf16.gmra.mrb[0].mxu0 %v252
      %v1136 = vpop.f32.mrb[0].mxu0
      %v1137 = vadd.f32 %v721, %v1136
      %v1138 = vpop.f32.mrb[0].mxu0
      %v1139 = vadd.f32 %v723, %v1138
      %v1140 = vpop.f32.mrb[0].mxu0
      %v1141 = vadd.f32 %v725, %v1140
      %v1142 = vpop.f32.mrb[0].mxu0
      %v1143 = vadd.f32 %v727, %v1142
      %1144 = vmatprep.mubr.bf16.mxu0 %v1090
      %1145 = vmatmul.mubr.bf16.gmra.mrb[0].mxu0 %v254
      %v1146 = vpop.f32.mrb[0].mxu0
      %v1147 = vadd.f32 %v731, %v1146
      %v1148 = vpop.f32.mrb[0].mxu0
      %v1149 = vadd.f32 %v733, %v1148
      %v1150 = vpop.f32.mrb[0].mxu0
      %v1151 = vadd.f32 %v735, %v1150
      %v1152 = vpop.f32.mrb[0].mxu0
      %v1153 = vadd.f32 %v737, %v1152
      %1154 = vmatprep.mubr.bf16.mxu0 %v1092
      %1155 = vmatmul.mubr.bf16.gmra.mrb[0].mxu0 %v256
      %v1156 = vpop.f32.mrb[0].mxu0
      %v1157 = vadd.f32 %v741, %v1156
      %v1158 = vpop.f32.mrb[0].mxu0
      %v1159 = vadd.f32 %v743, %v1158
      %v1160 = vpop.f32.mrb[0].mxu0
      %v1161 = vadd.f32 %v745, %v1160
      %v1162 = vpop.f32.mrb[0].mxu0
      %v1163 = vadd.f32 %v747, %v1162
      %1164 = vmatprep.mubr.bf16.mxu0 %v1094
      %1165 = vmatmul.mubr.bf16.gmra.mrb[0].mxu0 %v258
      %v1166 = vpop.f32.mrb[0].mxu0
      %v1167 = vadd.f32 %v751, %v1166
      %v1168 = vpop.f32.mrb[0].mxu0
      %v1169 = vadd.f32 %v753, %v1168
      %v1170 = vpop.f32.mrb[0].mxu0
      %v1171 = vadd.f32 %v755, %v1170
      %v1172 = vpop.f32.mrb[0].mxu0
      %v1173 = vadd.f32 %v757, %v1172
      %1174 = vmatprep.mubr.bf16.mxu0 %v1096
      %1175 = vmatmul.mubr.bf16.gmra.mrb[0].mxu0 %v260
      %v1176 = vpop.f32.mrb[0].mxu0
      %v1177 = vadd.f32 %v761, %v1176
      %v1178 = vpop.f32.mrb[0].mxu0
      %v1179 = vadd.f32 %v763, %v1178
      %v1180 = vpop.f32.mrb[0].mxu0
      %v1181 = vadd.f32 %v765, %v1180
      %v1182 = vpop.f32.mrb[0].mxu0
      %v1183 = vadd.f32 %v767, %v1182
      %1184 = vmatprep.mubr.bf16.mxu0 %v1098
      %1185 = vmatmul.mubr.bf16.gmra.mrb[0].mxu0 %v262
      %v1186 = vpop.f32.mrb[0].mxu0
      %v1187 = vadd.f32 %v771, %v1186
      %v1188 = vpop.f32.mrb[0].mxu0
      %v1189 = vadd.f32 %v773, %v1188
      %v1190 = vpop.f32.mrb[0].mxu0
      %v1191 = vadd.f32 %v775, %v1190
      %v1192 = vpop.f32.mrb[0].mxu0
      %v1193 = vadd.f32 %v777, %v1192
      %1194 = vmatprep.mubr.bf16.mxu0 %v1100
      %1195 = vmatmul.mubr.bf16.gmra.mrb[0].mxu0 %v264
      %v1196 = vpop.f32.mrb[0].mxu0
      %v1197 = vadd.f32 %v781, %v1196
      %v1198 = vpop.f32.mrb[0].mxu0
      %v1199 = vadd.f32 %v783, %v1198
      %v1200 = vpop.f32.mrb[0].mxu0
      %v1201 = vpop.f32.mrb[0].mxu0
      %1202 = vdwg.mxu0
      %1203 = vmatprep.subr.bf16.mxu0 %v1011
      %1204 = vmatpush1.bf16.msra.mxu0 %v1010
      %1205 = vmatprep.subr.bf16.mxu0 %v1015
      %1206 = vmatpush1.bf16.msra.mxu0 %v1014
      %1207 = vmatprep.subr.bf16.mxu0 %v1019
      %1208 = vmatpush1.bf16.msra.mxu0 %v1018
      %1209 = vmatprep.subr.bf16.mxu0 %v1023
      %1210 = vmatpush1.bf16.msra.mxu0 %v1022
      %1211 = vmatprep.subr.bf16.mxu0 %v1027
      %1212 = vmatpush1.bf16.msra.mxu0 %v1026
      %1213 = vmatprep.subr.bf16.mxu0 %v1031
      %1214 = vmatpush1.bf16.msra.mxu0 %v1030
      %1215 = vmatprep.subr.bf16.mxu0 %v1035
      %1216 = vmatpush1.bf16.msra.mxu0 %v1034
      %1217 = vmatprep.subr.bf16.mxu0 %v1039
      %1218 = vmatpush1.bf16.msra.mxu0 %v1038
      %1219 = vmatprep.subr.bf16.mxu0 %v1043
      %1220 = vmatpush1.bf16.msra.mxu0 %v1042
      %1221 = vmatprep.subr.bf16.mxu0 %v1047
      %1222 = vmatpush1.bf16.msra.mxu0 %v1046
      %1223 = vmatprep.subr.bf16.mxu0 0
      %1224 = vmatpush1.bf16.msra.mxu0 0
      %1225 = vmatprep.subr.bf16.mxu0 0
      %1226 = vmatpush1.bf16.msra.mxu0 0
      %1227 = vmatprep.subr.bf16.mxu0 0
      %1228 = vmatpush1.bf16.msra.mxu0 0
      %1229 = vmatprep.subr.bf16.mxu0 0
      %1230 = vmatpush1.bf16.msra.mxu0 0
      %1231 = vmatprep.subr.bf16.mxu0 0
      %1232 = vmatpush1.bf16.msra.mxu0 0
      %1233 = vmatprep.subr.bf16.mxu0 0
      %1234 = vmatpush1.bf16.msra.mxu0 0
      %1235 = vmatprep.mubr.bf16.mxu0 %v1088
      %1236 = vmatmul.mubr.bf16.gmra.mrb[0].mxu0 %v252
      %v1237 = vpop.f32.mrb[0].mxu0
      %v1238 = vadd.f32 %v822, %v1237
      %v1239 = vpop.f32.mrb[0].mxu0
      %v1240 = vadd.f32 %v824, %v1239
      %v1241 = vpop.f32.mrb[0].mxu0
      %v1242 = vadd.f32 %v826, %v1241
      %v1243 = vpop.f32.mrb[0].mxu0
      %v1244 = vadd.f32 %v828, %v1243
      %1245 = vmatprep.mubr.bf16.mxu0 %v1090
      %1246 = vmatmul.mubr.bf16.gmra.mrb[0].mxu0 %v254
      %v1247 = vpop.f32.mrb[0].mxu0
      %v1248 = vadd.f32 %v832, %v1247
      %v1249 = vpop.f32.mrb[0].mxu0
      %v1250 = vadd.f32 %v834, %v1249
      %v1251 = vpop.f32.mrb[0].mxu0
      %v1252 = vadd.f32 %v836, %v1251
      %v1253 = vpop.f32.mrb[0].mxu0
      %v1254 = vadd.f32 %v838, %v1253
      %1255 = vmatprep.mubr.bf16.mxu0 %v1092
      %1256 = vmatmul.mubr.bf16.gmra.mrb[0].mxu0 %v256
      %v1257 = vpop.f32.mrb[0].mxu0
      %v1258 = vadd.f32 %v842, %v1257
      %v1259 = vpop.f32.mrb[0].mxu0
      %v1260 = vadd.f32 %v844, %v1259
      %v1261 = vpop.f32.mrb[0].mxu0
      %v1262 = vadd.f32 %v846, %v1261
      %v1263 = vpop.f32.mrb[0].mxu0
      %v1264 = vadd.f32 %v848, %v1263
      %1265 = vmatprep.mubr.bf16.mxu0 %v1094
      %1266 = vmatmul.mubr.bf16.gmra.mrb[0].mxu0 %v258
      %v1267 = vpop.f32.mrb[0].mxu0
      %v1268 = vadd.f32 %v852, %v1267
      %v1269 = vpop.f32.mrb[0].mxu0
      %v1270 = vadd.f32 %v854, %v1269
      %v1271 = vpop.f32.mrb[0].mxu0
      %v1272 = vadd.f32 %v856, %v1271
      %v1273 = vpop.f32.mrb[0].mxu0
      %v1274 = vadd.f32 %v858, %v1273
      %1275 = vmatprep.mubr.bf16.mxu0 %v1096
      %1276 = vmatmul.mubr.bf16.gmra.mrb[0].mxu0 %v260
      %v1277 = vpop.f32.mrb[0].mxu0
      %v1278 = vadd.f32 %v862, %v1277
      %v1279 = vpop.f32.mrb[0].mxu0
      %v1280 = vadd.f32 %v864, %v1279
      %v1281 = vpop.f32.mrb[0].mxu0
      %v1282 = vadd.f32 %v866, %v1281
      %v1283 = vpop.f32.mrb[0].mxu0
      %v1284 = vadd.f32 %v868, %v1283
      %1285 = vmatprep.mubr.bf16.mxu0 %v1098
      %1286 = vmatmul.mubr.bf16.gmra.mrb[0].mxu0 %v262
      %v1287 = vpop.f32.mrb[0].mxu0
      %v1288 = vadd.f32 %v872, %v1287
      %v1289 = vpop.f32.mrb[0].mxu0
      %v1290 = vadd.f32 %v874, %v1289
      %v1291 = vpop.f32.mrb[0].mxu0
      %v1292 = vadd.f32 %v876, %v1291
      %v1293 = vpop.f32.mrb[0].mxu0
      %v1294 = vadd.f32 %v878, %v1293
      %1295 = vmatprep.mubr.bf16.mxu0 %v1100
      %1296 = vmatmul.mubr.bf16.gmra.mrb[0].mxu0 %v264
      %v1297 = vpop.f32.mrb[0].mxu0
      %v1298 = vadd.f32 %v882, %v1297
      %v1299 = vpop.f32.mrb[0].mxu0
      %v1300 = vadd.f32 %v884, %v1299
      %v1301 = vpop.f32.mrb[0].mxu0
      %v1302 = vpop.f32.mrb[0].mxu0
      %1303 = vdwg.mxu0
      %v1304 = vld [vmem:[%s1 + $0x280] sm:$0xff]
      %v1305 = vld [vmem:[%s1 + $0x288] sm:$0xff]
      %v1306 = vld [vmem:[%s1 + $0x290] sm:$0xff]
      %v1307 = vld [vmem:[%s1 + $0x298] sm:$0xff]
      %v1308 = vld [vmem:[%s1 + $0x2a0] sm:$0xff]
      %v1309 = vld [vmem:[%s1 + $0x2a8] sm:$0xff]
      %v1310 = vld [vmem:[%s1 + $0x2b0] sm:$0xff]
      %v1311 = vld [vmem:[%s1 + $0x2b8] sm:$0xff]
      %v1312 = vld [vmem:[%s1 + $0x2c0] sm:$0xff]
      %v1313 = vld [vmem:[%s1 + $0x2c8] sm:$0xff]
      %v1314 = vld [vmem:[%s1 + $0x2d0] sm:$0xff]
      %v1315 = vld [vmem:[%s1 + $0x2d8] sm:$0xff]
      %v1316 = vld [vmem:[%s1 + $0x2e0] sm:$0xff]
      %v1317 = vld [vmem:[%s1 + $0x2e8] sm:$0xff]
      %v1318 = vld [vmem:[%s1 + $0x2f0] sm:$0xff]
      %v1319 = vld [vmem:[%s1 + $0x2f8] sm:$0xff]
      %v1320 = vld [vmem:[%s1 + $0x300] sm:$0xff]
      %v1321 = vld [vmem:[%s1 + $0x308] sm:$0xff]
      %v1322 = vld [vmem:[%s1 + $0x310] sm:$0xff]
      %v1323 = vld [vmem:[%s1 + $0x318] sm:$0xff]
      %v1324 = vld [vmem:[%s1 + $0x320] sm:$0xff]
      %v1325 = vld [vmem:[%s1 + $0x328] sm:$0xff]
      %v1326 = vld [vmem:[%s1 + $0x330] sm:$0xff]
      %v1327 = vld [vmem:[%s1 + $0x338] sm:$0xff]
      %v1328 = vld [vmem:[%s1 + $0x340] sm:$0xff]
      %v1329 = vld [vmem:[%s1 + $0x348] sm:$0xff]
      %v1330 = vld [vmem:[%s1 + $0x350] sm:$0xff]
      %v1331 = vld [vmem:[%s1 + $0x358] sm:$0xff]
      %v1332 = vld [vmem:[%s1 + $0x360] sm:$0xff]
      %v1333 = vld [vmem:[%s1 + $0x368] sm:$0xff]
      %v1334 = vld [vmem:[%s1 + $0x370] sm:$0xff]
      %v1335 = vld [vmem:[%s1 + $0x378] sm:$0xff]
      %v1336 = vld [vmem:[%s1 + $0x380] sm:$0xff]
      %v1337 = vld [vmem:[%s1 + $0x388] sm:$0xff]
      %v1338 = vld [vmem:[%s1 + $0x390] sm:$0xff]
      %v1339 = vld [vmem:[%s1 + $0x398] sm:$0xff]
      %v1340 = vld [vmem:[%s1 + $0x3a0] sm:$0xff]
      %v1341 = vld [vmem:[%s1 + $0x3a8] sm:$0xff]
      %v1342 = vld [vmem:[%s1 + $0x3b0] sm:$0xff]
      %v1343 = vld [vmem:[%s1 + $0x3b8] sm:$0xff]
      %vm1358 = vcmask 1046528
      %v1359 = vrot.slane %v252, 1
      %v1360 = vrot.slane %v254, 1
      %v1361 = vsel %vm1358, %v1359, %v1360
      %v1362 = vrot.slane %v253, 1
      %v1363 = vrot.slane %v255, 1
      %v1364 = vsel %vm1358, %v1362, %v1363
      %v1365 = vrot.slane %v256, 1
      %v1366 = vsel %vm1358, %v1360, %v1365
      %v1367 = vrot.slane %v257, 1
      %v1368 = vsel %vm1358, %v1363, %v1367
      %v1369 = vrot.slane %v258, 1
      %v1370 = vsel %vm1358, %v1365, %v1369
      %v1371 = vrot.slane %v259, 1
      %v1372 = vsel %vm1358, %v1367, %v1371
      %v1373 = vrot.slane %v260, 1
      %v1374 = vsel %vm1358, %v1369, %v1373
      %v1375 = vrot.slane %v261, 1
      %v1376 = vsel %vm1358, %v1371, %v1375
      %v1377 = vrot.slane %v262, 1
      %v1378 = vsel %vm1358, %v1373, %v1377
      %v1379 = vrot.slane %v263, 1
      %v1380 = vsel %vm1358, %v1375, %v1379
      %v1381 = vrot.slane %v264, 1
      %v1382 = vsel %vm1358, %v1377, %v1381
      %v1383 = vrot.slane %v265, 1
      %v1384 = vsel %vm1358, %v1379, %v1383
      %v1432 = vunpack.c.l.b16 %v1304
      %v1433 = vunpack.c.h.b16 %v1304
      %v1434 = vunpack.c.l.b16 %v1305
      %v1435 = vunpack.c.h.b16 %v1305
      %v1436 = vunpack.c.l.b16 %v1306
      %v1437 = vunpack.c.h.b16 %v1306
      %v1438 = vunpack.c.l.b16 %v1307
      %v1439 = vunpack.c.h.b16 %v1307
      %v1440 = vunpack.c.l.b16 %v1308
      %v1441 = vunpack.c.h.b16 %v1308
      %v1442 = vunpack.c.l.b16 %v1309
      %v1443 = vunpack.c.h.b16 %v1309
      %v1444 = vunpack.c.l.b16 %v1310
      %v1445 = vunpack.c.h.b16 %v1310
      %v1446 = vunpack.c.l.b16 %v1311
      %v1447 = vunpack.c.h.b16 %v1311
      %v1448 = vunpack.c.l.b16 %v1312
      %v1449 = vunpack.c.h.b16 %v1312
      %v1450 = vunpack.c.l.b16 %v1313
      %v1451 = vunpack.c.h.b16 %v1313
      %v1452 = vunpack.c.l.b16 %v1314
      %v1453 = vunpack.c.h.b16 %v1314
      %v1454 = vunpack.c.l.b16 %v1315
      %v1455 = vunpack.c.h.b16 %v1315
      %v1456 = vunpack.c.l.b16 %v1316
      %v1457 = vunpack.c.h.b16 %v1316
      %v1458 = vunpack.c.l.b16 %v1317
      %v1459 = vunpack.c.h.b16 %v1317
      %v1460 = vunpack.c.l.b16 %v1318
      %v1461 = vunpack.c.h.b16 %v1318
      %v1462 = vunpack.c.l.b16 %v1319
      %v1463 = vunpack.c.h.b16 %v1319
      %v1464 = vunpack.c.l.b16 %v1320
      %v1465 = vunpack.c.h.b16 %v1320
      %v1466 = vunpack.c.l.b16 %v1321
      %v1467 = vunpack.c.h.b16 %v1321
      %v1468 = vunpack.c.l.b16 %v1322
      %v1469 = vunpack.c.h.b16 %v1322
      %v1470 = vunpack.c.l.b16 %v1323
      %v1471 = vunpack.c.h.b16 %v1323
      %v1472 = vunpack.c.l.b16 %v1324
      %v1473 = vunpack.c.h.b16 %v1324
      %v1474 = vunpack.c.l.b16 %v1325
      %v1475 = vunpack.c.h.b16 %v1325
      %v1476 = vunpack.c.l.b16 %v1326
      %v1477 = vunpack.c.h.b16 %v1326
      %v1478 = vunpack.c.l.b16 %v1327
      %v1479 = vunpack.c.h.b16 %v1327
      %v1480 = vunpack.c.l.b16 %v1328
      %v1481 = vunpack.c.h.b16 %v1328
      %v1482 = vunpack.c.l.b16 %v1329
      %v1483 = vunpack.c.h.b16 %v1329
      %v1484 = vunpack.c.l.b16 %v1330
      %v1485 = vunpack.c.h.b16 %v1330
      %v1486 = vunpack.c.l.b16 %v1331
      %v1487 = vunpack.c.h.b16 %v1331
      %v1488 = vunpack.c.l.b16 %v1332
      %v1489 = vunpack.c.h.b16 %v1332
      %v1490 = vunpack.c.l.b16 %v1333
      %v1491 = vunpack.c.h.b16 %v1333
      %v1492 = vunpack.c.l.b16 %v1334
      %v1493 = vunpack.c.h.b16 %v1334
      %v1494 = vunpack.c.l.b16 %v1335
      %v1495 = vunpack.c.h.b16 %v1335
      %v1496 = vunpack.c.l.b16 %v1336
      %v1497 = vunpack.c.h.b16 %v1336
      %v1498 = vunpack.c.l.b16 %v1337
      %v1499 = vunpack.c.h.b16 %v1337
      %v1500 = vunpack.c.l.b16 %v1338
      %v1501 = vunpack.c.h.b16 %v1338
      %v1502 = vunpack.c.l.b16 %v1339
      %v1503 = vunpack.c.h.b16 %v1339
      %v1504 = vunpack.c.l.b16 %v1340
      %v1505 = vunpack.c.h.b16 %v1340
      %v1506 = vunpack.c.l.b16 %v1341
      %v1507 = vunpack.c.h.b16 %v1341
      %v1508 = vunpack.c.l.b16 %v1342
      %v1509 = vunpack.c.h.b16 %v1342
      %v1510 = vunpack.c.l.b16 %v1343
      %v1511 = vunpack.c.h.b16 %v1343
      %v1512 = vpack.c.b16 %v1436, %v1432
      %v1513 = vpack.c.b16 %v1437, %v1433
      %v1514 = vpack.c.b16 %v1438, %v1434
      %v1515 = vpack.c.b16 %v1439, %v1435
      %v1516 = vpack.c.b16 %v1444, %v1440
      %v1517 = vpack.c.b16 %v1445, %v1441
      %v1518 = vpack.c.b16 %v1446, %v1442
      %v1519 = vpack.c.b16 %v1447, %v1443
      %v1520 = vpack.c.b16 %v1452, %v1448
      %v1521 = vpack.c.b16 %v1453, %v1449
      %v1522 = vpack.c.b16 %v1454, %v1450
      %v1523 = vpack.c.b16 %v1455, %v1451
      %v1524 = vpack.c.b16 %v1460, %v1456
      %v1525 = vpack.c.b16 %v1461, %v1457
      %v1526 = vpack.c.b16 %v1462, %v1458
      %v1527 = vpack.c.b16 %v1463, %v1459
      %v1528 = vpack.c.b16 %v1468, %v1464
      %v1529 = vpack.c.b16 %v1469, %v1465
      %v1530 = vpack.c.b16 %v1470, %v1466
      %v1531 = vpack.c.b16 %v1471, %v1467
      %v1532 = vpack.c.b16 %v1476, %v1472
      %v1533 = vpack.c.b16 %v1477, %v1473
      %v1534 = vpack.c.b16 %v1478, %v1474
      %v1535 = vpack.c.b16 %v1479, %v1475
      %v1536 = vpack.c.b16 %v1484, %v1480
      %v1537 = vpack.c.b16 %v1485, %v1481
      %v1538 = vpack.c.b16 %v1486, %v1482
      %v1539 = vpack.c.b16 %v1487, %v1483
      %v1540 = vpack.c.b16 %v1492, %v1488
      %v1541 = vpack.c.b16 %v1493, %v1489
      %v1542 = vpack.c.b16 %v1494, %v1490
      %v1543 = vpack.c.b16 %v1495, %v1491
      %v1544 = vpack.c.b16 %v1500, %v1496
      %v1545 = vpack.c.b16 %v1501, %v1497
      %v1546 = vpack.c.b16 %v1502, %v1498
      %v1547 = vpack.c.b16 %v1503, %v1499
      %v1548 = vpack.c.b16 %v1508, %v1504
      %v1549 = vpack.c.b16 %v1509, %v1505
      %v1550 = vpack.c.b16 %v1510, %v1506
      %v1551 = vpack.c.b16 %v1511, %v1507
      %v1593 = vsel %vm664, %v1364, 0
      %v1596 = vsel %vm664, %v1368, 0
      %v1599 = vsel %vm664, %v1372, 0
      %v1602 = vsel %vm664, %v1376, 0
      %v1605 = vsel %vm664, %v1380, 0
      %v1608 = vsel %vm664, %v1384, 0
      %v1611 = vsel %vm664, %v1383, 0
      %1613 = vmatprep.subr.bf16.mxu0 %v1513
      %1614 = vmatpush1.bf16.msra.mxu0 %v1512
      %1615 = vmatprep.subr.bf16.mxu0 %v1517
      %1616 = vmatpush1.bf16.msra.mxu0 %v1516
      %1617 = vmatprep.subr.bf16.mxu0 %v1521
      %1618 = vmatpush1.bf16.msra.mxu0 %v1520
      %1619 = vmatprep.subr.bf16.mxu0 %v1525
      %1620 = vmatpush1.bf16.msra.mxu0 %v1524
      %1621 = vmatprep.subr.bf16.mxu0 %v1529
      %1622 = vmatpush1.bf16.msra.mxu0 %v1528
      %1623 = vmatprep.subr.bf16.mxu0 %v1533
      %1624 = vmatpush1.bf16.msra.mxu0 %v1532
      %1625 = vmatprep.subr.bf16.mxu0 %v1537
      %1626 = vmatpush1.bf16.msra.mxu0 %v1536
      %1627 = vmatprep.subr.bf16.mxu0 %v1541
      %1628 = vmatpush1.bf16.msra.mxu0 %v1540
      %1629 = vmatprep.subr.bf16.mxu0 %v1545
      %1630 = vmatpush1.bf16.msra.mxu0 %v1544
      %1631 = vmatprep.subr.bf16.mxu0 %v1549
      %1632 = vmatpush1.bf16.msra.mxu0 %v1548
      %1633 = vmatprep.subr.bf16.mxu0 0
      %1634 = vmatpush1.bf16.msra.mxu0 0
      %1635 = vmatprep.subr.bf16.mxu0 0
      %1636 = vmatpush1.bf16.msra.mxu0 0
      %1637 = vmatprep.subr.bf16.mxu0 0
      %1638 = vmatpush1.bf16.msra.mxu0 0
      %1639 = vmatprep.subr.bf16.mxu0 0
      %1640 = vmatpush1.bf16.msra.mxu0 0
      %1641 = vmatprep.subr.bf16.mxu0 0
      %1642 = vmatpush1.bf16.msra.mxu0 0
      %1643 = vmatprep.subr.bf16.mxu0 0
      %1644 = vmatpush1.bf16.msra.mxu0 0
      %1645 = vmatprep.mubr.bf16.mxu0 %v1593
      %1646 = vmatmul.mubr.bf16.gmra.mrb[0].mxu0 %v1361
      %v1647 = vpop.f32.mrb[0].mxu0
      %v1648 = vadd.f32 0.0, %v1647
      %v1649 = vpop.f32.mrb[0].mxu0
      %v1650 = vadd.f32 0.0, %v1649
      %v1651 = vpop.f32.mrb[0].mxu0
      %v1652 = vadd.f32 0.0, %v1651
      %v1653 = vpop.f32.mrb[0].mxu0
      %v1654 = vadd.f32 0.0, %v1653
      %1655 = vmatprep.mubr.bf16.mxu0 %v1596
      %1656 = vmatmul.mubr.bf16.gmra.mrb[0].mxu0 %v1366
      %v1657 = vpop.f32.mrb[0].mxu0
      %v1658 = vadd.f32 0.0, %v1657
      %v1659 = vpop.f32.mrb[0].mxu0
      %v1660 = vadd.f32 0.0, %v1659
      %v1661 = vpop.f32.mrb[0].mxu0
      %v1662 = vadd.f32 0.0, %v1661
      %v1663 = vpop.f32.mrb[0].mxu0
      %v1664 = vadd.f32 0.0, %v1663
      %1665 = vmatprep.mubr.bf16.mxu0 %v1599
      %1666 = vmatmul.mubr.bf16.gmra.mrb[0].mxu0 %v1370
      %v1667 = vpop.f32.mrb[0].mxu0
      %v1668 = vadd.f32 0.0, %v1667
      %v1669 = vpop.f32.mrb[0].mxu0
      %v1670 = vadd.f32 0.0, %v1669
      %v1671 = vpop.f32.mrb[0].mxu0
      %v1672 = vadd.f32 0.0, %v1671
      %v1673 = vpop.f32.mrb[0].mxu0
      %v1674 = vadd.f32 0.0, %v1673
      %1675 = vmatprep.mubr.bf16.mxu0 %v1602
      %1676 = vmatmul.mubr.bf16.gmra.mrb[0].mxu0 %v1374
      %v1677 = vpop.f32.mrb[0].mxu0
      %v1678 = vadd.f32 0.0, %v1677
      %v1679 = vpop.f32.mrb[0].mxu0
      %v1680 = vadd.f32 0.0, %v1679
      %v1681 = vpop.f32.mrb[0].mxu0
      %v1682 = vadd.f32 0.0, %v1681
      %v1683 = vpop.f32.mrb[0].mxu0
      %v1684 = vadd.f32 0.0, %v1683
      %1685 = vmatprep.mubr.bf16.mxu0 %v1605
      %1686 = vmatmul.mubr.bf16.gmra.mrb[0].mxu0 %v1378
      %v1687 = vpop.f32.mrb[0].mxu0
      %v1688 = vadd.f32 0.0, %v1687
      %v1689 = vpop.f32.mrb[0].mxu0
      %v1690 = vadd.f32 0.0, %v1689
      %v1691 = vpop.f32.mrb[0].mxu0
      %v1692 = vadd.f32 0.0, %v1691
      %v1693 = vpop.f32.mrb[0].mxu0
      %v1694 = vadd.f32 0.0, %v1693
      %1695 = vmatprep.mubr.bf16.mxu0 %v1608
      %1696 = vmatmul.mubr.bf16.gmra.mrb[0].mxu0 %v1382
      %v1697 = vpop.f32.mrb[0].mxu0
      %v1698 = vadd.f32 0.0, %v1697
      %v1699 = vpop.f32.mrb[0].mxu0
      %v1700 = vadd.f32 0.0, %v1699
      %v1701 = vpop.f32.mrb[0].mxu0
      %v1702 = vadd.f32 0.0, %v1701
      %v1703 = vpop.f32.mrb[0].mxu0
      %v1704 = vadd.f32 0.0, %v1703
      %1705 = vmatprep.mubr.bf16.mxu0 %v1611
      %1706 = vmatmul.mubr.bf16.gmra.mrb[0].mxu0 %v1381
      %v1707 = vpop.f32.mrb[0].mxu0
      %v1708 = vadd.f32 0.0, %v1707
      %v1709 = vpop.f32.mrb[0].mxu0
      %v1710 = vadd.f32 0.0, %v1709
      %v1711 = vpop.f32.mrb[0].mxu0
      %v1712 = vpop.f32.mrb[0].mxu0
      %1713 = vdwg.mxu0
      %1714 = vmatprep.subr.bf16.mxu0 %v1515
      %1715 = vmatpush1.bf16.msra.mxu0 %v1514
      %1716 = vmatprep.subr.bf16.mxu0 %v1519
      %1717 = vmatpush1.bf16.msra.mxu0 %v1518
      %1718 = vmatprep.subr.bf16.mxu0 %v1523
      %1719 = vmatpush1.bf16.msra.mxu0 %v1522
      %1720 = vmatprep.subr.bf16.mxu0 %v1527
      %1721 = vmatpush1.bf16.msra.mxu0 %v1526
      %1722 = vmatprep.subr.bf16.mxu0 %v1531
      %1723 = vmatpush1.bf16.msra.mxu0 %v1530
      %1724 = vmatprep.subr.bf16.mxu0 %v1535
      %1725 = vmatpush1.bf16.msra.mxu0 %v1534
      %1726 = vmatprep.subr.bf16.mxu0 %v1539
      %1727 = vmatpush1.bf16.msra.mxu0 %v1538
      %1728 = vmatprep.subr.bf16.mxu0 %v1543
      %1729 = vmatpush1.bf16.msra.mxu0 %v1542
      %1730 = vmatprep.subr.bf16.mxu0 %v1547
      %1731 = vmatpush1.bf16.msra.mxu0 %v1546
      %1732 = vmatprep.subr.bf16.mxu0 %v1551
      %1733 = vmatpush1.bf16.msra.mxu0 %v1550
      %1734 = vmatprep.subr.bf16.mxu0 0
      %1735 = vmatpush1.bf16.msra.mxu0 0
      %1736 = vmatprep.subr.bf16.mxu0 0
      %1737 = vmatpush1.bf16.msra.mxu0 0
      %1738 = vmatprep.subr.bf16.mxu0 0
      %1739 = vmatpush1.bf16.msra.mxu0 0
      %1740 = vmatprep.subr.bf16.mxu0 0
      %1741 = vmatpush1.bf16.msra.mxu0 0
      %1742 = vmatprep.subr.bf16.mxu0 0
      %1743 = vmatpush1.bf16.msra.mxu0 0
      %1744 = vmatprep.subr.bf16.mxu0 0
      %1745 = vmatpush1.bf16.msra.mxu0 0
      %1746 = vmatprep.mubr.bf16.mxu0 %v1593
      %1747 = vmatmul.mubr.bf16.gmra.mrb[0].mxu0 %v1361
      %v1748 = vpop.f32.mrb[0].mxu0
      %v1749 = vadd.f32 0.0, %v1748
      %v1750 = vpop.f32.mrb[0].mxu0
      %v1751 = vadd.f32 0.0, %v1750
      %v1752 = vpop.f32.mrb[0].mxu0
      %v1753 = vadd.f32 0.0, %v1752
      %v1754 = vpop.f32.mrb[0].mxu0
      %v1755 = vadd.f32 0.0, %v1754
      %1756 = vmatprep.mubr.bf16.mxu0 %v1596
      %1757 = vmatmul.mubr.bf16.gmra.mrb[0].mxu0 %v1366
      %v1758 = vpop.f32.mrb[0].mxu0
      %v1759 = vadd.f32 0.0, %v1758
      %v1760 = vpop.f32.mrb[0].mxu0
      %v1761 = vadd.f32 0.0, %v1760
      %v1762 = vpop.f32.mrb[0].mxu0
      %v1763 = vadd.f32 0.0, %v1762
      %v1764 = vpop.f32.mrb[0].mxu0
      %v1765 = vadd.f32 0.0, %v1764
      %1766 = vmatprep.mubr.bf16.mxu0 %v1599
      %1767 = vmatmul.mubr.bf16.gmra.mrb[0].mxu0 %v1370
      %v1768 = vpop.f32.mrb[0].mxu0
      %v1769 = vadd.f32 0.0, %v1768
      %v1770 = vpop.f32.mrb[0].mxu0
      %v1771 = vadd.f32 0.0, %v1770
      %v1772 = vpop.f32.mrb[0].mxu0
      %v1773 = vadd.f32 0.0, %v1772
      %v1774 = vpop.f32.mrb[0].mxu0
      %v1775 = vadd.f32 0.0, %v1774
      %1776 = vmatprep.mubr.bf16.mxu0 %v1602
      %1777 = vmatmul.mubr.bf16.gmra.mrb[0].mxu0 %v1374
      %v1778 = vpop.f32.mrb[0].mxu0
      %v1779 = vadd.f32 0.0, %v1778
      %v1780 = vpop.f32.mrb[0].mxu0
      %v1781 = vadd.f32 0.0, %v1780
      %v1782 = vpop.f32.mrb[0].mxu0
      %v1783 = vadd.f32 0.0, %v1782
      %v1784 = vpop.f32.mrb[0].mxu0
      %v1785 = vadd.f32 0.0, %v1784
      %1786 = vmatprep.mubr.bf16.mxu0 %v1605
      %1787 = vmatmul.mubr.bf16.gmra.mrb[0].mxu0 %v1378
      %v1788 = vpop.f32.mrb[0].mxu0
      %v1789 = vadd.f32 0.0, %v1788
      %v1790 = vpop.f32.mrb[0].mxu0
      %v1791 = vadd.f32 0.0, %v1790
      %v1792 = vpop.f32.mrb[0].mxu0
      %v1793 = vadd.f32 0.0, %v1792
      %v1794 = vpop.f32.mrb[0].mxu0
      %v1795 = vadd.f32 0.0, %v1794
      %1796 = vmatprep.mubr.bf16.mxu0 %v1608
      %1797 = vmatmul.mubr.bf16.gmra.mrb[0].mxu0 %v1382
      %v1798 = vpop.f32.mrb[0].mxu0
      %v1799 = vadd.f32 0.0, %v1798
      %v1800 = vpop.f32.mrb[0].mxu0
      %v1801 = vadd.f32 0.0, %v1800
      %v1802 = vpop.f32.mrb[0].mxu0
      %v1803 = vadd.f32 0.0, %v1802
      %v1804 = vpop.f32.mrb[0].mxu0
      %v1805 = vadd.f32 0.0, %v1804
      %1806 = vmatprep.mubr.bf16.mxu0 %v1611
      %1807 = vmatmul.mubr.bf16.gmra.mrb[0].mxu0 %v1381
      %v1808 = vpop.f32.mrb[0].mxu0
      %v1809 = vadd.f32 0.0, %v1808
      %v1810 = vpop.f32.mrb[0].mxu0
      %v1811 = vadd.f32 0.0, %v1810
      %v1812 = vpop.f32.mrb[0].mxu0
      %v1813 = vpop.f32.mrb[0].mxu0
      %1814 = vdwg.mxu0
      %v1815 = vadd.f32 %v1137, %v1648
      %v1816 = vadd.f32 %v1139, %v1650
      %v1817 = vadd.f32 %v1238, %v1749
      %v1818 = vadd.f32 %v1240, %v1751
      %v1819 = vadd.f32 %v1141, %v1652
      %v1820 = vadd.f32 %v1143, %v1654
      %v1821 = vadd.f32 %v1242, %v1753
      %v1822 = vadd.f32 %v1244, %v1755
      %v1823 = vadd.f32 %v1147, %v1658
      %v1824 = vadd.f32 %v1149, %v1660
      %v1825 = vadd.f32 %v1248, %v1759
      %v1826 = vadd.f32 %v1250, %v1761
      %v1827 = vadd.f32 %v1151, %v1662
      %v1828 = vadd.f32 %v1153, %v1664
      %v1829 = vadd.f32 %v1252, %v1763
      %v1830 = vadd.f32 %v1254, %v1765
      %v1831 = vadd.f32 %v1157, %v1668
      %v1832 = vadd.f32 %v1159, %v1670
      %v1833 = vadd.f32 %v1258, %v1769
      %v1834 = vadd.f32 %v1260, %v1771
      %v1835 = vadd.f32 %v1161, %v1672
      %v1836 = vadd.f32 %v1163, %v1674
      %v1837 = vadd.f32 %v1262, %v1773
      %v1838 = vadd.f32 %v1264, %v1775
      %v1839 = vadd.f32 %v1167, %v1678
      %v1840 = vadd.f32 %v1169, %v1680
      %v1841 = vadd.f32 %v1268, %v1779
      %v1842 = vadd.f32 %v1270, %v1781
      %v1843 = vadd.f32 %v1171, %v1682
      %v1844 = vadd.f32 %v1173, %v1684
      %v1845 = vadd.f32 %v1272, %v1783
      %v1846 = vadd.f32 %v1274, %v1785
      %v1847 = vadd.f32 %v1177, %v1688
      %v1848 = vadd.f32 %v1179, %v1690
      %v1849 = vadd.f32 %v1278, %v1789
      %v1850 = vadd.f32 %v1280, %v1791
      %v1851 = vadd.f32 %v1181, %v1692
      %v1852 = vadd.f32 %v1183, %v1694
      %v1853 = vadd.f32 %v1282, %v1793
      %v1854 = vadd.f32 %v1284, %v1795
      %v1855 = vadd.f32 %v1187, %v1698
      %v1856 = vadd.f32 %v1189, %v1700
      %v1857 = vadd.f32 %v1288, %v1799
      %v1858 = vadd.f32 %v1290, %v1801
      %v1859 = vadd.f32 %v1191, %v1702
      %v1860 = vadd.f32 %v1193, %v1704
      %v1861 = vadd.f32 %v1292, %v1803
      %v1862 = vadd.f32 %v1294, %v1805
      %v1863 = vadd.f32 %v1197, %v1708
      %v1864 = vadd.f32 %v1199, %v1710
      %v1865 = vadd.f32 %v1298, %v1809
      %v1866 = vadd.f32 %v1300, %v1811
      %v1867 = vmul.f32 %v1815, %v1815
      %v1868 = vmul.f32 %v1816, %v1816
      %v1869 = vmul.f32 %v1817, %v1817
      %v1870 = vmul.f32 %v1818, %v1818
      %v1871 = vmul.f32 %v1819, %v1819
      %v1872 = vmul.f32 %v1820, %v1820
      %v1873 = vmul.f32 %v1821, %v1821
      %v1874 = vmul.f32 %v1822, %v1822
      %v1875 = vmul.f32 %v1823, %v1823
      %v1876 = vmul.f32 %v1824, %v1824
      %v1877 = vmul.f32 %v1825, %v1825
      %v1878 = vmul.f32 %v1826, %v1826
      %v1879 = vmul.f32 %v1827, %v1827
      %v1880 = vmul.f32 %v1828, %v1828
      %v1881 = vmul.f32 %v1829, %v1829
      %v1882 = vmul.f32 %v1830, %v1830
      %v1883 = vmul.f32 %v1831, %v1831
      %v1884 = vmul.f32 %v1832, %v1832
      %v1885 = vmul.f32 %v1833, %v1833
      %v1886 = vmul.f32 %v1834, %v1834
      %v1887 = vmul.f32 %v1835, %v1835
      %v1888 = vmul.f32 %v1836, %v1836
      %v1889 = vmul.f32 %v1837, %v1837
      %v1890 = vmul.f32 %v1838, %v1838
      %v1891 = vmul.f32 %v1839, %v1839
      %v1892 = vmul.f32 %v1840, %v1840
      %v1893 = vmul.f32 %v1841, %v1841
      %v1894 = vmul.f32 %v1842, %v1842
      %v1895 = vmul.f32 %v1843, %v1843
      %v1896 = vmul.f32 %v1844, %v1844
      %v1897 = vmul.f32 %v1845, %v1845
      %v1898 = vmul.f32 %v1846, %v1846
      %v1899 = vmul.f32 %v1847, %v1847
      %v1900 = vmul.f32 %v1848, %v1848
      %v1901 = vmul.f32 %v1849, %v1849
      %v1902 = vmul.f32 %v1850, %v1850
      %v1903 = vmul.f32 %v1851, %v1851
      %v1904 = vmul.f32 %v1852, %v1852
      %v1905 = vmul.f32 %v1853, %v1853
      %v1906 = vmul.f32 %v1854, %v1854
      %v1907 = vmul.f32 %v1855, %v1855
      %v1908 = vmul.f32 %v1856, %v1856
      %v1909 = vmul.f32 %v1857, %v1857
      %v1910 = vmul.f32 %v1858, %v1858
      %v1911 = vmul.f32 %v1859, %v1859
      %v1912 = vmul.f32 %v1860, %v1860
      %v1913 = vmul.f32 %v1861, %v1861
      %v1914 = vmul.f32 %v1862, %v1862
      %v1915 = vmul.f32 %v1863, %v1863
      %v1916 = vmul.f32 %v1864, %v1864
      %v1917 = vmul.f32 %v1865, %v1865
      %v1918 = vmul.f32 %v1866, %v1866
      %v1919 = vadd.f32 %v1867, %v1869
      %v1920 = vadd.f32 %v1868, %v1870
      %v1921 = vadd.f32 %v1871, %v1873
      %v1922 = vadd.f32 %v1872, %v1874
      %v1923 = vadd.f32 %v1875, %v1877
      %v1924 = vadd.f32 %v1876, %v1878
      %v1925 = vadd.f32 %v1879, %v1881
      %v1926 = vadd.f32 %v1880, %v1882
      %v1927 = vadd.f32 %v1883, %v1885
      %v1928 = vadd.f32 %v1884, %v1886
      %v1929 = vadd.f32 %v1887, %v1889
      %v1930 = vadd.f32 %v1888, %v1890
      %v1931 = vadd.f32 %v1891, %v1893
      %v1932 = vadd.f32 %v1892, %v1894
      %v1933 = vadd.f32 %v1895, %v1897
      %v1934 = vadd.f32 %v1896, %v1898
      %v1935 = vadd.f32 %v1899, %v1901
      %v1936 = vadd.f32 %v1900, %v1902
      %v1937 = vadd.f32 %v1903, %v1905
      %v1938 = vadd.f32 %v1904, %v1906
      %v1939 = vadd.f32 %v1907, %v1909
      %v1940 = vadd.f32 %v1908, %v1910
      %v1941 = vadd.f32 %v1911, %v1913
      %v1942 = vadd.f32 %v1912, %v1914
      %v1943 = vadd.f32 %v1915, %v1917
      %v1944 = vadd.f32 %v1916, %v1918
      %v1945 = vld [vmem:[%s2] sm:$0xff]
      %v1946 = vld [vmem:[%s2 + $0x8] sm:$0xff]
      %v1947 = vld [vmem:[%s2 + $0x10] sm:$0xff]
      %v1948 = vld [vmem:[%s2 + $0x18] sm:$0xff]
      %v1949 = vld [vmem:[%s2 + $0x20] sm:$0xff]
      %v1950 = vld [vmem:[%s2 + $0x28] sm:$0xff]
      %v1951 = vld [vmem:[%s2 + $0x30] sm:$0xff]
      %v1952 = vld [vmem:[%s2 + $0x38] sm:$0xff]
      %v1953 = vld [vmem:[%s2 + $0x40] sm:$0xff]
      %v1954 = vld [vmem:[%s2 + $0x48] sm:$0xff]
      %v1955 = vld [vmem:[%s2 + $0x50] sm:$0xff]
      %v1956 = vld [vmem:[%s2 + $0x58] sm:$0xff]
      %v1957 = vld [vmem:[%s2 + $0x60] sm:$0xff]
      %v1958 = vld [vmem:[%s2 + $0x68] sm:$0xff]
      %v1959 = vld [vmem:[%s2 + $0x70] sm:$0xff]
      %v1960 = vld [vmem:[%s2 + $0x78] sm:$0xff]
      %v1961 = vld [vmem:[%s2 + $0x80] sm:$0xff]
      %v1962 = vld [vmem:[%s2 + $0x88] sm:$0xff]
      %v1963 = vld [vmem:[%s2 + $0x90] sm:$0xff]
      %v1964 = vld [vmem:[%s2 + $0x98] sm:$0xff]
      %v1965 = vld [vmem:[%s2 + $0xa0] sm:$0xff]
      %v1966 = vld [vmem:[%s2 + $0xa8] sm:$0xff]
      %v1967 = vld [vmem:[%s2 + $0xb0] sm:$0xff]
      %v1968 = vld [vmem:[%s2 + $0xb8] sm:$0xff]
      %v1969 = vld [vmem:[%s2 + $0xc0] sm:$0xff]
      %v1970 = vld [vmem:[%s2 + $0xc8] sm:$0xff]
      %v1971 = vld [vmem:[%s2 + $0xd0] sm:$0xff]
      %v1972 = vld [vmem:[%s2 + $0xd8] sm:$0xff]
      %v1973 = vld [vmem:[%s2 + $0xe0] sm:$0xff]
      %v1974 = vld [vmem:[%s2 + $0xe8] sm:$0xff]
      %v1975 = vld [vmem:[%s2 + $0xf0] sm:$0xff]
      %v1976 = vld [vmem:[%s2 + $0xf8] sm:$0xff]
      %1977 = vmatprep.subr.mxu0 0.0
      %1978 = vmatpush1.msra.mxu0 %v1945
      %1979 = vmatprep.subr.mxu0 0.0
      %1980 = vmatpush1.msra.mxu0 %v1946
      %1981 = vmatprep.subr.mxu0 0.0
      %1982 = vmatpush1.msra.mxu0 %v1947
      %1983 = vmatprep.subr.mxu0 0.0
      %1984 = vmatpush1.msra.mxu0 %v1948
      %1985 = vmatprep.subr.mxu0 0.0
      %1986 = vmatpush1.msra.mxu0 %v1949
      %1987 = vmatprep.subr.mxu0 0.0
      %1988 = vmatpush1.msra.mxu0 %v1950
      %1989 = vmatprep.subr.mxu0 0.0
      %1990 = vmatpush1.msra.mxu0 %v1951
      %1991 = vmatprep.subr.mxu0 0.0
      %1992 = vmatpush1.msra.mxu0 %v1952
      %1993 = vmatprep.subr.mxu0 0.0
      %1994 = vmatpush1.msra.mxu0 %v1953
      %1995 = vmatprep.subr.mxu0 0.0
      %1996 = vmatpush1.msra.mxu0 %v1954
      %1997 = vmatprep.subr.mxu0 0.0
      %1998 = vmatpush1.msra.mxu0 %v1955
      %1999 = vmatprep.subr.mxu0 0.0
      %2000 = vmatpush1.msra.mxu0 %v1956
      %2001 = vmatprep.subr.mxu0 0.0
      %2002 = vmatpush1.msra.mxu0 %v1957
      %2003 = vmatprep.subr.mxu0 0.0
      %2004 = vmatpush1.msra.mxu0 %v1958
      %2005 = vmatprep.subr.mxu0 0.0
      %2006 = vmatpush1.msra.mxu0 %v1959
      %2007 = vmatprep.subr.mxu0 0.0
      %2008 = vmatpush1.msra.mxu0 %v1960
      %2009 = vmatprep.subr.mxu0 0.0
      %2010 = vmatpush1.msra.mxu0 %v1961
      %2011 = vmatprep.subr.mxu0 0.0
      %2012 = vmatpush1.msra.mxu0 %v1962
      %2013 = vmatprep.subr.mxu0 0.0
      %2014 = vmatpush1.msra.mxu0 %v1963
      %2015 = vmatprep.subr.mxu0 0.0
      %2016 = vmatpush1.msra.mxu0 %v1964
      %2017 = vmatprep.subr.mxu0 0.0
      %2018 = vmatpush1.msra.mxu0 %v1965
      %2019 = vmatprep.subr.mxu0 0.0
      %2020 = vmatpush1.msra.mxu0 %v1966
      %2021 = vmatprep.subr.mxu0 0.0
      %2022 = vmatpush1.msra.mxu0 %v1967
      %2023 = vmatprep.subr.mxu0 0.0
      %2024 = vmatpush1.msra.mxu0 %v1968
      %2025 = vmatprep.subr.mxu0 0.0
      %2026 = vmatpush1.msra.mxu0 %v1969
      %2027 = vmatprep.subr.mxu0 0.0
      %2028 = vmatpush1.msra.mxu0 %v1970
      %2029 = vmatprep.subr.mxu0 0.0
      %2030 = vmatpush1.msra.mxu0 %v1971
      %2031 = vmatprep.subr.mxu0 0.0
      %2032 = vmatpush1.msra.mxu0 %v1972
      %2033 = vmatprep.subr.mxu0 0.0
      %2034 = vmatpush1.msra.mxu0 %v1973
      %2035 = vmatprep.subr.mxu0 0.0
      %2036 = vmatpush1.msra.mxu0 %v1974
      %2037 = vmatprep.subr.mxu0 0.0
      %2038 = vmatpush1.msra.mxu0 %v1975
      %2039 = vmatprep.subr.mxu0 0.0
      %2040 = vmatpush1.msra.mxu0 %v1976
      %2041 = vmatprep.mubr.f32.mxu0 %v1920
      %2042 = vmatmul.mubr.f32.gmra.mrb[0].mxu0 %v1919
      %v2043 = vpop.f32.mrb[0].mxu0
      %v2044 = vadd.f32 0.0, %v2043
      %v2045 = vpop.f32.mrb[0].mxu0
      %2046 = vmatprep.mubr.f32.mxu0 %v1922
      %2047 = vmatmul.mubr.f32.gmra.mrb[0].mxu0 %v1921
      %v2048 = vpop.f32.mrb[0].mxu0
      %v2049 = vadd.f32 0.0, %v2048
      %v2050 = vpop.f32.mrb[0].mxu0
      %2051 = vmatprep.mubr.f32.mxu0 %v1924
      %2052 = vmatmul.mubr.f32.gmra.mrb[0].mxu0 %v1923
      %v2053 = vpop.f32.mrb[0].mxu0
      %v2054 = vadd.f32 0.0, %v2053
      %v2055 = vpop.f32.mrb[0].mxu0
      %2056 = vmatprep.mubr.f32.mxu0 %v1926
      %2057 = vmatmul.mubr.f32.gmra.mrb[0].mxu0 %v1925
      %v2058 = vpop.f32.mrb[0].mxu0
      %v2059 = vadd.f32 0.0, %v2058
      %v2060 = vpop.f32.mrb[0].mxu0
      %2061 = vmatprep.mubr.f32.mxu0 %v1928
      %2062 = vmatmul.mubr.f32.gmra.mrb[0].mxu0 %v1927
      %v2063 = vpop.f32.mrb[0].mxu0
      %v2064 = vadd.f32 0.0, %v2063
      %v2065 = vpop.f32.mrb[0].mxu0
      %2066 = vmatprep.mubr.f32.mxu0 %v1930
      %2067 = vmatmul.mubr.f32.gmra.mrb[0].mxu0 %v1929
      %v2068 = vpop.f32.mrb[0].mxu0
      %v2069 = vadd.f32 0.0, %v2068
      %v2070 = vpop.f32.mrb[0].mxu0
      %2071 = vmatprep.mubr.f32.mxu0 %v1932
      %2072 = vmatmul.mubr.f32.gmra.mrb[0].mxu0 %v1931
      %v2073 = vpop.f32.mrb[0].mxu0
      %v2074 = vadd.f32 0.0, %v2073
      %v2075 = vpop.f32.mrb[0].mxu0
      %2076 = vmatprep.mubr.f32.mxu0 %v1934
      %2077 = vmatmul.mubr.f32.gmra.mrb[0].mxu0 %v1933
      %v2078 = vpop.f32.mrb[0].mxu0
      %v2079 = vadd.f32 0.0, %v2078
      %v2080 = vpop.f32.mrb[0].mxu0
      %2081 = vmatprep.mubr.f32.mxu0 %v1936
      %2082 = vmatmul.mubr.f32.gmra.mrb[0].mxu0 %v1935
      %v2083 = vpop.f32.mrb[0].mxu0
      %v2084 = vadd.f32 0.0, %v2083
      %v2085 = vpop.f32.mrb[0].mxu0
      %2086 = vmatprep.mubr.f32.mxu0 %v1938
      %2087 = vmatmul.mubr.f32.gmra.mrb[0].mxu0 %v1937
      %v2088 = vpop.f32.mrb[0].mxu0
      %v2089 = vadd.f32 0.0, %v2088
      %v2090 = vpop.f32.mrb[0].mxu0
      %2091 = vmatprep.mubr.f32.mxu0 %v1940
      %2092 = vmatmul.mubr.f32.gmra.mrb[0].mxu0 %v1939
      %v2093 = vpop.f32.mrb[0].mxu0
      %v2094 = vadd.f32 0.0, %v2093
      %v2095 = vpop.f32.mrb[0].mxu0
      %2096 = vmatprep.mubr.f32.mxu0 %v1942
      %2097 = vmatmul.mubr.f32.gmra.mrb[0].mxu0 %v1941
      %v2098 = vpop.f32.mrb[0].mxu0
      %v2099 = vadd.f32 0.0, %v2098
      %v2100 = vpop.f32.mrb[0].mxu0
      %2101 = vmatprep.mubr.f32.mxu0 %v1944
      %2102 = vmatmul.mubr.f32.gmra.mrb[0].mxu0 %v1943
      %v2103 = vpop.f32.mrb[0].mxu0
      %v2104 = vadd.f32 0.0, %v2103
      %v2105 = vpop.f32.mrb[0].mxu0
      %2106 = vdwg.mxu0
      %v2107 = vmax.f32 %v2044, 1e-10
      %v2108 = vmax.f32 %v2049, 1e-10
      %v2109 = vmax.f32 %v2054, 1e-10
      %v2110 = vmax.f32 %v2059, 1e-10
      %v2111 = vmax.f32 %v2064, 1e-10
      %v2112 = vmax.f32 %v2069, 1e-10
      %v2113 = vmax.f32 %v2074, 1e-10
      %v2114 = vmax.f32 %v2079, 1e-10
      %v2115 = vmax.f32 %v2084, 1e-10
      %v2116 = vmax.f32 %v2089, 1e-10
      %v2117 = vmax.f32 %v2094, 1e-10
      %v2118 = vmax.f32 %v2099, 1e-10
      %v2119 = vmax.f32 %v2104, 1e-10
      %v2120 = vlog2.pop %v2107
      %v2121 = vmul.f32 %v2120, 0.6931472
      %v2122 = vlog2.pop %v2108
      %v2123 = vmul.f32 %v2122, 0.6931472
      %v2124 = vlog2.pop %v2109
      %v2125 = vmul.f32 %v2124, 0.6931472
      %v2126 = vlog2.pop %v2110
      %v2127 = vmul.f32 %v2126, 0.6931472
      %v2128 = vlog2.pop %v2111
      %v2129 = vmul.f32 %v2128, 0.6931472
      %v2130 = vlog2.pop %v2112
      %v2131 = vmul.f32 %v2130, 0.6931472
      %v2132 = vlog2.pop %v2113
      %v2133 = vmul.f32 %v2132, 0.6931472
      %v2134 = vlog2.pop %v2114
      %v2135 = vmul.f32 %v2134, 0.6931472
      %v2136 = vlog2.pop %v2115
      %v2137 = vmul.f32 %v2136, 0.6931472
      %v2138 = vlog2.pop %v2116
      %v2139 = vmul.f32 %v2138, 0.6931472
      %v2140 = vlog2.pop %v2117
      %v2141 = vmul.f32 %v2140, 0.6931472
      %v2142 = vlog2.pop %v2118
      %v2143 = vmul.f32 %v2142, 0.6931472
      %v2144 = vlog2.pop %v2119
      %v2145 = vmul.f32 %v2144, 0.6931472
      %v2146 = vmul.f32 %v2121, 0.4342945
      %v2147 = vmul.f32 %v2123, 0.4342945
      %v2148 = vmul.f32 %v2125, 0.4342945
      %v2149 = vmul.f32 %v2127, 0.4342945
      %v2150 = vmul.f32 %v2129, 0.4342945
      %v2151 = vmul.f32 %v2131, 0.4342945
      %v2152 = vmul.f32 %v2133, 0.4342945
      %v2153 = vmul.f32 %v2135, 0.4342945
      %v2154 = vmul.f32 %v2137, 0.4342945
      %v2155 = vmul.f32 %v2139, 0.4342945
      %v2156 = vmul.f32 %v2141, 0.4342945
      %v2157 = vmul.f32 %v2143, 0.4342945
      %v2158 = vmul.f32 %v2145, 0.4342945
      %v2159 = vmul.f32 %v2146, 10.0
      %v2160 = vmul.f32 %v2147, 10.0
      %v2161 = vmul.f32 %v2148, 10.0
      %v2162 = vmul.f32 %v2149, 10.0
      %v2163 = vmul.f32 %v2150, 10.0
      %v2164 = vmul.f32 %v2151, 10.0
      %v2165 = vmul.f32 %v2152, 10.0
      %v2166 = vmul.f32 %v2153, 10.0
      %v2167 = vmul.f32 %v2154, 10.0
      %v2168 = vmul.f32 %v2155, 10.0
      %v2169 = vmul.f32 %v2156, 10.0
      %v2170 = vmul.f32 %v2157, 10.0
      %v2171 = vmul.f32 %v2158, 10.0
      %vm2172 = vcmask 187392
      %v2173 = vsel %vm2172, %v2159, -inf
      %v2174 = vsel %vm2172, %v2160, -inf
      %v2175 = vsel %vm2172, %v2161, -inf
      %v2176 = vsel %vm2172, %v2162, -inf
      %v2177 = vsel %vm2172, %v2163, -inf
      %v2178 = vmax.f32 %v2173, %v2177
      %v2179 = vsel %vm2172, %v2164, -inf
      %v2180 = vmax.f32 %v2174, %v2179
      %v2181 = vsel %vm2172, %v2165, -inf
      %v2182 = vmax.f32 %v2175, %v2181
      %v2183 = vsel %vm2172, %v2166, -inf
      %v2184 = vmax.f32 %v2176, %v2183
      %v2185 = vsel %vm2172, %v2167, -inf
      %v2186 = vmax.f32 %v2178, %v2185
      %v2187 = vsel %vm2172, %v2168, -inf
      %v2188 = vmax.f32 %v2180, %v2187
      %v2189 = vsel %vm2172, %v2169, -inf
      %v2190 = vmax.f32 %v2182, %v2189
      %v2191 = vsel %vm2172, %v2170, -inf
      %v2192 = vmax.f32 %v2184, %v2191
      %vm2193 = vcmask 184320
      %v2194 = vsel %vm2193, %v2171, -inf
      %v2195 = vmax.f32 %v2186, %v2194
      %v2196 = vmax.f32 %v2195, %v2188
      %v2197 = vmax.f32 %v2190, %v2192
      %v2198 = vmax.f32 %v2196, %v2197
      %2199 = vmax.xlane.f32.xlu0 %v2198
      %v2200 = vpop.xlane.xlu0 %2199
      %v2201 = vrot.slane %v2200, 4
      %v2202 = vmax.f32 %v2200, %v2201
      %v2203 = vrot.slane %v2202, 2
      %v2204 = vmax.f32 %v2202, %v2203
      %v2205 = vrot.slane %v2204, 1
      %v2206 = vmax.f32 %v2204, %v2205
      %s2207 = vtos %v2206
      %s2208 = ssub.f32 %s2207, 80.0
      %v2209 = vstv %s2208
      %v2210 = vmax.f32 %v2159, %v2209
      %v2211 = vmax.f32 %v2160, %v2209
      %v2212 = vmax.f32 %v2161, %v2209
      %v2213 = vmax.f32 %v2162, %v2209
      %v2214 = vmax.f32 %v2163, %v2209
      %v2215 = vmax.f32 %v2164, %v2209
      %v2216 = vmax.f32 %v2165, %v2209
      %v2217 = vmax.f32 %v2166, %v2209
      %v2218 = vmax.f32 %v2167, %v2209
      %v2219 = vmax.f32 %v2168, %v2209
      %v2220 = vmax.f32 %v2169, %v2209
      %v2221 = vmax.f32 %v2170, %v2209
      %v2222 = vmax.f32 %v2171, %v2209
      %v2223 = vld [vmem:[%s3] sm:$0xff]
      %v2224 = vld [vmem:[%s3 + $0x8] sm:$0xff]
      %v2225 = vld [vmem:[%s3 + $0x10] sm:$0x7f]
      %v2227 = vsel %vm2172, %v2210, 0
      %v2230 = vsel %vm2172, %v2211, 0
      %v2233 = vsel %vm2172, %v2212, 0
      %v2236 = vsel %vm2172, %v2213, 0
      %v2239 = vsel %vm2172, %v2214, 0
      %v2242 = vsel %vm2172, %v2215, 0
      %v2245 = vsel %vm2172, %v2216, 0
      %v2248 = vsel %vm2172, %v2217, 0
      %v2251 = vsel %vm2172, %v2218, 0
      %v2254 = vsel %vm2172, %v2219, 0
      %v2257 = vsel %vm2172, %v2220, 0
      %v2260 = vsel %vm2172, %v2221, 0
      %v2263 = vsel %vm2172, %v2222, 0
      %vm2265 = vcmask 1046528
      %v2267 = vsel %vm2265, %v2225, 0
      %2269 = vmatprep.subr.mxu0 0.0
      %2270 = vmatpush1.msra.mxu0 %v2223
      %2271 = vmatprep.subr.mxu0 0.0
      %2272 = vmatpush1.msra.mxu0 %v2224
      %2273 = vmatprep.subr.mxu0 0.0
      %2274 = vmatpush1.msra.mxu0 %v2267
      %2275 = vmatprep.subr.mxu0 0.0
      %2276 = vmatpush1.msra.mxu0 0.0
      %2277 = vmatprep.subr.mxu0 0.0
      %2278 = vmatpush1.msra.mxu0 0.0
      %2279 = vmatprep.subr.mxu0 0.0
      %2280 = vmatpush1.msra.mxu0 0.0
      %2281 = vmatprep.subr.mxu0 0.0
      %2282 = vmatpush1.msra.mxu0 0.0
      %2283 = vmatprep.subr.mxu0 0.0
      %2284 = vmatpush1.msra.mxu0 0.0
      %2285 = vmatprep.subr.mxu0 0.0
      %2286 = vmatpush1.msra.mxu0 0.0
      %2287 = vmatprep.subr.mxu0 0.0
      %2288 = vmatpush1.msra.mxu0 0.0
      %2289 = vmatprep.subr.mxu0 0.0
      %2290 = vmatpush1.msra.mxu0 0.0
      %2291 = vmatprep.subr.mxu0 0.0
      %2292 = vmatpush1.msra.mxu0 0.0
      %2293 = vmatprep.subr.mxu0 0.0
      %2294 = vmatpush1.msra.mxu0 0.0
      %2295 = vmatprep.subr.mxu0 0.0
      %2296 = vmatpush1.msra.mxu0 0.0
      %2297 = vmatprep.subr.mxu0 0.0
      %2298 = vmatpush1.msra.mxu0 0.0
      %2299 = vmatprep.subr.mxu0 0.0
      %2300 = vmatpush1.msra.mxu0 0.0
      %2301 = vmatprep.subr.mxu0 0.0
      %2302 = vmatpush1.msra.mxu0 0.0
      %2303 = vmatprep.subr.mxu0 0.0
      %2304 = vmatpush1.msra.mxu0 0.0
      %2305 = vmatprep.subr.mxu0 0.0
      %2306 = vmatpush1.msra.mxu0 0.0
      %2307 = vmatprep.subr.mxu0 0.0
      %2308 = vmatpush1.msra.mxu0 0.0
      %2309 = vmatprep.subr.mxu0 0.0
      %2310 = vmatpush1.msra.mxu0 0.0
      %2311 = vmatprep.subr.mxu0 0.0
      %2312 = vmatpush1.msra.mxu0 0.0
      %2313 = vmatprep.subr.mxu0 0.0
      %2314 = vmatpush1.msra.mxu0 0.0
      %2315 = vmatprep.subr.mxu0 0.0
      %2316 = vmatpush1.msra.mxu0 0.0
      %2317 = vmatprep.subr.mxu0 0.0
      %2318 = vmatpush1.msra.mxu0 0.0
      %2319 = vmatprep.subr.mxu0 0.0
      %2320 = vmatpush1.msra.mxu0 0.0
      %2321 = vmatprep.subr.mxu0 0.0
      %2322 = vmatpush1.msra.mxu0 0.0
      %2323 = vmatprep.subr.mxu0 0.0
      %2324 = vmatpush1.msra.mxu0 0.0
      %2325 = vmatprep.subr.mxu0 0.0
      %2326 = vmatpush1.msra.mxu0 0.0
      %2327 = vmatprep.subr.mxu0 0.0
      %2328 = vmatpush1.msra.mxu0 0.0
      %2329 = vmatprep.subr.mxu0 0.0
      %2330 = vmatpush1.msra.mxu0 0.0
      %2331 = vmatprep.subr.mxu0 0.0
      %2332 = vmatpush1.msra.mxu0 0.0
      %2333 = vmatprep.mubr.f32.mxu0 0.0
      %2334 = vmatmul.mubr.f32.gmra.mrb[0].mxu0 %v2227
      %v2335 = vpop.f32.mrb[0].mxu0
      %v2336 = vadd.f32 0.0, %v2335
      %v2337 = vpop.f32.mrb[0].mxu0
      %2338 = vmatprep.mubr.f32.mxu0 0.0
      %2339 = vmatmul.mubr.f32.gmra.mrb[0].mxu0 %v2230
      %v2340 = vpop.f32.mrb[0].mxu0
      %v2341 = vadd.f32 0.0, %v2340
      %v2342 = vpop.f32.mrb[0].mxu0
      %2343 = vmatprep.mubr.f32.mxu0 0.0
      %2344 = vmatmul.mubr.f32.gmra.mrb[0].mxu0 %v2233
      %v2345 = vpop.f32.mrb[0].mxu0
      %v2346 = vadd.f32 0.0, %v2345
      %v2347 = vpop.f32.mrb[0].mxu0
      %2348 = vmatprep.mubr.f32.mxu0 0.0
      %2349 = vmatmul.mubr.f32.gmra.mrb[0].mxu0 %v2236
      %v2350 = vpop.f32.mrb[0].mxu0
      %v2351 = vadd.f32 0.0, %v2350
      %v2352 = vpop.f32.mrb[0].mxu0
      %2353 = vmatprep.mubr.f32.mxu0 0.0
      %2354 = vmatmul.mubr.f32.gmra.mrb[0].mxu0 %v2239
      %v2355 = vpop.f32.mrb[0].mxu0
      %v2356 = vadd.f32 0.0, %v2355
      %v2357 = vpop.f32.mrb[0].mxu0
      %2358 = vmatprep.mubr.f32.mxu0 0.0
      %2359 = vmatmul.mubr.f32.gmra.mrb[0].mxu0 %v2242
      %v2360 = vpop.f32.mrb[0].mxu0
      %v2361 = vadd.f32 0.0, %v2360
      %v2362 = vpop.f32.mrb[0].mxu0
      %2363 = vmatprep.mubr.f32.mxu0 0.0
      %2364 = vmatmul.mubr.f32.gmra.mrb[0].mxu0 %v2245
      %v2365 = vpop.f32.mrb[0].mxu0
      %v2366 = vadd.f32 0.0, %v2365
      %v2367 = vpop.f32.mrb[0].mxu0
      %2368 = vmatprep.mubr.f32.mxu0 0.0
      %2369 = vmatmul.mubr.f32.gmra.mrb[0].mxu0 %v2248
      %v2370 = vpop.f32.mrb[0].mxu0
      %v2371 = vadd.f32 0.0, %v2370
      %v2372 = vpop.f32.mrb[0].mxu0
      %2373 = vmatprep.mubr.f32.mxu0 0.0
      %2374 = vmatmul.mubr.f32.gmra.mrb[0].mxu0 %v2251
      %v2375 = vpop.f32.mrb[0].mxu0
      %v2376 = vadd.f32 0.0, %v2375
      %v2377 = vpop.f32.mrb[0].mxu0
      %2378 = vmatprep.mubr.f32.mxu0 0.0
      %2379 = vmatmul.mubr.f32.gmra.mrb[0].mxu0 %v2254
      %v2380 = vpop.f32.mrb[0].mxu0
      %v2381 = vadd.f32 0.0, %v2380
      %v2382 = vpop.f32.mrb[0].mxu0
      %2383 = vmatprep.mubr.f32.mxu0 0.0
      %2384 = vmatmul.mubr.f32.gmra.mrb[0].mxu0 %v2257
      %v2385 = vpop.f32.mrb[0].mxu0
      %v2386 = vadd.f32 0.0, %v2385
      %v2387 = vpop.f32.mrb[0].mxu0
      %2388 = vmatprep.mubr.f32.mxu0 0.0
      %2389 = vmatmul.mubr.f32.gmra.mrb[0].mxu0 %v2260
      %v2390 = vpop.f32.mrb[0].mxu0
      %v2391 = vadd.f32 0.0, %v2390
      %v2392 = vpop.f32.mrb[0].mxu0
      %2393 = vmatprep.mubr.f32.mxu0 0.0
      %2394 = vmatmul.mubr.f32.gmra.mrb[0].mxu0 %v2263
      %v2395 = vpop.f32.mrb[0].mxu0
      %v2396 = vadd.f32 0.0, %v2395
      %v2397 = vpop.f32.mrb[0].mxu0
      %2398 = vdwg.mxu0
      %v2400 = vrot.slane %v2336, 7
      %vm2414 = vcmask 1041408
      %v2415 = vrot.slane %v2336, 6
      %v2416 = vrot.slane %v2341, 6
      %v2417 = vsel %vm2414, %v2415, %v2416
      %v2418 = vrot.slane %v2346, 6
      %v2419 = vsel %vm2414, %v2416, %v2418
      %v2420 = vrot.slane %v2351, 6
      %v2421 = vsel %vm2414, %v2418, %v2420
      %v2422 = vrot.slane %v2356, 6
      %v2423 = vsel %vm2414, %v2420, %v2422
      %v2424 = vrot.slane %v2361, 6
      %v2425 = vsel %vm2414, %v2422, %v2424
      %v2426 = vrot.slane %v2366, 6
      %v2427 = vsel %vm2414, %v2424, %v2426
      %v2428 = vrot.slane %v2371, 6
      %v2429 = vsel %vm2414, %v2426, %v2428
      %v2430 = vrot.slane %v2376, 6
      %v2431 = vsel %vm2414, %v2428, %v2430
      %v2432 = vrot.slane %v2381, 6
      %v2433 = vsel %vm2414, %v2430, %v2432
      %v2434 = vrot.slane %v2386, 6
      %v2435 = vsel %vm2414, %v2432, %v2434
      %v2436 = vrot.slane %v2391, 6
      %v2437 = vsel %vm2414, %v2434, %v2436
      %v2438 = vrot.slane %v2396, 6
      %v2439 = vsel %vm2414, %v2436, %v2438
      %v2453 = vrot.slane %v2396, 5
      %v2455 = vrot.slane %v2396, 4
      %vm2457 = vcmask 1040384
      %v2458 = vsel %vm2457, %v2336, %v2400
      %v2459 = vsel %vm2414, %v2458, %v2415
      %v2460 = vsel %vm2265, %v2439, %v2453
      %vm2463 = vcmask 1043456
      %v2464 = vrot.slane %v2459, 4
      %v2465 = vrot.slane %v2417, 4
      %v2466 = vsel %vm2463, %v2464, %v2465
      %v2467 = vrot.slane %v2419, 4
      %v2468 = vsel %vm2463, %v2465, %v2467
      %v2469 = vrot.slane %v2421, 4
      %v2470 = vsel %vm2463, %v2467, %v2469
      %v2471 = vrot.slane %v2423, 4
      %v2472 = vsel %vm2463, %v2469, %v2471
      %v2473 = vrot.slane %v2425, 4
      %v2474 = vsel %vm2463, %v2471, %v2473
      %v2475 = vrot.slane %v2427, 4
      %v2476 = vsel %vm2463, %v2473, %v2475
      %v2477 = vrot.slane %v2429, 4
      %v2478 = vsel %vm2463, %v2475, %v2477
      %v2479 = vrot.slane %v2431, 4
      %v2480 = vsel %vm2463, %v2477, %v2479
      %v2481 = vrot.slane %v2433, 4
      %v2482 = vsel %vm2463, %v2479, %v2481
      %v2483 = vrot.slane %v2435, 4
      %v2484 = vsel %vm2463, %v2481, %v2483
      %v2485 = vrot.slane %v2437, 4
      %v2486 = vsel %vm2463, %v2483, %v2485
      %v2487 = vrot.slane %v2460, 4
      %v2488 = vsel %vm2463, %v2485, %v2487
      %v2503 = vsub.f32 %v2459, %v2464
      %v2504 = vsub.f32 %v2417, %v2466
      %v2505 = vsub.f32 %v2419, %v2468
      %v2506 = vsub.f32 %v2421, %v2470
      %v2507 = vsub.f32 %v2423, %v2472
      %v2508 = vsub.f32 %v2425, %v2474
      %v2509 = vsub.f32 %v2427, %v2476
      %v2510 = vsub.f32 %v2429, %v2478
      %v2511 = vsub.f32 %v2431, %v2480
      %v2512 = vsub.f32 %v2433, %v2482
      %v2513 = vsub.f32 %v2435, %v2484
      %v2514 = vsub.f32 %v2437, %v2486
      %v2515 = vsub.f32 %v2460, %v2488
      %v2516 = vsub.f32 %v2455, %v2487
      %v2517 = vmul.f32 %v2503, 0.2
      %v2518 = vmul.f32 %v2504, 0.2
      %v2519 = vmul.f32 %v2505, 0.2
      %v2520 = vmul.f32 %v2506, 0.2
      %v2521 = vmul.f32 %v2507, 0.2
      %v2522 = vmul.f32 %v2508, 0.2
      %v2523 = vmul.f32 %v2509, 0.2
      %v2524 = vmul.f32 %v2510, 0.2
      %v2525 = vmul.f32 %v2511, 0.2
      %v2526 = vmul.f32 %v2512, 0.2
      %v2527 = vmul.f32 %v2513, 0.2
      %v2528 = vmul.f32 %v2514, 0.2
      %v2529 = vmul.f32 %v2515, 0.2
      %v2530 = vmul.f32 %v2516, 0.2
      %v2531 = vrot.slane %v2459, 6
      %v2532 = vrot.slane %v2417, 6
      %v2533 = vsel %vm2414, %v2531, %v2532
      %v2534 = vrot.slane %v2419, 6
      %v2535 = vsel %vm2414, %v2532, %v2534
      %v2536 = vrot.slane %v2421, 6
      %v2537 = vsel %vm2414, %v2534, %v2536
      %v2538 = vrot.slane %v2423, 6
      %v2539 = vsel %vm2414, %v2536, %v2538
      %v2540 = vrot.slane %v2425, 6
      %v2541 = vsel %vm2414, %v2538, %v2540
      %v2542 = vrot.slane %v2427, 6
      %v2543 = vsel %vm2414, %v2540, %v2542
      %v2544 = vrot.slane %v2429, 6
      %v2545 = vsel %vm2414, %v2542, %v2544
      %v2546 = vrot.slane %v2431, 6
      %v2547 = vsel %vm2414, %v2544, %v2546
      %v2548 = vrot.slane %v2433, 6
      %v2549 = vsel %vm2414, %v2546, %v2548
      %v2550 = vrot.slane %v2435, 6
      %v2551 = vsel %vm2414, %v2548, %v2550
      %v2552 = vrot.slane %v2437, 6
      %v2553 = vsel %vm2414, %v2550, %v2552
      %v2554 = vrot.slane %v2460, 6
      %v2555 = vsel %vm2414, %v2552, %v2554
      %v2569 = vsub.f32 %v2459, %v2531
      %v2570 = vsub.f32 %v2417, %v2533
      %v2571 = vsub.f32 %v2419, %v2535
      %v2572 = vsub.f32 %v2421, %v2537
      %v2573 = vsub.f32 %v2423, %v2539
      %v2574 = vsub.f32 %v2425, %v2541
      %v2575 = vsub.f32 %v2427, %v2543
      %v2576 = vsub.f32 %v2429, %v2545
      %v2577 = vsub.f32 %v2431, %v2547
      %v2578 = vsub.f32 %v2433, %v2549
      %v2579 = vsub.f32 %v2435, %v2551
      %v2580 = vsub.f32 %v2437, %v2553
      %v2581 = vsub.f32 %v2460, %v2555
      %v2582 = vmul.f32 %v2569, 0.1
      %v2583 = vmul.f32 %v2570, 0.1
      %v2584 = vmul.f32 %v2571, 0.1
      %v2585 = vmul.f32 %v2572, 0.1
      %v2586 = vmul.f32 %v2573, 0.1
      %v2587 = vmul.f32 %v2574, 0.1
      %v2588 = vmul.f32 %v2575, 0.1
      %v2589 = vmul.f32 %v2576, 0.1
      %v2590 = vmul.f32 %v2577, 0.1
      %v2591 = vmul.f32 %v2578, 0.1
      %v2592 = vmul.f32 %v2579, 0.1
      %v2593 = vmul.f32 %v2580, 0.1
      %v2594 = vmul.f32 %v2581, 0.1
      %v2608 = vrot.slane %v2582, 7
      %v2609 = vrot.slane %v2583, 7
      %v2610 = vsel %vm2457, %v2608, %v2609
      %v2611 = vrot.slane %v2584, 7
      %v2612 = vsel %vm2457, %v2609, %v2611
      %v2613 = vrot.slane %v2585, 7
      %v2614 = vsel %vm2457, %v2611, %v2613
      %v2615 = vrot.slane %v2586, 7
      %v2616 = vsel %vm2457, %v2613, %v2615
      %v2617 = vrot.slane %v2587, 7
      %v2618 = vsel %vm2457, %v2615, %v2617
      %v2619 = vrot.slane %v2588, 7
      %v2620 = vsel %vm2457, %v2617, %v2619
      %v2621 = vrot.slane %v2589, 7
      %v2622 = vsel %vm2457, %v2619, %v2621
      %v2623 = vrot.slane %v2590, 7
      %v2624 = vsel %vm2457, %v2621, %v2623
      %v2625 = vrot.slane %v2591, 7
      %v2626 = vsel %vm2457, %v2623, %v2625
      %v2627 = vrot.slane %v2592, 7
      %v2628 = vsel %vm2457, %v2625, %v2627
      %v2629 = vrot.slane %v2593, 7
      %v2630 = vsel %vm2457, %v2627, %v2629
      %v2631 = vrot.slane %v2594, 7
      %v2632 = vsel %vm2457, %v2629, %v2631
      %v2647 = vadd.f32 %v2517, %v2608
      %v2648 = vadd.f32 %v2518, %v2610
      %v2649 = vadd.f32 %v2519, %v2612
      %v2650 = vadd.f32 %v2520, %v2614
      %v2651 = vadd.f32 %v2521, %v2616
      %v2652 = vadd.f32 %v2522, %v2618
      %v2653 = vadd.f32 %v2523, %v2620
      %v2654 = vadd.f32 %v2524, %v2622
      %v2655 = vadd.f32 %v2525, %v2624
      %v2656 = vadd.f32 %v2526, %v2626
      %v2657 = vadd.f32 %v2527, %v2628
      %v2658 = vadd.f32 %v2528, %v2630
      %v2659 = vadd.f32 %v2529, %v2632
      %v2660 = vadd.f32 %v2530, %v2631
      %v2662 = vrot.slane %v2647, 4
      %v2664 = vrot.slane %v2647, 3
      %vm2679 = vcmask 1045504
      %v2680 = vrot.slane %v2647, 2
      %v2681 = vrot.slane %v2648, 2
      %v2682 = vsel %vm2679, %v2680, %v2681
      %v2683 = vrot.slane %v2649, 2
      %v2684 = vsel %vm2679, %v2681, %v2683
      %v2685 = vrot.slane %v2650, 2
      %v2686 = vsel %vm2679, %v2683, %v2685
      %v2687 = vrot.slane %v2651, 2
      %v2688 = vsel %vm2679, %v2685, %v2687
      %v2689 = vrot.slane %v2652, 2
      %v2690 = vsel %vm2679, %v2687, %v2689
      %v2691 = vrot.slane %v2653, 2
      %v2692 = vsel %vm2679, %v2689, %v2691
      %v2693 = vrot.slane %v2654, 2
      %v2694 = vsel %vm2679, %v2691, %v2693
      %v2695 = vrot.slane %v2655, 2
      %v2696 = vsel %vm2679, %v2693, %v2695
      %v2697 = vrot.slane %v2656, 2
      %v2698 = vsel %vm2679, %v2695, %v2697
      %v2699 = vrot.slane %v2657, 2
      %v2700 = vsel %vm2679, %v2697, %v2699
      %v2701 = vrot.slane %v2658, 2
      %v2702 = vsel %vm2679, %v2699, %v2701
      %v2703 = vrot.slane %v2659, 2
      %v2704 = vsel %vm2679, %v2701, %v2703
      %v2705 = vrot.slane %v2660, 2
      %v2706 = vsel %vm2679, %v2703, %v2705
      %v2720 = vrot.slane %v2660, 1
      %v2722 = vsel %vm2457, %v2662, %v2664
      %v2723 = vsel %vm2414, %v2722, %v2682
      %v2724 = vsel %vm2265, %v2706, %v2720
      %v2727 = vrot.slane %v2723, 4
      %v2728 = vrot.slane %v2684, 4
      %v2729 = vsel %vm2463, %v2727, %v2728
      %v2730 = vrot.slane %v2686, 4
      %v2731 = vsel %vm2463, %v2728, %v2730
      %v2732 = vrot.slane %v2688, 4
      %v2733 = vsel %vm2463, %v2730, %v2732
      %v2734 = vrot.slane %v2690, 4
      %v2735 = vsel %vm2463, %v2732, %v2734
      %v2736 = vrot.slane %v2692, 4
      %v2737 = vsel %vm2463, %v2734, %v2736
      %v2738 = vrot.slane %v2694, 4
      %v2739 = vsel %vm2463, %v2736, %v2738
      %v2740 = vrot.slane %v2696, 4
      %v2741 = vsel %vm2463, %v2738, %v2740
      %v2742 = vrot.slane %v2698, 4
      %v2743 = vsel %vm2463, %v2740, %v2742
      %v2744 = vrot.slane %v2700, 4
      %v2745 = vsel %vm2463, %v2742, %v2744
      %v2746 = vrot.slane %v2702, 4
      %v2747 = vsel %vm2463, %v2744, %v2746
      %v2748 = vrot.slane %v2704, 4
      %v2749 = vsel %vm2463, %v2746, %v2748
      %v2750 = vrot.slane %v2724, 4
      %v2751 = vsel %vm2463, %v2748, %v2750
      %v2766 = vsub.f32 %v2723, %v2727
      %v2767 = vsub.f32 %v2684, %v2729
      %v2768 = vsub.f32 %v2686, %v2731
      %v2769 = vsub.f32 %v2688, %v2733
      %v2770 = vsub.f32 %v2690, %v2735
      %v2771 = vsub.f32 %v2692, %v2737
      %v2772 = vsub.f32 %v2694, %v2739
      %v2773 = vsub.f32 %v2696, %v2741
      %v2774 = vsub.f32 %v2698, %v2743
      %v2775 = vsub.f32 %v2700, %v2745
      %v2776 = vsub.f32 %v2702, %v2747
      %v2777 = vsub.f32 %v2704, %v2749
      %v2778 = vsub.f32 %v2724, %v2751
      %v2779 = vsub.f32 %v2660, %v2750
      %v2780 = vmul.f32 %v2766, 0.2
      %v2781 = vmul.f32 %v2767, 0.2
      %v2782 = vmul.f32 %v2768, 0.2
      %v2783 = vmul.f32 %v2769, 0.2
      %v2784 = vmul.f32 %v2770, 0.2
      %v2785 = vmul.f32 %v2771, 0.2
      %v2786 = vmul.f32 %v2772, 0.2
      %v2787 = vmul.f32 %v2773, 0.2
      %v2788 = vmul.f32 %v2774, 0.2
      %v2789 = vmul.f32 %v2775, 0.2
      %v2790 = vmul.f32 %v2776, 0.2
      %v2791 = vmul.f32 %v2777, 0.2
      %v2792 = vmul.f32 %v2778, 0.2
      %v2793 = vmul.f32 %v2779, 0.2
      %v2794 = vrot.slane %v2723, 6
      %v2795 = vrot.slane %v2684, 6
      %v2796 = vsel %vm2414, %v2794, %v2795
      %v2797 = vrot.slane %v2686, 6
      %v2798 = vsel %vm2414, %v2795, %v2797
      %v2799 = vrot.slane %v2688, 6
      %v2800 = vsel %vm2414, %v2797, %v2799
      %v2801 = vrot.slane %v2690, 6
      %v2802 = vsel %vm2414, %v2799, %v2801
      %v2803 = vrot.slane %v2692, 6
      %v2804 = vsel %vm2414, %v2801, %v2803
      %v2805 = vrot.slane %v2694, 6
      %v2806 = vsel %vm2414, %v2803, %v2805
      %v2807 = vrot.slane %v2696, 6
      %v2808 = vsel %vm2414, %v2805, %v2807
      %v2809 = vrot.slane %v2698, 6
      %v2810 = vsel %vm2414, %v2807, %v2809
      %v2811 = vrot.slane %v2700, 6
      %v2812 = vsel %vm2414, %v2809, %v2811
      %v2813 = vrot.slane %v2702, 6
      %v2814 = vsel %vm2414, %v2811, %v2813
      %v2815 = vrot.slane %v2704, 6
      %v2816 = vsel %vm2414, %v2813, %v2815
      %v2817 = vrot.slane %v2724, 6
      %v2818 = vsel %vm2414, %v2815, %v2817
      %v2832 = vsub.f32 %v2723, %v2794
      %v2833 = vsub.f32 %v2684, %v2796
      %v2834 = vsub.f32 %v2686, %v2798
      %v2835 = vsub.f32 %v2688, %v2800
      %v2836 = vsub.f32 %v2690, %v2802
      %v2837 = vsub.f32 %v2692, %v2804
      %v2838 = vsub.f32 %v2694, %v2806
      %v2839 = vsub.f32 %v2696, %v2808
      %v2840 = vsub.f32 %v2698, %v2810
      %v2841 = vsub.f32 %v2700, %v2812
      %v2842 = vsub.f32 %v2702, %v2814
      %v2843 = vsub.f32 %v2704, %v2816
      %v2844 = vsub.f32 %v2724, %v2818
      %v2845 = vmul.f32 %v2832, 0.1
      %v2846 = vmul.f32 %v2833, 0.1
      %v2847 = vmul.f32 %v2834, 0.1
      %v2848 = vmul.f32 %v2835, 0.1
      %v2849 = vmul.f32 %v2836, 0.1
      %v2850 = vmul.f32 %v2837, 0.1
      %v2851 = vmul.f32 %v2838, 0.1
      %v2852 = vmul.f32 %v2839, 0.1
      %v2853 = vmul.f32 %v2840, 0.1
      %v2854 = vmul.f32 %v2841, 0.1
      %v2855 = vmul.f32 %v2842, 0.1
      %v2856 = vmul.f32 %v2843, 0.1
      %v2857 = vmul.f32 %v2844, 0.1
      %v2871 = vrot.slane %v2845, 7
      %v2872 = vrot.slane %v2846, 7
      %v2873 = vsel %vm2457, %v2871, %v2872
      %v2874 = vrot.slane %v2847, 7
      %v2875 = vsel %vm2457, %v2872, %v2874
      %v2876 = vrot.slane %v2848, 7
      %v2877 = vsel %vm2457, %v2874, %v2876
      %v2878 = vrot.slane %v2849, 7
      %v2879 = vsel %vm2457, %v2876, %v2878
      %v2880 = vrot.slane %v2850, 7
      %v2881 = vsel %vm2457, %v2878, %v2880
      %v2882 = vrot.slane %v2851, 7
      %v2883 = vsel %vm2457, %v2880, %v2882
      %v2884 = vrot.slane %v2852, 7
      %v2885 = vsel %vm2457, %v2882, %v2884
      %v2886 = vrot.slane %v2853, 7
      %v2887 = vsel %vm2457, %v2884, %v2886
      %v2888 = vrot.slane %v2854, 7
      %v2889 = vsel %vm2457, %v2886, %v2888
      %v2890 = vrot.slane %v2855, 7
      %v2891 = vsel %vm2457, %v2888, %v2890
      %v2892 = vrot.slane %v2856, 7
      %v2893 = vsel %vm2457, %v2890, %v2892
      %v2894 = vrot.slane %v2857, 7
      %v2895 = vsel %vm2457, %v2892, %v2894
      %v2910 = vadd.f32 %v2780, %v2871
      %v2911 = vadd.f32 %v2781, %v2873
      %v2912 = vadd.f32 %v2782, %v2875
      %v2913 = vadd.f32 %v2783, %v2877
      %v2914 = vadd.f32 %v2784, %v2879
      %v2915 = vadd.f32 %v2785, %v2881
      %v2916 = vadd.f32 %v2786, %v2883
      %v2917 = vadd.f32 %v2787, %v2885
      %v2918 = vadd.f32 %v2788, %v2887
      %v2919 = vadd.f32 %v2789, %v2889
      %v2920 = vadd.f32 %v2790, %v2891
      %v2921 = vadd.f32 %v2791, %v2893
      %v2922 = vadd.f32 %v2792, %v2895
      %v2923 = vadd.f32 %v2793, %v2894
      %v2924 = vrot.slane %v2648, 4
      %v2925 = vsel %vm2463, %v2662, %v2924
      %v2926 = vrot.slane %v2649, 4
      %v2927 = vsel %vm2463, %v2924, %v2926
      %v2928 = vrot.slane %v2650, 4
      %v2929 = vsel %vm2463, %v2926, %v2928
      %v2930 = vrot.slane %v2651, 4
      %v2931 = vsel %vm2463, %v2928, %v2930
      %v2932 = vrot.slane %v2652, 4
      %v2933 = vsel %vm2463, %v2930, %v2932
      %v2934 = vrot.slane %v2653, 4
      %v2935 = vsel %vm2463, %v2932, %v2934
      %v2936 = vrot.slane %v2654, 4
      %v2937 = vsel %vm2463, %v2934, %v2936
      %v2938 = vrot.slane %v2655, 4
      %v2939 = vsel %vm2463, %v2936, %v2938
      %v2940 = vrot.slane %v2656, 4
      %v2941 = vsel %vm2463, %v2938, %v2940
      %v2942 = vrot.slane %v2657, 4
      %v2943 = vsel %vm2463, %v2940, %v2942
      %v2944 = vrot.slane %v2658, 4
      %v2945 = vsel %vm2463, %v2942, %v2944
      %v2946 = vrot.slane %v2659, 4
      %v2947 = vsel %vm2463, %v2944, %v2946
      %v2948 = vrot.slane %v2660, 4
      %v2949 = vsel %vm2463, %v2946, %v2948
      %2950 = vrot.lane.b32.xlu0 %v2925, 20
      %v2951 = vpop.permute.xlu0 %2950
      %2952 = vrot.lane.b32.xlu0 %v2927, 20
      %v2953 = vpop.permute.xlu0 %2952
      %2954 = vrot.lane.b32.xlu0 %v2929, 20
      %v2955 = vpop.permute.xlu0 %2954
      %2956 = vrot.lane.b32.xlu0 %v2931, 20
      %v2957 = vpop.permute.xlu0 %2956
      %2958 = vrot.lane.b32.xlu0 %v2933, 20
      %v2959 = vpop.permute.xlu0 %2958
      %2960 = vrot.lane.b32.xlu0 %v2935, 20
      %v2961 = vpop.permute.xlu0 %2960
      %2962 = vrot.lane.b32.xlu0 %v2937, 20
      %v2963 = vpop.permute.xlu0 %2962
      %2964 = vrot.lane.b32.xlu0 %v2939, 20
      %v2965 = vpop.permute.xlu0 %2964
      %2966 = vrot.lane.b32.xlu0 %v2941, 20
      %v2967 = vpop.permute.xlu0 %2966
      %2968 = vrot.lane.b32.xlu0 %v2943, 20
      %v2969 = vpop.permute.xlu0 %2968
      %2970 = vrot.lane.b32.xlu0 %v2945, 20
      %v2971 = vpop.permute.xlu0 %2970
      %2972 = vrot.lane.b32.xlu0 %v2947, 20
      %v2973 = vpop.permute.xlu0 %2972
      %2974 = vrot.lane.b32.xlu0 %v2949, 20
      %v2975 = vpop.permute.xlu0 %2974
      %v3003 = vrot.slane %v2910, 4
      %v3004 = vrot.slane %v2911, 4
      %v3005 = vsel %vm2463, %v3003, %v3004
      %v3006 = vrot.slane %v2912, 4
      %v3007 = vsel %vm2463, %v3004, %v3006
      %v3008 = vrot.slane %v2913, 4
      %v3009 = vsel %vm2463, %v3006, %v3008
      %v3010 = vrot.slane %v2914, 4
      %v3011 = vsel %vm2463, %v3008, %v3010
      %v3012 = vrot.slane %v2915, 4
      %v3013 = vsel %vm2463, %v3010, %v3012
      %v3014 = vrot.slane %v2916, 4
      %v3015 = vsel %vm2463, %v3012, %v3014
      %v3016 = vrot.slane %v2917, 4
      %v3017 = vsel %vm2463, %v3014, %v3016
      %v3018 = vrot.slane %v2918, 4
      %v3019 = vsel %vm2463, %v3016, %v3018
      %v3020 = vrot.slane %v2919, 4
      %v3021 = vsel %vm2463, %v3018, %v3020
      %v3022 = vrot.slane %v2920, 4
      %v3023 = vsel %vm2463, %v3020, %v3022
      %v3024 = vrot.slane %v2921, 4
      %v3025 = vsel %vm2463, %v3022, %v3024
      %v3026 = vrot.slane %v2922, 4
      %v3027 = vsel %vm2463, %v3024, %v3026
      %v3028 = vrot.slane %v2923, 4
      %v3029 = vsel %vm2463, %v3026, %v3028
      %3030 = vrot.lane.b32.xlu0 %v3005, 40
      %v3031 = vpop.permute.xlu0 %3030
      %3032 = vrot.lane.b32.xlu0 %v3007, 40
      %v3033 = vpop.permute.xlu0 %3032
      %3034 = vrot.lane.b32.xlu0 %v3009, 40
      %v3035 = vpop.permute.xlu0 %3034
      %3036 = vrot.lane.b32.xlu0 %v3011, 40
      %v3037 = vpop.permute.xlu0 %3036
      %3038 = vrot.lane.b32.xlu0 %v3013, 40
      %v3039 = vpop.permute.xlu0 %3038
      %3040 = vrot.lane.b32.xlu0 %v3015, 40
      %v3041 = vpop.permute.xlu0 %3040
      %3042 = vrot.lane.b32.xlu0 %v3017, 40
      %v3043 = vpop.permute.xlu0 %3042
      %3044 = vrot.lane.b32.xlu0 %v3019, 40
      %v3045 = vpop.permute.xlu0 %3044
      %3046 = vrot.lane.b32.xlu0 %v3021, 40
      %v3047 = vpop.permute.xlu0 %3046
      %3048 = vrot.lane.b32.xlu0 %v3023, 40
      %v3049 = vpop.permute.xlu0 %3048
      %3050 = vrot.lane.b32.xlu0 %v3025, 40
      %v3051 = vpop.permute.xlu0 %3050
      %3052 = vrot.lane.b32.xlu0 %v3027, 40
      %v3053 = vpop.permute.xlu0 %3052
      %3054 = vrot.lane.b32.xlu0 %v3029, 40
      %v3055 = vpop.permute.xlu0 %3054
      %vm3069 = vcmask 162816
      %v3070 = vsel %vm3069, %v2336, %v2951
      %v3071 = vsel %vm3069, %v2341, %v2953
      %v3072 = vsel %vm3069, %v2346, %v2955
      %v3073 = vsel %vm3069, %v2351, %v2957
      %v3074 = vsel %vm3069, %v2356, %v2959
      %v3075 = vsel %vm3069, %v2361, %v2961
      %v3076 = vsel %vm3069, %v2366, %v2963
      %v3077 = vsel %vm3069, %v2371, %v2965
      %v3078 = vsel %vm3069, %v2376, %v2967
      %v3079 = vsel %vm3069, %v2381, %v2969
      %v3080 = vsel %vm3069, %v2386, %v2971
      %v3081 = vsel %vm3069, %v2391, %v2973
      %v3082 = vsel %vm3069, %v2396, %v2975
      %vm3083 = vcmask 326656
      %v3084 = vsel %vm3083, %v3070, %v3031
      %v3085 = vsel %vm3083, %v3071, %v3033
      %v3086 = vsel %vm3083, %v3072, %v3035
      %v3087 = vsel %vm3083, %v3073, %v3037
      %v3088 = vsel %vm3083, %v3074, %v3039
      %v3089 = vsel %vm3083, %v3075, %v3041
      %v3090 = vsel %vm3083, %v3076, %v3043
      %v3091 = vsel %vm3083, %v3077, %v3045
      %v3092 = vsel %vm3083, %v3078, %v3047
      %v3093 = vsel %vm3083, %v3079, %v3049
      %v3094 = vsel %vm3083, %v3080, %v3051
      %v3095 = vsel %vm3083, %v3081, %v3053
      %v3096 = vsel %vm3083, %v3082, %v3055
      %v3097 = vld [vmem:[%s4] sm:$0xff]
      %v3098 = vld [vmem:[%s4 + $0x8] sm:$0xff]
      %v3099 = vld [vmem:[%s4 + $0x10] sm:$0xff]
      %v3100 = vld [vmem:[%s4 + $0x18] sm:$0xff]
      %v3101 = vld [vmem:[%s4 + $0x20] sm:$0xff]
      %v3102 = vld [vmem:[%s4 + $0x28] sm:$0xff]
      %v3103 = vld [vmem:[%s4 + $0x30] sm:$0xff]
      %v3104 = vld [vmem:[%s4 + $0x38] sm:$0xff]
      %v3105 = vld [vmem:[%s4 + $0x40] sm:$0xff]
      %v3106 = vld [vmem:[%s4 + $0x48] sm:$0xff]
      %v3107 = vld [vmem:[%s4 + $0x50] sm:$0xff]
      %v3108 = vld [vmem:[%s4 + $0x58] sm:$0xff]
      %v3109 = vld [vmem:[%s4 + $0x60] sm:$0xff]
      %v3110 = vld [vmem:[%s4 + $0x68] sm:$0xff]
      %v3111 = vld [vmem:[%s4 + $0x70] sm:$0xff]
      %v3112 = vld [vmem:[%s4 + $0x78] sm:$0xff]
      %v3113 = vld [vmem:[%s4 + $0x80] sm:$0xff]
      %v3114 = vld [vmem:[%s4 + $0x88] sm:$0xff]
      %v3115 = vld [vmem:[%s4 + $0x90] sm:$0xff]
      %v3116 = vld [vmem:[%s4 + $0x98] sm:$0xff]
      %v3117 = vld [vmem:[%s4 + $0xa0] sm:$0xff]
      %v3118 = vld [vmem:[%s4 + $0xa8] sm:$0xff]
      %v3119 = vld [vmem:[%s4 + $0xb0] sm:$0xff]
      %v3120 = vld [vmem:[%s4 + $0xb8] sm:$0xff]
      %v3121 = vld [vmem:[%s4 + $0xc0] sm:$0xff]
      %v3122 = vld [vmem:[%s4 + $0xc8] sm:$0xff]
      %v3123 = vld [vmem:[%s4 + $0xd0] sm:$0xff]
      %v3124 = vld [vmem:[%s4 + $0xd8] sm:$0xff]
      %v3125 = vld [vmem:[%s4 + $0xe0] sm:$0xff]
      %v3126 = vld [vmem:[%s4 + $0xe8] sm:$0xff]
      %v3127 = vld [vmem:[%s4 + $0xf0] sm:$0xff]
      %v3128 = vld [vmem:[%s4 + $0xf8] sm:$0xff]
      %v3129 = vld [vmem:[%s4 + $0x100] sm:$0xff]
      %v3130 = vld [vmem:[%s4 + $0x108] sm:$0xff]
      %v3131 = vld [vmem:[%s4 + $0x110] sm:$0xff]
      %v3132 = vld [vmem:[%s4 + $0x118] sm:$0xff]
      %v3133 = vld [vmem:[%s4 + $0x120] sm:$0xff]
      %v3134 = vld [vmem:[%s4 + $0x128] sm:$0xff]
      %v3135 = vld [vmem:[%s4 + $0x130] sm:$0xff]
      %v3136 = vld [vmem:[%s4 + $0x138] sm:$0xff]
      %v3137 = vld [vmem:[%s4 + $0x140] sm:$0xff]
      %v3138 = vld [vmem:[%s4 + $0x148] sm:$0xff]
      %v3139 = vld [vmem:[%s4 + $0x150] sm:$0xf]
      %v3140 = vld [vmem:[%s4 + $0x158] sm:$0xf]
      %v3141 = vld [vmem:[%s4 + $0x160] sm:$0xf]
      %v3142 = vld [vmem:[%s4 + $0x168] sm:$0xf]
      %v3143 = vld [vmem:[%s4 + $0x170] sm:$0xf]
      %v3144 = vld [vmem:[%s4 + $0x178] sm:$0xf]
      %vm3145 = vcmask 490496
      %v3147 = vsel %vm3145, %v3084, 0
      %v3150 = vsel %vm3145, %v3085, 0
      %v3153 = vsel %vm3145, %v3086, 0
      %v3156 = vsel %vm3145, %v3087, 0
      %v3159 = vsel %vm3145, %v3088, 0
      %v3162 = vsel %vm3145, %v3089, 0
      %v3165 = vsel %vm3145, %v3090, 0
      %v3168 = vsel %vm3145, %v3091, 0
      %v3171 = vsel %vm3145, %v3092, 0
      %v3174 = vsel %vm3145, %v3093, 0
      %v3177 = vsel %vm3145, %v3094, 0
      %v3180 = vsel %vm3145, %v3095, 0
      %v3183 = vsel %vm3145, %v3096, 0
      %v3186 = vsel %vm2463, %v3139, 0
      %v3189 = vsel %vm2463, %v3140, 0
      %v3192 = vsel %vm2463, %v3141, 0
      %v3195 = vsel %vm2463, %v3142, 0
      %v3198 = vsel %vm2463, %v3143, 0
      %v3201 = vsel %vm2463, %v3144, 0
      %3203 = vmatprep.subr.mxu0 %v3098
      %3204 = vmatpush1.msra.mxu0 %v3097
      %3205 = vmatprep.subr.mxu0 %v3104
      %3206 = vmatpush1.msra.mxu0 %v3103
      %3207 = vmatprep.subr.mxu0 %v3110
      %3208 = vmatpush1.msra.mxu0 %v3109
      %3209 = vmatprep.subr.mxu0 %v3116
      %3210 = vmatpush1.msra.mxu0 %v3115
      %3211 = vmatprep.subr.mxu0 %v3122
      %3212 = vmatpush1.msra.mxu0 %v3121
      %3213 = vmatprep.subr.mxu0 %v3128
      %3214 = vmatpush1.msra.mxu0 %v3127
      %3215 = vmatprep.subr.mxu0 %v3134
      %3216 = vmatpush1.msra.mxu0 %v3133
      %3217 = vmatprep.subr.mxu0 %v3189
      %3218 = vmatpush1.msra.mxu0 %v3186
      %3219 = vmatprep.subr.mxu0 0.0
      %3220 = vmatpush1.msra.mxu0 0.0
      %3221 = vmatprep.subr.mxu0 0.0
      %3222 = vmatpush1.msra.mxu0 0.0
      %3223 = vmatprep.subr.mxu0 0.0
      %3224 = vmatpush1.msra.mxu0 0.0
      %3225 = vmatprep.subr.mxu0 0.0
      %3226 = vmatpush1.msra.mxu0 0.0
      %3227 = vmatprep.subr.mxu0 0.0
      %3228 = vmatpush1.msra.mxu0 0.0
      %3229 = vmatprep.subr.mxu0 0.0
      %3230 = vmatpush1.msra.mxu0 0.0
      %3231 = vmatprep.subr.mxu0 0.0
      %3232 = vmatpush1.msra.mxu0 0.0
      %3233 = vmatprep.subr.mxu0 0.0
      %3234 = vmatpush1.msra.mxu0 0.0
      %3235 = vmatprep.subr.mxu0 0.0
      %3236 = vmatpush1.msra.mxu0 0.0
      %3237 = vmatprep.subr.mxu0 0.0
      %3238 = vmatpush1.msra.mxu0 0.0
      %3239 = vmatprep.subr.mxu0 0.0
      %3240 = vmatpush1.msra.mxu0 0.0
      %3241 = vmatprep.subr.mxu0 0.0
      %3242 = vmatpush1.msra.mxu0 0.0
      %3243 = vmatprep.subr.mxu0 0.0
      %3244 = vmatpush1.msra.mxu0 0.0
      %3245 = vmatprep.subr.mxu0 0.0
      %3246 = vmatpush1.msra.mxu0 0.0
      %3247 = vmatprep.subr.mxu0 0.0
      %3248 = vmatpush1.msra.mxu0 0.0
      %3249 = vmatprep.subr.mxu0 0.0
      %3250 = vmatpush1.msra.mxu0 0.0
      %3251 = vmatprep.subr.mxu0 0.0
      %3252 = vmatpush1.msra.mxu0 0.0
      %3253 = vmatprep.subr.mxu0 0.0
      %3254 = vmatpush1.msra.mxu0 0.0
      %3255 = vmatprep.subr.mxu0 0.0
      %3256 = vmatpush1.msra.mxu0 0.0
      %3257 = vmatprep.subr.mxu0 0.0
      %3258 = vmatpush1.msra.mxu0 0.0
      %3259 = vmatprep.subr.mxu0 0.0
      %3260 = vmatpush1.msra.mxu0 0.0
      %3261 = vmatprep.subr.mxu0 0.0
      %3262 = vmatpush1.msra.mxu0 0.0
      %3263 = vmatprep.subr.mxu0 0.0
      %3264 = vmatpush1.msra.mxu0 0.0
      %3265 = vmatprep.subr.mxu0 0.0
      %3266 = vmatpush1.msra.mxu0 0.0
      %3267 = vmatprep.mubr.f32.mxu0 0.0
      %3268 = vmatmul.mubr.f32.gmra.mrb[0].mxu0 %v3147
      %v3269 = vpop.f32.mrb[0].mxu0
      %v3270 = vadd.f32 0.0, %v3269
      %v3271 = vpop.f32.mrb[0].mxu0
      %v3272 = vadd.f32 0.0, %v3271
      %3273 = vmatprep.mubr.f32.mxu0 0.0
      %3274 = vmatmul.mubr.f32.gmra.mrb[0].mxu0 %v3150
      %v3275 = vpop.f32.mrb[0].mxu0
      %v3276 = vadd.f32 0.0, %v3275
      %v3277 = vpop.f32.mrb[0].mxu0
      %v3278 = vadd.f32 0.0, %v3277
      %3279 = vmatprep.mubr.f32.mxu0 0.0
      %3280 = vmatmul.mubr.f32.gmra.mrb[0].mxu0 %v3153
      %v3281 = vpop.f32.mrb[0].mxu0
      %v3282 = vadd.f32 0.0, %v3281
      %v3283 = vpop.f32.mrb[0].mxu0
      %v3284 = vadd.f32 0.0, %v3283
      %3285 = vmatprep.mubr.f32.mxu0 0.0
      %3286 = vmatmul.mubr.f32.gmra.mrb[0].mxu0 %v3156
      %v3287 = vpop.f32.mrb[0].mxu0
      %v3288 = vadd.f32 0.0, %v3287
      %v3289 = vpop.f32.mrb[0].mxu0
      %v3290 = vadd.f32 0.0, %v3289
      %3291 = vmatprep.mubr.f32.mxu0 0.0
      %3292 = vmatmul.mubr.f32.gmra.mrb[0].mxu0 %v3159
      %v3293 = vpop.f32.mrb[0].mxu0
      %v3294 = vadd.f32 0.0, %v3293
      %v3295 = vpop.f32.mrb[0].mxu0
      %v3296 = vadd.f32 0.0, %v3295
      %3297 = vmatprep.mubr.f32.mxu0 0.0
      %3298 = vmatmul.mubr.f32.gmra.mrb[0].mxu0 %v3162
      %v3299 = vpop.f32.mrb[0].mxu0
      %v3300 = vadd.f32 0.0, %v3299
      %v3301 = vpop.f32.mrb[0].mxu0
      %v3302 = vadd.f32 0.0, %v3301
      %3303 = vmatprep.mubr.f32.mxu0 0.0
      %3304 = vmatmul.mubr.f32.gmra.mrb[0].mxu0 %v3165
      %v3305 = vpop.f32.mrb[0].mxu0
      %v3306 = vadd.f32 0.0, %v3305
      %v3307 = vpop.f32.mrb[0].mxu0
      %v3308 = vadd.f32 0.0, %v3307
      %3309 = vmatprep.mubr.f32.mxu0 0.0
      %3310 = vmatmul.mubr.f32.gmra.mrb[0].mxu0 %v3168
      %v3311 = vpop.f32.mrb[0].mxu0
      %v3312 = vadd.f32 0.0, %v3311
      %v3313 = vpop.f32.mrb[0].mxu0
      %v3314 = vadd.f32 0.0, %v3313
      %3315 = vmatprep.mubr.f32.mxu0 0.0
      %3316 = vmatmul.mubr.f32.gmra.mrb[0].mxu0 %v3171
      %v3317 = vpop.f32.mrb[0].mxu0
      %v3318 = vadd.f32 0.0, %v3317
      %v3319 = vpop.f32.mrb[0].mxu0
      %v3320 = vadd.f32 0.0, %v3319
      %3321 = vmatprep.mubr.f32.mxu0 0.0
      %3322 = vmatmul.mubr.f32.gmra.mrb[0].mxu0 %v3174
      %v3323 = vpop.f32.mrb[0].mxu0
      %v3324 = vadd.f32 0.0, %v3323
      %v3325 = vpop.f32.mrb[0].mxu0
      %v3326 = vadd.f32 0.0, %v3325
      %3327 = vmatprep.mubr.f32.mxu0 0.0
      %3328 = vmatmul.mubr.f32.gmra.mrb[0].mxu0 %v3177
      %v3329 = vpop.f32.mrb[0].mxu0
      %v3330 = vadd.f32 0.0, %v3329
      %v3331 = vpop.f32.mrb[0].mxu0
      %v3332 = vadd.f32 0.0, %v3331
      %3333 = vmatprep.mubr.f32.mxu0 0.0
      %3334 = vmatmul.mubr.f32.gmra.mrb[0].mxu0 %v3180
      %v3335 = vpop.f32.mrb[0].mxu0
      %v3336 = vadd.f32 0.0, %v3335
      %v3337 = vpop.f32.mrb[0].mxu0
      %v3338 = vadd.f32 0.0, %v3337
      %3339 = vmatprep.mubr.f32.mxu0 0.0
      %3340 = vmatmul.mubr.f32.gmra.mrb[0].mxu0 %v3183
      %v3341 = vpop.f32.mrb[0].mxu0
      %v3342 = vadd.f32 0.0, %v3341
      %v3343 = vpop.f32.mrb[0].mxu0
      %v3344 = vadd.f32 0.0, %v3343
      %3345 = vdwg.mxu0
      %3346 = vmatprep.subr.mxu0 %v3100
      %3347 = vmatpush1.msra.mxu0 %v3099
      %3348 = vmatprep.subr.mxu0 %v3106
      %3349 = vmatpush1.msra.mxu0 %v3105
      %3350 = vmatprep.subr.mxu0 %v3112
      %3351 = vmatpush1.msra.mxu0 %v3111
      %3352 = vmatprep.subr.mxu0 %v3118
      %3353 = vmatpush1.msra.mxu0 %v3117
      %3354 = vmatprep.subr.mxu0 %v3124
      %3355 = vmatpush1.msra.mxu0 %v3123
      %3356 = vmatprep.subr.mxu0 %v3130
      %3357 = vmatpush1.msra.mxu0 %v3129
      %3358 = vmatprep.subr.mxu0 %v3136
      %3359 = vmatpush1.msra.mxu0 %v3135
      %3360 = vmatprep.subr.mxu0 %v3195
      %3361 = vmatpush1.msra.mxu0 %v3192
      %3362 = vmatprep.subr.mxu0 0.0
      %3363 = vmatpush1.msra.mxu0 0.0
      %3364 = vmatprep.subr.mxu0 0.0
      %3365 = vmatpush1.msra.mxu0 0.0
      %3366 = vmatprep.subr.mxu0 0.0
      %3367 = vmatpush1.msra.mxu0 0.0
      %3368 = vmatprep.subr.mxu0 0.0
      %3369 = vmatpush1.msra.mxu0 0.0
      %3370 = vmatprep.subr.mxu0 0.0
      %3371 = vmatpush1.msra.mxu0 0.0
      %3372 = vmatprep.subr.mxu0 0.0
      %3373 = vmatpush1.msra.mxu0 0.0
      %3374 = vmatprep.subr.mxu0 0.0
      %3375 = vmatpush1.msra.mxu0 0.0
      %3376 = vmatprep.subr.mxu0 0.0
      %3377 = vmatpush1.msra.mxu0 0.0
      %3378 = vmatprep.subr.mxu0 0.0
      %3379 = vmatpush1.msra.mxu0 0.0
      %3380 = vmatprep.subr.mxu0 0.0
      %3381 = vmatpush1.msra.mxu0 0.0
      %3382 = vmatprep.subr.mxu0 0.0
      %3383 = vmatpush1.msra.mxu0 0.0
      %3384 = vmatprep.subr.mxu0 0.0
      %3385 = vmatpush1.msra.mxu0 0.0
      %3386 = vmatprep.subr.mxu0 0.0
      %3387 = vmatpush1.msra.mxu0 0.0
      %3388 = vmatprep.subr.mxu0 0.0
      %3389 = vmatpush1.msra.mxu0 0.0
      %3390 = vmatprep.subr.mxu0 0.0
      %3391 = vmatpush1.msra.mxu0 0.0
      %3392 = vmatprep.subr.mxu0 0.0
      %3393 = vmatpush1.msra.mxu0 0.0
      %3394 = vmatprep.subr.mxu0 0.0
      %3395 = vmatpush1.msra.mxu0 0.0
      %3396 = vmatprep.subr.mxu0 0.0
      %3397 = vmatpush1.msra.mxu0 0.0
      %3398 = vmatprep.subr.mxu0 0.0
      %3399 = vmatpush1.msra.mxu0 0.0
      %3400 = vmatprep.subr.mxu0 0.0
      %3401 = vmatpush1.msra.mxu0 0.0
      %3402 = vmatprep.subr.mxu0 0.0
      %3403 = vmatpush1.msra.mxu0 0.0
      %3404 = vmatprep.subr.mxu0 0.0
      %3405 = vmatpush1.msra.mxu0 0.0
      %3406 = vmatprep.subr.mxu0 0.0
      %3407 = vmatpush1.msra.mxu0 0.0
      %3408 = vmatprep.subr.mxu0 0.0
      %3409 = vmatpush1.msra.mxu0 0.0
      %3410 = vmatprep.mubr.f32.mxu0 0.0
      %3411 = vmatmul.mubr.f32.gmra.mrb[0].mxu0 %v3147
      %v3412 = vpop.f32.mrb[0].mxu0
      %v3413 = vadd.f32 0.0, %v3412
      %v3414 = vpop.f32.mrb[0].mxu0
      %v3415 = vadd.f32 0.0, %v3414
      %3416 = vmatprep.mubr.f32.mxu0 0.0
      %3417 = vmatmul.mubr.f32.gmra.mrb[0].mxu0 %v3150
      %v3418 = vpop.f32.mrb[0].mxu0
      %v3419 = vadd.f32 0.0, %v3418
      %v3420 = vpop.f32.mrb[0].mxu0
      %v3421 = vadd.f32 0.0, %v3420
      %3422 = vmatprep.mubr.f32.mxu0 0.0
      %3423 = vmatmul.mubr.f32.gmra.mrb[0].mxu0 %v3153
      %v3424 = vpop.f32.mrb[0].mxu0
      %v3425 = vadd.f32 0.0, %v3424
      %v3426 = vpop.f32.mrb[0].mxu0
      %v3427 = vadd.f32 0.0, %v3426
      %3428 = vmatprep.mubr.f32.mxu0 0.0
      %3429 = vmatmul.mubr.f32.gmra.mrb[0].mxu0 %v3156
      %v3430 = vpop.f32.mrb[0].mxu0
      %v3431 = vadd.f32 0.0, %v3430
      %v3432 = vpop.f32.mrb[0].mxu0
      %v3433 = vadd.f32 0.0, %v3432
      %3434 = vmatprep.mubr.f32.mxu0 0.0
      %3435 = vmatmul.mubr.f32.gmra.mrb[0].mxu0 %v3159
      %v3436 = vpop.f32.mrb[0].mxu0
      %v3437 = vadd.f32 0.0, %v3436
      %v3438 = vpop.f32.mrb[0].mxu0
      %v3439 = vadd.f32 0.0, %v3438
      %3440 = vmatprep.mubr.f32.mxu0 0.0
      %3441 = vmatmul.mubr.f32.gmra.mrb[0].mxu0 %v3162
      %v3442 = vpop.f32.mrb[0].mxu0
      %v3443 = vadd.f32 0.0, %v3442
      %v3444 = vpop.f32.mrb[0].mxu0
      %v3445 = vadd.f32 0.0, %v3444
      %3446 = vmatprep.mubr.f32.mxu0 0.0
      %3447 = vmatmul.mubr.f32.gmra.mrb[0].mxu0 %v3165
      %v3448 = vpop.f32.mrb[0].mxu0
      %v3449 = vadd.f32 0.0, %v3448
      %v3450 = vpop.f32.mrb[0].mxu0
      %v3451 = vadd.f32 0.0, %v3450
      %3452 = vmatprep.mubr.f32.mxu0 0.0
      %3453 = vmatmul.mubr.f32.gmra.mrb[0].mxu0 %v3168
      %v3454 = vpop.f32.mrb[0].mxu0
      %v3455 = vadd.f32 0.0, %v3454
      %v3456 = vpop.f32.mrb[0].mxu0
      %v3457 = vadd.f32 0.0, %v3456
      %3458 = vmatprep.mubr.f32.mxu0 0.0
      %3459 = vmatmul.mubr.f32.gmra.mrb[0].mxu0 %v3171
      %v3460 = vpop.f32.mrb[0].mxu0
      %v3461 = vadd.f32 0.0, %v3460
      %v3462 = vpop.f32.mrb[0].mxu0
      %v3463 = vadd.f32 0.0, %v3462
      %3464 = vmatprep.mubr.f32.mxu0 0.0
      %3465 = vmatmul.mubr.f32.gmra.mrb[0].mxu0 %v3174
      %v3466 = vpop.f32.mrb[0].mxu0
      %v3467 = vadd.f32 0.0, %v3466
      %v3468 = vpop.f32.mrb[0].mxu0
      %v3469 = vadd.f32 0.0, %v3468
      %3470 = vmatprep.mubr.f32.mxu0 0.0
      %3471 = vmatmul.mubr.f32.gmra.mrb[0].mxu0 %v3177
      %v3472 = vpop.f32.mrb[0].mxu0
      %v3473 = vadd.f32 0.0, %v3472
      %v3474 = vpop.f32.mrb[0].mxu0
      %v3475 = vadd.f32 0.0, %v3474
      %3476 = vmatprep.mubr.f32.mxu0 0.0
      %3477 = vmatmul.mubr.f32.gmra.mrb[0].mxu0 %v3180
      %v3478 = vpop.f32.mrb[0].mxu0
      %v3479 = vadd.f32 0.0, %v3478
      %v3480 = vpop.f32.mrb[0].mxu0
      %v3481 = vadd.f32 0.0, %v3480
      %3482 = vmatprep.mubr.f32.mxu0 0.0
      %3483 = vmatmul.mubr.f32.gmra.mrb[0].mxu0 %v3183
      %v3484 = vpop.f32.mrb[0].mxu0
      %v3485 = vadd.f32 0.0, %v3484
      %v3486 = vpop.f32.mrb[0].mxu0
      %v3487 = vadd.f32 0.0, %v3486
      %3488 = vdwg.mxu0
      %3489 = vmatprep.subr.mxu0 %v3102
      %3490 = vmatpush1.msra.mxu0 %v3101
      %3491 = vmatprep.subr.mxu0 %v3108
      %3492 = vmatpush1.msra.mxu0 %v3107
      %3493 = vmatprep.subr.mxu0 %v3114
      %3494 = vmatpush1.msra.mxu0 %v3113
      %3495 = vmatprep.subr.mxu0 %v3120
      %3496 = vmatpush1.msra.mxu0 %v3119
      %3497 = vmatprep.subr.mxu0 %v3126
      %3498 = vmatpush1.msra.mxu0 %v3125
      %3499 = vmatprep.subr.mxu0 %v3132
      %3500 = vmatpush1.msra.mxu0 %v3131
      %3501 = vmatprep.subr.mxu0 %v3138
      %3502 = vmatpush1.msra.mxu0 %v3137
      %3503 = vmatprep.subr.mxu0 %v3201
      %3504 = vmatpush1.msra.mxu0 %v3198
      %3505 = vmatprep.subr.mxu0 0.0
      %3506 = vmatpush1.msra.mxu0 0.0
      %3507 = vmatprep.subr.mxu0 0.0
      %3508 = vmatpush1.msra.mxu0 0.0
      %3509 = vmatprep.subr.mxu0 0.0
      %3510 = vmatpush1.msra.mxu0 0.0
      %3511 = vmatprep.subr.mxu0 0.0
      %3512 = vmatpush1.msra.mxu0 0.0
      %3513 = vmatprep.subr.mxu0 0.0
      %3514 = vmatpush1.msra.mxu0 0.0
      %3515 = vmatprep.subr.mxu0 0.0
      %3516 = vmatpush1.msra.mxu0 0.0
      %3517 = vmatprep.subr.mxu0 0.0
      %3518 = vmatpush1.msra.mxu0 0.0
      %3519 = vmatprep.subr.mxu0 0.0
      %3520 = vmatpush1.msra.mxu0 0.0
      %3521 = vmatprep.subr.mxu0 0.0
      %3522 = vmatpush1.msra.mxu0 0.0
      %3523 = vmatprep.subr.mxu0 0.0
      %3524 = vmatpush1.msra.mxu0 0.0
      %3525 = vmatprep.subr.mxu0 0.0
      %3526 = vmatpush1.msra.mxu0 0.0
      %3527 = vmatprep.subr.mxu0 0.0
      %3528 = vmatpush1.msra.mxu0 0.0
      %3529 = vmatprep.subr.mxu0 0.0
      %3530 = vmatpush1.msra.mxu0 0.0
      %3531 = vmatprep.subr.mxu0 0.0
      %3532 = vmatpush1.msra.mxu0 0.0
      %3533 = vmatprep.subr.mxu0 0.0
      %3534 = vmatpush1.msra.mxu0 0.0
      %3535 = vmatprep.subr.mxu0 0.0
      %3536 = vmatpush1.msra.mxu0 0.0
      %3537 = vmatprep.subr.mxu0 0.0
      %3538 = vmatpush1.msra.mxu0 0.0
      %3539 = vmatprep.subr.mxu0 0.0
      %3540 = vmatpush1.msra.mxu0 0.0
      %3541 = vmatprep.subr.mxu0 0.0
      %3542 = vmatpush1.msra.mxu0 0.0
      %3543 = vmatprep.subr.mxu0 0.0
      %3544 = vmatpush1.msra.mxu0 0.0
      %3545 = vmatprep.subr.mxu0 0.0
      %3546 = vmatpush1.msra.mxu0 0.0
      %3547 = vmatprep.subr.mxu0 0.0
      %3548 = vmatpush1.msra.mxu0 0.0
      %3549 = vmatprep.subr.mxu0 0.0
      %3550 = vmatpush1.msra.mxu0 0.0
      %3551 = vmatprep.subr.mxu0 0.0
      %3552 = vmatpush1.msra.mxu0 0.0
      %3553 = vmatprep.mubr.f32.mxu0 0.0
      %3554 = vmatmul.mubr.f32.gmra.mrb[0].mxu0 %v3147
      %v3555 = vpop.f32.mrb[0].mxu0
      %v3556 = vadd.f32 0.0, %v3555
      %v3557 = vpop.f32.mrb[0].mxu0
      %v3558 = vadd.f32 0.0, %v3557
      %3559 = vmatprep.mubr.f32.mxu0 0.0
      %3560 = vmatmul.mubr.f32.gmra.mrb[0].mxu0 %v3150
      %v3561 = vpop.f32.mrb[0].mxu0
      %v3562 = vadd.f32 0.0, %v3561
      %v3563 = vpop.f32.mrb[0].mxu0
      %v3564 = vadd.f32 0.0, %v3563
      %3565 = vmatprep.mubr.f32.mxu0 0.0
      %3566 = vmatmul.mubr.f32.gmra.mrb[0].mxu0 %v3153
      %v3567 = vpop.f32.mrb[0].mxu0
      %v3568 = vadd.f32 0.0, %v3567
      %v3569 = vpop.f32.mrb[0].mxu0
      %v3570 = vadd.f32 0.0, %v3569
      %3571 = vmatprep.mubr.f32.mxu0 0.0
      %3572 = vmatmul.mubr.f32.gmra.mrb[0].mxu0 %v3156
      %v3573 = vpop.f32.mrb[0].mxu0
      %v3574 = vadd.f32 0.0, %v3573
      %v3575 = vpop.f32.mrb[0].mxu0
      %v3576 = vadd.f32 0.0, %v3575
      %3577 = vmatprep.mubr.f32.mxu0 0.0
      %3578 = vmatmul.mubr.f32.gmra.mrb[0].mxu0 %v3159
      %v3579 = vpop.f32.mrb[0].mxu0
      %v3580 = vadd.f32 0.0, %v3579
      %v3581 = vpop.f32.mrb[0].mxu0
      %v3582 = vadd.f32 0.0, %v3581
      %3583 = vmatprep.mubr.f32.mxu0 0.0
      %3584 = vmatmul.mubr.f32.gmra.mrb[0].mxu0 %v3162
      %v3585 = vpop.f32.mrb[0].mxu0
      %v3586 = vadd.f32 0.0, %v3585
      %v3587 = vpop.f32.mrb[0].mxu0
      %v3588 = vadd.f32 0.0, %v3587
      %3589 = vmatprep.mubr.f32.mxu0 0.0
      %3590 = vmatmul.mubr.f32.gmra.mrb[0].mxu0 %v3165
      %v3591 = vpop.f32.mrb[0].mxu0
      %v3592 = vadd.f32 0.0, %v3591
      %v3593 = vpop.f32.mrb[0].mxu0
      %v3594 = vadd.f32 0.0, %v3593
      %3595 = vmatprep.mubr.f32.mxu0 0.0
      %3596 = vmatmul.mubr.f32.gmra.mrb[0].mxu0 %v3168
      %v3597 = vpop.f32.mrb[0].mxu0
      %v3598 = vadd.f32 0.0, %v3597
      %v3599 = vpop.f32.mrb[0].mxu0
      %v3600 = vadd.f32 0.0, %v3599
      %3601 = vmatprep.mubr.f32.mxu0 0.0
      %3602 = vmatmul.mubr.f32.gmra.mrb[0].mxu0 %v3171
      %v3603 = vpop.f32.mrb[0].mxu0
      %v3604 = vadd.f32 0.0, %v3603
      %v3605 = vpop.f32.mrb[0].mxu0
      %v3606 = vadd.f32 0.0, %v3605
      %3607 = vmatprep.mubr.f32.mxu0 0.0
      %3608 = vmatmul.mubr.f32.gmra.mrb[0].mxu0 %v3174
      %v3609 = vpop.f32.mrb[0].mxu0
      %v3610 = vadd.f32 0.0, %v3609
      %v3611 = vpop.f32.mrb[0].mxu0
      %v3612 = vadd.f32 0.0, %v3611
      %3613 = vmatprep.mubr.f32.mxu0 0.0
      %3614 = vmatmul.mubr.f32.gmra.mrb[0].mxu0 %v3177
      %v3615 = vpop.f32.mrb[0].mxu0
      %v3616 = vadd.f32 0.0, %v3615
      %v3617 = vpop.f32.mrb[0].mxu0
      %v3618 = vadd.f32 0.0, %v3617
      %3619 = vmatprep.mubr.f32.mxu0 0.0
      %3620 = vmatmul.mubr.f32.gmra.mrb[0].mxu0 %v3180
      %v3621 = vpop.f32.mrb[0].mxu0
      %v3622 = vadd.f32 0.0, %v3621
      %v3623 = vpop.f32.mrb[0].mxu0
      %v3624 = vadd.f32 0.0, %v3623
      %3625 = vmatprep.mubr.f32.mxu0 0.0
      %3626 = vmatmul.mubr.f32.gmra.mrb[0].mxu0 %v3183
      %v3627 = vpop.f32.mrb[0].mxu0
      %v3628 = vadd.f32 0.0, %v3627
      %v3629 = vpop.f32.mrb[0].mxu0
      %v3630 = vadd.f32 0.0, %v3629
      %3631 = vdwg.mxu0
      %3632 = vst [vmem:[#allocation2] sm:$0x1f] 0.0
      %3633 = vst [vmem:[#allocation2 + $0x8] sm:$0x1f] 0.0
      %3634 = vst [vmem:[#allocation2 + $0x10] sm:$0x1f] 0.0
      %3635 = vst [vmem:[#allocation2 + $0x18] sm:$0x1f] 0.0
      %3636 = vst [vmem:[#allocation2 + $0x20] sm:$0x1f] 0.0
      %3637 = vst [vmem:[#allocation2 + $0x28] sm:$0x1f] 0.0
      %3638 = vst [vmem:[#allocation2 + $0x270] sm:$0x7c] 0.0
      %3639 = vst [vmem:[#allocation2 + $0x278] sm:$0x7c] 0.0
      %3640 = vst [vmem:[#allocation2 + $0x280] sm:$0x7c] 0.0
      %3641 = vst [vmem:[#allocation2 + $0x288] sm:$0x7c] 0.0
      %3642 = vst [vmem:[#allocation2 + $0x290] sm:$0x7c] 0.0
      %3643 = vst [vmem:[#allocation2 + $0x298] sm:$0x7c] 0.0
      %vm3722 = vcmask 1044480
      %v3723 = vrot.slane %v3270, 3
      %v3724 = vrot.slane %v3272, 3
      %v3725 = vrot.slane %v3413, 3
      %v3726 = vrot.slane %v3415, 3
      %v3727 = vrot.slane %v3556, 3
      %v3728 = vrot.slane %v3558, 3
      %v3729 = vrot.slane %v3276, 3
      %v3730 = vsel %vm3722, %v3723, %v3729
      %v3731 = vrot.slane %v3278, 3
      %v3732 = vsel %vm3722, %v3724, %v3731
      %v3733 = vrot.slane %v3419, 3
      %v3734 = vsel %vm3722, %v3725, %v3733
      %v3735 = vrot.slane %v3421, 3
      %v3736 = vsel %vm3722, %v3726, %v3735
      %v3737 = vrot.slane %v3562, 3
      %v3738 = vsel %vm3722, %v3727, %v3737
      %v3739 = vrot.slane %v3564, 3
      %v3740 = vsel %vm3722, %v3728, %v3739
      %v3741 = vrot.slane %v3282, 3
      %v3742 = vsel %vm3722, %v3729, %v3741
      %v3743 = vrot.slane %v3284, 3
      %v3744 = vsel %vm3722, %v3731, %v3743
      %v3745 = vrot.slane %v3425, 3
      %v3746 = vsel %vm3722, %v3733, %v3745
      %v3747 = vrot.slane %v3427, 3
      %v3748 = vsel %vm3722, %v3735, %v3747
      %v3749 = vrot.slane %v3568, 3
      %v3750 = vsel %vm3722, %v3737, %v3749
      %v3751 = vrot.slane %v3570, 3
      %v3752 = vsel %vm3722, %v3739, %v3751
      %v3753 = vrot.slane %v3288, 3
      %v3754 = vsel %vm3722, %v3741, %v3753
      %v3755 = vrot.slane %v3290, 3
      %v3756 = vsel %vm3722, %v3743, %v3755
      %v3757 = vrot.slane %v3431, 3
      %v3758 = vsel %vm3722, %v3745, %v3757
      %v3759 = vrot.slane %v3433, 3
      %v3760 = vsel %vm3722, %v3747, %v3759
      %v3761 = vrot.slane %v3574, 3
      %v3762 = vsel %vm3722, %v3749, %v3761
      %v3763 = vrot.slane %v3576, 3
      %v3764 = vsel %vm3722, %v3751, %v3763
      %v3765 = vrot.slane %v3294, 3
      %v3766 = vsel %vm3722, %v3753, %v3765
      %v3767 = vrot.slane %v3296, 3
      %v3768 = vsel %vm3722, %v3755, %v3767
      %v3769 = vrot.slane %v3437, 3
      %v3770 = vsel %vm3722, %v3757, %v3769
      %v3771 = vrot.slane %v3439, 3
      %v3772 = vsel %vm3722, %v3759, %v3771
      %v3773 = vrot.slane %v3580, 3
      %v3774 = vsel %vm3722, %v3761, %v3773
      %v3775 = vrot.slane %v3582, 3
      %v3776 = vsel %vm3722, %v3763, %v3775
      %v3777 = vrot.slane %v3300, 3
      %v3778 = vsel %vm3722, %v3765, %v3777
      %v3779 = vrot.slane %v3302, 3
      %v3780 = vsel %vm3722, %v3767, %v3779
      %v3781 = vrot.slane %v3443, 3
      %v3782 = vsel %vm3722, %v3769, %v3781
      %v3783 = vrot.slane %v3445, 3
      %v3784 = vsel %vm3722, %v3771, %v3783
      %v3785 = vrot.slane %v3586, 3
      %v3786 = vsel %vm3722, %v3773, %v3785
      %v3787 = vrot.slane %v3588, 3
      %v3788 = vsel %vm3722, %v3775, %v3787
      %v3789 = vrot.slane %v3306, 3
      %v3790 = vsel %vm3722, %v3777, %v3789
      %v3791 = vrot.slane %v3308, 3
      %v3792 = vsel %vm3722, %v3779, %v3791
      %v3793 = vrot.slane %v3449, 3
      %v3794 = vsel %vm3722, %v3781, %v3793
      %v3795 = vrot.slane %v3451, 3
      %v3796 = vsel %vm3722, %v3783, %v3795
      %v3797 = vrot.slane %v3592, 3
      %v3798 = vsel %vm3722, %v3785, %v3797
      %v3799 = vrot.slane %v3594, 3
      %v3800 = vsel %vm3722, %v3787, %v3799
      %v3801 = vrot.slane %v3312, 3
      %v3802 = vsel %vm3722, %v3789, %v3801
      %v3803 = vrot.slane %v3314, 3
      %v3804 = vsel %vm3722, %v3791, %v3803
      %v3805 = vrot.slane %v3455, 3
      %v3806 = vsel %vm3722, %v3793, %v3805
      %v3807 = vrot.slane %v3457, 3
      %v3808 = vsel %vm3722, %v3795, %v3807
      %v3809 = vrot.slane %v3598, 3
      %v3810 = vsel %vm3722, %v3797, %v3809
      %v3811 = vrot.slane %v3600, 3
      %v3812 = vsel %vm3722, %v3799, %v3811
      %v3813 = vrot.slane %v3318, 3
      %v3814 = vsel %vm3722, %v3801, %v3813
      %v3815 = vrot.slane %v3320, 3
      %v3816 = vsel %vm3722, %v3803, %v3815
      %v3817 = vrot.slane %v3461, 3
      %v3818 = vsel %vm3722, %v3805, %v3817
      %v3819 = vrot.slane %v3463, 3
      %v3820 = vsel %vm3722, %v3807, %v3819
      %v3821 = vrot.slane %v3604, 3
      %v3822 = vsel %vm3722, %v3809, %v3821
      %v3823 = vrot.slane %v3606, 3
      %v3824 = vsel %vm3722, %v3811, %v3823
      %v3825 = vrot.slane %v3324, 3
      %v3826 = vsel %vm3722, %v3813, %v3825
      %v3827 = vrot.slane %v3326, 3
      %v3828 = vsel %vm3722, %v3815, %v3827
      %v3829 = vrot.slane %v3467, 3
      %v3830 = vsel %vm3722, %v3817, %v3829
      %v3831 = vrot.slane %v3469, 3
      %v3832 = vsel %vm3722, %v3819, %v3831
      %v3833 = vrot.slane %v3610, 3
      %v3834 = vsel %vm3722, %v3821, %v3833
      %v3835 = vrot.slane %v3612, 3
      %v3836 = vsel %vm3722, %v3823, %v3835
      %v3837 = vrot.slane %v3330, 3
      %v3838 = vsel %vm3722, %v3825, %v3837
      %v3839 = vrot.slane %v3332, 3
      %v3840 = vsel %vm3722, %v3827, %v3839
      %v3841 = vrot.slane %v3473, 3
      %v3842 = vsel %vm3722, %v3829, %v3841
      %v3843 = vrot.slane %v3475, 3
      %v3844 = vsel %vm3722, %v3831, %v3843
      %v3845 = vrot.slane %v3616, 3
      %v3846 = vsel %vm3722, %v3833, %v3845
      %v3847 = vrot.slane %v3618, 3
      %v3848 = vsel %vm3722, %v3835, %v3847
      %v3849 = vrot.slane %v3336, 3
      %v3850 = vsel %vm3722, %v3837, %v3849
      %v3851 = vrot.slane %v3338, 3
      %v3852 = vsel %vm3722, %v3839, %v3851
      %v3853 = vrot.slane %v3479, 3
      %v3854 = vsel %vm3722, %v3841, %v3853
      %v3855 = vrot.slane %v3481, 3
      %v3856 = vsel %vm3722, %v3843, %v3855
      %v3857 = vrot.slane %v3622, 3
      %v3858 = vsel %vm3722, %v3845, %v3857
      %v3859 = vrot.slane %v3624, 3
      %v3860 = vsel %vm3722, %v3847, %v3859
      %v3861 = vrot.slane %v3342, 3
      %v3862 = vsel %vm3722, %v3849, %v3861
      %v3863 = vrot.slane %v3344, 3
      %v3864 = vsel %vm3722, %v3851, %v3863
      %v3865 = vrot.slane %v3485, 3
      %v3866 = vsel %vm3722, %v3853, %v3865
      %v3867 = vrot.slane %v3487, 3
      %v3868 = vsel %vm3722, %v3855, %v3867
      %v3869 = vrot.slane %v3628, 3
      %v3870 = vsel %vm3722, %v3857, %v3869
      %v3871 = vrot.slane %v3630, 3
      %v3872 = vsel %vm3722, %v3859, %v3871
      %3957 = vst [vmem:[#allocation2] sm:$0xe0] %v3723
      %3958 = vst [vmem:[#allocation2 + $0x8] sm:$0xe0] %v3724
      %3959 = vst [vmem:[#allocation2 + $0x10] sm:$0xe0] %v3725
      %3960 = vst [vmem:[#allocation2 + $0x18] sm:$0xe0] %v3726
      %3961 = vst [vmem:[#allocation2 + $0x20] sm:$0xe0] %v3727
      %3962 = vst [vmem:[#allocation2 + $0x28] sm:$0xe0] %v3728
      %3963 = vst [vmem:[#allocation2 + $0x30] sm:$0xff] %v3730
      %3964 = vst [vmem:[#allocation2 + $0x38] sm:$0xff] %v3732
      %3965 = vst [vmem:[#allocation2 + $0x40] sm:$0xff] %v3734
      %3966 = vst [vmem:[#allocation2 + $0x48] sm:$0xff] %v3736
      %3967 = vst [vmem:[#allocation2 + $0x50] sm:$0xff] %v3738
      %3968 = vst [vmem:[#allocation2 + $0x58] sm:$0xff] %v3740
      %3969 = vst [vmem:[#allocation2 + $0x60] sm:$0xff] %v3742
      %3970 = vst [vmem:[#allocation2 + $0x68] sm:$0xff] %v3744
      %3971 = vst [vmem:[#allocation2 + $0x70] sm:$0xff] %v3746
      %3972 = vst [vmem:[#allocation2 + $0x78] sm:$0xff] %v3748
      %3973 = vst [vmem:[#allocation2 + $0x80] sm:$0xff] %v3750
      %3974 = vst [vmem:[#allocation2 + $0x88] sm:$0xff] %v3752
      %3975 = vst [vmem:[#allocation2 + $0x90] sm:$0xff] %v3754
      %3976 = vst [vmem:[#allocation2 + $0x98] sm:$0xff] %v3756
      %3977 = vst [vmem:[#allocation2 + $0xa0] sm:$0xff] %v3758
      %3978 = vst [vmem:[#allocation2 + $0xa8] sm:$0xff] %v3760
      %3979 = vst [vmem:[#allocation2 + $0xb0] sm:$0xff] %v3762
      %3980 = vst [vmem:[#allocation2 + $0xb8] sm:$0xff] %v3764
      %3981 = vst [vmem:[#allocation2 + $0xc0] sm:$0xff] %v3766
      %3982 = vst [vmem:[#allocation2 + $0xc8] sm:$0xff] %v3768
      %3983 = vst [vmem:[#allocation2 + $0xd0] sm:$0xff] %v3770
      %3984 = vst [vmem:[#allocation2 + $0xd8] sm:$0xff] %v3772
      %3985 = vst [vmem:[#allocation2 + $0xe0] sm:$0xff] %v3774
      %3986 = vst [vmem:[#allocation2 + $0xe8] sm:$0xff] %v3776
      %3987 = vst [vmem:[#allocation2 + $0xf0] sm:$0xff] %v3778
      %3988 = vst [vmem:[#allocation2 + $0xf8] sm:$0xff] %v3780
      %3989 = vst [vmem:[#allocation2 + $0x100] sm:$0xff] %v3782
      %3990 = vst [vmem:[#allocation2 + $0x108] sm:$0xff] %v3784
      %3991 = vst [vmem:[#allocation2 + $0x110] sm:$0xff] %v3786
      %3992 = vst [vmem:[#allocation2 + $0x118] sm:$0xff] %v3788
      %3993 = vst [vmem:[#allocation2 + $0x120] sm:$0xff] %v3790
      %3994 = vst [vmem:[#allocation2 + $0x128] sm:$0xff] %v3792
      %3995 = vst [vmem:[#allocation2 + $0x130] sm:$0xff] %v3794
      %3996 = vst [vmem:[#allocation2 + $0x138] sm:$0xff] %v3796
      %3997 = vst [vmem:[#allocation2 + $0x140] sm:$0xff] %v3798
      %3998 = vst [vmem:[#allocation2 + $0x148] sm:$0xff] %v3800
      %3999 = vst [vmem:[#allocation2 + $0x150] sm:$0xff] %v3802
      %4000 = vst [vmem:[#allocation2 + $0x158] sm:$0xff] %v3804
      %4001 = vst [vmem:[#allocation2 + $0x160] sm:$0xff] %v3806
      %4002 = vst [vmem:[#allocation2 + $0x168] sm:$0xff] %v3808
      %4003 = vst [vmem:[#allocation2 + $0x170] sm:$0xff] %v3810
      %4004 = vst [vmem:[#allocation2 + $0x178] sm:$0xff] %v3812
      %4005 = vst [vmem:[#allocation2 + $0x180] sm:$0xff] %v3814
      %4006 = vst [vmem:[#allocation2 + $0x188] sm:$0xff] %v3816
      %4007 = vst [vmem:[#allocation2 + $0x190] sm:$0xff] %v3818
      %4008 = vst [vmem:[#allocation2 + $0x198] sm:$0xff] %v3820
      %4009 = vst [vmem:[#allocation2 + $0x1a0] sm:$0xff] %v3822
      %4010 = vst [vmem:[#allocation2 + $0x1a8] sm:$0xff] %v3824
      %4011 = vst [vmem:[#allocation2 + $0x1b0] sm:$0xff] %v3826
      %4012 = vst [vmem:[#allocation2 + $0x1b8] sm:$0xff] %v3828
      %4013 = vst [vmem:[#allocation2 + $0x1c0] sm:$0xff] %v3830
      %4014 = vst [vmem:[#allocation2 + $0x1c8] sm:$0xff] %v3832
      %4015 = vst [vmem:[#allocation2 + $0x1d0] sm:$0xff] %v3834
      %4016 = vst [vmem:[#allocation2 + $0x1d8] sm:$0xff] %v3836
      %4017 = vst [vmem:[#allocation2 + $0x1e0] sm:$0xff] %v3838
      %4018 = vst [vmem:[#allocation2 + $0x1e8] sm:$0xff] %v3840
      %4019 = vst [vmem:[#allocation2 + $0x1f0] sm:$0xff] %v3842
      %4020 = vst [vmem:[#allocation2 + $0x1f8] sm:$0xff] %v3844
      %4021 = vst [vmem:[#allocation2 + $0x200] sm:$0xff] %v3846
      %4022 = vst [vmem:[#allocation2 + $0x208] sm:$0xff] %v3848
      %4023 = vst [vmem:[#allocation2 + $0x210] sm:$0xff] %v3850
      %4024 = vst [vmem:[#allocation2 + $0x218] sm:$0xff] %v3852
      %4025 = vst [vmem:[#allocation2 + $0x220] sm:$0xff] %v3854
      %4026 = vst [vmem:[#allocation2 + $0x228] sm:$0xff] %v3856
      %4027 = vst [vmem:[#allocation2 + $0x230] sm:$0xff] %v3858
      %4028 = vst [vmem:[#allocation2 + $0x238] sm:$0xff] %v3860
      %4029 = vst [vmem:[#allocation2 + $0x240] sm:$0xff] %v3862
      %4030 = vst [vmem:[#allocation2 + $0x248] sm:$0xff] %v3864
      %4031 = vst [vmem:[#allocation2 + $0x250] sm:$0xff] %v3866
      %4032 = vst [vmem:[#allocation2 + $0x258] sm:$0xff] %v3868
      %4033 = vst [vmem:[#allocation2 + $0x260] sm:$0xff] %v3870
      %4034 = vst [vmem:[#allocation2 + $0x268] sm:$0xff] %v3872
      %4035 = vst [vmem:[#allocation2 + $0x270] sm:$0x3] %v3861
      %4036 = vst [vmem:[#allocation2 + $0x278] sm:$0x3] %v3863
      %4037 = vst [vmem:[#allocation2 + $0x280] sm:$0x3] %v3865
      %4038 = vst [vmem:[#allocation2 + $0x288] sm:$0x3] %v3867
      %4039 = vst [vmem:[#allocation2 + $0x290] sm:$0x3] %v3869
      %4040 = vst [vmem:[#allocation2 + $0x298] sm:$0x3] %v3871
      %v4041 = vld [vmem:[#allocation2] sm:$0xff]
      %v4042 = vld [vmem:[#allocation2 + $0x8] sm:$0xff]
      %v4043 = vld [vmem:[#allocation2 + $0x10] sm:$0xff]
      %v4044 = vld [vmem:[#allocation2 + $0x18] sm:$0xff]
      %v4045 = vld [vmem:[#allocation2 + $0x20] sm:$0xff]
      %v4046 = vld [vmem:[#allocation2 + $0x28] sm:$0xff]
      %v4047 = vld [vmem:[#allocation2 + $0x30] sm:$0xff]
      %v4048 = vld [vmem:[#allocation2 + $0x38] sm:$0xff]
      %v4049 = vld [vmem:[#allocation2 + $0x40] sm:$0xff]
      %v4050 = vld [vmem:[#allocation2 + $0x48] sm:$0xff]
      %v4051 = vld [vmem:[#allocation2 + $0x50] sm:$0xff]
      %v4052 = vld [vmem:[#allocation2 + $0x58] sm:$0xff]
      %v4053 = vld [vmem:[#allocation2 + $0x60] sm:$0xff]
      %v4054 = vld [vmem:[#allocation2 + $0x68] sm:$0xff]
      %v4055 = vld [vmem:[#allocation2 + $0x70] sm:$0xff]
      %v4056 = vld [vmem:[#allocation2 + $0x78] sm:$0xff]
      %v4057 = vld [vmem:[#allocation2 + $0x80] sm:$0xff]
      %v4058 = vld [vmem:[#allocation2 + $0x88] sm:$0xff]
      %v4059 = vld [vmem:[#allocation2 + $0x90] sm:$0xff]
      %v4060 = vld [vmem:[#allocation2 + $0x98] sm:$0xff]
      %v4061 = vld [vmem:[#allocation2 + $0xa0] sm:$0xff]
      %v4062 = vld [vmem:[#allocation2 + $0xa8] sm:$0xff]
      %v4063 = vld [vmem:[#allocation2 + $0xb0] sm:$0xff]
      %v4064 = vld [vmem:[#allocation2 + $0xb8] sm:$0xff]
      %v4065 = vld [vmem:[#allocation2 + $0xc0] sm:$0xff]
      %v4066 = vld [vmem:[#allocation2 + $0xc8] sm:$0xff]
      %v4067 = vld [vmem:[#allocation2 + $0xd0] sm:$0xff]
      %v4068 = vld [vmem:[#allocation2 + $0xd8] sm:$0xff]
      %v4069 = vld [vmem:[#allocation2 + $0xe0] sm:$0xff]
      %v4070 = vld [vmem:[#allocation2 + $0xe8] sm:$0xff]
      %v4071 = vld [vmem:[#allocation2 + $0xf0] sm:$0xff]
      %v4072 = vld [vmem:[#allocation2 + $0xf8] sm:$0xff]
      %v4073 = vld [vmem:[#allocation2 + $0x100] sm:$0xff]
      %v4074 = vld [vmem:[#allocation2 + $0x108] sm:$0xff]
      %v4075 = vld [vmem:[#allocation2 + $0x110] sm:$0xff]
      %v4076 = vld [vmem:[#allocation2 + $0x118] sm:$0xff]
      %v4077 = vld [vmem:[#allocation2 + $0x120] sm:$0xff]
      %v4078 = vld [vmem:[#allocation2 + $0x128] sm:$0xff]
      %v4079 = vld [vmem:[#allocation2 + $0x130] sm:$0xff]
      %v4080 = vld [vmem:[#allocation2 + $0x138] sm:$0xff]
      %v4081 = vld [vmem:[#allocation2 + $0x140] sm:$0xff]
      %v4082 = vld [vmem:[#allocation2 + $0x148] sm:$0xff]
      %v4083 = vld [vmem:[#allocation2 + $0x150] sm:$0xff]
      %v4084 = vld [vmem:[#allocation2 + $0x158] sm:$0xff]
      %v4085 = vld [vmem:[#allocation2 + $0x160] sm:$0xff]
      %v4086 = vld [vmem:[#allocation2 + $0x168] sm:$0xff]
      %v4087 = vld [vmem:[#allocation2 + $0x170] sm:$0xff]
      %v4088 = vld [vmem:[#allocation2 + $0x178] sm:$0xff]
      %v4089 = vld [vmem:[#allocation2 + $0x180] sm:$0xff]
      %v4090 = vld [vmem:[#allocation2 + $0x188] sm:$0xff]
      %v4091 = vld [vmem:[#allocation2 + $0x190] sm:$0xff]
      %v4092 = vld [vmem:[#allocation2 + $0x198] sm:$0xff]
      %v4093 = vld [vmem:[#allocation2 + $0x1a0] sm:$0xff]
      %v4094 = vld [vmem:[#allocation2 + $0x1a8] sm:$0xff]
      %v4095 = vld [vmem:[#allocation2 + $0x1b0] sm:$0xff]
      %v4096 = vld [vmem:[#allocation2 + $0x1b8] sm:$0xff]
      %v4097 = vld [vmem:[#allocation2 + $0x1c0] sm:$0xff]
      %v4098 = vld [vmem:[#allocation2 + $0x1c8] sm:$0xff]
      %v4099 = vld [vmem:[#allocation2 + $0x1d0] sm:$0xff]
      %v4100 = vld [vmem:[#allocation2 + $0x1d8] sm:$0xff]
      %v4101 = vld [vmem:[#allocation2 + $0x1e0] sm:$0xff]
      %v4102 = vld [vmem:[#allocation2 + $0x1e8] sm:$0xff]
      %v4103 = vld [vmem:[#allocation2 + $0x1f0] sm:$0xff]
      %v4104 = vld [vmem:[#allocation2 + $0x1f8] sm:$0xff]
      %v4105 = vld [vmem:[#allocation2 + $0x200] sm:$0xff]
      %v4106 = vld [vmem:[#allocation2 + $0x208] sm:$0xff]
      %v4107 = vld [vmem:[#allocation2 + $0x210] sm:$0xff]
      %v4108 = vld [vmem:[#allocation2 + $0x218] sm:$0xff]
      %v4109 = vld [vmem:[#allocation2 + $0x220] sm:$0xff]
      %v4110 = vld [vmem:[#allocation2 + $0x228] sm:$0xff]
      %v4111 = vld [vmem:[#allocation2 + $0x230] sm:$0xff]
      %v4112 = vld [vmem:[#allocation2 + $0x238] sm:$0xff]
      %v4113 = vld [vmem:[#allocation2 + $0x240] sm:$0x1f]
      %v4114 = vld [vmem:[#allocation2 + $0x248] sm:$0x1f]
      %v4115 = vld [vmem:[#allocation2 + $0x250] sm:$0x1f]
      %v4116 = vld [vmem:[#allocation2 + $0x258] sm:$0x1f]
      %v4117 = vld [vmem:[#allocation2 + $0x260] sm:$0x1f]
      %v4118 = vld [vmem:[#allocation2 + $0x268] sm:$0x1f]
      %v4119 = vld [vmem:[#allocation2] sm:$0xfe]
      %v4120 = vld [vmem:[#allocation2 + $0x8] sm:$0xfe]
      %v4121 = vld [vmem:[#allocation2 + $0x10] sm:$0xfe]
      %v4122 = vld [vmem:[#allocation2 + $0x18] sm:$0xfe]
      %v4123 = vld [vmem:[#allocation2 + $0x20] sm:$0xfe]
      %v4124 = vld [vmem:[#allocation2 + $0x28] sm:$0xfe]
      %v4125 = vld [vmem:[#allocation2 + $0x240] sm:$0x3f]
      %v4126 = vld [vmem:[#allocation2 + $0x248] sm:$0x3f]
      %v4127 = vld [vmem:[#allocation2 + $0x250] sm:$0x3f]
      %v4128 = vld [vmem:[#allocation2 + $0x258] sm:$0x3f]
      %v4129 = vld [vmem:[#allocation2 + $0x260] sm:$0x3f]
      %v4130 = vld [vmem:[#allocation2 + $0x268] sm:$0x3f]
      %v4209 = vrot.slane %v4119, 1
      %v4210 = vrot.slane %v4047, 1
      %v4211 = vsel %vm2265, %v4209, %v4210
      %v4212 = vrot.slane %v4120, 1
      %v4213 = vrot.slane %v4048, 1
      %v4214 = vsel %vm2265, %v4212, %v4213
      %v4215 = vrot.slane %v4121, 1
      %v4216 = vrot.slane %v4049, 1
      %v4217 = vsel %vm2265, %v4215, %v4216
      %v4218 = vrot.slane %v4122, 1
      %v4219 = vrot.slane %v4050, 1
      %v4220 = vsel %vm2265, %v4218, %v4219
      %v4221 = vrot.slane %v4123, 1
      %v4222 = vrot.slane %v4051, 1
      %v4223 = vsel %vm2265, %v4221, %v4222
      %v4224 = vrot.slane %v4124, 1
      %v4225 = vrot.slane %v4052, 1
      %v4226 = vsel %vm2265, %v4224, %v4225
      %v4227 = vrot.slane %v4053, 1
      %v4228 = vsel %vm2265, %v4210, %v4227
      %v4229 = vrot.slane %v4054, 1
      %v4230 = vsel %vm2265, %v4213, %v4229
      %v4231 = vrot.slane %v4055, 1
      %v4232 = vsel %vm2265, %v4216, %v4231
      %v4233 = vrot.slane %v4056, 1
      %v4234 = vsel %vm2265, %v4219, %v4233
      %v4235 = vrot.slane %v4057, 1
      %v4236 = vsel %vm2265, %v4222, %v4235
      %v4237 = vrot.slane %v4058, 1
      %v4238 = vsel %vm2265, %v4225, %v4237
      %v4239 = vrot.slane %v4059, 1
      %v4240 = vsel %vm2265, %v4227, %v4239
      %v4241 = vrot.slane %v4060, 1
      %v4242 = vsel %vm2265, %v4229, %v4241
      %v4243 = vrot.slane %v4061, 1
      %v4244 = vsel %vm2265, %v4231, %v4243
      %v4245 = vrot.slane %v4062, 1
      %v4246 = vsel %vm2265, %v4233, %v4245
      %v4247 = vrot.slane %v4063, 1
      %v4248 = vsel %vm2265, %v4235, %v4247
      %v4249 = vrot.slane %v4064, 1
      %v4250 = vsel %vm2265, %v4237, %v4249
      %v4251 = vrot.slane %v4065, 1
      %v4252 = vsel %vm2265, %v4239, %v4251
      %v4253 = vrot.slane %v4066, 1
      %v4254 = vsel %vm2265, %v4241, %v4253
      %v4255 = vrot.slane %v4067, 1
      %v4256 = vsel %vm2265, %v4243, %v4255
      %v4257 = vrot.slane %v4068, 1
      %v4258 = vsel %vm2265, %v4245, %v4257
      %v4259 = vrot.slane %v4069, 1
      %v4260 = vsel %vm2265, %v4247, %v4259
      %v4261 = vrot.slane %v4070, 1
      %v4262 = vsel %vm2265, %v4249, %v4261
      %v4263 = vrot.slane %v4071, 1
      %v4264 = vsel %vm2265, %v4251, %v4263
      %v4265 = vrot.slane %v4072, 1
      %v4266 = vsel %vm2265, %v4253, %v4265
      %v4267 = vrot.slane %v4073, 1
      %v4268 = vsel %vm2265, %v4255, %v4267
      %v4269 = vrot.slane %v4074, 1
      %v4270 = vsel %vm2265, %v4257, %v4269
      %v4271 = vrot.slane %v4075, 1
      %v4272 = vsel %vm2265, %v4259, %v4271
      %v4273 = vrot.slane %v4076, 1
      %v4274 = vsel %vm2265, %v4261, %v4273
      %v4275 = vrot.slane %v4077, 1
      %v4276 = vsel %vm2265, %v4263, %v4275
      %v4277 = vrot.slane %v4078, 1
      %v4278 = vsel %vm2265, %v4265, %v4277
      %v4279 = vrot.slane %v4079, 1
      %v4280 = vsel %vm2265, %v4267, %v4279
      %v4281 = vrot.slane %v4080, 1
      %v4282 = vsel %vm2265, %v4269, %v4281
      %v4283 = vrot.slane %v4081, 1
      %v4284 = vsel %vm2265, %v4271, %v4283
      %v4285 = vrot.slane %v4082, 1
      %v4286 = vsel %vm2265, %v4273, %v4285
      %v4287 = vrot.slane %v4083, 1
      %v4288 = vsel %vm2265, %v4275, %v4287
      %v4289 = vrot.slane %v4084, 1
      %v4290 = vsel %vm2265, %v4277, %v4289
      %v4291 = vrot.slane %v4085, 1
      %v4292 = vsel %vm2265, %v4279, %v4291
      %v4293 = vrot.slane %v4086, 1
      %v4294 = vsel %vm2265, %v4281, %v4293
      %v4295 = vrot.slane %v4087, 1
      %v4296 = vsel %vm2265, %v4283, %v4295
      %v4297 = vrot.slane %v4088, 1
      %v4298 = vsel %vm2265, %v4285, %v4297
      %v4299 = vrot.slane %v4089, 1
      %v4300 = vsel %vm2265, %v4287, %v4299
      %v4301 = vrot.slane %v4090, 1
      %v4302 = vsel %vm2265, %v4289, %v4301
      %v4303 = vrot.slane %v4091, 1
      %v4304 = vsel %vm2265, %v4291, %v4303
      %v4305 = vrot.slane %v4092, 1
      %v4306 = vsel %vm2265, %v4293, %v4305
      %v4307 = vrot.slane %v4093, 1
      %v4308 = vsel %vm2265, %v4295, %v4307
      %v4309 = vrot.slane %v4094, 1
      %v4310 = vsel %vm2265, %v4297, %v4309
      %v4311 = vrot.slane %v4095, 1
      %v4312 = vsel %vm2265, %v4299, %v4311
      %v4313 = vrot.slane %v4096, 1
      %v4314 = vsel %vm2265, %v4301, %v4313
      %v4315 = vrot.slane %v4097, 1
      %v4316 = vsel %vm2265, %v4303, %v4315
      %v4317 = vrot.slane %v4098, 1
      %v4318 = vsel %vm2265, %v4305, %v4317
      %v4319 = vrot.slane %v4099, 1
      %v4320 = vsel %vm2265, %v4307, %v4319
      %v4321 = vrot.slane %v4100, 1
      %v4322 = vsel %vm2265, %v4309, %v4321
      %v4323 = vrot.slane %v4101, 1
      %v4324 = vsel %vm2265, %v4311, %v4323
      %v4325 = vrot.slane %v4102, 1
      %v4326 = vsel %vm2265, %v4313, %v4325
      %v4327 = vrot.slane %v4103, 1
      %v4328 = vsel %vm2265, %v4315, %v4327
      %v4329 = vrot.slane %v4104, 1
      %v4330 = vsel %vm2265, %v4317, %v4329
      %v4331 = vrot.slane %v4105, 1
      %v4332 = vsel %vm2265, %v4319, %v4331
      %v4333 = vrot.slane %v4106, 1
      %v4334 = vsel %vm2265, %v4321, %v4333
      %v4335 = vrot.slane %v4107, 1
      %v4336 = vsel %vm2265, %v4323, %v4335
      %v4337 = vrot.slane %v4108, 1
      %v4338 = vsel %vm2265, %v4325, %v4337
      %v4339 = vrot.slane %v4109, 1
      %v4340 = vsel %vm2265, %v4327, %v4339
      %v4341 = vrot.slane %v4110, 1
      %v4342 = vsel %vm2265, %v4329, %v4341
      %v4343 = vrot.slane %v4111, 1
      %v4344 = vsel %vm2265, %v4331, %v4343
      %v4345 = vrot.slane %v4112, 1
      %v4346 = vsel %vm2265, %v4333, %v4345
      %v4347 = vrot.slane %v4125, 1
      %v4348 = vsel %vm2265, %v4335, %v4347
      %v4349 = vrot.slane %v4126, 1
      %v4350 = vsel %vm2265, %v4337, %v4349
      %v4351 = vrot.slane %v4127, 1
      %v4352 = vsel %vm2265, %v4339, %v4351
      %v4353 = vrot.slane %v4128, 1
      %v4354 = vsel %vm2265, %v4341, %v4353
      %v4355 = vrot.slane %v4129, 1
      %v4356 = vsel %vm2265, %v4343, %v4355
      %v4357 = vrot.slane %v4130, 1
      %v4358 = vsel %vm2265, %v4345, %v4357
      %4437 = vrot.lane.b32.xlu0 %v4211, 1
      %v4438 = vpop.permute.xlu0 %4437
      %4439 = vrot.lane.b32.xlu0 %v4228, 1
      %v4440 = vpop.permute.xlu0 %4439
      %4441 = vrot.lane.b32.xlu0 %v4240, 1
      %v4442 = vpop.permute.xlu0 %4441
      %4443 = vrot.lane.b32.xlu0 %v4252, 1
      %v4444 = vpop.permute.xlu0 %4443
      %4445 = vrot.lane.b32.xlu0 %v4264, 1
      %v4446 = vpop.permute.xlu0 %4445
      %4447 = vrot.lane.b32.xlu0 %v4276, 1
      %v4448 = vpop.permute.xlu0 %4447
      %4449 = vrot.lane.b32.xlu0 %v4288, 1
      %v4450 = vpop.permute.xlu0 %4449
      %4451 = vrot.lane.b32.xlu0 %v4300, 1
      %v4452 = vpop.permute.xlu0 %4451
      %4453 = vrot.lane.b32.xlu0 %v4312, 1
      %v4454 = vpop.permute.xlu0 %4453
      %4455 = vrot.lane.b32.xlu0 %v4324, 1
      %v4456 = vpop.permute.xlu0 %4455
      %4457 = vrot.lane.b32.xlu0 %v4336, 1
      %v4458 = vpop.permute.xlu0 %4457
      %4459 = vrot.lane.b32.xlu0 %v4348, 1
      %v4460 = vpop.permute.xlu0 %4459
      %4461 = vrot.lane.b32.xlu0 %v4347, 1
      %v4462 = vpop.permute.xlu0 %4461
      %4463 = vrot.lane.b32.xlu0 %v4214, 1
      %v4464 = vpop.permute.xlu0 %4463
      %4465 = vrot.lane.b32.xlu0 %v4230, 1
      %v4466 = vpop.permute.xlu0 %4465
      %4467 = vrot.lane.b32.xlu0 %v4242, 1
      %v4468 = vpop.permute.xlu0 %4467
      %4469 = vrot.lane.b32.xlu0 %v4254, 1
      %v4470 = vpop.permute.xlu0 %4469
      %4471 = vrot.lane.b32.xlu0 %v4266, 1
      %v4472 = vpop.permute.xlu0 %4471
      %4473 = vrot.lane.b32.xlu0 %v4278, 1
      %v4474 = vpop.permute.xlu0 %4473
      %4475 = vrot.lane.b32.xlu0 %v4290, 1
      %v4476 = vpop.permute.xlu0 %4475
      %4477 = vrot.lane.b32.xlu0 %v4302, 1
      %v4478 = vpop.permute.xlu0 %4477
      %4479 = vrot.lane.b32.xlu0 %v4314, 1
      %v4480 = vpop.permute.xlu0 %4479
      %4481 = vrot.lane.b32.xlu0 %v4326, 1
      %v4482 = vpop.permute.xlu0 %4481
      %4483 = vrot.lane.b32.xlu0 %v4338, 1
      %v4484 = vpop.permute.xlu0 %4483
      %4485 = vrot.lane.b32.xlu0 %v4350, 1
      %v4486 = vpop.permute.xlu0 %4485
      %4487 = vrot.lane.b32.xlu0 %v4349, 1
      %v4488 = vpop.permute.xlu0 %4487
      %4489 = vrot.lane.b32.xlu0 %v4217, 1
      %v4490 = vpop.permute.xlu0 %4489
      %4491 = vrot.lane.b32.xlu0 %v4232, 1
      %v4492 = vpop.permute.xlu0 %4491
      %4493 = vrot.lane.b32.xlu0 %v4244, 1
      %v4494 = vpop.permute.xlu0 %4493
      %4495 = vrot.lane.b32.xlu0 %v4256, 1
      %v4496 = vpop.permute.xlu0 %4495
      %4497 = vrot.lane.b32.xlu0 %v4268, 1
      %v4498 = vpop.permute.xlu0 %4497
      %4499 = vrot.lane.b32.xlu0 %v4280, 1
      %v4500 = vpop.permute.xlu0 %4499
      %4501 = vrot.lane.b32.xlu0 %v4292, 1
      %v4502 = vpop.permute.xlu0 %4501
      %4503 = vrot.lane.b32.xlu0 %v4304, 1
      %v4504 = vpop.permute.xlu0 %4503
      %4505 = vrot.lane.b32.xlu0 %v4316, 1
      %v4506 = vpop.permute.xlu0 %4505
      %4507 = vrot.lane.b32.xlu0 %v4328, 1
      %v4508 = vpop.permute.xlu0 %4507
      %4509 = vrot.lane.b32.xlu0 %v4340, 1
      %v4510 = vpop.permute.xlu0 %4509
      %4511 = vrot.lane.b32.xlu0 %v4352, 1
      %v4512 = vpop.permute.xlu0 %4511
      %4513 = vrot.lane.b32.xlu0 %v4351, 1
      %v4514 = vpop.permute.xlu0 %4513
      %4515 = vrot.lane.b32.xlu0 %v4220, 1
      %v4516 = vpop.permute.xlu0 %4515
      %4517 = vrot.lane.b32.xlu0 %v4234, 1
      %v4518 = vpop.permute.xlu0 %4517
      %4519 = vrot.lane.b32.xlu0 %v4246, 1
      %v4520 = vpop.permute.xlu0 %4519
      %4521 = vrot.lane.b32.xlu0 %v4258, 1
      %v4522 = vpop.permute.xlu0 %4521
      %4523 = vrot.lane.b32.xlu0 %v4270, 1
      %v4524 = vpop.permute.xlu0 %4523
      %4525 = vrot.lane.b32.xlu0 %v4282, 1
      %v4526 = vpop.permute.xlu0 %4525
      %4527 = vrot.lane.b32.xlu0 %v4294, 1
      %v4528 = vpop.permute.xlu0 %4527
      %4529 = vrot.lane.b32.xlu0 %v4306, 1
      %v4530 = vpop.permute.xlu0 %4529
      %4531 = vrot.lane.b32.xlu0 %v4318, 1
      %v4532 = vpop.permute.xlu0 %4531
      %4533 = vrot.lane.b32.xlu0 %v4330, 1
      %v4534 = vpop.permute.xlu0 %4533
      %4535 = vrot.lane.b32.xlu0 %v4342, 1
      %v4536 = vpop.permute.xlu0 %4535
      %4537 = vrot.lane.b32.xlu0 %v4354, 1
      %v4538 = vpop.permute.xlu0 %4537
      %4539 = vrot.lane.b32.xlu0 %v4353, 1
      %v4540 = vpop.permute.xlu0 %4539
      %4541 = vrot.lane.b32.xlu0 %v4223, 1
      %v4542 = vpop.permute.xlu0 %4541
      %4543 = vrot.lane.b32.xlu0 %v4236, 1
      %v4544 = vpop.permute.xlu0 %4543
      %4545 = vrot.lane.b32.xlu0 %v4248, 1
      %v4546 = vpop.permute.xlu0 %4545
      %4547 = vrot.lane.b32.xlu0 %v4260, 1
      %v4548 = vpop.permute.xlu0 %4547
      %4549 = vrot.lane.b32.xlu0 %v4272, 1
      %v4550 = vpop.permute.xlu0 %4549
      %4551 = vrot.lane.b32.xlu0 %v4284, 1
      %v4552 = vpop.permute.xlu0 %4551
      %4553 = vrot.lane.b32.xlu0 %v4296, 1
      %v4554 = vpop.permute.xlu0 %4553
      %4555 = vrot.lane.b32.xlu0 %v4308, 1
      %v4556 = vpop.permute.xlu0 %4555
      %4557 = vrot.lane.b32.xlu0 %v4320, 1
      %v4558 = vpop.permute.xlu0 %4557
      %4559 = vrot.lane.b32.xlu0 %v4332, 1
      %v4560 = vpop.permute.xlu0 %4559
      %4561 = vrot.lane.b32.xlu0 %v4344, 1
      %v4562 = vpop.permute.xlu0 %4561
      %4563 = vrot.lane.b32.xlu0 %v4356, 1
      %v4564 = vpop.permute.xlu0 %4563
      %4565 = vrot.lane.b32.xlu0 %v4355, 1
      %v4566 = vpop.permute.xlu0 %4565
      %4567 = vrot.lane.b32.xlu0 %v4226, 1
      %v4568 = vpop.permute.xlu0 %4567
      %4569 = vrot.lane.b32.xlu0 %v4238, 1
      %v4570 = vpop.permute.xlu0 %4569
      %4571 = vrot.lane.b32.xlu0 %v4250, 1
      %v4572 = vpop.permute.xlu0 %4571
      %4573 = vrot.lane.b32.xlu0 %v4262, 1
      %v4574 = vpop.permute.xlu0 %4573
      %4575 = vrot.lane.b32.xlu0 %v4274, 1
      %v4576 = vpop.permute.xlu0 %4575
      %4577 = vrot.lane.b32.xlu0 %v4286, 1
      %v4578 = vpop.permute.xlu0 %4577
      %4579 = vrot.lane.b32.xlu0 %v4298, 1
      %v4580 = vpop.permute.xlu0 %4579
      %4581 = vrot.lane.b32.xlu0 %v4310, 1
      %v4582 = vpop.permute.xlu0 %4581
      %4583 = vrot.lane.b32.xlu0 %v4322, 1
      %v4584 = vpop.permute.xlu0 %4583
      %4585 = vrot.lane.b32.xlu0 %v4334, 1
      %v4586 = vpop.permute.xlu0 %4585
      %4587 = vrot.lane.b32.xlu0 %v4346, 1
      %v4588 = vpop.permute.xlu0 %4587
      %4589 = vrot.lane.b32.xlu0 %v4358, 1
      %v4590 = vpop.permute.xlu0 %4589
      %4591 = vrot.lane.b32.xlu0 %v4357, 1
      %v4592 = vpop.permute.xlu0 %4591
      %v4593 = vlaneseq
      %v4594 = vand.u32 %v4593, 127
      %vm4595 = vcmp.lt.s32.totalorder %v4594, 1
      %v4596 = vsel %vm4595, %v4542, %v4568
      %v4597 = vsel %vm4595, %v4544, %v4570
      %v4598 = vsel %vm4595, %v4546, %v4572
      %v4599 = vsel %vm4595, %v4548, %v4574
      %v4600 = vsel %vm4595, %v4550, %v4576
      %v4601 = vsel %vm4595, %v4552, %v4578
      %v4602 = vsel %vm4595, %v4554, %v4580
      %v4603 = vsel %vm4595, %v4556, %v4582
      %v4604 = vsel %vm4595, %v4558, %v4584
      %v4605 = vsel %vm4595, %v4560, %v4586
      %v4606 = vsel %vm4595, %v4562, %v4588
      %v4607 = vsel %vm4595, %v4564, %v4590
      %v4608 = vsel %vm4595, %v4566, %v4592
      %v4609 = vsel %vm4595, %v4516, %v4542
      %v4610 = vsel %vm4595, %v4518, %v4544
      %v4611 = vsel %vm4595, %v4520, %v4546
      %v4612 = vsel %vm4595, %v4522, %v4548
      %v4613 = vsel %vm4595, %v4524, %v4550
      %v4614 = vsel %vm4595, %v4526, %v4552
      %v4615 = vsel %vm4595, %v4528, %v4554
      %v4616 = vsel %vm4595, %v4530, %v4556
      %v4617 = vsel %vm4595, %v4532, %v4558
      %v4618 = vsel %vm4595, %v4534, %v4560
      %v4619 = vsel %vm4595, %v4536, %v4562
      %v4620 = vsel %vm4595, %v4538, %v4564
      %v4621 = vsel %vm4595, %v4540, %v4566
      %v4622 = vsel %vm4595, %v4490, %v4516
      %v4623 = vsel %vm4595, %v4492, %v4518
      %v4624 = vsel %vm4595, %v4494, %v4520
      %v4625 = vsel %vm4595, %v4496, %v4522
      %v4626 = vsel %vm4595, %v4498, %v4524
      %v4627 = vsel %vm4595, %v4500, %v4526
      %v4628 = vsel %vm4595, %v4502, %v4528
      %v4629 = vsel %vm4595, %v4504, %v4530
      %v4630 = vsel %vm4595, %v4506, %v4532
      %v4631 = vsel %vm4595, %v4508, %v4534
      %v4632 = vsel %vm4595, %v4510, %v4536
      %v4633 = vsel %vm4595, %v4512, %v4538
      %v4634 = vsel %vm4595, %v4514, %v4540
      %v4635 = vsel %vm4595, %v4464, %v4490
      %v4636 = vsel %vm4595, %v4466, %v4492
      %v4637 = vsel %vm4595, %v4468, %v4494
      %v4638 = vsel %vm4595, %v4470, %v4496
      %v4639 = vsel %vm4595, %v4472, %v4498
      %v4640 = vsel %vm4595, %v4474, %v4500
      %v4641 = vsel %vm4595, %v4476, %v4502
      %v4642 = vsel %vm4595, %v4478, %v4504
      %v4643 = vsel %vm4595, %v4480, %v4506
      %v4644 = vsel %vm4595, %v4482, %v4508
      %v4645 = vsel %vm4595, %v4484, %v4510
      %v4646 = vsel %vm4595, %v4486, %v4512
      %v4647 = vsel %vm4595, %v4488, %v4514
      %v4648 = vsel %vm4595, %v4438, %v4464
      %v4649 = vsel %vm4595, %v4440, %v4466
      %v4650 = vsel %vm4595, %v4442, %v4468
      %v4651 = vsel %vm4595, %v4444, %v4470
      %v4652 = vsel %vm4595, %v4446, %v4472
      %v4653 = vsel %vm4595, %v4448, %v4474
      %v4654 = vsel %vm4595, %v4450, %v4476
      %v4655 = vsel %vm4595, %v4452, %v4478
      %v4656 = vsel %vm4595, %v4454, %v4480
      %v4657 = vsel %vm4595, %v4456, %v4482
      %v4658 = vsel %vm4595, %v4458, %v4484
      %v4659 = vsel %vm4595, %v4460, %v4486
      %v4660 = vsel %vm4595, %v4462, %v4488
      %v4661 = vsel %vm4595, %v4568, %v4438
      %v4662 = vsel %vm4595, %v4570, %v4440
      %v4663 = vsel %vm4595, %v4572, %v4442
      %v4664 = vsel %vm4595, %v4574, %v4444
      %v4665 = vsel %vm4595, %v4576, %v4446
      %v4666 = vsel %vm4595, %v4578, %v4448
      %v4667 = vsel %vm4595, %v4580, %v4450
      %v4668 = vsel %vm4595, %v4582, %v4452
      %v4669 = vsel %vm4595, %v4584, %v4454
      %v4670 = vsel %vm4595, %v4586, %v4456
      %v4671 = vsel %vm4595, %v4588, %v4458
      %v4672 = vsel %vm4595, %v4590, %v4460
      %v4673 = vsel %vm4595, %v4592, %v4462
      %v4674 = vadd.f32 %v4041, %v4661
      %v4675 = vadd.f32 %v4042, %v4648
      %v4676 = vadd.f32 %v4043, %v4635
      %v4677 = vadd.f32 %v4044, %v4622
      %v4678 = vadd.f32 %v4045, %v4609
      %v4679 = vadd.f32 %v4046, %v4596
      %v4680 = vadd.f32 %v4047, %v4662
      %v4681 = vadd.f32 %v4048, %v4649
      %v4682 = vadd.f32 %v4049, %v4636
      %v4683 = vadd.f32 %v4050, %v4623
      %v4684 = vadd.f32 %v4051, %v4610
      %v4685 = vadd.f32 %v4052, %v4597
      %v4686 = vadd.f32 %v4053, %v4663
      %v4687 = vadd.f32 %v4054, %v4650
      %v4688 = vadd.f32 %v4055, %v4637
      %v4689 = vadd.f32 %v4056, %v4624
      %v4690 = vadd.f32 %v4057, %v4611
      %v4691 = vadd.f32 %v4058, %v4598
      %v4692 = vadd.f32 %v4059, %v4664
      %v4693 = vadd.f32 %v4060, %v4651
      %v4694 = vadd.f32 %v4061, %v4638
      %v4695 = vadd.f32 %v4062, %v4625
      %v4696 = vadd.f32 %v4063, %v4612
      %v4697 = vadd.f32 %v4064, %v4599
      %v4698 = vadd.f32 %v4065, %v4665
      %v4699 = vadd.f32 %v4066, %v4652
      %v4700 = vadd.f32 %v4067, %v4639
      %v4701 = vadd.f32 %v4068, %v4626
      %v4702 = vadd.f32 %v4069, %v4613
      %v4703 = vadd.f32 %v4070, %v4600
      %v4704 = vadd.f32 %v4071, %v4666
      %v4705 = vadd.f32 %v4072, %v4653
      %v4706 = vadd.f32 %v4073, %v4640
      %v4707 = vadd.f32 %v4074, %v4627
      %v4708 = vadd.f32 %v4075, %v4614
      %v4709 = vadd.f32 %v4076, %v4601
      %v4710 = vadd.f32 %v4077, %v4667
      %v4711 = vadd.f32 %v4078, %v4654
      %v4712 = vadd.f32 %v4079, %v4641
      %v4713 = vadd.f32 %v4080, %v4628
      %v4714 = vadd.f32 %v4081, %v4615
      %v4715 = vadd.f32 %v4082, %v4602
      %v4716 = vadd.f32 %v4083, %v4668
      %v4717 = vadd.f32 %v4084, %v4655
      %v4718 = vadd.f32 %v4085, %v4642
      %v4719 = vadd.f32 %v4086, %v4629
      %v4720 = vadd.f32 %v4087, %v4616
      %v4721 = vadd.f32 %v4088, %v4603
      %v4722 = vadd.f32 %v4089, %v4669
      %v4723 = vadd.f32 %v4090, %v4656
      %v4724 = vadd.f32 %v4091, %v4643
      %v4725 = vadd.f32 %v4092, %v4630
      %v4726 = vadd.f32 %v4093, %v4617
      %v4727 = vadd.f32 %v4094, %v4604
      %v4728 = vadd.f32 %v4095, %v4670
      %v4729 = vadd.f32 %v4096, %v4657
      %v4730 = vadd.f32 %v4097, %v4644
      %v4731 = vadd.f32 %v4098, %v4631
      %v4732 = vadd.f32 %v4099, %v4618
      %v4733 = vadd.f32 %v4100, %v4605
      %v4734 = vadd.f32 %v4101, %v4671
      %v4735 = vadd.f32 %v4102, %v4658
      %v4736 = vadd.f32 %v4103, %v4645
      %v4737 = vadd.f32 %v4104, %v4632
      %v4738 = vadd.f32 %v4105, %v4619
      %v4739 = vadd.f32 %v4106, %v4606
      %v4740 = vadd.f32 %v4107, %v4672
      %v4741 = vadd.f32 %v4108, %v4659
      %v4742 = vadd.f32 %v4109, %v4646
      %v4743 = vadd.f32 %v4110, %v4633
      %v4744 = vadd.f32 %v4111, %v4620
      %v4745 = vadd.f32 %v4112, %v4607
      %v4746 = vadd.f32 %v4113, %v4673
      %v4747 = vadd.f32 %v4114, %v4660
      %v4748 = vadd.f32 %v4115, %v4647
      %v4749 = vadd.f32 %v4116, %v4634
      %v4750 = vadd.f32 %v4117, %v4621
      %v4751 = vadd.f32 %v4118, %v4608
      %4752 = vst [vmem:[%s224] sm:$0xff] %v4674
      %4753 = vst [vmem:[%s224 + $0x8] sm:$0xff] %v4675
      %4754 = vst [vmem:[%s224 + $0x10] sm:$0xff] %v4676
      %4755 = vst [vmem:[%s224 + $0x18] sm:$0xff] %v4677
      %4756 = vst [vmem:[%s224 + $0x20] sm:$0xff] %v4678
      %4757 = vst.msk [vmem:[%s224 + $0x28] sm:$0xff] %vm3069, %v4679
      %4758 = vst [vmem:[%s224 + $0x30] sm:$0xff] %v4680
      %4759 = vst [vmem:[%s224 + $0x38] sm:$0xff] %v4681
      %4760 = vst [vmem:[%s224 + $0x40] sm:$0xff] %v4682
      %4761 = vst [vmem:[%s224 + $0x48] sm:$0xff] %v4683
      %4762 = vst [vmem:[%s224 + $0x50] sm:$0xff] %v4684
      %4763 = vst.msk [vmem:[%s224 + $0x58] sm:$0xff] %vm3069, %v4685
      %4764 = vst [vmem:[%s224 + $0x60] sm:$0xff] %v4686
      %4765 = vst [vmem:[%s224 + $0x68] sm:$0xff] %v4687
      %4766 = vst [vmem:[%s224 + $0x70] sm:$0xff] %v4688
      %4767 = vst [vmem:[%s224 + $0x78] sm:$0xff] %v4689
      %4768 = vst [vmem:[%s224 + $0x80] sm:$0xff] %v4690
      %4769 = vst.msk [vmem:[%s224 + $0x88] sm:$0xff] %vm3069, %v4691
      %4770 = vst [vmem:[%s224 + $0x90] sm:$0xff] %v4692
      %4771 = vst [vmem:[%s224 + $0x98] sm:$0xff] %v4693
      %4772 = vst [vmem:[%s224 + $0xa0] sm:$0xff] %v4694
      %4773 = vst [vmem:[%s224 + $0xa8] sm:$0xff] %v4695
      %4774 = vst [vmem:[%s224 + $0xb0] sm:$0xff] %v4696
      %4775 = vst.msk [vmem:[%s224 + $0xb8] sm:$0xff] %vm3069, %v4697
      %4776 = vst [vmem:[%s224 + $0xc0] sm:$0xff] %v4698
      %4777 = vst [vmem:[%s224 + $0xc8] sm:$0xff] %v4699
      %4778 = vst [vmem:[%s224 + $0xd0] sm:$0xff] %v4700
      %4779 = vst [vmem:[%s224 + $0xd8] sm:$0xff] %v4701
      %4780 = vst [vmem:[%s224 + $0xe0] sm:$0xff] %v4702
      %4781 = vst.msk [vmem:[%s224 + $0xe8] sm:$0xff] %vm3069, %v4703
      %4782 = vst [vmem:[%s224 + $0xf0] sm:$0xff] %v4704
      %4783 = vst [vmem:[%s224 + $0xf8] sm:$0xff] %v4705
      %4784 = vst [vmem:[%s224 + $0x100] sm:$0xff] %v4706
      %4785 = vst [vmem:[%s224 + $0x108] sm:$0xff] %v4707
      %4786 = vst [vmem:[%s224 + $0x110] sm:$0xff] %v4708
      %4787 = vst.msk [vmem:[%s224 + $0x118] sm:$0xff] %vm3069, %v4709
      %4788 = vst [vmem:[%s224 + $0x120] sm:$0xff] %v4710
      %4789 = vst [vmem:[%s224 + $0x128] sm:$0xff] %v4711
      %4790 = vst [vmem:[%s224 + $0x130] sm:$0xff] %v4712
      %4791 = vst [vmem:[%s224 + $0x138] sm:$0xff] %v4713
      %4792 = vst [vmem:[%s224 + $0x140] sm:$0xff] %v4714
      %4793 = vst.msk [vmem:[%s224 + $0x148] sm:$0xff] %vm3069, %v4715
      %4794 = vst [vmem:[%s224 + $0x150] sm:$0xff] %v4716
      %4795 = vst [vmem:[%s224 + $0x158] sm:$0xff] %v4717
      %4796 = vst [vmem:[%s224 + $0x160] sm:$0xff] %v4718
      %4797 = vst [vmem:[%s224 + $0x168] sm:$0xff] %v4719
      %4798 = vst [vmem:[%s224 + $0x170] sm:$0xff] %v4720
      %4799 = vst.msk [vmem:[%s224 + $0x178] sm:$0xff] %vm3069, %v4721
      %4800 = vst [vmem:[%s224 + $0x180] sm:$0xff] %v4722
      %4801 = vst [vmem:[%s224 + $0x188] sm:$0xff] %v4723
      %4802 = vst [vmem:[%s224 + $0x190] sm:$0xff] %v4724
      %4803 = vst [vmem:[%s224 + $0x198] sm:$0xff] %v4725
      %4804 = vst [vmem:[%s224 + $0x1a0] sm:$0xff] %v4726
      %4805 = vst.msk [vmem:[%s224 + $0x1a8] sm:$0xff] %vm3069, %v4727
      %4806 = vst [vmem:[%s224 + $0x1b0] sm:$0xff] %v4728
      %4807 = vst [vmem:[%s224 + $0x1b8] sm:$0xff] %v4729
      %4808 = vst [vmem:[%s224 + $0x1c0] sm:$0xff] %v4730
      %4809 = vst [vmem:[%s224 + $0x1c8] sm:$0xff] %v4731
      %4810 = vst [vmem:[%s224 + $0x1d0] sm:$0xff] %v4732
      %4811 = vst.msk [vmem:[%s224 + $0x1d8] sm:$0xff] %vm3069, %v4733
      %4812 = vst [vmem:[%s224 + $0x1e0] sm:$0xff] %v4734
      %4813 = vst [vmem:[%s224 + $0x1e8] sm:$0xff] %v4735
      %4814 = vst [vmem:[%s224 + $0x1f0] sm:$0xff] %v4736
      %4815 = vst [vmem:[%s224 + $0x1f8] sm:$0xff] %v4737
      %4816 = vst [vmem:[%s224 + $0x200] sm:$0xff] %v4738
      %4817 = vst.msk [vmem:[%s224 + $0x208] sm:$0xff] %vm3069, %v4739
      %4818 = vst [vmem:[%s224 + $0x210] sm:$0xff] %v4740
      %4819 = vst [vmem:[%s224 + $0x218] sm:$0xff] %v4741
      %4820 = vst [vmem:[%s224 + $0x220] sm:$0xff] %v4742
      %4821 = vst [vmem:[%s224 + $0x228] sm:$0xff] %v4743
      %4822 = vst [vmem:[%s224 + $0x230] sm:$0xff] %v4744
      %4823 = vst.msk [vmem:[%s224 + $0x238] sm:$0xff] %vm3069, %v4745
      %4824 = vst [vmem:[%s224 + $0x240] sm:$0x1f] %v4746
      %4825 = vst [vmem:[%s224 + $0x248] sm:$0x1f] %v4747
      %4826 = vst [vmem:[%s224 + $0x250] sm:$0x1f] %v4748
      %4827 = vst [vmem:[%s224 + $0x258] sm:$0x1f] %v4749
      %4828 = vst [vmem:[%s224 + $0x260] sm:$0x1f] %v4750
      %vm4829 = vcmask 159744
      %4830 = vst.msk [vmem:[%s224 + $0x268] sm:$0x1f] %vm4829, %v4751
      %v4831 = vld [vmem:[%s224] sm:$0xff]
      %v4832 = vld [vmem:[%s224 + $0x8] sm:$0xff]
      %v4833 = vld [vmem:[%s224 + $0x10] sm:$0xff]
      %v4834 = vld [vmem:[%s224 + $0x18] sm:$0xff]
      %v4835 = vld [vmem:[%s224 + $0x20] sm:$0xff]
      %v4836 = vld [vmem:[%s224 + $0x28] sm:$0xff]
      %v4837 = vld [vmem:[%s224 + $0x30] sm:$0xff]
      %v4838 = vld [vmem:[%s224 + $0x38] sm:$0xff]
      %v4839 = vld [vmem:[%s224 + $0x40] sm:$0xff]
      %v4840 = vld [vmem:[%s224 + $0x48] sm:$0xff]
      %v4841 = vld [vmem:[%s224 + $0x50] sm:$0xff]
      %v4842 = vld [vmem:[%s224 + $0x58] sm:$0xff]
      %v4843 = vld [vmem:[%s224 + $0x60] sm:$0xff]
      %v4844 = vld [vmem:[%s224 + $0x68] sm:$0xff]
      %v4845 = vld [vmem:[%s224 + $0x70] sm:$0xff]
      %v4846 = vld [vmem:[%s224 + $0x78] sm:$0xff]
      %v4847 = vld [vmem:[%s224 + $0x80] sm:$0xff]
      %v4848 = vld [vmem:[%s224 + $0x88] sm:$0xff]
      %v4849 = vld [vmem:[%s224 + $0x90] sm:$0xff]
      %v4850 = vld [vmem:[%s224 + $0x98] sm:$0xff]
      %v4851 = vld [vmem:[%s224 + $0xa0] sm:$0xff]
      %v4852 = vld [vmem:[%s224 + $0xa8] sm:$0xff]
      %v4853 = vld [vmem:[%s224 + $0xb0] sm:$0xff]
      %v4854 = vld [vmem:[%s224 + $0xb8] sm:$0xff]
      %v4855 = vld [vmem:[%s224 + $0xc0] sm:$0xff]
      %v4856 = vld [vmem:[%s224 + $0xc8] sm:$0xff]
      %v4857 = vld [vmem:[%s224 + $0xd0] sm:$0xff]
      %v4858 = vld [vmem:[%s224 + $0xd8] sm:$0xff]
      %v4859 = vld [vmem:[%s224 + $0xe0] sm:$0xff]
      %v4860 = vld [vmem:[%s224 + $0xe8] sm:$0xff]
      %v4861 = vld [vmem:[%s224 + $0xf0] sm:$0xff]
      %v4862 = vld [vmem:[%s224 + $0xf8] sm:$0xff]
      %v4863 = vld [vmem:[%s224 + $0x100] sm:$0xff]
      %v4864 = vld [vmem:[%s224 + $0x108] sm:$0xff]
      %v4865 = vld [vmem:[%s224 + $0x110] sm:$0xff]
      %v4866 = vld [vmem:[%s224 + $0x118] sm:$0xff]
      %v4867 = vld [vmem:[%s224 + $0x120] sm:$0xff]
      %v4868 = vld [vmem:[%s224 + $0x128] sm:$0xff]
      %v4869 = vld [vmem:[%s224 + $0x130] sm:$0xff]
      %v4870 = vld [vmem:[%s224 + $0x138] sm:$0xff]
      %v4871 = vld [vmem:[%s224 + $0x140] sm:$0xff]
      %v4872 = vld [vmem:[%s224 + $0x148] sm:$0xff]
      %v4873 = vld [vmem:[%s224 + $0x150] sm:$0xff]
      %v4874 = vld [vmem:[%s224 + $0x158] sm:$0xff]
      %v4875 = vld [vmem:[%s224 + $0x160] sm:$0xff]
      %v4876 = vld [vmem:[%s224 + $0x168] sm:$0xff]
      %v4877 = vld [vmem:[%s224 + $0x170] sm:$0xff]
      %v4878 = vld [vmem:[%s224 + $0x178] sm:$0xff]
      %v4879 = vld [vmem:[%s224 + $0x180] sm:$0xff]
      %v4880 = vld [vmem:[%s224 + $0x188] sm:$0xff]
      %v4881 = vld [vmem:[%s224 + $0x190] sm:$0xff]
      %v4882 = vld [vmem:[%s224 + $0x198] sm:$0xff]
      %v4883 = vld [vmem:[%s224 + $0x1a0] sm:$0xff]
      %v4884 = vld [vmem:[%s224 + $0x1a8] sm:$0xff]
      %v4885 = vld [vmem:[%s224 + $0x1b0] sm:$0xff]
      %v4886 = vld [vmem:[%s224 + $0x1b8] sm:$0xff]
      %v4887 = vld [vmem:[%s224 + $0x1c0] sm:$0xff]
      %v4888 = vld [vmem:[%s224 + $0x1c8] sm:$0xff]
      %v4889 = vld [vmem:[%s224 + $0x1d0] sm:$0xff]
      %v4890 = vld [vmem:[%s224 + $0x1d8] sm:$0xff]
      %v4891 = vld [vmem:[%s224 + $0x1e0] sm:$0xff]
      %v4892 = vld [vmem:[%s224 + $0x1e8] sm:$0xff]
      %v4893 = vld [vmem:[%s224 + $0x1f0] sm:$0xff]
      %v4894 = vld [vmem:[%s224 + $0x1f8] sm:$0xff]
      %v4895 = vld [vmem:[%s224 + $0x200] sm:$0xff]
      %v4896 = vld [vmem:[%s224 + $0x208] sm:$0xff]
      %v4897 = vld [vmem:[%s224 + $0x210] sm:$0xff]
      %v4898 = vld [vmem:[%s224 + $0x218] sm:$0xff]
      %v4899 = vld [vmem:[%s224 + $0x220] sm:$0xff]
      %v4900 = vld [vmem:[%s224 + $0x228] sm:$0xff]
      %v4901 = vld [vmem:[%s224 + $0x230] sm:$0xff]
      %v4902 = vld [vmem:[%s224 + $0x238] sm:$0xff]
      %v4903 = vld [vmem:[%s224 + $0x240] sm:$0x1f]
      %v4904 = vld [vmem:[%s224 + $0x248] sm:$0x1f]
      %v4905 = vld [vmem:[%s224 + $0x250] sm:$0x1f]
      %v4906 = vld [vmem:[%s224 + $0x258] sm:$0x1f]
      %v4907 = vld [vmem:[%s224 + $0x260] sm:$0x1f]
      %v4908 = vld [vmem:[%s224 + $0x268] sm:$0x1f]
      %v4909 = vld [vmem:[#allocation2] sm:$0xfc]
      %v4910 = vld [vmem:[#allocation2 + $0x8] sm:$0xfc]
      %v4911 = vld [vmem:[#allocation2 + $0x10] sm:$0xfc]
      %v4912 = vld [vmem:[#allocation2 + $0x18] sm:$0xfc]
      %v4913 = vld [vmem:[#allocation2 + $0x20] sm:$0xfc]
      %v4914 = vld [vmem:[#allocation2 + $0x28] sm:$0xfc]
      %v4915 = vld [vmem:[#allocation2 + $0x30] sm:$0xff]
      %v4916 = vld [vmem:[#allocation2 + $0x38] sm:$0xff]
      %v4917 = vld [vmem:[#allocation2 + $0x40] sm:$0xff]
      %v4918 = vld [vmem:[#allocation2 + $0x48] sm:$0xff]
      %v4919 = vld [vmem:[#allocation2 + $0x50] sm:$0xff]
      %v4920 = vld [vmem:[#allocation2 + $0x58] sm:$0xff]
      %v4921 = vld [vmem:[#allocation2 + $0x60] sm:$0xff]
      %v4922 = vld [vmem:[#allocation2 + $0x68] sm:$0xff]
      %v4923 = vld [vmem:[#allocation2 + $0x70] sm:$0xff]
      %v4924 = vld [vmem:[#allocation2 + $0x78] sm:$0xff]
      %v4925 = vld [vmem:[#allocation2 + $0x80] sm:$0xff]
      %v4926 = vld [vmem:[#allocation2 + $0x88] sm:$0xff]
      %v4927 = vld [vmem:[#allocation2 + $0x90] sm:$0xff]
      %v4928 = vld [vmem:[#allocation2 + $0x98] sm:$0xff]
      %v4929 = vld [vmem:[#allocation2 + $0xa0] sm:$0xff]
      %v4930 = vld [vmem:[#allocation2 + $0xa8] sm:$0xff]
      %v4931 = vld [vmem:[#allocation2 + $0xb0] sm:$0xff]
      %v4932 = vld [vmem:[#allocation2 + $0xb8] sm:$0xff]
      %v4933 = vld [vmem:[#allocation2 + $0xc0] sm:$0xff]
      %v4934 = vld [vmem:[#allocation2 + $0xc8] sm:$0xff]
      %v4935 = vld [vmem:[#allocation2 + $0xd0] sm:$0xff]
      %v4936 = vld [vmem:[#allocation2 + $0xd8] sm:$0xff]
      %v4937 = vld [vmem:[#allocation2 + $0xe0] sm:$0xff]
      %v4938 = vld [vmem:[#allocation2 + $0xe8] sm:$0xff]
      %v4939 = vld [vmem:[#allocation2 + $0xf0] sm:$0xff]
      %v4940 = vld [vmem:[#allocation2 + $0xf8] sm:$0xff]
      %v4941 = vld [vmem:[#allocation2 + $0x100] sm:$0xff]
      %v4942 = vld [vmem:[#allocation2 + $0x108] sm:$0xff]
      %v4943 = vld [vmem:[#allocation2 + $0x110] sm:$0xff]
      %v4944 = vld [vmem:[#allocation2 + $0x118] sm:$0xff]
      %v4945 = vld [vmem:[#allocation2 + $0x120] sm:$0xff]
      %v4946 = vld [vmem:[#allocation2 + $0x128] sm:$0xff]
      %v4947 = vld [vmem:[#allocation2 + $0x130] sm:$0xff]
      %v4948 = vld [vmem:[#allocation2 + $0x138] sm:$0xff]
      %v4949 = vld [vmem:[#allocation2 + $0x140] sm:$0xff]
      %v4950 = vld [vmem:[#allocation2 + $0x148] sm:$0xff]
      %v4951 = vld [vmem:[#allocation2 + $0x150] sm:$0xff]
      %v4952 = vld [vmem:[#allocation2 + $0x158] sm:$0xff]
      %v4953 = vld [vmem:[#allocation2 + $0x160] sm:$0xff]
      %v4954 = vld [vmem:[#allocation2 + $0x168] sm:$0xff]
      %v4955 = vld [vmem:[#allocation2 + $0x170] sm:$0xff]
      %v4956 = vld [vmem:[#allocation2 + $0x178] sm:$0xff]
      %v4957 = vld [vmem:[#allocation2 + $0x180] sm:$0xff]
      %v4958 = vld [vmem:[#allocation2 + $0x188] sm:$0xff]
      %v4959 = vld [vmem:[#allocation2 + $0x190] sm:$0xff]
      %v4960 = vld [vmem:[#allocation2 + $0x198] sm:$0xff]
      %v4961 = vld [vmem:[#allocation2 + $0x1a0] sm:$0xff]
      %v4962 = vld [vmem:[#allocation2 + $0x1a8] sm:$0xff]
      %v4963 = vld [vmem:[#allocation2 + $0x1b0] sm:$0xff]
      %v4964 = vld [vmem:[#allocation2 + $0x1b8] sm:$0xff]
      %v4965 = vld [vmem:[#allocation2 + $0x1c0] sm:$0xff]
      %v4966 = vld [vmem:[#allocation2 + $0x1c8] sm:$0xff]
      %v4967 = vld [vmem:[#allocation2 + $0x1d0] sm:$0xff]
      %v4968 = vld [vmem:[#allocation2 + $0x1d8] sm:$0xff]
      %v4969 = vld [vmem:[#allocation2 + $0x1e0] sm:$0xff]
      %v4970 = vld [vmem:[#allocation2 + $0x1e8] sm:$0xff]
      %v4971 = vld [vmem:[#allocation2 + $0x1f0] sm:$0xff]
      %v4972 = vld [vmem:[#allocation2 + $0x1f8] sm:$0xff]
      %v4973 = vld [vmem:[#allocation2 + $0x200] sm:$0xff]
      %v4974 = vld [vmem:[#allocation2 + $0x208] sm:$0xff]
      %v4975 = vld [vmem:[#allocation2 + $0x210] sm:$0xff]
      %v4976 = vld [vmem:[#allocation2 + $0x218] sm:$0xff]
      %v4977 = vld [vmem:[#allocation2 + $0x220] sm:$0xff]
      %v4978 = vld [vmem:[#allocation2 + $0x228] sm:$0xff]
      %v4979 = vld [vmem:[#allocation2 + $0x230] sm:$0xff]
      %v4980 = vld [vmem:[#allocation2 + $0x238] sm:$0xff]
      %v4981 = vld [vmem:[#allocation2 + $0x240] sm:$0x7f]
      %v4982 = vld [vmem:[#allocation2 + $0x248] sm:$0x7f]
      %v4983 = vld [vmem:[#allocation2 + $0x250] sm:$0x7f]
      %v4984 = vld [vmem:[#allocation2 + $0x258] sm:$0x7f]
      %v4985 = vld [vmem:[#allocation2 + $0x260] sm:$0x7f]
      %v4986 = vld [vmem:[#allocation2 + $0x268] sm:$0x7f]
      %v5065 = vrot.slane %v4909, 2
      %v5066 = vrot.slane %v4915, 2
      %v5067 = vsel %vm2679, %v5065, %v5066
      %v5068 = vrot.slane %v4910, 2
      %v5069 = vrot.slane %v4916, 2
      %v5070 = vsel %vm2679, %v5068, %v5069
      %v5071 = vrot.slane %v4911, 2
      %v5072 = vrot.slane %v4917, 2
      %v5073 = vsel %vm2679, %v5071, %v5072
      %v5074 = vrot.slane %v4912, 2
      %v5075 = vrot.slane %v4918, 2
      %v5076 = vsel %vm2679, %v5074, %v5075
      %v5077 = vrot.slane %v4913, 2
      %v5078 = vrot.slane %v4919, 2
      %v5079 = vsel %vm2679, %v5077, %v5078
      %v5080 = vrot.slane %v4914, 2
      %v5081 = vrot.slane %v4920, 2
      %v5082 = vsel %vm2679, %v5080, %v5081
      %v5083 = vrot.slane %v4921, 2
      %v5084 = vsel %vm2679, %v5066, %v5083
      %v5085 = vrot.slane %v4922, 2
      %v5086 = vsel %vm2679, %v5069, %v5085
      %v5087 = vrot.slane %v4923, 2
      %v5088 = vsel %vm2679, %v5072, %v5087
      %v5089 = vrot.slane %v4924, 2
      %v5090 = vsel %vm2679, %v5075, %v5089
      %v5091 = vrot.slane %v4925, 2
      %v5092 = vsel %vm2679, %v5078, %v5091
      %v5093 = vrot.slane %v4926, 2
      %v5094 = vsel %vm2679, %v5081, %v5093
      %v5095 = vrot.slane %v4927, 2
      %v5096 = vsel %vm2679, %v5083, %v5095
      %v5097 = vrot.slane %v4928, 2
      %v5098 = vsel %vm2679, %v5085, %v5097
      %v5099 = vrot.slane %v4929, 2
      %v5100 = vsel %vm2679, %v5087, %v5099
      %v5101 = vrot.slane %v4930, 2
      %v5102 = vsel %vm2679, %v5089, %v5101
      %v5103 = vrot.slane %v4931, 2
      %v5104 = vsel %vm2679, %v5091, %v5103
      %v5105 = vrot.slane %v4932, 2
      %v5106 = vsel %vm2679, %v5093, %v5105
      %v5107 = vrot.slane %v4933, 2
      %v5108 = vsel %vm2679, %v5095, %v5107
      %v5109 = vrot.slane %v4934, 2
      %v5110 = vsel %vm2679, %v5097, %v5109
      %v5111 = vrot.slane %v4935, 2
      %v5112 = vsel %vm2679, %v5099, %v5111
      %v5113 = vrot.slane %v4936, 2
      %v5114 = vsel %vm2679, %v5101, %v5113
      %v5115 = vrot.slane %v4937, 2
      %v5116 = vsel %vm2679, %v5103, %v5115
      %v5117 = vrot.slane %v4938, 2
      %v5118 = vsel %vm2679, %v5105, %v5117
      %v5119 = vrot.slane %v4939, 2
      %v5120 = vsel %vm2679, %v5107, %v5119
      %v5121 = vrot.slane %v4940, 2
      %v5122 = vsel %vm2679, %v5109, %v5121
      %v5123 = vrot.slane %v4941, 2
      %v5124 = vsel %vm2679, %v5111, %v5123
      %v5125 = vrot.slane %v4942, 2
      %v5126 = vsel %vm2679, %v5113, %v5125
      %v5127 = vrot.slane %v4943, 2
      %v5128 = vsel %vm2679, %v5115, %v5127
      %v5129 = vrot.slane %v4944, 2
      %v5130 = vsel %vm2679, %v5117, %v5129
      %v5131 = vrot.slane %v4945, 2
      %v5132 = vsel %vm2679, %v5119, %v5131
      %v5133 = vrot.slane %v4946, 2
      %v5134 = vsel %vm2679, %v5121, %v5133
      %v5135 = vrot.slane %v4947, 2
      %v5136 = vsel %vm2679, %v5123, %v5135
      %v5137 = vrot.slane %v4948, 2
      %v5138 = vsel %vm2679, %v5125, %v5137
      %v5139 = vrot.slane %v4949, 2
      %v5140 = vsel %vm2679, %v5127, %v5139
      %v5141 = vrot.slane %v4950, 2
      %v5142 = vsel %vm2679, %v5129, %v5141
      %v5143 = vrot.slane %v4951, 2
      %v5144 = vsel %vm2679, %v5131, %v5143
      %v5145 = vrot.slane %v4952, 2
      %v5146 = vsel %vm2679, %v5133, %v5145
      %v5147 = vrot.slane %v4953, 2
      %v5148 = vsel %vm2679, %v5135, %v5147
      %v5149 = vrot.slane %v4954, 2
      %v5150 = vsel %vm2679, %v5137, %v5149
      %v5151 = vrot.slane %v4955, 2
      %v5152 = vsel %vm2679, %v5139, %v5151
      %v5153 = vrot.slane %v4956, 2
      %v5154 = vsel %vm2679, %v5141, %v5153
      %v5155 = vrot.slane %v4957, 2
      %v5156 = vsel %vm2679, %v5143, %v5155
      %v5157 = vrot.slane %v4958, 2
      %v5158 = vsel %vm2679, %v5145, %v5157
      %v5159 = vrot.slane %v4959, 2
      %v5160 = vsel %vm2679, %v5147, %v5159
      %v5161 = vrot.slane %v4960, 2
      %v5162 = vsel %vm2679, %v5149, %v5161
      %v5163 = vrot.slane %v4961, 2
      %v5164 = vsel %vm2679, %v5151, %v5163
      %v5165 = vrot.slane %v4962, 2
      %v5166 = vsel %vm2679, %v5153, %v5165
      %v5167 = vrot.slane %v4963, 2
      %v5168 = vsel %vm2679, %v5155, %v5167
      %v5169 = vrot.slane %v4964, 2
      %v5170 = vsel %vm2679, %v5157, %v5169
      %v5171 = vrot.slane %v4965, 2
      %v5172 = vsel %vm2679, %v5159, %v5171
      %v5173 = vrot.slane %v4966, 2
      %v5174 = vsel %vm2679, %v5161, %v5173
      %v5175 = vrot.slane %v4967, 2
      %v5176 = vsel %vm2679, %v5163, %v5175
      %v5177 = vrot.slane %v4968, 2
      %v5178 = vsel %vm2679, %v5165, %v5177
      %v5179 = vrot.slane %v4969, 2
      %v5180 = vsel %vm2679, %v5167, %v5179
      %v5181 = vrot.slane %v4970, 2
      %v5182 = vsel %vm2679, %v5169, %v5181
      %v5183 = vrot.slane %v4971, 2
      %v5184 = vsel %vm2679, %v5171, %v5183
      %v5185 = vrot.slane %v4972, 2
      %v5186 = vsel %vm2679, %v5173, %v5185
      %v5187 = vrot.slane %v4973, 2
      %v5188 = vsel %vm2679, %v5175, %v5187
      %v5189 = vrot.slane %v4974, 2
      %v5190 = vsel %vm2679, %v5177, %v5189
      %v5191 = vrot.slane %v4975, 2
      %v5192 = vsel %vm2679, %v5179, %v5191
      %v5193 = vrot.slane %v4976, 2
      %v5194 = vsel %vm2679, %v5181, %v5193
      %v5195 = vrot.slane %v4977, 2
      %v5196 = vsel %vm2679, %v5183, %v5195
      %v5197 = vrot.slane %v4978, 2
      %v5198 = vsel %vm2679, %v5185, %v5197
      %v5199 = vrot.slane %v4979, 2
      %v5200 = vsel %vm2679, %v5187, %v5199
      %v5201 = vrot.slane %v4980, 2
      %v5202 = vsel %vm2679, %v5189, %v5201
      %v5203 = vrot.slane %v4981, 2
      %v5204 = vsel %vm2679, %v5191, %v5203
      %v5205 = vrot.slane %v4982, 2
      %v5206 = vsel %vm2679, %v5193, %v5205
      %v5207 = vrot.slane %v4983, 2
      %v5208 = vsel %vm2679, %v5195, %v5207
      %v5209 = vrot.slane %v4984, 2
      %v5210 = vsel %vm2679, %v5197, %v5209
      %v5211 = vrot.slane %v4985, 2
      %v5212 = vsel %vm2679, %v5199, %v5211
      %v5213 = vrot.slane %v4986, 2
      %v5214 = vsel %vm2679, %v5201, %v5213
      %5293 = vrot.lane.b32.xlu0 %v5067, 2
      %v5294 = vpop.permute.xlu0 %5293
      %5295 = vrot.lane.b32.xlu0 %v5084, 2
      %v5296 = vpop.permute.xlu0 %5295
      %5297 = vrot.lane.b32.xlu0 %v5096, 2
      %v5298 = vpop.permute.xlu0 %5297
      %5299 = vrot.lane.b32.xlu0 %v5108, 2
      %v5300 = vpop.permute.xlu0 %5299
      %5301 = vrot.lane.b32.xlu0 %v5120, 2
      %v5302 = vpop.permute.xlu0 %5301
      %5303 = vrot.lane.b32.xlu0 %v5132, 2
      %v5304 = vpop.permute.xlu0 %5303
      %5305 = vrot.lane.b32.xlu0 %v5144, 2
      %v5306 = vpop.permute.xlu0 %5305
      %5307 = vrot.lane.b32.xlu0 %v5156, 2
      %v5308 = vpop.permute.xlu0 %5307
      %5309 = vrot.lane.b32.xlu0 %v5168, 2
      %v5310 = vpop.permute.xlu0 %5309
      %5311 = vrot.lane.b32.xlu0 %v5180, 2
      %v5312 = vpop.permute.xlu0 %5311
      %5313 = vrot.lane.b32.xlu0 %v5192, 2
      %v5314 = vpop.permute.xlu0 %5313
      %5315 = vrot.lane.b32.xlu0 %v5204, 2
      %v5316 = vpop.permute.xlu0 %5315
      %5317 = vrot.lane.b32.xlu0 %v5203, 2
      %v5318 = vpop.permute.xlu0 %5317
      %5319 = vrot.lane.b32.xlu0 %v5070, 2
      %v5320 = vpop.permute.xlu0 %5319
      %5321 = vrot.lane.b32.xlu0 %v5086, 2
      %v5322 = vpop.permute.xlu0 %5321
      %5323 = vrot.lane.b32.xlu0 %v5098, 2
      %v5324 = vpop.permute.xlu0 %5323
      %5325 = vrot.lane.b32.xlu0 %v5110, 2
      %v5326 = vpop.permute.xlu0 %5325
      %5327 = vrot.lane.b32.xlu0 %v5122, 2
      %v5328 = vpop.permute.xlu0 %5327
      %5329 = vrot.lane.b32.xlu0 %v5134, 2
      %v5330 = vpop.permute.xlu0 %5329
      %5331 = vrot.lane.b32.xlu0 %v5146, 2
      %v5332 = vpop.permute.xlu0 %5331
      %5333 = vrot.lane.b32.xlu0 %v5158, 2
      %v5334 = vpop.permute.xlu0 %5333
      %5335 = vrot.lane.b32.xlu0 %v5170, 2
      %v5336 = vpop.permute.xlu0 %5335
      %5337 = vrot.lane.b32.xlu0 %v5182, 2
      %v5338 = vpop.permute.xlu0 %5337
      %5339 = vrot.lane.b32.xlu0 %v5194, 2
      %v5340 = vpop.permute.xlu0 %5339
      %5341 = vrot.lane.b32.xlu0 %v5206, 2
      %v5342 = vpop.permute.xlu0 %5341
      %5343 = vrot.lane.b32.xlu0 %v5205, 2
      %v5344 = vpop.permute.xlu0 %5343
      %5345 = vrot.lane.b32.xlu0 %v5073, 2
      %v5346 = vpop.permute.xlu0 %5345
      %5347 = vrot.lane.b32.xlu0 %v5088, 2
      %v5348 = vpop.permute.xlu0 %5347
      %5349 = vrot.lane.b32.xlu0 %v5100, 2
      %v5350 = vpop.permute.xlu0 %5349
      %5351 = vrot.lane.b32.xlu0 %v5112, 2
      %v5352 = vpop.permute.xlu0 %5351
      %5353 = vrot.lane.b32.xlu0 %v5124, 2
      %v5354 = vpop.permute.xlu0 %5353
      %5355 = vrot.lane.b32.xlu0 %v5136, 2
      %v5356 = vpop.permute.xlu0 %5355
      %5357 = vrot.lane.b32.xlu0 %v5148, 2
      %v5358 = vpop.permute.xlu0 %5357
      %5359 = vrot.lane.b32.xlu0 %v5160, 2
      %v5360 = vpop.permute.xlu0 %5359
      %5361 = vrot.lane.b32.xlu0 %v5172, 2
      %v5362 = vpop.permute.xlu0 %5361
      %5363 = vrot.lane.b32.xlu0 %v5184, 2
      %v5364 = vpop.permute.xlu0 %5363
      %5365 = vrot.lane.b32.xlu0 %v5196, 2
      %v5366 = vpop.permute.xlu0 %5365
      %5367 = vrot.lane.b32.xlu0 %v5208, 2
      %v5368 = vpop.permute.xlu0 %5367
      %5369 = vrot.lane.b32.xlu0 %v5207, 2
      %v5370 = vpop.permute.xlu0 %5369
      %5371 = vrot.lane.b32.xlu0 %v5076, 2
      %v5372 = vpop.permute.xlu0 %5371
      %5373 = vrot.lane.b32.xlu0 %v5090, 2
      %v5374 = vpop.permute.xlu0 %5373
      %5375 = vrot.lane.b32.xlu0 %v5102, 2
      %v5376 = vpop.permute.xlu0 %5375
      %5377 = vrot.lane.b32.xlu0 %v5114, 2
      %v5378 = vpop.permute.xlu0 %5377
      %5379 = vrot.lane.b32.xlu0 %v5126, 2
      %v5380 = vpop.permute.xlu0 %5379
      %5381 = vrot.lane.b32.xlu0 %v5138, 2
      %v5382 = vpop.permute.xlu0 %5381
      %5383 = vrot.lane.b32.xlu0 %v5150, 2
      %v5384 = vpop.permute.xlu0 %5383
      %5385 = vrot.lane.b32.xlu0 %v5162, 2
      %v5386 = vpop.permute.xlu0 %5385
      %5387 = vrot.lane.b32.xlu0 %v5174, 2
      %v5388 = vpop.permute.xlu0 %5387
      %5389 = vrot.lane.b32.xlu0 %v5186, 2
      %v5390 = vpop.permute.xlu0 %5389
      %5391 = vrot.lane.b32.xlu0 %v5198, 2
      %v5392 = vpop.permute.xlu0 %5391
      %5393 = vrot.lane.b32.xlu0 %v5210, 2
      %v5394 = vpop.permute.xlu0 %5393
      %5395 = vrot.lane.b32.xlu0 %v5209, 2
      %v5396 = vpop.permute.xlu0 %5395
      %5397 = vrot.lane.b32.xlu0 %v5079, 2
      %v5398 = vpop.permute.xlu0 %5397
      %5399 = vrot.lane.b32.xlu0 %v5092, 2
      %v5400 = vpop.permute.xlu0 %5399
      %5401 = vrot.lane.b32.xlu0 %v5104, 2
      %v5402 = vpop.permute.xlu0 %5401
      %5403 = vrot.lane.b32.xlu0 %v5116, 2
      %v5404 = vpop.permute.xlu0 %5403
      %5405 = vrot.lane.b32.xlu0 %v5128, 2
      %v5406 = vpop.permute.xlu0 %5405
      %5407 = vrot.lane.b32.xlu0 %v5140, 2
      %v5408 = vpop.permute.xlu0 %5407
      %5409 = vrot.lane.b32.xlu0 %v5152, 2
      %v5410 = vpop.permute.xlu0 %5409
      %5411 = vrot.lane.b32.xlu0 %v5164, 2
      %v5412 = vpop.permute.xlu0 %5411
      %5413 = vrot.lane.b32.xlu0 %v5176, 2
      %v5414 = vpop.permute.xlu0 %5413
      %5415 = vrot.lane.b32.xlu0 %v5188, 2
      %v5416 = vpop.permute.xlu0 %5415
      %5417 = vrot.lane.b32.xlu0 %v5200, 2
      %v5418 = vpop.permute.xlu0 %5417
      %5419 = vrot.lane.b32.xlu0 %v5212, 2
      %v5420 = vpop.permute.xlu0 %5419
      %5421 = vrot.lane.b32.xlu0 %v5211, 2
      %v5422 = vpop.permute.xlu0 %5421
      %5423 = vrot.lane.b32.xlu0 %v5082, 2
      %v5424 = vpop.permute.xlu0 %5423
      %5425 = vrot.lane.b32.xlu0 %v5094, 2
      %v5426 = vpop.permute.xlu0 %5425
      %5427 = vrot.lane.b32.xlu0 %v5106, 2
      %v5428 = vpop.permute.xlu0 %5427
      %5429 = vrot.lane.b32.xlu0 %v5118, 2
      %v5430 = vpop.permute.xlu0 %5429
      %5431 = vrot.lane.b32.xlu0 %v5130, 2
      %v5432 = vpop.permute.xlu0 %5431
      %5433 = vrot.lane.b32.xlu0 %v5142, 2
      %v5434 = vpop.permute.xlu0 %5433
      %5435 = vrot.lane.b32.xlu0 %v5154, 2
      %v5436 = vpop.permute.xlu0 %5435
      %5437 = vrot.lane.b32.xlu0 %v5166, 2
      %v5438 = vpop.permute.xlu0 %5437
      %5439 = vrot.lane.b32.xlu0 %v5178, 2
      %v5440 = vpop.permute.xlu0 %5439
      %5441 = vrot.lane.b32.xlu0 %v5190, 2
      %v5442 = vpop.permute.xlu0 %5441
      %5443 = vrot.lane.b32.xlu0 %v5202, 2
      %v5444 = vpop.permute.xlu0 %5443
      %5445 = vrot.lane.b32.xlu0 %v5214, 2
      %v5446 = vpop.permute.xlu0 %5445
      %5447 = vrot.lane.b32.xlu0 %v5213, 2
      %v5448 = vpop.permute.xlu0 %5447
      %vm5449 = vcmp.lt.s32.totalorder %v4594, 2
      %v5450 = vsel %vm5449, %v5398, %v5424
      %v5451 = vsel %vm5449, %v5400, %v5426
      %v5452 = vsel %vm5449, %v5402, %v5428
      %v5453 = vsel %vm5449, %v5404, %v5430
      %v5454 = vsel %vm5449, %v5406, %v5432
      %v5455 = vsel %vm5449, %v5408, %v5434
      %v5456 = vsel %vm5449, %v5410, %v5436
      %v5457 = vsel %vm5449, %v5412, %v5438
      %v5458 = vsel %vm5449, %v5414, %v5440
      %v5459 = vsel %vm5449, %v5416, %v5442
      %v5460 = vsel %vm5449, %v5418, %v5444
      %v5461 = vsel %vm5449, %v5420, %v5446
      %v5462 = vsel %vm5449, %v5422, %v5448
      %v5463 = vsel %vm5449, %v5372, %v5398
      %v5464 = vsel %vm5449, %v5374, %v5400
      %v5465 = vsel %vm5449, %v5376, %v5402
      %v5466 = vsel %vm5449, %v5378, %v5404
      %v5467 = vsel %vm5449, %v5380, %v5406
      %v5468 = vsel %vm5449, %v5382, %v5408
      %v5469 = vsel %vm5449, %v5384, %v5410
      %v5470 = vsel %vm5449, %v5386, %v5412
      %v5471 = vsel %vm5449, %v5388, %v5414
      %v5472 = vsel %vm5449, %v5390, %v5416
      %v5473 = vsel %vm5449, %v5392, %v5418
      %v5474 = vsel %vm5449, %v5394, %v5420
      %v5475 = vsel %vm5449, %v5396, %v5422
      %v5476 = vsel %vm5449, %v5346, %v5372
      %v5477 = vsel %vm5449, %v5348, %v5374
      %v5478 = vsel %vm5449, %v5350, %v5376
      %v5479 = vsel %vm5449, %v5352, %v5378
      %v5480 = vsel %vm5449, %v5354, %v5380
      %v5481 = vsel %vm5449, %v5356, %v5382
      %v5482 = vsel %vm5449, %v5358, %v5384
      %v5483 = vsel %vm5449, %v5360, %v5386
      %v5484 = vsel %vm5449, %v5362, %v5388
      %v5485 = vsel %vm5449, %v5364, %v5390
      %v5486 = vsel %vm5449, %v5366, %v5392
      %v5487 = vsel %vm5449, %v5368, %v5394
      %v5488 = vsel %vm5449, %v5370, %v5396
      %v5489 = vsel %vm5449, %v5320, %v5346
      %v5490 = vsel %vm5449, %v5322, %v5348
      %v5491 = vsel %vm5449, %v5324, %v5350
      %v5492 = vsel %vm5449, %v5326, %v5352
      %v5493 = vsel %vm5449, %v5328, %v5354
      %v5494 = vsel %vm5449, %v5330, %v5356
      %v5495 = vsel %vm5449, %v5332, %v5358
      %v5496 = vsel %vm5449, %v5334, %v5360
      %v5497 = vsel %vm5449, %v5336, %v5362
      %v5498 = vsel %vm5449, %v5338, %v5364
      %v5499 = vsel %vm5449, %v5340, %v5366
      %v5500 = vsel %vm5449, %v5342, %v5368
      %v5501 = vsel %vm5449, %v5344, %v5370
      %v5502 = vsel %vm5449, %v5294, %v5320
      %v5503 = vsel %vm5449, %v5296, %v5322
      %v5504 = vsel %vm5449, %v5298, %v5324
      %v5505 = vsel %vm5449, %v5300, %v5326
      %v5506 = vsel %vm5449, %v5302, %v5328
      %v5507 = vsel %vm5449, %v5304, %v5330
      %v5508 = vsel %vm5449, %v5306, %v5332
      %v5509 = vsel %vm5449, %v5308, %v5334
      %v5510 = vsel %vm5449, %v5310, %v5336
      %v5511 = vsel %vm5449, %v5312, %v5338
      %v5512 = vsel %vm5449, %v5314, %v5340
      %v5513 = vsel %vm5449, %v5316, %v5342
      %v5514 = vsel %vm5449, %v5318, %v5344
      %v5515 = vsel %vm5449, %v5424, %v5294
      %v5516 = vsel %vm5449, %v5426, %v5296
      %v5517 = vsel %vm5449, %v5428, %v5298
      %v5518 = vsel %vm5449, %v5430, %v5300
      %v5519 = vsel %vm5449, %v5432, %v5302
      %v5520 = vsel %vm5449, %v5434, %v5304
      %v5521 = vsel %vm5449, %v5436, %v5306
      %v5522 = vsel %vm5449, %v5438, %v5308
      %v5523 = vsel %vm5449, %v5440, %v5310
      %v5524 = vsel %vm5449, %v5442, %v5312
      %v5525 = vsel %vm5449, %v5444, %v5314
      %v5526 = vsel %vm5449, %v5446, %v5316
      %v5527 = vsel %vm5449, %v5448, %v5318
      %v5528 = vld [vmem:[#allocation2] sm:$0xf8]
      %v5529 = vld [vmem:[#allocation2 + $0x8] sm:$0xf8]
      %v5530 = vld [vmem:[#allocation2 + $0x10] sm:$0xf8]
      %v5531 = vld [vmem:[#allocation2 + $0x18] sm:$0xf8]
      %v5532 = vld [vmem:[#allocation2 + $0x20] sm:$0xf8]
      %v5533 = vld [vmem:[#allocation2 + $0x28] sm:$0xf8]
      %v5534 = vld [vmem:[#allocation2 + $0x240] sm:$0xff]
      %v5535 = vld [vmem:[#allocation2 + $0x248] sm:$0xff]
      %v5536 = vld [vmem:[#allocation2 + $0x250] sm:$0xff]
      %v5537 = vld [vmem:[#allocation2 + $0x258] sm:$0xff]
      %v5538 = vld [vmem:[#allocation2 + $0x260] sm:$0xff]
      %v5539 = vld [vmem:[#allocation2 + $0x268] sm:$0xff]
      %v5552 = vrot.slane %v5528, 3
      %v5553 = vrot.slane %v4915, 3
      %v5554 = vsel %vm3722, %v5552, %v5553
      %v5555 = vrot.slane %v5529, 3
      %v5556 = vrot.slane %v4916, 3
      %v5557 = vsel %vm3722, %v5555, %v5556
      %v5558 = vrot.slane %v5530, 3
      %v5559 = vrot.slane %v4917, 3
      %v5560 = vsel %vm3722, %v5558, %v5559
      %v5561 = vrot.slane %v5531, 3
      %v5562 = vrot.slane %v4918, 3
      %v5563 = vsel %vm3722, %v5561, %v5562
      %v5564 = vrot.slane %v5532, 3
      %v5565 = vrot.slane %v4919, 3
      %v5566 = vsel %vm3722, %v5564, %v5565
      %v5567 = vrot.slane %v5533, 3
      %v5568 = vrot.slane %v4920, 3
      %v5569 = vsel %vm3722, %v5567, %v5568
      %v5570 = vrot.slane %v4921, 3
      %v5571 = vsel %vm3722, %v5553, %v5570
      %v5572 = vrot.slane %v4922, 3
      %v5573 = vsel %vm3722, %v5556, %v5572
      %v5574 = vrot.slane %v4923, 3
      %v5575 = vsel %vm3722, %v5559, %v5574
      %v5576 = vrot.slane %v4924, 3
      %v5577 = vsel %vm3722, %v5562, %v5576
      %v5578 = vrot.slane %v4925, 3
      %v5579 = vsel %vm3722, %v5565, %v5578
      %v5580 = vrot.slane %v4926, 3
      %v5581 = vsel %vm3722, %v5568, %v5580
      %v5582 = vrot.slane %v4927, 3
      %v5583 = vsel %vm3722, %v5570, %v5582
      %v5584 = vrot.slane %v4928, 3
      %v5585 = vsel %vm3722, %v5572, %v5584
      %v5586 = vrot.slane %v4929, 3
      %v5587 = vsel %vm3722, %v5574, %v5586
      %v5588 = vrot.slane %v4930, 3
      %v5589 = vsel %vm3722, %v5576, %v5588
      %v5590 = vrot.slane %v4931, 3
      %v5591 = vsel %vm3722, %v5578, %v5590
      %v5592 = vrot.slane %v4932, 3
      %v5593 = vsel %vm3722, %v5580, %v5592
      %v5594 = vrot.slane %v4933, 3
      %v5595 = vsel %vm3722, %v5582, %v5594
      %v5596 = vrot.slane %v4934, 3
      %v5597 = vsel %vm3722, %v5584, %v5596
      %v5598 = vrot.slane %v4935, 3
      %v5599 = vsel %vm3722, %v5586, %v5598
      %v5600 = vrot.slane %v4936, 3
      %v5601 = vsel %vm3722, %v5588, %v5600
      %v5602 = vrot.slane %v4937, 3
      %v5603 = vsel %vm3722, %v5590, %v5602
      %v5604 = vrot.slane %v4938, 3
      %v5605 = vsel %vm3722, %v5592, %v5604
      %v5606 = vrot.slane %v4939, 3
      %v5607 = vsel %vm3722, %v5594, %v5606
      %v5608 = vrot.slane %v4940, 3
      %v5609 = vsel %vm3722, %v5596, %v5608
      %v5610 = vrot.slane %v4941, 3
      %v5611 = vsel %vm3722, %v5598, %v5610
      %v5612 = vrot.slane %v4942, 3
      %v5613 = vsel %vm3722, %v5600, %v5612
      %v5614 = vrot.slane %v4943, 3
      %v5615 = vsel %vm3722, %v5602, %v5614
      %v5616 = vrot.slane %v4944, 3
      %v5617 = vsel %vm3722, %v5604, %v5616
      %v5618 = vrot.slane %v4945, 3
      %v5619 = vsel %vm3722, %v5606, %v5618
      %v5620 = vrot.slane %v4946, 3
      %v5621 = vsel %vm3722, %v5608, %v5620
      %v5622 = vrot.slane %v4947, 3
      %v5623 = vsel %vm3722, %v5610, %v5622
      %v5624 = vrot.slane %v4948, 3
      %v5625 = vsel %vm3722, %v5612, %v5624
      %v5626 = vrot.slane %v4949, 3
      %v5627 = vsel %vm3722, %v5614, %v5626
      %v5628 = vrot.slane %v4950, 3
      %v5629 = vsel %vm3722, %v5616, %v5628
      %v5630 = vrot.slane %v4951, 3
      %v5631 = vsel %vm3722, %v5618, %v5630
      %v5632 = vrot.slane %v4952, 3
      %v5633 = vsel %vm3722, %v5620, %v5632
      %v5634 = vrot.slane %v4953, 3
      %v5635 = vsel %vm3722, %v5622, %v5634
      %v5636 = vrot.slane %v4954, 3
      %v5637 = vsel %vm3722, %v5624, %v5636
      %v5638 = vrot.slane %v4955, 3
      %v5639 = vsel %vm3722, %v5626, %v5638
      %v5640 = vrot.slane %v4956, 3
      %v5641 = vsel %vm3722, %v5628, %v5640
      %v5642 = vrot.slane %v4957, 3
      %v5643 = vsel %vm3722, %v5630, %v5642
      %v5644 = vrot.slane %v4958, 3
      %v5645 = vsel %vm3722, %v5632, %v5644
      %v5646 = vrot.slane %v4959, 3
      %v5647 = vsel %vm3722, %v5634, %v5646
      %v5648 = vrot.slane %v4960, 3
      %v5649 = vsel %vm3722, %v5636, %v5648
      %v5650 = vrot.slane %v4961, 3
      %v5651 = vsel %vm3722, %v5638, %v5650
      %v5652 = vrot.slane %v4962, 3
      %v5653 = vsel %vm3722, %v5640, %v5652
      %v5654 = vrot.slane %v4963, 3
      %v5655 = vsel %vm3722, %v5642, %v5654
      %v5656 = vrot.slane %v4964, 3
      %v5657 = vsel %vm3722, %v5644, %v5656
      %v5658 = vrot.slane %v4965, 3
      %v5659 = vsel %vm3722, %v5646, %v5658
      %v5660 = vrot.slane %v4966, 3
      %v5661 = vsel %vm3722, %v5648, %v5660
      %v5662 = vrot.slane %v4967, 3
      %v5663 = vsel %vm3722, %v5650, %v5662
      %v5664 = vrot.slane %v4968, 3
      %v5665 = vsel %vm3722, %v5652, %v5664
      %v5666 = vrot.slane %v4969, 3
      %v5667 = vsel %vm3722, %v5654, %v5666
      %v5668 = vrot.slane %v4970, 3
      %v5669 = vsel %vm3722, %v5656, %v5668
      %v5670 = vrot.slane %v4971, 3
      %v5671 = vsel %vm3722, %v5658, %v5670
      %v5672 = vrot.slane %v4972, 3
      %v5673 = vsel %vm3722, %v5660, %v5672
      %v5674 = vrot.slane %v4973, 3
      %v5675 = vsel %vm3722, %v5662, %v5674
      %v5676 = vrot.slane %v4974, 3
      %v5677 = vsel %vm3722, %v5664, %v5676
      %v5678 = vrot.slane %v4975, 3
      %v5679 = vsel %vm3722, %v5666, %v5678
      %v5680 = vrot.slane %v4976, 3
      %v5681 = vsel %vm3722, %v5668, %v5680
      %v5682 = vrot.slane %v4977, 3
      %v5683 = vsel %vm3722, %v5670, %v5682
      %v5684 = vrot.slane %v4978, 3
      %v5685 = vsel %vm3722, %v5672, %v5684
      %v5686 = vrot.slane %v4979, 3
      %v5687 = vsel %vm3722, %v5674, %v5686
      %v5688 = vrot.slane %v4980, 3
      %v5689 = vsel %vm3722, %v5676, %v5688
      %v5690 = vrot.slane %v5534, 3
      %v5691 = vsel %vm3722, %v5678, %v5690
      %v5692 = vrot.slane %v5535, 3
      %v5693 = vsel %vm3722, %v5680, %v5692
      %v5694 = vrot.slane %v5536, 3
      %v5695 = vsel %vm3722, %v5682, %v5694
      %v5696 = vrot.slane %v5537, 3
      %v5697 = vsel %vm3722, %v5684, %v5696
      %v5698 = vrot.slane %v5538, 3
      %v5699 = vsel %vm3722, %v5686, %v5698
      %v5700 = vrot.slane %v5539, 3
      %v5701 = vsel %vm3722, %v5688, %v5700
      %5780 = vrot.lane.b32.xlu0 %v5554, 3
      %v5781 = vpop.permute.xlu0 %5780
      %5782 = vrot.lane.b32.xlu0 %v5571, 3
      %v5783 = vpop.permute.xlu0 %5782
      %5784 = vrot.lane.b32.xlu0 %v5583, 3
      %v5785 = vpop.permute.xlu0 %5784
      %5786 = vrot.lane.b32.xlu0 %v5595, 3
      %v5787 = vpop.permute.xlu0 %5786
      %5788 = vrot.lane.b32.xlu0 %v5607, 3
      %v5789 = vpop.permute.xlu0 %5788
      %5790 = vrot.lane.b32.xlu0 %v5619, 3
      %v5791 = vpop.permute.xlu0 %5790
      %5792 = vrot.lane.b32.xlu0 %v5631, 3
      %v5793 = vpop.permute.xlu0 %5792
      %5794 = vrot.lane.b32.xlu0 %v5643, 3
      %v5795 = vpop.permute.xlu0 %5794
      %5796 = vrot.lane.b32.xlu0 %v5655, 3
      %v5797 = vpop.permute.xlu0 %5796
      %5798 = vrot.lane.b32.xlu0 %v5667, 3
      %v5799 = vpop.permute.xlu0 %5798
      %5800 = vrot.lane.b32.xlu0 %v5679, 3
      %v5801 = vpop.permute.xlu0 %5800
      %5802 = vrot.lane.b32.xlu0 %v5691, 3
      %v5803 = vpop.permute.xlu0 %5802
      %5804 = vrot.lane.b32.xlu0 %v5690, 3
      %v5805 = vpop.permute.xlu0 %5804
      %5806 = vrot.lane.b32.xlu0 %v5557, 3
      %v5807 = vpop.permute.xlu0 %5806
      %5808 = vrot.lane.b32.xlu0 %v5573, 3
      %v5809 = vpop.permute.xlu0 %5808
      %5810 = vrot.lane.b32.xlu0 %v5585, 3
      %v5811 = vpop.permute.xlu0 %5810
      %5812 = vrot.lane.b32.xlu0 %v5597, 3
      %v5813 = vpop.permute.xlu0 %5812
      %5814 = vrot.lane.b32.xlu0 %v5609, 3
      %v5815 = vpop.permute.xlu0 %5814
      %5816 = vrot.lane.b32.xlu0 %v5621, 3
      %v5817 = vpop.permute.xlu0 %5816
      %5818 = vrot.lane.b32.xlu0 %v5633, 3
      %v5819 = vpop.permute.xlu0 %5818
      %5820 = vrot.lane.b32.xlu0 %v5645, 3
      %v5821 = vpop.permute.xlu0 %5820
      %5822 = vrot.lane.b32.xlu0 %v5657, 3
      %v5823 = vpop.permute.xlu0 %5822
      %5824 = vrot.lane.b32.xlu0 %v5669, 3
      %v5825 = vpop.permute.xlu0 %5824
      %5826 = vrot.lane.b32.xlu0 %v5681, 3
      %v5827 = vpop.permute.xlu0 %5826
      %5828 = vrot.lane.b32.xlu0 %v5693, 3
      %v5829 = vpop.permute.xlu0 %5828
      %5830 = vrot.lane.b32.xlu0 %v5692, 3
      %v5831 = vpop.permute.xlu0 %5830
      %5832 = vrot.lane.b32.xlu0 %v5560, 3
      %v5833 = vpop.permute.xlu0 %5832
      %5834 = vrot.lane.b32.xlu0 %v5575, 3
      %v5835 = vpop.permute.xlu0 %5834
      %5836 = vrot.lane.b32.xlu0 %v5587, 3
      %v5837 = vpop.permute.xlu0 %5836
      %5838 = vrot.lane.b32.xlu0 %v5599, 3
      %v5839 = vpop.permute.xlu0 %5838
      %5840 = vrot.lane.b32.xlu0 %v5611, 3
      %v5841 = vpop.permute.xlu0 %5840
      %5842 = vrot.lane.b32.xlu0 %v5623, 3
      %v5843 = vpop.permute.xlu0 %5842
      %5844 = vrot.lane.b32.xlu0 %v5635, 3
      %v5845 = vpop.permute.xlu0 %5844
      %5846 = vrot.lane.b32.xlu0 %v5647, 3
      %v5847 = vpop.permute.xlu0 %5846
      %5848 = vrot.lane.b32.xlu0 %v5659, 3
      %v5849 = vpop.permute.xlu0 %5848
      %5850 = vrot.lane.b32.xlu0 %v5671, 3
      %v5851 = vpop.permute.xlu0 %5850
      %5852 = vrot.lane.b32.xlu0 %v5683, 3
      %v5853 = vpop.permute.xlu0 %5852
      %5854 = vrot.lane.b32.xlu0 %v5695, 3
      %v5855 = vpop.permute.xlu0 %5854
      %5856 = vrot.lane.b32.xlu0 %v5694, 3
      %v5857 = vpop.permute.xlu0 %5856
      %5858 = vrot.lane.b32.xlu0 %v5563, 3
      %v5859 = vpop.permute.xlu0 %5858
      %5860 = vrot.lane.b32.xlu0 %v5577, 3
      %v5861 = vpop.permute.xlu0 %5860
      %5862 = vrot.lane.b32.xlu0 %v5589, 3
      %v5863 = vpop.permute.xlu0 %5862
      %5864 = vrot.lane.b32.xlu0 %v5601, 3
      %v5865 = vpop.permute.xlu0 %5864
      %5866 = vrot.lane.b32.xlu0 %v5613, 3
      %v5867 = vpop.permute.xlu0 %5866
      %5868 = vrot.lane.b32.xlu0 %v5625, 3
      %v5869 = vpop.permute.xlu0 %5868
      %5870 = vrot.lane.b32.xlu0 %v5637, 3
      %v5871 = vpop.permute.xlu0 %5870
      %5872 = vrot.lane.b32.xlu0 %v5649, 3
      %v5873 = vpop.permute.xlu0 %5872
      %5874 = vrot.lane.b32.xlu0 %v5661, 3
      %v5875 = vpop.permute.xlu0 %5874
      %5876 = vrot.lane.b32.xlu0 %v5673, 3
      %v5877 = vpop.permute.xlu0 %5876
      %5878 = vrot.lane.b32.xlu0 %v5685, 3
      %v5879 = vpop.permute.xlu0 %5878
      %5880 = vrot.lane.b32.xlu0 %v5697, 3
      %v5881 = vpop.permute.xlu0 %5880
      %5882 = vrot.lane.b32.xlu0 %v5696, 3
      %v5883 = vpop.permute.xlu0 %5882
      %5884 = vrot.lane.b32.xlu0 %v5566, 3
      %v5885 = vpop.permute.xlu0 %5884
      %5886 = vrot.lane.b32.xlu0 %v5579, 3
      %v5887 = vpop.permute.xlu0 %5886
      %5888 = vrot.lane.b32.xlu0 %v5591, 3
      %v5889 = vpop.permute.xlu0 %5888
      %5890 = vrot.lane.b32.xlu0 %v5603, 3
      %v5891 = vpop.permute.xlu0 %5890
      %5892 = vrot.lane.b32.xlu0 %v5615, 3
      %v5893 = vpop.permute.xlu0 %5892
      %5894 = vrot.lane.b32.xlu0 %v5627, 3
      %v5895 = vpop.permute.xlu0 %5894
      %5896 = vrot.lane.b32.xlu0 %v5639, 3
      %v5897 = vpop.permute.xlu0 %5896
      %5898 = vrot.lane.b32.xlu0 %v5651, 3
      %v5899 = vpop.permute.xlu0 %5898
      %5900 = vrot.lane.b32.xlu0 %v5663, 3
      %v5901 = vpop.permute.xlu0 %5900
      %5902 = vrot.lane.b32.xlu0 %v5675, 3
      %v5903 = vpop.permute.xlu0 %5902
      %5904 = vrot.lane.b32.xlu0 %v5687, 3
      %v5905 = vpop.permute.xlu0 %5904
      %5906 = vrot.lane.b32.xlu0 %v5699, 3
      %v5907 = vpop.permute.xlu0 %5906
      %5908 = vrot.lane.b32.xlu0 %v5698, 3
      %v5909 = vpop.permute.xlu0 %5908
      %5910 = vrot.lane.b32.xlu0 %v5569, 3
      %v5911 = vpop.permute.xlu0 %5910
      %5912 = vrot.lane.b32.xlu0 %v5581, 3
      %v5913 = vpop.permute.xlu0 %5912
      %5914 = vrot.lane.b32.xlu0 %v5593, 3
      %v5915 = vpop.permute.xlu0 %5914
      %5916 = vrot.lane.b32.xlu0 %v5605, 3
      %v5917 = vpop.permute.xlu0 %5916
      %5918 = vrot.lane.b32.xlu0 %v5617, 3
      %v5919 = vpop.permute.xlu0 %5918
      %5920 = vrot.lane.b32.xlu0 %v5629, 3
      %v5921 = vpop.permute.xlu0 %5920
      %5922 = vrot.lane.b32.xlu0 %v5641, 3
      %v5923 = vpop.permute.xlu0 %5922
      %5924 = vrot.lane.b32.xlu0 %v5653, 3
      %v5925 = vpop.permute.xlu0 %5924
      %5926 = vrot.lane.b32.xlu0 %v5665, 3
      %v5927 = vpop.permute.xlu0 %5926
      %5928 = vrot.lane.b32.xlu0 %v5677, 3
      %v5929 = vpop.permute.xlu0 %5928
      %5930 = vrot.lane.b32.xlu0 %v5689, 3
      %v5931 = vpop.permute.xlu0 %5930
      %5932 = vrot.lane.b32.xlu0 %v5701, 3
      %v5933 = vpop.permute.xlu0 %5932
      %5934 = vrot.lane.b32.xlu0 %v5700, 3
      %v5935 = vpop.permute.xlu0 %5934
      %vm5936 = vcmp.lt.s32.totalorder %v4594, 3
      %v5937 = vsel %vm5936, %v5885, %v5911
      %v5938 = vsel %vm5936, %v5887, %v5913
      %v5939 = vsel %vm5936, %v5889, %v5915
      %v5940 = vsel %vm5936, %v5891, %v5917
      %v5941 = vsel %vm5936, %v5893, %v5919
      %v5942 = vsel %vm5936, %v5895, %v5921
      %v5943 = vsel %vm5936, %v5897, %v5923
      %v5944 = vsel %vm5936, %v5899, %v5925
      %v5945 = vsel %vm5936, %v5901, %v5927
      %v5946 = vsel %vm5936, %v5903, %v5929
      %v5947 = vsel %vm5936, %v5905, %v5931
      %v5948 = vsel %vm5936, %v5907, %v5933
      %v5949 = vsel %vm5936, %v5909, %v5935
      %v5950 = vsel %vm5936, %v5859, %v5885
      %v5951 = vsel %vm5936, %v5861, %v5887
      %v5952 = vsel %vm5936, %v5863, %v5889
      %v5953 = vsel %vm5936, %v5865, %v5891
      %v5954 = vsel %vm5936, %v5867, %v5893
      %v5955 = vsel %vm5936, %v5869, %v5895
      %v5956 = vsel %vm5936, %v5871, %v5897
      %v5957 = vsel %vm5936, %v5873, %v5899
      %v5958 = vsel %vm5936, %v5875, %v5901
      %v5959 = vsel %vm5936, %v5877, %v5903
      %v5960 = vsel %vm5936, %v5879, %v5905
      %v5961 = vsel %vm5936, %v5881, %v5907
      %v5962 = vsel %vm5936, %v5883, %v5909
      %v5963 = vsel %vm5936, %v5833, %v5859
      %v5964 = vsel %vm5936, %v5835, %v5861
      %v5965 = vsel %vm5936, %v5837, %v5863
      %v5966 = vsel %vm5936, %v5839, %v5865
      %v5967 = vsel %vm5936, %v5841, %v5867
      %v5968 = vsel %vm5936, %v5843, %v5869
      %v5969 = vsel %vm5936, %v5845, %v5871
      %v5970 = vsel %vm5936, %v5847, %v5873
      %v5971 = vsel %vm5936, %v5849, %v5875
      %v5972 = vsel %vm5936, %v5851, %v5877
      %v5973 = vsel %vm5936, %v5853, %v5879
      %v5974 = vsel %vm5936, %v5855, %v5881
      %v5975 = vsel %vm5936, %v5857, %v5883
      %v5976 = vsel %vm5936, %v5807, %v5833
      %v5977 = vsel %vm5936, %v5809, %v5835
      %v5978 = vsel %vm5936, %v5811, %v5837
      %v5979 = vsel %vm5936, %v5813, %v5839
      %v5980 = vsel %vm5936, %v5815, %v5841
      %v5981 = vsel %vm5936, %v5817, %v5843
      %v5982 = vsel %vm5936, %v5819, %v5845
      %v5983 = vsel %vm5936, %v5821, %v5847
      %v5984 = vsel %vm5936, %v5823, %v5849
      %v5985 = vsel %vm5936, %v5825, %v5851
      %v5986 = vsel %vm5936, %v5827, %v5853
      %v5987 = vsel %vm5936, %v5829, %v5855
      %v5988 = vsel %vm5936, %v5831, %v5857
      %v5989 = vsel %vm5936, %v5781, %v5807
      %v5990 = vsel %vm5936, %v5783, %v5809
      %v5991 = vsel %vm5936, %v5785, %v5811
      %v5992 = vsel %vm5936, %v5787, %v5813
      %v5993 = vsel %vm5936, %v5789, %v5815
      %v5994 = vsel %vm5936, %v5791, %v5817
      %v5995 = vsel %vm5936, %v5793, %v5819
      %v5996 = vsel %vm5936, %v5795, %v5821
      %v5997 = vsel %vm5936, %v5797, %v5823
      %v5998 = vsel %vm5936, %v5799, %v5825
      %v5999 = vsel %vm5936, %v5801, %v5827
      %v6000 = vsel %vm5936, %v5803, %v5829
      %v6001 = vsel %vm5936, %v5805, %v5831
      %v6002 = vsel %vm5936, %v5911, %v5781
      %v6003 = vsel %vm5936, %v5913, %v5783
      %v6004 = vsel %vm5936, %v5915, %v5785
      %v6005 = vsel %vm5936, %v5917, %v5787
      %v6006 = vsel %vm5936, %v5919, %v5789
      %v6007 = vsel %vm5936, %v5921, %v5791
      %v6008 = vsel %vm5936, %v5923, %v5793
      %v6009 = vsel %vm5936, %v5925, %v5795
      %v6010 = vsel %vm5936, %v5927, %v5797
      %v6011 = vsel %vm5936, %v5929, %v5799
      %v6012 = vsel %vm5936, %v5931, %v5801
      %v6013 = vsel %vm5936, %v5933, %v5803
      %v6014 = vsel %vm5936, %v5935, %v5805
      %v6015 = vadd.f32 %v5515, %v6002
      %v6016 = vadd.f32 %v5502, %v5989
      %v6017 = vadd.f32 %v5489, %v5976
      %v6018 = vadd.f32 %v5476, %v5963
      %v6019 = vadd.f32 %v5463, %v5950
      %v6020 = vadd.f32 %v5450, %v5937
      %v6021 = vadd.f32 %v5516, %v6003
      %v6022 = vadd.f32 %v5503, %v5990
      %v6023 = vadd.f32 %v5490, %v5977
      %v6024 = vadd.f32 %v5477, %v5964
      %v6025 = vadd.f32 %v5464, %v5951
      %v6026 = vadd.f32 %v5451, %v5938
      %v6027 = vadd.f32 %v5517, %v6004
      %v6028 = vadd.f32 %v5504, %v5991
      %v6029 = vadd.f32 %v5491, %v5978
      %v6030 = vadd.f32 %v5478, %v5965
      %v6031 = vadd.f32 %v5465, %v5952
      %v6032 = vadd.f32 %v5452, %v5939
      %v6033 = vadd.f32 %v5518, %v6005
      %v6034 = vadd.f32 %v5505, %v5992
      %v6035 = vadd.f32 %v5492, %v5979
      %v6036 = vadd.f32 %v5479, %v5966
      %v6037 = vadd.f32 %v5466, %v5953
      %v6038 = vadd.f32 %v5453, %v5940
      %v6039 = vadd.f32 %v5519, %v6006
      %v6040 = vadd.f32 %v5506, %v5993
      %v6041 = vadd.f32 %v5493, %v5980
      %v6042 = vadd.f32 %v5480, %v5967
      %v6043 = vadd.f32 %v5467, %v5954
      %v6044 = vadd.f32 %v5454, %v5941
      %v6045 = vadd.f32 %v5520, %v6007
      %v6046 = vadd.f32 %v5507, %v5994
      %v6047 = vadd.f32 %v5494, %v5981
      %v6048 = vadd.f32 %v5481, %v5968
      %v6049 = vadd.f32 %v5468, %v5955
      %v6050 = vadd.f32 %v5455, %v5942
      %v6051 = vadd.f32 %v5521, %v6008
      %v6052 = vadd.f32 %v5508, %v5995
      %v6053 = vadd.f32 %v5495, %v5982
      %v6054 = vadd.f32 %v5482, %v5969
      %v6055 = vadd.f32 %v5469, %v5956
      %v6056 = vadd.f32 %v5456, %v5943
      %v6057 = vadd.f32 %v5522, %v6009
      %v6058 = vadd.f32 %v5509, %v5996
      %v6059 = vadd.f32 %v5496, %v5983
      %v6060 = vadd.f32 %v5483, %v5970
      %v6061 = vadd.f32 %v5470, %v5957
      %v6062 = vadd.f32 %v5457, %v5944
      %v6063 = vadd.f32 %v5523, %v6010
      %v6064 = vadd.f32 %v5510, %v5997
      %v6065 = vadd.f32 %v5497, %v5984
      %v6066 = vadd.f32 %v5484, %v5971
      %v6067 = vadd.f32 %v5471, %v5958
      %v6068 = vadd.f32 %v5458, %v5945
      %v6069 = vadd.f32 %v5524, %v6011
      %v6070 = vadd.f32 %v5511, %v5998
      %v6071 = vadd.f32 %v5498, %v5985
      %v6072 = vadd.f32 %v5485, %v5972
      %v6073 = vadd.f32 %v5472, %v5959
      %v6074 = vadd.f32 %v5459, %v5946
      %v6075 = vadd.f32 %v5525, %v6012
      %v6076 = vadd.f32 %v5512, %v5999
      %v6077 = vadd.f32 %v5499, %v5986
      %v6078 = vadd.f32 %v5486, %v5973
      %v6079 = vadd.f32 %v5473, %v5960
      %v6080 = vadd.f32 %v5460, %v5947
      %v6081 = vadd.f32 %v5526, %v6013
      %v6082 = vadd.f32 %v5513, %v6000
      %v6083 = vadd.f32 %v5500, %v5987
      %v6084 = vadd.f32 %v5487, %v5974
      %v6085 = vadd.f32 %v5474, %v5961
      %v6086 = vadd.f32 %v5461, %v5948
      %v6087 = vadd.f32 %v5527, %v6014
      %v6088 = vadd.f32 %v5514, %v6001
      %v6089 = vadd.f32 %v5501, %v5988
      %v6090 = vadd.f32 %v5488, %v5975
      %v6091 = vadd.f32 %v5475, %v5962
      %v6092 = vadd.f32 %v5462, %v5949
      %v6093 = vadd.f32 %v4831, %v6015
      %v6094 = vadd.f32 %v4832, %v6016
      %v6095 = vadd.f32 %v4833, %v6017
      %v6096 = vadd.f32 %v4834, %v6018
      %v6097 = vadd.f32 %v4835, %v6019
      %v6098 = vadd.f32 %v4836, %v6020
      %v6099 = vadd.f32 %v4837, %v6021
      %v6100 = vadd.f32 %v4838, %v6022
      %v6101 = vadd.f32 %v4839, %v6023
      %v6102 = vadd.f32 %v4840, %v6024
      %v6103 = vadd.f32 %v4841, %v6025
      %v6104 = vadd.f32 %v4842, %v6026
      %v6105 = vadd.f32 %v4843, %v6027
      %v6106 = vadd.f32 %v4844, %v6028
      %v6107 = vadd.f32 %v4845, %v6029
      %v6108 = vadd.f32 %v4846, %v6030
      %v6109 = vadd.f32 %v4847, %v6031
      %v6110 = vadd.f32 %v4848, %v6032
      %v6111 = vadd.f32 %v4849, %v6033
      %v6112 = vadd.f32 %v4850, %v6034
      %v6113 = vadd.f32 %v4851, %v6035
      %v6114 = vadd.f32 %v4852, %v6036
      %v6115 = vadd.f32 %v4853, %v6037
      %v6116 = vadd.f32 %v4854, %v6038
      %v6117 = vadd.f32 %v4855, %v6039
      %v6118 = vadd.f32 %v4856, %v6040
      %v6119 = vadd.f32 %v4857, %v6041
      %v6120 = vadd.f32 %v4858, %v6042
      %v6121 = vadd.f32 %v4859, %v6043
      %v6122 = vadd.f32 %v4860, %v6044
      %v6123 = vadd.f32 %v4861, %v6045
      %v6124 = vadd.f32 %v4862, %v6046
      %v6125 = vadd.f32 %v4863, %v6047
      %v6126 = vadd.f32 %v4864, %v6048
      %v6127 = vadd.f32 %v4865, %v6049
      %v6128 = vadd.f32 %v4866, %v6050
      %v6129 = vadd.f32 %v4867, %v6051
      %v6130 = vadd.f32 %v4868, %v6052
      %v6131 = vadd.f32 %v4869, %v6053
      %v6132 = vadd.f32 %v4870, %v6054
      %v6133 = vadd.f32 %v4871, %v6055
      %v6134 = vadd.f32 %v4872, %v6056
      %v6135 = vadd.f32 %v4873, %v6057
      %v6136 = vadd.f32 %v4874, %v6058
      %v6137 = vadd.f32 %v4875, %v6059
      %v6138 = vadd.f32 %v4876, %v6060
      %v6139 = vadd.f32 %v4877, %v6061
      %v6140 = vadd.f32 %v4878, %v6062
      %v6141 = vadd.f32 %v4879, %v6063
      %v6142 = vadd.f32 %v4880, %v6064
      %v6143 = vadd.f32 %v4881, %v6065
      %v6144 = vadd.f32 %v4882, %v6066
      %v6145 = vadd.f32 %v4883, %v6067
      %v6146 = vadd.f32 %v4884, %v6068
      %v6147 = vadd.f32 %v4885, %v6069
      %v6148 = vadd.f32 %v4886, %v6070
      %v6149 = vadd.f32 %v4887, %v6071
      %v6150 = vadd.f32 %v4888, %v6072
      %v6151 = vadd.f32 %v4889, %v6073
      %v6152 = vadd.f32 %v4890, %v6074
      %v6153 = vadd.f32 %v4891, %v6075
      %v6154 = vadd.f32 %v4892, %v6076
      %v6155 = vadd.f32 %v4893, %v6077
      %v6156 = vadd.f32 %v4894, %v6078
      %v6157 = vadd.f32 %v4895, %v6079
      %v6158 = vadd.f32 %v4896, %v6080
      %v6159 = vadd.f32 %v4897, %v6081
      %v6160 = vadd.f32 %v4898, %v6082
      %v6161 = vadd.f32 %v4899, %v6083
      %v6162 = vadd.f32 %v4900, %v6084
      %v6163 = vadd.f32 %v4901, %v6085
      %v6164 = vadd.f32 %v4902, %v6086
      %v6165 = vadd.f32 %v4903, %v6087
      %v6166 = vadd.f32 %v4904, %v6088
      %v6167 = vadd.f32 %v4905, %v6089
      %v6168 = vadd.f32 %v4906, %v6090
      %v6169 = vadd.f32 %v4907, %v6091
      %v6170 = vadd.f32 %v4908, %v6092
      %6171 = vst [vmem:[%s224] sm:$0xff] %v6093
      %6172 = vst [vmem:[%s224 + $0x8] sm:$0xff] %v6094
      %6173 = vst [vmem:[%s224 + $0x10] sm:$0xff] %v6095
      %6174 = vst [vmem:[%s224 + $0x18] sm:$0xff] %v6096
      %6175 = vst [vmem:[%s224 + $0x20] sm:$0xff] %v6097
      %6176 = vst.msk [vmem:[%s224 + $0x28] sm:$0xff] %vm3069, %v6098
      %6177 = vst [vmem:[%s224 + $0x30] sm:$0xff] %v6099
      %6178 = vst [vmem:[%s224 + $0x38] sm:$0xff] %v6100
      %6179 = vst [vmem:[%s224 + $0x40] sm:$0xff] %v6101
      %6180 = vst [vmem:[%s224 + $0x48] sm:$0xff] %v6102
      %6181 = vst [vmem:[%s224 + $0x50] sm:$0xff] %v6103
      %6182 = vst.msk [vmem:[%s224 + $0x58] sm:$0xff] %vm3069, %v6104
      %6183 = vst [vmem:[%s224 + $0x60] sm:$0xff] %v6105
      %6184 = vst [vmem:[%s224 + $0x68] sm:$0xff] %v6106
      %6185 = vst [vmem:[%s224 + $0x70] sm:$0xff] %v6107
      %6186 = vst [vmem:[%s224 + $0x78] sm:$0xff] %v6108
      %6187 = vst [vmem:[%s224 + $0x80] sm:$0xff] %v6109
      %6188 = vst.msk [vmem:[%s224 + $0x88] sm:$0xff] %vm3069, %v6110
      %6189 = vst [vmem:[%s224 + $0x90] sm:$0xff] %v6111
      %6190 = vst [vmem:[%s224 + $0x98] sm:$0xff] %v6112
      %6191 = vst [vmem:[%s224 + $0xa0] sm:$0xff] %v6113
      %6192 = vst [vmem:[%s224 + $0xa8] sm:$0xff] %v6114
      %6193 = vst [vmem:[%s224 + $0xb0] sm:$0xff] %v6115
      %6194 = vst.msk [vmem:[%s224 + $0xb8] sm:$0xff] %vm3069, %v6116
      %6195 = vst [vmem:[%s224 + $0xc0] sm:$0xff] %v6117
      %6196 = vst [vmem:[%s224 + $0xc8] sm:$0xff] %v6118
      %6197 = vst [vmem:[%s224 + $0xd0] sm:$0xff] %v6119
      %6198 = vst [vmem:[%s224 + $0xd8] sm:$0xff] %v6120
      %6199 = vst [vmem:[%s224 + $0xe0] sm:$0xff] %v6121
      %6200 = vst.msk [vmem:[%s224 + $0xe8] sm:$0xff] %vm3069, %v6122
      %6201 = vst [vmem:[%s224 + $0xf0] sm:$0xff] %v6123
      %6202 = vst [vmem:[%s224 + $0xf8] sm:$0xff] %v6124
      %6203 = vst [vmem:[%s224 + $0x100] sm:$0xff] %v6125
      %6204 = vst [vmem:[%s224 + $0x108] sm:$0xff] %v6126
      %6205 = vst [vmem:[%s224 + $0x110] sm:$0xff] %v6127
      %6206 = vst.msk [vmem:[%s224 + $0x118] sm:$0xff] %vm3069, %v6128
      %6207 = vst [vmem:[%s224 + $0x120] sm:$0xff] %v6129
      %6208 = vst [vmem:[%s224 + $0x128] sm:$0xff] %v6130
      %6209 = vst [vmem:[%s224 + $0x130] sm:$0xff] %v6131
      %6210 = vst [vmem:[%s224 + $0x138] sm:$0xff] %v6132
      %6211 = vst [vmem:[%s224 + $0x140] sm:$0xff] %v6133
      %6212 = vst.msk [vmem:[%s224 + $0x148] sm:$0xff] %vm3069, %v6134
      %6213 = vst [vmem:[%s224 + $0x150] sm:$0xff] %v6135
      %6214 = vst [vmem:[%s224 + $0x158] sm:$0xff] %v6136
      %6215 = vst [vmem:[%s224 + $0x160] sm:$0xff] %v6137
      %6216 = vst [vmem:[%s224 + $0x168] sm:$0xff] %v6138
      %6217 = vst [vmem:[%s224 + $0x170] sm:$0xff] %v6139
      %6218 = vst.msk [vmem:[%s224 + $0x178] sm:$0xff] %vm3069, %v6140
      %6219 = vst [vmem:[%s224 + $0x180] sm:$0xff] %v6141
      %6220 = vst [vmem:[%s224 + $0x188] sm:$0xff] %v6142
      %6221 = vst [vmem:[%s224 + $0x190] sm:$0xff] %v6143
      %6222 = vst [vmem:[%s224 + $0x198] sm:$0xff] %v6144
      %6223 = vst [vmem:[%s224 + $0x1a0] sm:$0xff] %v6145
      %6224 = vst.msk [vmem:[%s224 + $0x1a8] sm:$0xff] %vm3069, %v6146
      %6225 = vst [vmem:[%s224 + $0x1b0] sm:$0xff] %v6147
      %6226 = vst [vmem:[%s224 + $0x1b8] sm:$0xff] %v6148
      %6227 = vst [vmem:[%s224 + $0x1c0] sm:$0xff] %v6149
      %6228 = vst [vmem:[%s224 + $0x1c8] sm:$0xff] %v6150
      %6229 = vst [vmem:[%s224 + $0x1d0] sm:$0xff] %v6151
      %6230 = vst.msk [vmem:[%s224 + $0x1d8] sm:$0xff] %vm3069, %v6152
      %6231 = vst [vmem:[%s224 + $0x1e0] sm:$0xff] %v6153
      %6232 = vst [vmem:[%s224 + $0x1e8] sm:$0xff] %v6154
      %6233 = vst [vmem:[%s224 + $0x1f0] sm:$0xff] %v6155
      %6234 = vst [vmem:[%s224 + $0x1f8] sm:$0xff] %v6156
      %6235 = vst [vmem:[%s224 + $0x200] sm:$0xff] %v6157
      %6236 = vst.msk [vmem:[%s224 + $0x208] sm:$0xff] %vm3069, %v6158
      %6237 = vst [vmem:[%s224 + $0x210] sm:$0xff] %v6159
      %6238 = vst [vmem:[%s224 + $0x218] sm:$0xff] %v6160
      %6239 = vst [vmem:[%s224 + $0x220] sm:$0xff] %v6161
      %6240 = vst [vmem:[%s224 + $0x228] sm:$0xff] %v6162
      %6241 = vst [vmem:[%s224 + $0x230] sm:$0xff] %v6163
      %6242 = vst.msk [vmem:[%s224 + $0x238] sm:$0xff] %vm3069, %v6164
      %6243 = vst [vmem:[%s224 + $0x240] sm:$0x1f] %v6165
      %6244 = vst [vmem:[%s224 + $0x248] sm:$0x1f] %v6166
      %6245 = vst [vmem:[%s224 + $0x250] sm:$0x1f] %v6167
      %6246 = vst [vmem:[%s224 + $0x258] sm:$0x1f] %v6168
      %6247 = vst [vmem:[%s224 + $0x260] sm:$0x1f] %v6169
      %6248 = vst.msk [vmem:[%s224 + $0x268] sm:$0x1f] %vm4829, %v6170
      %v6249 = vld [vmem:[%s224] sm:$0xff]
      %v6250 = vld [vmem:[%s224 + $0x8] sm:$0xff]
      %v6251 = vld [vmem:[%s224 + $0x10] sm:$0xff]
      %v6252 = vld [vmem:[%s224 + $0x18] sm:$0xff]
      %v6253 = vld [vmem:[%s224 + $0x20] sm:$0xff]
      %v6254 = vld [vmem:[%s224 + $0x28] sm:$0xff]
      %v6255 = vld [vmem:[%s224 + $0x30] sm:$0xff]
      %v6256 = vld [vmem:[%s224 + $0x38] sm:$0xff]
      %v6257 = vld [vmem:[%s224 + $0x40] sm:$0xff]
      %v6258 = vld [vmem:[%s224 + $0x48] sm:$0xff]
      %v6259 = vld [vmem:[%s224 + $0x50] sm:$0xff]
      %v6260 = vld [vmem:[%s224 + $0x58] sm:$0xff]
      %v6261 = vld [vmem:[%s224 + $0x60] sm:$0xff]
      %v6262 = vld [vmem:[%s224 + $0x68] sm:$0xff]
      %v6263 = vld [vmem:[%s224 + $0x70] sm:$0xff]
      %v6264 = vld [vmem:[%s224 + $0x78] sm:$0xff]
      %v6265 = vld [vmem:[%s224 + $0x80] sm:$0xff]
      %v6266 = vld [vmem:[%s224 + $0x88] sm:$0xff]
      %v6267 = vld [vmem:[%s224 + $0x90] sm:$0xff]
      %v6268 = vld [vmem:[%s224 + $0x98] sm:$0xff]
      %v6269 = vld [vmem:[%s224 + $0xa0] sm:$0xff]
      %v6270 = vld [vmem:[%s224 + $0xa8] sm:$0xff]
      %v6271 = vld [vmem:[%s224 + $0xb0] sm:$0xff]
      %v6272 = vld [vmem:[%s224 + $0xb8] sm:$0xff]
      %v6273 = vld [vmem:[%s224 + $0xc0] sm:$0xff]
      %v6274 = vld [vmem:[%s224 + $0xc8] sm:$0xff]
      %v6275 = vld [vmem:[%s224 + $0xd0] sm:$0xff]
      %v6276 = vld [vmem:[%s224 + $0xd8] sm:$0xff]
      %v6277 = vld [vmem:[%s224 + $0xe0] sm:$0xff]
      %v6278 = vld [vmem:[%s224 + $0xe8] sm:$0xff]
      %v6279 = vld [vmem:[%s224 + $0xf0] sm:$0xff]
      %v6280 = vld [vmem:[%s224 + $0xf8] sm:$0xff]
      %v6281 = vld [vmem:[%s224 + $0x100] sm:$0xff]
      %v6282 = vld [vmem:[%s224 + $0x108] sm:$0xff]
      %v6283 = vld [vmem:[%s224 + $0x110] sm:$0xff]
      %v6284 = vld [vmem:[%s224 + $0x118] sm:$0xff]
      %v6285 = vld [vmem:[%s224 + $0x120] sm:$0xff]
      %v6286 = vld [vmem:[%s224 + $0x128] sm:$0xff]
      %v6287 = vld [vmem:[%s224 + $0x130] sm:$0xff]
      %v6288 = vld [vmem:[%s224 + $0x138] sm:$0xff]
      %v6289 = vld [vmem:[%s224 + $0x140] sm:$0xff]
      %v6290 = vld [vmem:[%s224 + $0x148] sm:$0xff]
      %v6291 = vld [vmem:[%s224 + $0x150] sm:$0xff]
      %v6292 = vld [vmem:[%s224 + $0x158] sm:$0xff]
      %v6293 = vld [vmem:[%s224 + $0x160] sm:$0xff]
      %v6294 = vld [vmem:[%s224 + $0x168] sm:$0xff]
      %v6295 = vld [vmem:[%s224 + $0x170] sm:$0xff]
      %v6296 = vld [vmem:[%s224 + $0x178] sm:$0xff]
      %v6297 = vld [vmem:[%s224 + $0x180] sm:$0xff]
      %v6298 = vld [vmem:[%s224 + $0x188] sm:$0xff]
      %v6299 = vld [vmem:[%s224 + $0x190] sm:$0xff]
      %v6300 = vld [vmem:[%s224 + $0x198] sm:$0xff]
      %v6301 = vld [vmem:[%s224 + $0x1a0] sm:$0xff]
      %v6302 = vld [vmem:[%s224 + $0x1a8] sm:$0xff]
      %v6303 = vld [vmem:[%s224 + $0x1b0] sm:$0xff]
      %v6304 = vld [vmem:[%s224 + $0x1b8] sm:$0xff]
      %v6305 = vld [vmem:[%s224 + $0x1c0] sm:$0xff]
      %v6306 = vld [vmem:[%s224 + $0x1c8] sm:$0xff]
      %v6307 = vld [vmem:[%s224 + $0x1d0] sm:$0xff]
      %v6308 = vld [vmem:[%s224 + $0x1d8] sm:$0xff]
      %v6309 = vld [vmem:[%s224 + $0x1e0] sm:$0xff]
      %v6310 = vld [vmem:[%s224 + $0x1e8] sm:$0xff]
      %v6311 = vld [vmem:[%s224 + $0x1f0] sm:$0xff]
      %v6312 = vld [vmem:[%s224 + $0x1f8] sm:$0xff]
      %v6313 = vld [vmem:[%s224 + $0x200] sm:$0xff]
      %v6314 = vld [vmem:[%s224 + $0x208] sm:$0xff]
      %v6315 = vld [vmem:[%s224 + $0x210] sm:$0xff]
      %v6316 = vld [vmem:[%s224 + $0x218] sm:$0xff]
      %v6317 = vld [vmem:[%s224 + $0x220] sm:$0xff]
      %v6318 = vld [vmem:[%s224 + $0x228] sm:$0xff]
      %v6319 = vld [vmem:[%s224 + $0x230] sm:$0xff]
      %v6320 = vld [vmem:[%s224 + $0x238] sm:$0xff]
      %v6321 = vld [vmem:[%s224 + $0x240] sm:$0x1f]
      %v6322 = vld [vmem:[%s224 + $0x248] sm:$0x1f]
      %v6323 = vld [vmem:[%s224 + $0x250] sm:$0x1f]
      %v6324 = vld [vmem:[%s224 + $0x258] sm:$0x1f]
      %v6325 = vld [vmem:[%s224 + $0x260] sm:$0x1f]
      %v6326 = vld [vmem:[%s224 + $0x268] sm:$0x1f]
      %v6327 = vld [vmem:[#allocation2] sm:$0xf0]
      %v6328 = vld [vmem:[#allocation2 + $0x8] sm:$0xf0]
      %v6329 = vld [vmem:[#allocation2 + $0x10] sm:$0xf0]
      %v6330 = vld [vmem:[#allocation2 + $0x18] sm:$0xf0]
      %v6331 = vld [vmem:[#allocation2 + $0x20] sm:$0xf0]
      %v6332 = vld [vmem:[#allocation2 + $0x28] sm:$0xf0]
      %v6333 = vld [vmem:[#allocation2 + $0x30] sm:$0xff]
      %v6334 = vld [vmem:[#allocation2 + $0x38] sm:$0xff]
      %v6335 = vld [vmem:[#allocation2 + $0x40] sm:$0xff]
      %v6336 = vld [vmem:[#allocation2 + $0x48] sm:$0xff]
      %v6337 = vld [vmem:[#allocation2 + $0x50] sm:$0xff]
      %v6338 = vld [vmem:[#allocation2 + $0x58] sm:$0xff]
      %v6339 = vld [vmem:[#allocation2 + $0x60] sm:$0xff]
      %v6340 = vld [vmem:[#allocation2 + $0x68] sm:$0xff]
      %v6341 = vld [vmem:[#allocation2 + $0x70] sm:$0xff]
      %v6342 = vld [vmem:[#allocation2 + $0x78] sm:$0xff]
      %v6343 = vld [vmem:[#allocation2 + $0x80] sm:$0xff]
      %v6344 = vld [vmem:[#allocation2 + $0x88] sm:$0xff]
      %v6345 = vld [vmem:[#allocation2 + $0x90] sm:$0xff]
      %v6346 = vld [vmem:[#allocation2 + $0x98] sm:$0xff]
      %v6347 = vld [vmem:[#allocation2 + $0xa0] sm:$0xff]
      %v6348 = vld [vmem:[#allocation2 + $0xa8] sm:$0xff]
      %v6349 = vld [vmem:[#allocation2 + $0xb0] sm:$0xff]
      %v6350 = vld [vmem:[#allocation2 + $0xb8] sm:$0xff]
      %v6351 = vld [vmem:[#allocation2 + $0xc0] sm:$0xff]
      %v6352 = vld [vmem:[#allocation2 + $0xc8] sm:$0xff]
      %v6353 = vld [vmem:[#allocation2 + $0xd0] sm:$0xff]
      %v6354 = vld [vmem:[#allocation2 + $0xd8] sm:$0xff]
      %v6355 = vld [vmem:[#allocation2 + $0xe0] sm:$0xff]
      %v6356 = vld [vmem:[#allocation2 + $0xe8] sm:$0xff]
      %v6357 = vld [vmem:[#allocation2 + $0xf0] sm:$0xff]
      %v6358 = vld [vmem:[#allocation2 + $0xf8] sm:$0xff]
      %v6359 = vld [vmem:[#allocation2 + $0x100] sm:$0xff]
      %v6360 = vld [vmem:[#allocation2 + $0x108] sm:$0xff]
      %v6361 = vld [vmem:[#allocation2 + $0x110] sm:$0xff]
      %v6362 = vld [vmem:[#allocation2 + $0x118] sm:$0xff]
      %v6363 = vld [vmem:[#allocation2 + $0x120] sm:$0xff]
      %v6364 = vld [vmem:[#allocation2 + $0x128] sm:$0xff]
      %v6365 = vld [vmem:[#allocation2 + $0x130] sm:$0xff]
      %v6366 = vld [vmem:[#allocation2 + $0x138] sm:$0xff]
      %v6367 = vld [vmem:[#allocation2 + $0x140] sm:$0xff]
      %v6368 = vld [vmem:[#allocation2 + $0x148] sm:$0xff]
      %v6369 = vld [vmem:[#allocation2 + $0x150] sm:$0xff]
      %v6370 = vld [vmem:[#allocation2 + $0x158] sm:$0xff]
      %v6371 = vld [vmem:[#allocation2 + $0x160] sm:$0xff]
      %v6372 = vld [vmem:[#allocation2 + $0x168] sm:$0xff]
      %v6373 = vld [vmem:[#allocation2 + $0x170] sm:$0xff]
      %v6374 = vld [vmem:[#allocation2 + $0x178] sm:$0xff]
      %v6375 = vld [vmem:[#allocation2 + $0x180] sm:$0xff]
      %v6376 = vld [vmem:[#allocation2 + $0x188] sm:$0xff]
      %v6377 = vld [vmem:[#allocation2 + $0x190] sm:$0xff]
      %v6378 = vld [vmem:[#allocation2 + $0x198] sm:$0xff]
      %v6379 = vld [vmem:[#allocation2 + $0x1a0] sm:$0xff]
      %v6380 = vld [vmem:[#allocation2 + $0x1a8] sm:$0xff]
      %v6381 = vld [vmem:[#allocation2 + $0x1b0] sm:$0xff]
      %v6382 = vld [vmem:[#allocation2 + $0x1b8] sm:$0xff]
      %v6383 = vld [vmem:[#allocation2 + $0x1c0] sm:$0xff]
      %v6384 = vld [vmem:[#allocation2 + $0x1c8] sm:$0xff]
      %v6385 = vld [vmem:[#allocation2 + $0x1d0] sm:$0xff]
      %v6386 = vld [vmem:[#allocation2 + $0x1d8] sm:$0xff]
      %v6387 = vld [vmem:[#allocation2 + $0x1e0] sm:$0xff]
      %v6388 = vld [vmem:[#allocation2 + $0x1e8] sm:$0xff]
      %v6389 = vld [vmem:[#allocation2 + $0x1f0] sm:$0xff]
      %v6390 = vld [vmem:[#allocation2 + $0x1f8] sm:$0xff]
      %v6391 = vld [vmem:[#allocation2 + $0x200] sm:$0xff]
      %v6392 = vld [vmem:[#allocation2 + $0x208] sm:$0xff]
      %v6393 = vld [vmem:[#allocation2 + $0x210] sm:$0xff]
      %v6394 = vld [vmem:[#allocation2 + $0x218] sm:$0xff]
      %v6395 = vld [vmem:[#allocation2 + $0x220] sm:$0xff]
      %v6396 = vld [vmem:[#allocation2 + $0x228] sm:$0xff]
      %v6397 = vld [vmem:[#allocation2 + $0x230] sm:$0xff]
      %v6398 = vld [vmem:[#allocation2 + $0x238] sm:$0xff]
      %v6399 = vld [vmem:[#allocation2 + $0x240] sm:$0xff]
      %v6400 = vld [vmem:[#allocation2 + $0x248] sm:$0xff]
      %v6401 = vld [vmem:[#allocation2 + $0x250] sm:$0xff]
      %v6402 = vld [vmem:[#allocation2 + $0x258] sm:$0xff]
      %v6403 = vld [vmem:[#allocation2 + $0x260] sm:$0xff]
      %v6404 = vld [vmem:[#allocation2 + $0x268] sm:$0xff]
      %v6405 = vld [vmem:[#allocation2 + $0x270] sm:$0x1]
      %v6406 = vld [vmem:[#allocation2 + $0x278] sm:$0x1]
      %v6407 = vld [vmem:[#allocation2 + $0x280] sm:$0x1]
      %v6408 = vld [vmem:[#allocation2 + $0x288] sm:$0x1]
      %v6409 = vld [vmem:[#allocation2 + $0x290] sm:$0x1]
      %v6410 = vld [vmem:[#allocation2 + $0x298] sm:$0x1]
      %v6495 = vrot.slane %v6327, 4
      %v6496 = vrot.slane %v6333, 4
      %v6497 = vsel %vm2463, %v6495, %v6496
      %v6498 = vrot.slane %v6328, 4
      %v6499 = vrot.slane %v6334, 4
      %v6500 = vsel %vm2463, %v6498, %v6499
      %v6501 = vrot.slane %v6329, 4
      %v6502 = vrot.slane %v6335, 4
      %v6503 = vsel %vm2463, %v6501, %v6502
      %v6504 = vrot.slane %v6330, 4
      %v6505 = vrot.slane %v6336, 4
      %v6506 = vsel %vm2463, %v6504, %v6505
      %v6507 = vrot.slane %v6331, 4
      %v6508 = vrot.slane %v6337, 4
      %v6509 = vsel %vm2463, %v6507, %v6508
      %v6510 = vrot.slane %v6332, 4
      %v6511 = vrot.slane %v6338, 4
      %v6512 = vsel %vm2463, %v6510, %v6511
      %v6513 = vrot.slane %v6339, 4
      %v6514 = vsel %vm2463, %v6496, %v6513
      %v6515 = vrot.slane %v6340, 4
      %v6516 = vsel %vm2463, %v6499, %v6515
      %v6517 = vrot.slane %v6341, 4
      %v6518 = vsel %vm2463, %v6502, %v6517
      %v6519 = vrot.slane %v6342, 4
      %v6520 = vsel %vm2463, %v6505, %v6519
      %v6521 = vrot.slane %v6343, 4
      %v6522 = vsel %vm2463, %v6508, %v6521
      %v6523 = vrot.slane %v6344, 4
      %v6524 = vsel %vm2463, %v6511, %v6523
      %v6525 = vrot.slane %v6345, 4
      %v6526 = vsel %vm2463, %v6513, %v6525
      %v6527 = vrot.slane %v6346, 4
      %v6528 = vsel %vm2463, %v6515, %v6527
      %v6529 = vrot.slane %v6347, 4
      %v6530 = vsel %vm2463, %v6517, %v6529
      %v6531 = vrot.slane %v6348, 4
      %v6532 = vsel %vm2463, %v6519, %v6531
      %v6533 = vrot.slane %v6349, 4
      %v6534 = vsel %vm2463, %v6521, %v6533
      %v6535 = vrot.slane %v6350, 4
      %v6536 = vsel %vm2463, %v6523, %v6535
      %v6537 = vrot.slane %v6351, 4
      %v6538 = vsel %vm2463, %v6525, %v6537
      %v6539 = vrot.slane %v6352, 4
      %v6540 = vsel %vm2463, %v6527, %v6539
      %v6541 = vrot.slane %v6353, 4
      %v6542 = vsel %vm2463, %v6529, %v6541
      %v6543 = vrot.slane %v6354, 4
      %v6544 = vsel %vm2463, %v6531, %v6543
      %v6545 = vrot.slane %v6355, 4
      %v6546 = vsel %vm2463, %v6533, %v6545
      %v6547 = vrot.slane %v6356, 4
      %v6548 = vsel %vm2463, %v6535, %v6547
      %v6549 = vrot.slane %v6357, 4
      %v6550 = vsel %vm2463, %v6537, %v6549
      %v6551 = vrot.slane %v6358, 4
      %v6552 = vsel %vm2463, %v6539, %v6551
      %v6553 = vrot.slane %v6359, 4
      %v6554 = vsel %vm2463, %v6541, %v6553
      %v6555 = vrot.slane %v6360, 4
      %v6556 = vsel %vm2463, %v6543, %v6555
      %v6557 = vrot.slane %v6361, 4
      %v6558 = vsel %vm2463, %v6545, %v6557
      %v6559 = vrot.slane %v6362, 4
      %v6560 = vsel %vm2463, %v6547, %v6559
      %v6561 = vrot.slane %v6363, 4
      %v6562 = vsel %vm2463, %v6549, %v6561
      %v6563 = vrot.slane %v6364, 4
      %v6564 = vsel %vm2463, %v6551, %v6563
      %v6565 = vrot.slane %v6365, 4
      %v6566 = vsel %vm2463, %v6553, %v6565
      %v6567 = vrot.slane %v6366, 4
      %v6568 = vsel %vm2463, %v6555, %v6567
      %v6569 = vrot.slane %v6367, 4
      %v6570 = vsel %vm2463, %v6557, %v6569
      %v6571 = vrot.slane %v6368, 4
      %v6572 = vsel %vm2463, %v6559, %v6571
      %v6573 = vrot.slane %v6369, 4
      %v6574 = vsel %vm2463, %v6561, %v6573
      %v6575 = vrot.slane %v6370, 4
      %v6576 = vsel %vm2463, %v6563, %v6575
      %v6577 = vrot.slane %v6371, 4
      %v6578 = vsel %vm2463, %v6565, %v6577
      %v6579 = vrot.slane %v6372, 4
      %v6580 = vsel %vm2463, %v6567, %v6579
      %v6581 = vrot.slane %v6373, 4
      %v6582 = vsel %vm2463, %v6569, %v6581
      %v6583 = vrot.slane %v6374, 4
      %v6584 = vsel %vm2463, %v6571, %v6583
      %v6585 = vrot.slane %v6375, 4
      %v6586 = vsel %vm2463, %v6573, %v6585
      %v6587 = vrot.slane %v6376, 4
      %v6588 = vsel %vm2463, %v6575, %v6587
      %v6589 = vrot.slane %v6377, 4
      %v6590 = vsel %vm2463, %v6577, %v6589
      %v6591 = vrot.slane %v6378, 4
      %v6592 = vsel %vm2463, %v6579, %v6591
      %v6593 = vrot.slane %v6379, 4
      %v6594 = vsel %vm2463, %v6581, %v6593
      %v6595 = vrot.slane %v6380, 4
      %v6596 = vsel %vm2463, %v6583, %v6595
      %v6597 = vrot.slane %v6381, 4
      %v6598 = vsel %vm2463, %v6585, %v6597
      %v6599 = vrot.slane %v6382, 4
      %v6600 = vsel %vm2463, %v6587, %v6599
      %v6601 = vrot.slane %v6383, 4
      %v6602 = vsel %vm2463, %v6589, %v6601
      %v6603 = vrot.slane %v6384, 4
      %v6604 = vsel %vm2463, %v6591, %v6603
      %v6605 = vrot.slane %v6385, 4
      %v6606 = vsel %vm2463, %v6593, %v6605
      %v6607 = vrot.slane %v6386, 4
      %v6608 = vsel %vm2463, %v6595, %v6607
      %v6609 = vrot.slane %v6387, 4
      %v6610 = vsel %vm2463, %v6597, %v6609
      %v6611 = vrot.slane %v6388, 4
      %v6612 = vsel %vm2463, %v6599, %v6611
      %v6613 = vrot.slane %v6389, 4
      %v6614 = vsel %vm2463, %v6601, %v6613
      %v6615 = vrot.slane %v6390, 4
      %v6616 = vsel %vm2463, %v6603, %v6615
      %v6617 = vrot.slane %v6391, 4
      %v6618 = vsel %vm2463, %v6605, %v6617
      %v6619 = vrot.slane %v6392, 4
      %v6620 = vsel %vm2463, %v6607, %v6619
      %v6621 = vrot.slane %v6393, 4
      %v6622 = vsel %vm2463, %v6609, %v6621
      %v6623 = vrot.slane %v6394, 4
      %v6624 = vsel %vm2463, %v6611, %v6623
      %v6625 = vrot.slane %v6395, 4
      %v6626 = vsel %vm2463, %v6613, %v6625
      %v6627 = vrot.slane %v6396, 4
      %v6628 = vsel %vm2463, %v6615, %v6627
      %v6629 = vrot.slane %v6397, 4
      %v6630 = vsel %vm2463, %v6617, %v6629
      %v6631 = vrot.slane %v6398, 4
      %v6632 = vsel %vm2463, %v6619, %v6631
      %v6633 = vrot.slane %v6399, 4
      %v6634 = vsel %vm2463, %v6621, %v6633
      %v6635 = vrot.slane %v6400, 4
      %v6636 = vsel %vm2463, %v6623, %v6635
      %v6637 = vrot.slane %v6401, 4
      %v6638 = vsel %vm2463, %v6625, %v6637
      %v6639 = vrot.slane %v6402, 4
      %v6640 = vsel %vm2463, %v6627, %v6639
      %v6641 = vrot.slane %v6403, 4
      %v6642 = vsel %vm2463, %v6629, %v6641
      %v6643 = vrot.slane %v6404, 4
      %v6644 = vsel %vm2463, %v6631, %v6643
      %v6645 = vrot.slane %v6405, 4
      %v6646 = vsel %vm2463, %v6633, %v6645
      %v6647 = vrot.slane %v6406, 4
      %v6648 = vsel %vm2463, %v6635, %v6647
      %v6649 = vrot.slane %v6407, 4
      %v6650 = vsel %vm2463, %v6637, %v6649
      %v6651 = vrot.slane %v6408, 4
      %v6652 = vsel %vm2463, %v6639, %v6651
      %v6653 = vrot.slane %v6409, 4
      %v6654 = vsel %vm2463, %v6641, %v6653
      %v6655 = vrot.slane %v6410, 4
      %v6656 = vsel %vm2463, %v6643, %v6655
      %6735 = vrot.lane.b32.xlu0 %v6497, 4
      %v6736 = vpop.permute.xlu0 %6735
      %6737 = vrot.lane.b32.xlu0 %v6514, 4
      %v6738 = vpop.permute.xlu0 %6737
      %6739 = vrot.lane.b32.xlu0 %v6526, 4
      %v6740 = vpop.permute.xlu0 %6739
      %6741 = vrot.lane.b32.xlu0 %v6538, 4
      %v6742 = vpop.permute.xlu0 %6741
      %6743 = vrot.lane.b32.xlu0 %v6550, 4
      %v6744 = vpop.permute.xlu0 %6743
      %6745 = vrot.lane.b32.xlu0 %v6562, 4
      %v6746 = vpop.permute.xlu0 %6745
      %6747 = vrot.lane.b32.xlu0 %v6574, 4
      %v6748 = vpop.permute.xlu0 %6747
      %6749 = vrot.lane.b32.xlu0 %v6586, 4
      %v6750 = vpop.permute.xlu0 %6749
      %6751 = vrot.lane.b32.xlu0 %v6598, 4
      %v6752 = vpop.permute.xlu0 %6751
      %6753 = vrot.lane.b32.xlu0 %v6610, 4
      %v6754 = vpop.permute.xlu0 %6753
      %6755 = vrot.lane.b32.xlu0 %v6622, 4
      %v6756 = vpop.permute.xlu0 %6755
      %6757 = vrot.lane.b32.xlu0 %v6634, 4
      %v6758 = vpop.permute.xlu0 %6757
      %6759 = vrot.lane.b32.xlu0 %v6646, 4
      %v6760 = vpop.permute.xlu0 %6759
      %6761 = vrot.lane.b32.xlu0 %v6500, 4
      %v6762 = vpop.permute.xlu0 %6761
      %6763 = vrot.lane.b32.xlu0 %v6516, 4
      %v6764 = vpop.permute.xlu0 %6763
      %6765 = vrot.lane.b32.xlu0 %v6528, 4
      %v6766 = vpop.permute.xlu0 %6765
      %6767 = vrot.lane.b32.xlu0 %v6540, 4
      %v6768 = vpop.permute.xlu0 %6767
      %6769 = vrot.lane.b32.xlu0 %v6552, 4
      %v6770 = vpop.permute.xlu0 %6769
      %6771 = vrot.lane.b32.xlu0 %v6564, 4
      %v6772 = vpop.permute.xlu0 %6771
      %6773 = vrot.lane.b32.xlu0 %v6576, 4
      %v6774 = vpop.permute.xlu0 %6773
      %6775 = vrot.lane.b32.xlu0 %v6588, 4
      %v6776 = vpop.permute.xlu0 %6775
      %6777 = vrot.lane.b32.xlu0 %v6600, 4
      %v6778 = vpop.permute.xlu0 %6777
      %6779 = vrot.lane.b32.xlu0 %v6612, 4
      %v6780 = vpop.permute.xlu0 %6779
      %6781 = vrot.lane.b32.xlu0 %v6624, 4
      %v6782 = vpop.permute.xlu0 %6781
      %6783 = vrot.lane.b32.xlu0 %v6636, 4
      %v6784 = vpop.permute.xlu0 %6783
      %6785 = vrot.lane.b32.xlu0 %v6648, 4
      %v6786 = vpop.permute.xlu0 %6785
      %6787 = vrot.lane.b32.xlu0 %v6503, 4
      %v6788 = vpop.permute.xlu0 %6787
      %6789 = vrot.lane.b32.xlu0 %v6518, 4
      %v6790 = vpop.permute.xlu0 %6789
      %6791 = vrot.lane.b32.xlu0 %v6530, 4
      %v6792 = vpop.permute.xlu0 %6791
      %6793 = vrot.lane.b32.xlu0 %v6542, 4
      %v6794 = vpop.permute.xlu0 %6793
      %6795 = vrot.lane.b32.xlu0 %v6554, 4
      %v6796 = vpop.permute.xlu0 %6795
      %6797 = vrot.lane.b32.xlu0 %v6566, 4
      %v6798 = vpop.permute.xlu0 %6797
      %6799 = vrot.lane.b32.xlu0 %v6578, 4
      %v6800 = vpop.permute.xlu0 %6799
      %6801 = vrot.lane.b32.xlu0 %v6590, 4
      %v6802 = vpop.permute.xlu0 %6801
      %6803 = vrot.lane.b32.xlu0 %v6602, 4
      %v6804 = vpop.permute.xlu0 %6803
      %6805 = vrot.lane.b32.xlu0 %v6614, 4
      %v6806 = vpop.permute.xlu0 %6805
      %6807 = vrot.lane.b32.xlu0 %v6626, 4
      %v6808 = vpop.permute.xlu0 %6807
      %6809 = vrot.lane.b32.xlu0 %v6638, 4
      %v6810 = vpop.permute.xlu0 %6809
      %6811 = vrot.lane.b32.xlu0 %v6650, 4
      %v6812 = vpop.permute.xlu0 %6811
      %6813 = vrot.lane.b32.xlu0 %v6506, 4
      %v6814 = vpop.permute.xlu0 %6813
      %6815 = vrot.lane.b32.xlu0 %v6520, 4
      %v6816 = vpop.permute.xlu0 %6815
      %6817 = vrot.lane.b32.xlu0 %v6532, 4
      %v6818 = vpop.permute.xlu0 %6817
      %6819 = vrot.lane.b32.xlu0 %v6544, 4
      %v6820 = vpop.permute.xlu0 %6819
      %6821 = vrot.lane.b32.xlu0 %v6556, 4
      %v6822 = vpop.permute.xlu0 %6821
      %6823 = vrot.lane.b32.xlu0 %v6568, 4
      %v6824 = vpop.permute.xlu0 %6823
      %6825 = vrot.lane.b32.xlu0 %v6580, 4
      %v6826 = vpop.permute.xlu0 %6825
      %6827 = vrot.lane.b32.xlu0 %v6592, 4
      %v6828 = vpop.permute.xlu0 %6827
      %6829 = vrot.lane.b32.xlu0 %v6604, 4
      %v6830 = vpop.permute.xlu0 %6829
      %6831 = vrot.lane.b32.xlu0 %v6616, 4
      %v6832 = vpop.permute.xlu0 %6831
      %6833 = vrot.lane.b32.xlu0 %v6628, 4
      %v6834 = vpop.permute.xlu0 %6833
      %6835 = vrot.lane.b32.xlu0 %v6640, 4
      %v6836 = vpop.permute.xlu0 %6835
      %6837 = vrot.lane.b32.xlu0 %v6652, 4
      %v6838 = vpop.permute.xlu0 %6837
      %6839 = vrot.lane.b32.xlu0 %v6509, 4
      %v6840 = vpop.permute.xlu0 %6839
      %6841 = vrot.lane.b32.xlu0 %v6522, 4
      %v6842 = vpop.permute.xlu0 %6841
      %6843 = vrot.lane.b32.xlu0 %v6534, 4
      %v6844 = vpop.permute.xlu0 %6843
      %6845 = vrot.lane.b32.xlu0 %v6546, 4
      %v6846 = vpop.permute.xlu0 %6845
      %6847 = vrot.lane.b32.xlu0 %v6558, 4
      %v6848 = vpop.permute.xlu0 %6847
      %6849 = vrot.lane.b32.xlu0 %v6570, 4
      %v6850 = vpop.permute.xlu0 %6849
      %6851 = vrot.lane.b32.xlu0 %v6582, 4
      %v6852 = vpop.permute.xlu0 %6851
      %6853 = vrot.lane.b32.xlu0 %v6594, 4
      %v6854 = vpop.permute.xlu0 %6853
      %6855 = vrot.lane.b32.xlu0 %v6606, 4
      %v6856 = vpop.permute.xlu0 %6855
      %6857 = vrot.lane.b32.xlu0 %v6618, 4
      %v6858 = vpop.permute.xlu0 %6857
      %6859 = vrot.lane.b32.xlu0 %v6630, 4
      %v6860 = vpop.permute.xlu0 %6859
      %6861 = vrot.lane.b32.xlu0 %v6642, 4
      %v6862 = vpop.permute.xlu0 %6861
      %6863 = vrot.lane.b32.xlu0 %v6654, 4
      %v6864 = vpop.permute.xlu0 %6863
      %6865 = vrot.lane.b32.xlu0 %v6512, 4
      %v6866 = vpop.permute.xlu0 %6865
      %6867 = vrot.lane.b32.xlu0 %v6524, 4
      %v6868 = vpop.permute.xlu0 %6867
      %6869 = vrot.lane.b32.xlu0 %v6536, 4
      %v6870 = vpop.permute.xlu0 %6869
      %6871 = vrot.lane.b32.xlu0 %v6548, 4
      %v6872 = vpop.permute.xlu0 %6871
      %6873 = vrot.lane.b32.xlu0 %v6560, 4
      %v6874 = vpop.permute.xlu0 %6873
      %6875 = vrot.lane.b32.xlu0 %v6572, 4
      %v6876 = vpop.permute.xlu0 %6875
      %6877 = vrot.lane.b32.xlu0 %v6584, 4
      %v6878 = vpop.permute.xlu0 %6877
      %6879 = vrot.lane.b32.xlu0 %v6596, 4
      %v6880 = vpop.permute.xlu0 %6879
      %6881 = vrot.lane.b32.xlu0 %v6608, 4
      %v6882 = vpop.permute.xlu0 %6881
      %6883 = vrot.lane.b32.xlu0 %v6620, 4
      %v6884 = vpop.permute.xlu0 %6883
      %6885 = vrot.lane.b32.xlu0 %v6632, 4
      %v6886 = vpop.permute.xlu0 %6885
      %6887 = vrot.lane.b32.xlu0 %v6644, 4
      %v6888 = vpop.permute.xlu0 %6887
      %6889 = vrot.lane.b32.xlu0 %v6656, 4
      %v6890 = vpop.permute.xlu0 %6889
      %vm6891 = vcmp.lt.s32.totalorder %v4594, 4
      %v6892 = vsel %vm6891, %v6840, %v6866
      %v6893 = vsel %vm6891, %v6842, %v6868
      %v6894 = vsel %vm6891, %v6844, %v6870
      %v6895 = vsel %vm6891, %v6846, %v6872
      %v6896 = vsel %vm6891, %v6848, %v6874
      %v6897 = vsel %vm6891, %v6850, %v6876
      %v6898 = vsel %vm6891, %v6852, %v6878
      %v6899 = vsel %vm6891, %v6854, %v6880
      %v6900 = vsel %vm6891, %v6856, %v6882
      %v6901 = vsel %vm6891, %v6858, %v6884
      %v6902 = vsel %vm6891, %v6860, %v6886
      %v6903 = vsel %vm6891, %v6862, %v6888
      %v6904 = vsel %vm6891, %v6864, %v6890
      %v6905 = vsel %vm6891, %v6814, %v6840
      %v6906 = vsel %vm6891, %v6816, %v6842
      %v6907 = vsel %vm6891, %v6818, %v6844
      %v6908 = vsel %vm6891, %v6820, %v6846
      %v6909 = vsel %vm6891, %v6822, %v6848
      %v6910 = vsel %vm6891, %v6824, %v6850
      %v6911 = vsel %vm6891, %v6826, %v6852
      %v6912 = vsel %vm6891, %v6828, %v6854
      %v6913 = vsel %vm6891, %v6830, %v6856
      %v6914 = vsel %vm6891, %v6832, %v6858
      %v6915 = vsel %vm6891, %v6834, %v6860
      %v6916 = vsel %vm6891, %v6836, %v6862
      %v6917 = vsel %vm6891, %v6838, %v6864
      %v6918 = vsel %vm6891, %v6788, %v6814
      %v6919 = vsel %vm6891, %v6790, %v6816
      %v6920 = vsel %vm6891, %v6792, %v6818
      %v6921 = vsel %vm6891, %v6794, %v6820
      %v6922 = vsel %vm6891, %v6796, %v6822
      %v6923 = vsel %vm6891, %v6798, %v6824
      %v6924 = vsel %vm6891, %v6800, %v6826
      %v6925 = vsel %vm6891, %v6802, %v6828
      %v6926 = vsel %vm6891, %v6804, %v6830
      %v6927 = vsel %vm6891, %v6806, %v6832
      %v6928 = vsel %vm6891, %v6808, %v6834
      %v6929 = vsel %vm6891, %v6810, %v6836
      %v6930 = vsel %vm6891, %v6812, %v6838
      %v6931 = vsel %vm6891, %v6762, %v6788
      %v6932 = vsel %vm6891, %v6764, %v6790
      %v6933 = vsel %vm6891, %v6766, %v6792
      %v6934 = vsel %vm6891, %v6768, %v6794
      %v6935 = vsel %vm6891, %v6770, %v6796
      %v6936 = vsel %vm6891, %v6772, %v6798
      %v6937 = vsel %vm6891, %v6774, %v6800
      %v6938 = vsel %vm6891, %v6776, %v6802
      %v6939 = vsel %vm6891, %v6778, %v6804
      %v6940 = vsel %vm6891, %v6780, %v6806
      %v6941 = vsel %vm6891, %v6782, %v6808
      %v6942 = vsel %vm6891, %v6784, %v6810
      %v6943 = vsel %vm6891, %v6786, %v6812
      %v6944 = vsel %vm6891, %v6736, %v6762
      %v6945 = vsel %vm6891, %v6738, %v6764
      %v6946 = vsel %vm6891, %v6740, %v6766
      %v6947 = vsel %vm6891, %v6742, %v6768
      %v6948 = vsel %vm6891, %v6744, %v6770
      %v6949 = vsel %vm6891, %v6746, %v6772
      %v6950 = vsel %vm6891, %v6748, %v6774
      %v6951 = vsel %vm6891, %v6750, %v6776
      %v6952 = vsel %vm6891, %v6752, %v6778
      %v6953 = vsel %vm6891, %v6754, %v6780
      %v6954 = vsel %vm6891, %v6756, %v6782
      %v6955 = vsel %vm6891, %v6758, %v6784
      %v6956 = vsel %vm6891, %v6760, %v6786
      %v6957 = vsel %vm6891, %v6866, %v6736
      %v6958 = vsel %vm6891, %v6868, %v6738
      %v6959 = vsel %vm6891, %v6870, %v6740
      %v6960 = vsel %vm6891, %v6872, %v6742
      %v6961 = vsel %vm6891, %v6874, %v6744
      %v6962 = vsel %vm6891, %v6876, %v6746
      %v6963 = vsel %vm6891, %v6878, %v6748
      %v6964 = vsel %vm6891, %v6880, %v6750
      %v6965 = vsel %vm6891, %v6882, %v6752
      %v6966 = vsel %vm6891, %v6884, %v6754
      %v6967 = vsel %vm6891, %v6886, %v6756
      %v6968 = vsel %vm6891, %v6888, %v6758
      %v6969 = vsel %vm6891, %v6890, %v6760
      %6970 = vrot.lane.b32.xlu0 %v3270, 5
      %v6971 = vpop.permute.xlu0 %6970
      %6972 = vrot.lane.b32.xlu0 %v3276, 5
      %v6973 = vpop.permute.xlu0 %6972
      %6974 = vrot.lane.b32.xlu0 %v3282, 5
      %v6975 = vpop.permute.xlu0 %6974
      %6976 = vrot.lane.b32.xlu0 %v3288, 5
      %v6977 = vpop.permute.xlu0 %6976
      %6978 = vrot.lane.b32.xlu0 %v3294, 5
      %v6979 = vpop.permute.xlu0 %6978
      %6980 = vrot.lane.b32.xlu0 %v3300, 5
      %v6981 = vpop.permute.xlu0 %6980
      %6982 = vrot.lane.b32.xlu0 %v3306, 5
      %v6983 = vpop.permute.xlu0 %6982
      %6984 = vrot.lane.b32.xlu0 %v3312, 5
      %v6985 = vpop.permute.xlu0 %6984
      %6986 = vrot.lane.b32.xlu0 %v3318, 5
      %v6987 = vpop.permute.xlu0 %6986
      %6988 = vrot.lane.b32.xlu0 %v3324, 5
      %v6989 = vpop.permute.xlu0 %6988
      %6990 = vrot.lane.b32.xlu0 %v3330, 5
      %v6991 = vpop.permute.xlu0 %6990
      %6992 = vrot.lane.b32.xlu0 %v3336, 5
      %v6993 = vpop.permute.xlu0 %6992
      %6994 = vrot.lane.b32.xlu0 %v3342, 5
      %v6995 = vpop.permute.xlu0 %6994
      %6996 = vrot.lane.b32.xlu0 %v3272, 5
      %v6997 = vpop.permute.xlu0 %6996
      %6998 = vrot.lane.b32.xlu0 %v3278, 5
      %v6999 = vpop.permute.xlu0 %6998
      %7000 = vrot.lane.b32.xlu0 %v3284, 5
      %v7001 = vpop.permute.xlu0 %7000
      %7002 = vrot.lane.b32.xlu0 %v3290, 5
      %v7003 = vpop.permute.xlu0 %7002
      %7004 = vrot.lane.b32.xlu0 %v3296, 5
      %v7005 = vpop.permute.xlu0 %7004
      %7006 = vrot.lane.b32.xlu0 %v3302, 5
      %v7007 = vpop.permute.xlu0 %7006
      %7008 = vrot.lane.b32.xlu0 %v3308, 5
      %v7009 = vpop.permute.xlu0 %7008
      %7010 = vrot.lane.b32.xlu0 %v3314, 5
      %v7011 = vpop.permute.xlu0 %7010
      %7012 = vrot.lane.b32.xlu0 %v3320, 5
      %v7013 = vpop.permute.xlu0 %7012
      %7014 = vrot.lane.b32.xlu0 %v3326, 5
      %v7015 = vpop.permute.xlu0 %7014
      %7016 = vrot.lane.b32.xlu0 %v3332, 5
      %v7017 = vpop.permute.xlu0 %7016
      %7018 = vrot.lane.b32.xlu0 %v3338, 5
      %v7019 = vpop.permute.xlu0 %7018
      %7020 = vrot.lane.b32.xlu0 %v3344, 5
      %v7021 = vpop.permute.xlu0 %7020
      %7022 = vrot.lane.b32.xlu0 %v3413, 5
      %v7023 = vpop.permute.xlu0 %7022
      %7024 = vrot.lane.b32.xlu0 %v3419, 5
      %v7025 = vpop.permute.xlu0 %7024
      %7026 = vrot.lane.b32.xlu0 %v3425, 5
      %v7027 = vpop.permute.xlu0 %7026
      %7028 = vrot.lane.b32.xlu0 %v3431, 5
      %v7029 = vpop.permute.xlu0 %7028
      %7030 = vrot.lane.b32.xlu0 %v3437, 5
      %v7031 = vpop.permute.xlu0 %7030
      %7032 = vrot.lane.b32.xlu0 %v3443, 5
      %v7033 = vpop.permute.xlu0 %7032
      %7034 = vrot.lane.b32.xlu0 %v3449, 5
      %v7035 = vpop.permute.xlu0 %7034
      %7036 = vrot.lane.b32.xlu0 %v3455, 5
      %v7037 = vpop.permute.xlu0 %7036
      %7038 = vrot.lane.b32.xlu0 %v3461, 5
      %v7039 = vpop.permute.xlu0 %7038
      %7040 = vrot.lane.b32.xlu0 %v3467, 5
      %v7041 = vpop.permute.xlu0 %7040
      %7042 = vrot.lane.b32.xlu0 %v3473, 5
      %v7043 = vpop.permute.xlu0 %7042
      %7044 = vrot.lane.b32.xlu0 %v3479, 5
      %v7045 = vpop.permute.xlu0 %7044
      %7046 = vrot.lane.b32.xlu0 %v3485, 5
      %v7047 = vpop.permute.xlu0 %7046
      %7048 = vrot.lane.b32.xlu0 %v3415, 5
      %v7049 = vpop.permute.xlu0 %7048
      %7050 = vrot.lane.b32.xlu0 %v3421, 5
      %v7051 = vpop.permute.xlu0 %7050
      %7052 = vrot.lane.b32.xlu0 %v3427, 5
      %v7053 = vpop.permute.xlu0 %7052
      %7054 = vrot.lane.b32.xlu0 %v3433, 5
      %v7055 = vpop.permute.xlu0 %7054
      %7056 = vrot.lane.b32.xlu0 %v3439, 5
      %v7057 = vpop.permute.xlu0 %7056
      %7058 = vrot.lane.b32.xlu0 %v3445, 5
      %v7059 = vpop.permute.xlu0 %7058
      %7060 = vrot.lane.b32.xlu0 %v3451, 5
      %v7061 = vpop.permute.xlu0 %7060
      %7062 = vrot.lane.b32.xlu0 %v3457, 5
      %v7063 = vpop.permute.xlu0 %7062
      %7064 = vrot.lane.b32.xlu0 %v3463, 5
      %v7065 = vpop.permute.xlu0 %7064
      %7066 = vrot.lane.b32.xlu0 %v3469, 5
      %v7067 = vpop.permute.xlu0 %7066
      %7068 = vrot.lane.b32.xlu0 %v3475, 5
      %v7069 = vpop.permute.xlu0 %7068
      %7070 = vrot.lane.b32.xlu0 %v3481, 5
      %v7071 = vpop.permute.xlu0 %7070
      %7072 = vrot.lane.b32.xlu0 %v3487, 5
      %v7073 = vpop.permute.xlu0 %7072
      %7074 = vrot.lane.b32.xlu0 %v3556, 5
      %v7075 = vpop.permute.xlu0 %7074
      %7076 = vrot.lane.b32.xlu0 %v3562, 5
      %v7077 = vpop.permute.xlu0 %7076
      %7078 = vrot.lane.b32.xlu0 %v3568, 5
      %v7079 = vpop.permute.xlu0 %7078
      %7080 = vrot.lane.b32.xlu0 %v3574, 5
      %v7081 = vpop.permute.xlu0 %7080
      %7082 = vrot.lane.b32.xlu0 %v3580, 5
      %v7083 = vpop.permute.xlu0 %7082
      %7084 = vrot.lane.b32.xlu0 %v3586, 5
      %v7085 = vpop.permute.xlu0 %7084
      %7086 = vrot.lane.b32.xlu0 %v3592, 5
      %v7087 = vpop.permute.xlu0 %7086
      %7088 = vrot.lane.b32.xlu0 %v3598, 5
      %v7089 = vpop.permute.xlu0 %7088
      %7090 = vrot.lane.b32.xlu0 %v3604, 5
      %v7091 = vpop.permute.xlu0 %7090
      %7092 = vrot.lane.b32.xlu0 %v3610, 5
      %v7093 = vpop.permute.xlu0 %7092
      %7094 = vrot.lane.b32.xlu0 %v3616, 5
      %v7095 = vpop.permute.xlu0 %7094
      %7096 = vrot.lane.b32.xlu0 %v3622, 5
      %v7097 = vpop.permute.xlu0 %7096
      %7098 = vrot.lane.b32.xlu0 %v3628, 5
      %v7099 = vpop.permute.xlu0 %7098
      %7100 = vrot.lane.b32.xlu0 %v3558, 5
      %v7101 = vpop.permute.xlu0 %7100
      %7102 = vrot.lane.b32.xlu0 %v3564, 5
      %v7103 = vpop.permute.xlu0 %7102
      %7104 = vrot.lane.b32.xlu0 %v3570, 5
      %v7105 = vpop.permute.xlu0 %7104
      %7106 = vrot.lane.b32.xlu0 %v3576, 5
      %v7107 = vpop.permute.xlu0 %7106
      %7108 = vrot.lane.b32.xlu0 %v3582, 5
      %v7109 = vpop.permute.xlu0 %7108
      %7110 = vrot.lane.b32.xlu0 %v3588, 5
      %v7111 = vpop.permute.xlu0 %7110
      %7112 = vrot.lane.b32.xlu0 %v3594, 5
      %v7113 = vpop.permute.xlu0 %7112
      %7114 = vrot.lane.b32.xlu0 %v3600, 5
      %v7115 = vpop.permute.xlu0 %7114
      %7116 = vrot.lane.b32.xlu0 %v3606, 5
      %v7117 = vpop.permute.xlu0 %7116
      %7118 = vrot.lane.b32.xlu0 %v3612, 5
      %v7119 = vpop.permute.xlu0 %7118
      %7120 = vrot.lane.b32.xlu0 %v3618, 5
      %v7121 = vpop.permute.xlu0 %7120
      %7122 = vrot.lane.b32.xlu0 %v3624, 5
      %v7123 = vpop.permute.xlu0 %7122
      %7124 = vrot.lane.b32.xlu0 %v3630, 5
      %v7125 = vpop.permute.xlu0 %7124
      %vm7126 = vcmp.lt.s32.totalorder %v4594, 5
      %v7127 = vsel %vm7126, %v7075, %v7101
      %v7128 = vsel %vm7126, %v7077, %v7103
      %v7129 = vsel %vm7126, %v7079, %v7105
      %v7130 = vsel %vm7126, %v7081, %v7107
      %v7131 = vsel %vm7126, %v7083, %v7109
      %v7132 = vsel %vm7126, %v7085, %v7111
      %v7133 = vsel %vm7126, %v7087, %v7113
      %v7134 = vsel %vm7126, %v7089, %v7115
      %v7135 = vsel %vm7126, %v7091, %v7117
      %v7136 = vsel %vm7126, %v7093, %v7119
      %v7137 = vsel %vm7126, %v7095, %v7121
      %v7138 = vsel %vm7126, %v7097, %v7123
      %v7139 = vsel %vm7126, %v7099, %v7125
      %v7140 = vsel %vm7126, %v7049, %v7075
      %v7141 = vsel %vm7126, %v7051, %v7077
      %v7142 = vsel %vm7126, %v7053, %v7079
      %v7143 = vsel %vm7126, %v7055, %v7081
      %v7144 = vsel %vm7126, %v7057, %v7083
      %v7145 = vsel %vm7126, %v7059, %v7085
      %v7146 = vsel %vm7126, %v7061, %v7087
      %v7147 = vsel %vm7126, %v7063, %v7089
      %v7148 = vsel %vm7126, %v7065, %v7091
      %v7149 = vsel %vm7126, %v7067, %v7093
      %v7150 = vsel %vm7126, %v7069, %v7095
      %v7151 = vsel %vm7126, %v7071, %v7097
      %v7152 = vsel %vm7126, %v7073, %v7099
      %v7153 = vsel %vm7126, %v7023, %v7049
      %v7154 = vsel %vm7126, %v7025, %v7051
      %v7155 = vsel %vm7126, %v7027, %v7053
      %v7156 = vsel %vm7126, %v7029, %v7055
      %v7157 = vsel %vm7126, %v7031, %v7057
      %v7158 = vsel %vm7126, %v7033, %v7059
      %v7159 = vsel %vm7126, %v7035, %v7061
      %v7160 = vsel %vm7126, %v7037, %v7063
      %v7161 = vsel %vm7126, %v7039, %v7065
      %v7162 = vsel %vm7126, %v7041, %v7067
      %v7163 = vsel %vm7126, %v7043, %v7069
      %v7164 = vsel %vm7126, %v7045, %v7071
      %v7165 = vsel %vm7126, %v7047, %v7073
      %v7166 = vsel %vm7126, %v6997, %v7023
      %v7167 = vsel %vm7126, %v6999, %v7025
      %v7168 = vsel %vm7126, %v7001, %v7027
      %v7169 = vsel %vm7126, %v7003, %v7029
      %v7170 = vsel %vm7126, %v7005, %v7031
      %v7171 = vsel %vm7126, %v7007, %v7033
      %v7172 = vsel %vm7126, %v7009, %v7035
      %v7173 = vsel %vm7126, %v7011, %v7037
      %v7174 = vsel %vm7126, %v7013, %v7039
      %v7175 = vsel %vm7126, %v7015, %v7041
      %v7176 = vsel %vm7126, %v7017, %v7043
      %v7177 = vsel %vm7126, %v7019, %v7045
      %v7178 = vsel %vm7126, %v7021, %v7047
      %v7179 = vsel %vm7126, %v6971, %v6997
      %v7180 = vsel %vm7126, %v6973, %v6999
      %v7181 = vsel %vm7126, %v6975, %v7001
      %v7182 = vsel %vm7126, %v6977, %v7003
      %v7183 = vsel %vm7126, %v6979, %v7005
      %v7184 = vsel %vm7126, %v6981, %v7007
      %v7185 = vsel %vm7126, %v6983, %v7009
      %v7186 = vsel %vm7126, %v6985, %v7011
      %v7187 = vsel %vm7126, %v6987, %v7013
      %v7188 = vsel %vm7126, %v6989, %v7015
      %v7189 = vsel %vm7126, %v6991, %v7017
      %v7190 = vsel %vm7126, %v6993, %v7019
      %v7191 = vsel %vm7126, %v6995, %v7021
      %v7192 = vsel %vm7126, %v7101, %v6971
      %v7193 = vsel %vm7126, %v7103, %v6973
      %v7194 = vsel %vm7126, %v7105, %v6975
      %v7195 = vsel %vm7126, %v7107, %v6977
      %v7196 = vsel %vm7126, %v7109, %v6979
      %v7197 = vsel %vm7126, %v7111, %v6981
      %v7198 = vsel %vm7126, %v7113, %v6983
      %v7199 = vsel %vm7126, %v7115, %v6985
      %v7200 = vsel %vm7126, %v7117, %v6987
      %v7201 = vsel %vm7126, %v7119, %v6989
      %v7202 = vsel %vm7126, %v7121, %v6991
      %v7203 = vsel %vm7126, %v7123, %v6993
      %v7204 = vsel %vm7126, %v7125, %v6995
      %v7205 = vadd.f32 %v6957, %v7192
      %v7206 = vadd.f32 %v6944, %v7179
      %v7207 = vadd.f32 %v6931, %v7166
      %v7208 = vadd.f32 %v6918, %v7153
      %v7209 = vadd.f32 %v6905, %v7140
      %v7210 = vadd.f32 %v6892, %v7127
      %v7211 = vadd.f32 %v6958, %v7193
      %v7212 = vadd.f32 %v6945, %v7180
      %v7213 = vadd.f32 %v6932, %v7167
      %v7214 = vadd.f32 %v6919, %v7154
      %v7215 = vadd.f32 %v6906, %v7141
      %v7216 = vadd.f32 %v6893, %v7128
      %v7217 = vadd.f32 %v6959, %v7194
      %v7218 = vadd.f32 %v6946, %v7181
      %v7219 = vadd.f32 %v6933, %v7168
      %v7220 = vadd.f32 %v6920, %v7155
      %v7221 = vadd.f32 %v6907, %v7142
      %v7222 = vadd.f32 %v6894, %v7129
      %v7223 = vadd.f32 %v6960, %v7195
      %v7224 = vadd.f32 %v6947, %v7182
      %v7225 = vadd.f32 %v6934, %v7169
      %v7226 = vadd.f32 %v6921, %v7156
      %v7227 = vadd.f32 %v6908, %v7143
      %v7228 = vadd.f32 %v6895, %v7130
      %v7229 = vadd.f32 %v6961, %v7196
      %v7230 = vadd.f32 %v6948, %v7183
      %v7231 = vadd.f32 %v6935, %v7170
      %v7232 = vadd.f32 %v6922, %v7157
      %v7233 = vadd.f32 %v6909, %v7144
      %v7234 = vadd.f32 %v6896, %v7131
      %v7235 = vadd.f32 %v6962, %v7197
      %v7236 = vadd.f32 %v6949, %v7184
      %v7237 = vadd.f32 %v6936, %v7171
      %v7238 = vadd.f32 %v6923, %v7158
      %v7239 = vadd.f32 %v6910, %v7145
      %v7240 = vadd.f32 %v6897, %v7132
      %v7241 = vadd.f32 %v6963, %v7198
      %v7242 = vadd.f32 %v6950, %v7185
      %v7243 = vadd.f32 %v6937, %v7172
      %v7244 = vadd.f32 %v6924, %v7159
      %v7245 = vadd.f32 %v6911, %v7146
      %v7246 = vadd.f32 %v6898, %v7133
      %v7247 = vadd.f32 %v6964, %v7199
      %v7248 = vadd.f32 %v6951, %v7186
      %v7249 = vadd.f32 %v6938, %v7173
      %v7250 = vadd.f32 %v6925, %v7160
      %v7251 = vadd.f32 %v6912, %v7147
      %v7252 = vadd.f32 %v6899, %v7134
      %v7253 = vadd.f32 %v6965, %v7200
      %v7254 = vadd.f32 %v6952, %v7187
      %v7255 = vadd.f32 %v6939, %v7174
      %v7256 = vadd.f32 %v6926, %v7161
      %v7257 = vadd.f32 %v6913, %v7148
      %v7258 = vadd.f32 %v6900, %v7135
      %v7259 = vadd.f32 %v6966, %v7201
      %v7260 = vadd.f32 %v6953, %v7188
      %v7261 = vadd.f32 %v6940, %v7175
      %v7262 = vadd.f32 %v6927, %v7162
      %v7263 = vadd.f32 %v6914, %v7149
      %v7264 = vadd.f32 %v6901, %v7136
      %v7265 = vadd.f32 %v6967, %v7202
      %v7266 = vadd.f32 %v6954, %v7189
      %v7267 = vadd.f32 %v6941, %v7176
      %v7268 = vadd.f32 %v6928, %v7163
      %v7269 = vadd.f32 %v6915, %v7150
      %v7270 = vadd.f32 %v6902, %v7137
      %v7271 = vadd.f32 %v6968, %v7203
      %v7272 = vadd.f32 %v6955, %v7190
      %v7273 = vadd.f32 %v6942, %v7177
      %v7274 = vadd.f32 %v6929, %v7164
      %v7275 = vadd.f32 %v6916, %v7151
      %v7276 = vadd.f32 %v6903, %v7138
      %v7277 = vadd.f32 %v6969, %v7204
      %v7278 = vadd.f32 %v6956, %v7191
      %v7279 = vadd.f32 %v6943, %v7178
      %v7280 = vadd.f32 %v6930, %v7165
      %v7281 = vadd.f32 %v6917, %v7152
      %v7282 = vadd.f32 %v6904, %v7139
      %v7283 = vadd.f32 %v6249, %v7205
      %v7284 = vadd.f32 %v6250, %v7206
      %v7285 = vadd.f32 %v6251, %v7207
      %v7286 = vadd.f32 %v6252, %v7208
      %v7287 = vadd.f32 %v6253, %v7209
      %v7288 = vadd.f32 %v6254, %v7210
      %v7289 = vadd.f32 %v6255, %v7211
      %v7290 = vadd.f32 %v6256, %v7212
      %v7291 = vadd.f32 %v6257, %v7213
      %v7292 = vadd.f32 %v6258, %v7214
      %v7293 = vadd.f32 %v6259, %v7215
      %v7294 = vadd.f32 %v6260, %v7216
      %v7295 = vadd.f32 %v6261, %v7217
      %v7296 = vadd.f32 %v6262, %v7218
      %v7297 = vadd.f32 %v6263, %v7219
      %v7298 = vadd.f32 %v6264, %v7220
      %v7299 = vadd.f32 %v6265, %v7221
      %v7300 = vadd.f32 %v6266, %v7222
      %v7301 = vadd.f32 %v6267, %v7223
      %v7302 = vadd.f32 %v6268, %v7224
      %v7303 = vadd.f32 %v6269, %v7225
      %v7304 = vadd.f32 %v6270, %v7226
      %v7305 = vadd.f32 %v6271, %v7227
      %v7306 = vadd.f32 %v6272, %v7228
      %v7307 = vadd.f32 %v6273, %v7229
      %v7308 = vadd.f32 %v6274, %v7230
      %v7309 = vadd.f32 %v6275, %v7231
      %v7310 = vadd.f32 %v6276, %v7232
      %v7311 = vadd.f32 %v6277, %v7233
      %v7312 = vadd.f32 %v6278, %v7234
      %v7313 = vadd.f32 %v6279, %v7235
      %v7314 = vadd.f32 %v6280, %v7236
      %v7315 = vadd.f32 %v6281, %v7237
      %v7316 = vadd.f32 %v6282, %v7238
      %v7317 = vadd.f32 %v6283, %v7239
      %v7318 = vadd.f32 %v6284, %v7240
      %v7319 = vadd.f32 %v6285, %v7241
      %v7320 = vadd.f32 %v6286, %v7242
      %v7321 = vadd.f32 %v6287, %v7243
      %v7322 = vadd.f32 %v6288, %v7244
      %v7323 = vadd.f32 %v6289, %v7245
      %v7324 = vadd.f32 %v6290, %v7246
      %v7325 = vadd.f32 %v6291, %v7247
      %v7326 = vadd.f32 %v6292, %v7248
      %v7327 = vadd.f32 %v6293, %v7249
      %v7328 = vadd.f32 %v6294, %v7250
      %v7329 = vadd.f32 %v6295, %v7251
      %v7330 = vadd.f32 %v6296, %v7252
      %v7331 = vadd.f32 %v6297, %v7253
      %v7332 = vadd.f32 %v6298, %v7254
      %v7333 = vadd.f32 %v6299, %v7255
      %v7334 = vadd.f32 %v6300, %v7256
      %v7335 = vadd.f32 %v6301, %v7257
      %v7336 = vadd.f32 %v6302, %v7258
      %v7337 = vadd.f32 %v6303, %v7259
      %v7338 = vadd.f32 %v6304, %v7260
      %v7339 = vadd.f32 %v6305, %v7261
      %v7340 = vadd.f32 %v6306, %v7262
      %v7341 = vadd.f32 %v6307, %v7263
      %v7342 = vadd.f32 %v6308, %v7264
      %v7343 = vadd.f32 %v6309, %v7265
      %v7344 = vadd.f32 %v6310, %v7266
      %v7345 = vadd.f32 %v6311, %v7267
      %v7346 = vadd.f32 %v6312, %v7268
      %v7347 = vadd.f32 %v6313, %v7269
      %v7348 = vadd.f32 %v6314, %v7270
      %v7349 = vadd.f32 %v6315, %v7271
      %v7350 = vadd.f32 %v6316, %v7272
      %v7351 = vadd.f32 %v6317, %v7273
      %v7352 = vadd.f32 %v6318, %v7274
      %v7353 = vadd.f32 %v6319, %v7275
      %v7354 = vadd.f32 %v6320, %v7276
      %v7355 = vadd.f32 %v6321, %v7277
      %v7356 = vadd.f32 %v6322, %v7278
      %v7357 = vadd.f32 %v6323, %v7279
      %v7358 = vadd.f32 %v6324, %v7280
      %v7359 = vadd.f32 %v6325, %v7281
      %v7360 = vadd.f32 %v6326, %v7282
      %7361 = vst [vmem:[%s224] sm:$0xff] %v7283
      %7362 = vst [vmem:[%s224 + $0x8] sm:$0xff] %v7284
      %7363 = vst [vmem:[%s224 + $0x10] sm:$0xff] %v7285
      %7364 = vst [vmem:[%s224 + $0x18] sm:$0xff] %v7286
      %7365 = vst [vmem:[%s224 + $0x20] sm:$0xff] %v7287
      %7366 = vst.msk [vmem:[%s224 + $0x28] sm:$0xff] %vm3069, %v7288
      %7367 = vst [vmem:[%s224 + $0x30] sm:$0xff] %v7289
      %7368 = vst [vmem:[%s224 + $0x38] sm:$0xff] %v7290
      %7369 = vst [vmem:[%s224 + $0x40] sm:$0xff] %v7291
      %7370 = vst [vmem:[%s224 + $0x48] sm:$0xff] %v7292
      %7371 = vst [vmem:[%s224 + $0x50] sm:$0xff] %v7293
      %7372 = vst.msk [vmem:[%s224 + $0x58] sm:$0xff] %vm3069, %v7294
      %7373 = vst [vmem:[%s224 + $0x60] sm:$0xff] %v7295
      %7374 = vst [vmem:[%s224 + $0x68] sm:$0xff] %v7296
      %7375 = vst [vmem:[%s224 + $0x70] sm:$0xff] %v7297
      %7376 = vst [vmem:[%s224 + $0x78] sm:$0xff] %v7298
      %7377 = vst [vmem:[%s224 + $0x80] sm:$0xff] %v7299
      %7378 = vst.msk [vmem:[%s224 + $0x88] sm:$0xff] %vm3069, %v7300
      %7379 = vst [vmem:[%s224 + $0x90] sm:$0xff] %v7301
      %7380 = vst [vmem:[%s224 + $0x98] sm:$0xff] %v7302
      %7381 = vst [vmem:[%s224 + $0xa0] sm:$0xff] %v7303
      %7382 = vst [vmem:[%s224 + $0xa8] sm:$0xff] %v7304
      %7383 = vst [vmem:[%s224 + $0xb0] sm:$0xff] %v7305
      %7384 = vst.msk [vmem:[%s224 + $0xb8] sm:$0xff] %vm3069, %v7306
      %7385 = vst [vmem:[%s224 + $0xc0] sm:$0xff] %v7307
      %7386 = vst [vmem:[%s224 + $0xc8] sm:$0xff] %v7308
      %7387 = vst [vmem:[%s224 + $0xd0] sm:$0xff] %v7309
      %7388 = vst [vmem:[%s224 + $0xd8] sm:$0xff] %v7310
      %7389 = vst [vmem:[%s224 + $0xe0] sm:$0xff] %v7311
      %7390 = vst.msk [vmem:[%s224 + $0xe8] sm:$0xff] %vm3069, %v7312
      %7391 = vst [vmem:[%s224 + $0xf0] sm:$0xff] %v7313
      %7392 = vst [vmem:[%s224 + $0xf8] sm:$0xff] %v7314
      %7393 = vst [vmem:[%s224 + $0x100] sm:$0xff] %v7315
      %7394 = vst [vmem:[%s224 + $0x108] sm:$0xff] %v7316
      %7395 = vst [vmem:[%s224 + $0x110] sm:$0xff] %v7317
      %7396 = vst.msk [vmem:[%s224 + $0x118] sm:$0xff] %vm3069, %v7318
      %7397 = vst [vmem:[%s224 + $0x120] sm:$0xff] %v7319
      %7398 = vst [vmem:[%s224 + $0x128] sm:$0xff] %v7320
      %7399 = vst [vmem:[%s224 + $0x130] sm:$0xff] %v7321
      %7400 = vst [vmem:[%s224 + $0x138] sm:$0xff] %v7322
      %7401 = vst [vmem:[%s224 + $0x140] sm:$0xff] %v7323
      %7402 = vst.msk [vmem:[%s224 + $0x148] sm:$0xff] %vm3069, %v7324
      %7403 = vst [vmem:[%s224 + $0x150] sm:$0xff] %v7325
      %7404 = vst [vmem:[%s224 + $0x158] sm:$0xff] %v7326
      %7405 = vst [vmem:[%s224 + $0x160] sm:$0xff] %v7327
      %7406 = vst [vmem:[%s224 + $0x168] sm:$0xff] %v7328
      %7407 = vst [vmem:[%s224 + $0x170] sm:$0xff] %v7329
      %7408 = vst.msk [vmem:[%s224 + $0x178] sm:$0xff] %vm3069, %v7330
      %7409 = vst [vmem:[%s224 + $0x180] sm:$0xff] %v7331
      %7410 = vst [vmem:[%s224 + $0x188] sm:$0xff] %v7332
      %7411 = vst [vmem:[%s224 + $0x190] sm:$0xff] %v7333
      %7412 = vst [vmem:[%s224 + $0x198] sm:$0xff] %v7334
      %7413 = vst [vmem:[%s224 + $0x1a0] sm:$0xff] %v7335
      %7414 = vst.msk [vmem:[%s224 + $0x1a8] sm:$0xff] %vm3069, %v7336
      %7415 = vst [vmem:[%s224 + $0x1b0] sm:$0xff] %v7337
      %7416 = vst [vmem:[%s224 + $0x1b8] sm:$0xff] %v7338
      %7417 = vst [vmem:[%s224 + $0x1c0] sm:$0xff] %v7339
      %7418 = vst [vmem:[%s224 + $0x1c8] sm:$0xff] %v7340
      %7419 = vst [vmem:[%s224 + $0x1d0] sm:$0xff] %v7341
      %7420 = vst.msk [vmem:[%s224 + $0x1d8] sm:$0xff] %vm3069, %v7342
      %7421 = vst [vmem:[%s224 + $0x1e0] sm:$0xff] %v7343
      %7422 = vst [vmem:[%s224 + $0x1e8] sm:$0xff] %v7344
      %7423 = vst [vmem:[%s224 + $0x1f0] sm:$0xff] %v7345
      %7424 = vst [vmem:[%s224 + $0x1f8] sm:$0xff] %v7346
      %7425 = vst [vmem:[%s224 + $0x200] sm:$0xff] %v7347
      %7426 = vst.msk [vmem:[%s224 + $0x208] sm:$0xff] %vm3069, %v7348
      %7427 = vst [vmem:[%s224 + $0x210] sm:$0xff] %v7349
      %7428 = vst [vmem:[%s224 + $0x218] sm:$0xff] %v7350
      %7429 = vst [vmem:[%s224 + $0x220] sm:$0xff] %v7351
      %7430 = vst [vmem:[%s224 + $0x228] sm:$0xff] %v7352
      %7431 = vst [vmem:[%s224 + $0x230] sm:$0xff] %v7353
      %7432 = vst.msk [vmem:[%s224 + $0x238] sm:$0xff] %vm3069, %v7354
      %7433 = vst [vmem:[%s224 + $0x240] sm:$0x1f] %v7355
      %7434 = vst [vmem:[%s224 + $0x248] sm:$0x1f] %v7356
      %7435 = vst [vmem:[%s224 + $0x250] sm:$0x1f] %v7357
      %7436 = vst [vmem:[%s224 + $0x258] sm:$0x1f] %v7358
      %7437 = vst [vmem:[%s224 + $0x260] sm:$0x1f] %v7359
      %7438 = vst.msk [vmem:[%s224 + $0x268] sm:$0x1f] %vm4829, %v7360
      %v7439 = vld [vmem:[%s224] sm:$0xff]
      %v7440 = vld [vmem:[%s224 + $0x8] sm:$0xff]
      %v7441 = vld [vmem:[%s224 + $0x10] sm:$0xff]
      %v7442 = vld [vmem:[%s224 + $0x18] sm:$0xff]
      %v7443 = vld [vmem:[%s224 + $0x20] sm:$0xff]
      %v7444 = vld [vmem:[%s224 + $0x28] sm:$0xff]
      %v7445 = vld [vmem:[%s224 + $0x30] sm:$0xff]
      %v7446 = vld [vmem:[%s224 + $0x38] sm:$0xff]
      %v7447 = vld [vmem:[%s224 + $0x40] sm:$0xff]
      %v7448 = vld [vmem:[%s224 + $0x48] sm:$0xff]
      %v7449 = vld [vmem:[%s224 + $0x50] sm:$0xff]
      %v7450 = vld [vmem:[%s224 + $0x58] sm:$0xff]
      %v7451 = vld [vmem:[%s224 + $0x60] sm:$0xff]
      %v7452 = vld [vmem:[%s224 + $0x68] sm:$0xff]
      %v7453 = vld [vmem:[%s224 + $0x70] sm:$0xff]
      %v7454 = vld [vmem:[%s224 + $0x78] sm:$0xff]
      %v7455 = vld [vmem:[%s224 + $0x80] sm:$0xff]
      %v7456 = vld [vmem:[%s224 + $0x88] sm:$0xff]
      %v7457 = vld [vmem:[%s224 + $0x90] sm:$0xff]
      %v7458 = vld [vmem:[%s224 + $0x98] sm:$0xff]
      %v7459 = vld [vmem:[%s224 + $0xa0] sm:$0xff]
      %v7460 = vld [vmem:[%s224 + $0xa8] sm:$0xff]
      %v7461 = vld [vmem:[%s224 + $0xb0] sm:$0xff]
      %v7462 = vld [vmem:[%s224 + $0xb8] sm:$0xff]
      %v7463 = vld [vmem:[%s224 + $0xc0] sm:$0xff]
      %v7464 = vld [vmem:[%s224 + $0xc8] sm:$0xff]
      %v7465 = vld [vmem:[%s224 + $0xd0] sm:$0xff]
      %v7466 = vld [vmem:[%s224 + $0xd8] sm:$0xff]
      %v7467 = vld [vmem:[%s224 + $0xe0] sm:$0xff]
      %v7468 = vld [vmem:[%s224 + $0xe8] sm:$0xff]
      %v7469 = vld [vmem:[%s224 + $0xf0] sm:$0xff]
      %v7470 = vld [vmem:[%s224 + $0xf8] sm:$0xff]
      %v7471 = vld [vmem:[%s224 + $0x100] sm:$0xff]
      %v7472 = vld [vmem:[%s224 + $0x108] sm:$0xff]
      %v7473 = vld [vmem:[%s224 + $0x110] sm:$0xff]
      %v7474 = vld [vmem:[%s224 + $0x118] sm:$0xff]
      %v7475 = vld [vmem:[%s224 + $0x120] sm:$0xff]
      %v7476 = vld [vmem:[%s224 + $0x128] sm:$0xff]
      %v7477 = vld [vmem:[%s224 + $0x130] sm:$0xff]
      %v7478 = vld [vmem:[%s224 + $0x138] sm:$0xff]
      %v7479 = vld [vmem:[%s224 + $0x140] sm:$0xff]
      %v7480 = vld [vmem:[%s224 + $0x148] sm:$0xff]
      %v7481 = vld [vmem:[%s224 + $0x150] sm:$0xff]
      %v7482 = vld [vmem:[%s224 + $0x158] sm:$0xff]
      %v7483 = vld [vmem:[%s224 + $0x160] sm:$0xff]
      %v7484 = vld [vmem:[%s224 + $0x168] sm:$0xff]
      %v7485 = vld [vmem:[%s224 + $0x170] sm:$0xff]
      %v7486 = vld [vmem:[%s224 + $0x178] sm:$0xff]
      %v7487 = vld [vmem:[%s224 + $0x180] sm:$0xff]
      %v7488 = vld [vmem:[%s224 + $0x188] sm:$0xff]
      %v7489 = vld [vmem:[%s224 + $0x190] sm:$0xff]
      %v7490 = vld [vmem:[%s224 + $0x198] sm:$0xff]
      %v7491 = vld [vmem:[%s224 + $0x1a0] sm:$0xff]
      %v7492 = vld [vmem:[%s224 + $0x1a8] sm:$0xff]
      %v7493 = vld [vmem:[%s224 + $0x1b0] sm:$0xff]
      %v7494 = vld [vmem:[%s224 + $0x1b8] sm:$0xff]
      %v7495 = vld [vmem:[%s224 + $0x1c0] sm:$0xff]
      %v7496 = vld [vmem:[%s224 + $0x1c8] sm:$0xff]
      %v7497 = vld [vmem:[%s224 + $0x1d0] sm:$0xff]
      %v7498 = vld [vmem:[%s224 + $0x1d8] sm:$0xff]
      %v7499 = vld [vmem:[%s224 + $0x1e0] sm:$0xff]
      %v7500 = vld [vmem:[%s224 + $0x1e8] sm:$0xff]
      %v7501 = vld [vmem:[%s224 + $0x1f0] sm:$0xff]
      %v7502 = vld [vmem:[%s224 + $0x1f8] sm:$0xff]
      %v7503 = vld [vmem:[%s224 + $0x200] sm:$0xff]
      %v7504 = vld [vmem:[%s224 + $0x208] sm:$0xff]
      %v7505 = vld [vmem:[%s224 + $0x210] sm:$0xff]
      %v7506 = vld [vmem:[%s224 + $0x218] sm:$0xff]
      %v7507 = vld [vmem:[%s224 + $0x220] sm:$0xff]
      %v7508 = vld [vmem:[%s224 + $0x228] sm:$0xff]
      %v7509 = vld [vmem:[%s224 + $0x230] sm:$0xff]
      %v7510 = vld [vmem:[%s224 + $0x238] sm:$0xff]
      %v7511 = vld [vmem:[%s224 + $0x240] sm:$0x1f]
      %v7512 = vld [vmem:[%s224 + $0x248] sm:$0x1f]
      %v7513 = vld [vmem:[%s224 + $0x250] sm:$0x1f]
      %v7514 = vld [vmem:[%s224 + $0x258] sm:$0x1f]
      %v7515 = vld [vmem:[%s224 + $0x260] sm:$0x1f]
      %v7516 = vld [vmem:[%s224 + $0x268] sm:$0x1f]
      %v7517 = vld [vmem:[#allocation2] sm:$0xc0]
      %v7518 = vld [vmem:[#allocation2 + $0x8] sm:$0xc0]
      %v7519 = vld [vmem:[#allocation2 + $0x10] sm:$0xc0]
      %v7520 = vld [vmem:[#allocation2 + $0x18] sm:$0xc0]
      %v7521 = vld [vmem:[#allocation2 + $0x20] sm:$0xc0]
      %v7522 = vld [vmem:[#allocation2 + $0x28] sm:$0xc0]
      %v7523 = vld [vmem:[#allocation2 + $0x30] sm:$0xff]
      %v7524 = vld [vmem:[#allocation2 + $0x38] sm:$0xff]
      %v7525 = vld [vmem:[#allocation2 + $0x40] sm:$0xff]
      %v7526 = vld [vmem:[#allocation2 + $0x48] sm:$0xff]
      %v7527 = vld [vmem:[#allocation2 + $0x50] sm:$0xff]
      %v7528 = vld [vmem:[#allocation2 + $0x58] sm:$0xff]
      %v7529 = vld [vmem:[#allocation2 + $0x60] sm:$0xff]
      %v7530 = vld [vmem:[#allocation2 + $0x68] sm:$0xff]
      %v7531 = vld [vmem:[#allocation2 + $0x70] sm:$0xff]
      %v7532 = vld [vmem:[#allocation2 + $0x78] sm:$0xff]
      %v7533 = vld [vmem:[#allocation2 + $0x80] sm:$0xff]
      %v7534 = vld [vmem:[#allocation2 + $0x88] sm:$0xff]
      %v7535 = vld [vmem:[#allocation2 + $0x90] sm:$0xff]
      %v7536 = vld [vmem:[#allocation2 + $0x98] sm:$0xff]
      %v7537 = vld [vmem:[#allocation2 + $0xa0] sm:$0xff]
      %v7538 = vld [vmem:[#allocation2 + $0xa8] sm:$0xff]
      %v7539 = vld [vmem:[#allocation2 + $0xb0] sm:$0xff]
      %v7540 = vld [vmem:[#allocation2 + $0xb8] sm:$0xff]
      %v7541 = vld [vmem:[#allocation2 + $0xc0] sm:$0xff]
      %v7542 = vld [vmem:[#allocation2 + $0xc8] sm:$0xff]
      %v7543 = vld [vmem:[#allocation2 + $0xd0] sm:$0xff]
      %v7544 = vld [vmem:[#allocation2 + $0xd8] sm:$0xff]
      %v7545 = vld [vmem:[#allocation2 + $0xe0] sm:$0xff]
      %v7546 = vld [vmem:[#allocation2 + $0xe8] sm:$0xff]
      %v7547 = vld [vmem:[#allocation2 + $0xf0] sm:$0xff]
      %v7548 = vld [vmem:[#allocation2 + $0xf8] sm:$0xff]
      %v7549 = vld [vmem:[#allocation2 + $0x100] sm:$0xff]
      %v7550 = vld [vmem:[#allocation2 + $0x108] sm:$0xff]
      %v7551 = vld [vmem:[#allocation2 + $0x110] sm:$0xff]
      %v7552 = vld [vmem:[#allocation2 + $0x118] sm:$0xff]
      %v7553 = vld [vmem:[#allocation2 + $0x120] sm:$0xff]
      %v7554 = vld [vmem:[#allocation2 + $0x128] sm:$0xff]
      %v7555 = vld [vmem:[#allocation2 + $0x130] sm:$0xff]
      %v7556 = vld [vmem:[#allocation2 + $0x138] sm:$0xff]
      %v7557 = vld [vmem:[#allocation2 + $0x140] sm:$0xff]
      %v7558 = vld [vmem:[#allocation2 + $0x148] sm:$0xff]
      %v7559 = vld [vmem:[#allocation2 + $0x150] sm:$0xff]
      %v7560 = vld [vmem:[#allocation2 + $0x158] sm:$0xff]
      %v7561 = vld [vmem:[#allocation2 + $0x160] sm:$0xff]
      %v7562 = vld [vmem:[#allocation2 + $0x168] sm:$0xff]
      %v7563 = vld [vmem:[#allocation2 + $0x170] sm:$0xff]
      %v7564 = vld [vmem:[#allocation2 + $0x178] sm:$0xff]
      %v7565 = vld [vmem:[#allocation2 + $0x180] sm:$0xff]
      %v7566 = vld [vmem:[#allocation2 + $0x188] sm:$0xff]
      %v7567 = vld [vmem:[#allocation2 + $0x190] sm:$0xff]
      %v7568 = vld [vmem:[#allocation2 + $0x198] sm:$0xff]
      %v7569 = vld [vmem:[#allocation2 + $0x1a0] sm:$0xff]
      %v7570 = vld [vmem:[#allocation2 + $0x1a8] sm:$0xff]
      %v7571 = vld [vmem:[#allocation2 + $0x1b0] sm:$0xff]
      %v7572 = vld [vmem:[#allocation2 + $0x1b8] sm:$0xff]
      %v7573 = vld [vmem:[#allocation2 + $0x1c0] sm:$0xff]
      %v7574 = vld [vmem:[#allocation2 + $0x1c8] sm:$0xff]
      %v7575 = vld [vmem:[#allocation2 + $0x1d0] sm:$0xff]
      %v7576 = vld [vmem:[#allocation2 + $0x1d8] sm:$0xff]
      %v7577 = vld [vmem:[#allocation2 + $0x1e0] sm:$0xff]
      %v7578 = vld [vmem:[#allocation2 + $0x1e8] sm:$0xff]
      %v7579 = vld [vmem:[#allocation2 + $0x1f0] sm:$0xff]
      %v7580 = vld [vmem:[#allocation2 + $0x1f8] sm:$0xff]
      %v7581 = vld [vmem:[#allocation2 + $0x200] sm:$0xff]
      %v7582 = vld [vmem:[#allocation2 + $0x208] sm:$0xff]
      %v7583 = vld [vmem:[#allocation2 + $0x210] sm:$0xff]
      %v7584 = vld [vmem:[#allocation2 + $0x218] sm:$0xff]
      %v7585 = vld [vmem:[#allocation2 + $0x220] sm:$0xff]
      %v7586 = vld [vmem:[#allocation2 + $0x228] sm:$0xff]
      %v7587 = vld [vmem:[#allocation2 + $0x230] sm:$0xff]
      %v7588 = vld [vmem:[#allocation2 + $0x238] sm:$0xff]
      %v7589 = vld [vmem:[#allocation2 + $0x240] sm:$0xff]
      %v7590 = vld [vmem:[#allocation2 + $0x248] sm:$0xff]
      %v7591 = vld [vmem:[#allocation2 + $0x250] sm:$0xff]
      %v7592 = vld [vmem:[#allocation2 + $0x258] sm:$0xff]
      %v7593 = vld [vmem:[#allocation2 + $0x260] sm:$0xff]
      %v7594 = vld [vmem:[#allocation2 + $0x268] sm:$0xff]
      %v7595 = vld [vmem:[#allocation2 + $0x270] sm:$0x7]
      %v7596 = vld [vmem:[#allocation2 + $0x278] sm:$0x7]
      %v7597 = vld [vmem:[#allocation2 + $0x280] sm:$0x7]
      %v7598 = vld [vmem:[#allocation2 + $0x288] sm:$0x7]
      %v7599 = vld [vmem:[#allocation2 + $0x290] sm:$0x7]
      %v7600 = vld [vmem:[#allocation2 + $0x298] sm:$0x7]
      %v7685 = vrot.slane %v7517, 6
      %v7686 = vrot.slane %v7523, 6
      %v7687 = vsel %vm2414, %v7685, %v7686
      %v7688 = vrot.slane %v7518, 6
      %v7689 = vrot.slane %v7524, 6
      %v7690 = vsel %vm2414, %v7688, %v7689
      %v7691 = vrot.slane %v7519, 6
      %v7692 = vrot.slane %v7525, 6
      %v7693 = vsel %vm2414, %v7691, %v7692
      %v7694 = vrot.slane %v7520, 6
      %v7695 = vrot.slane %v7526, 6
      %v7696 = vsel %vm2414, %v7694, %v7695
      %v7697 = vrot.slane %v7521, 6
      %v7698 = vrot.slane %v7527, 6
      %v7699 = vsel %vm2414, %v7697, %v7698
      %v7700 = vrot.slane %v7522, 6
      %v7701 = vrot.slane %v7528, 6
      %v7702 = vsel %vm2414, %v7700, %v7701
      %v7703 = vrot.slane %v7529, 6
      %v7704 = vsel %vm2414, %v7686, %v7703
      %v7705 = vrot.slane %v7530, 6
      %v7706 = vsel %vm2414, %v7689, %v7705
      %v7707 = vrot.slane %v7531, 6
      %v7708 = vsel %vm2414, %v7692, %v7707
      %v7709 = vrot.slane %v7532, 6
      %v7710 = vsel %vm2414, %v7695, %v7709
      %v7711 = vrot.slane %v7533, 6
      %v7712 = vsel %vm2414, %v7698, %v7711
      %v7713 = vrot.slane %v7534, 6
      %v7714 = vsel %vm2414, %v7701, %v7713
      %v7715 = vrot.slane %v7535, 6
      %v7716 = vsel %vm2414, %v7703, %v7715
      %v7717 = vrot.slane %v7536, 6
      %v7718 = vsel %vm2414, %v7705, %v7717
      %v7719 = vrot.slane %v7537, 6
      %v7720 = vsel %vm2414, %v7707, %v7719
      %v7721 = vrot.slane %v7538, 6
      %v7722 = vsel %vm2414, %v7709, %v7721
      %v7723 = vrot.slane %v7539, 6
      %v7724 = vsel %vm2414, %v7711, %v7723
      %v7725 = vrot.slane %v7540, 6
      %v7726 = vsel %vm2414, %v7713, %v7725
      %v7727 = vrot.slane %v7541, 6
      %v7728 = vsel %vm2414, %v7715, %v7727
      %v7729 = vrot.slane %v7542, 6
      %v7730 = vsel %vm2414, %v7717, %v7729
      %v7731 = vrot.slane %v7543, 6
      %v7732 = vsel %vm2414, %v7719, %v7731
      %v7733 = vrot.slane %v7544, 6
      %v7734 = vsel %vm2414, %v7721, %v7733
      %v7735 = vrot.slane %v7545, 6
      %v7736 = vsel %vm2414, %v7723, %v7735
      %v7737 = vrot.slane %v7546, 6
      %v7738 = vsel %vm2414, %v7725, %v7737
      %v7739 = vrot.slane %v7547, 6
      %v7740 = vsel %vm2414, %v7727, %v7739
      %v7741 = vrot.slane %v7548, 6
      %v7742 = vsel %vm2414, %v7729, %v7741
      %v7743 = vrot.slane %v7549, 6
      %v7744 = vsel %vm2414, %v7731, %v7743
      %v7745 = vrot.slane %v7550, 6
      %v7746 = vsel %vm2414, %v7733, %v7745
      %v7747 = vrot.slane %v7551, 6
      %v7748 = vsel %vm2414, %v7735, %v7747
      %v7749 = vrot.slane %v7552, 6
      %v7750 = vsel %vm2414, %v7737, %v7749
      %v7751 = vrot.slane %v7553, 6
      %v7752 = vsel %vm2414, %v7739, %v7751
      %v7753 = vrot.slane %v7554, 6
      %v7754 = vsel %vm2414, %v7741, %v7753
      %v7755 = vrot.slane %v7555, 6
      %v7756 = vsel %vm2414, %v7743, %v7755
      %v7757 = vrot.slane %v7556, 6
      %v7758 = vsel %vm2414, %v7745, %v7757
      %v7759 = vrot.slane %v7557, 6
      %v7760 = vsel %vm2414, %v7747, %v7759
      %v7761 = vrot.slane %v7558, 6
      %v7762 = vsel %vm2414, %v7749, %v7761
      %v7763 = vrot.slane %v7559, 6
      %v7764 = vsel %vm2414, %v7751, %v7763
      %v7765 = vrot.slane %v7560, 6
      %v7766 = vsel %vm2414, %v7753, %v7765
      %v7767 = vrot.slane %v7561, 6
      %v7768 = vsel %vm2414, %v7755, %v7767
      %v7769 = vrot.slane %v7562, 6
      %v7770 = vsel %vm2414, %v7757, %v7769
      %v7771 = vrot.slane %v7563, 6
      %v7772 = vsel %vm2414, %v7759, %v7771
      %v7773 = vrot.slane %v7564, 6
      %v7774 = vsel %vm2414, %v7761, %v7773
      %v7775 = vrot.slane %v7565, 6
      %v7776 = vsel %vm2414, %v7763, %v7775
      %v7777 = vrot.slane %v7566, 6
      %v7778 = vsel %vm2414, %v7765, %v7777
      %v7779 = vrot.slane %v7567, 6
      %v7780 = vsel %vm2414, %v7767, %v7779
      %v7781 = vrot.slane %v7568, 6
      %v7782 = vsel %vm2414, %v7769, %v7781
      %v7783 = vrot.slane %v7569, 6
      %v7784 = vsel %vm2414, %v7771, %v7783
      %v7785 = vrot.slane %v7570, 6
      %v7786 = vsel %vm2414, %v7773, %v7785
      %v7787 = vrot.slane %v7571, 6
      %v7788 = vsel %vm2414, %v7775, %v7787
      %v7789 = vrot.slane %v7572, 6
      %v7790 = vsel %vm2414, %v7777, %v7789
      %v7791 = vrot.slane %v7573, 6
      %v7792 = vsel %vm2414, %v7779, %v7791
      %v7793 = vrot.slane %v7574, 6
      %v7794 = vsel %vm2414, %v7781, %v7793
      %v7795 = vrot.slane %v7575, 6
      %v7796 = vsel %vm2414, %v7783, %v7795
      %v7797 = vrot.slane %v7576, 6
      %v7798 = vsel %vm2414, %v7785, %v7797
      %v7799 = vrot.slane %v7577, 6
      %v7800 = vsel %vm2414, %v7787, %v7799
      %v7801 = vrot.slane %v7578, 6
      %v7802 = vsel %vm2414, %v7789, %v7801
      %v7803 = vrot.slane %v7579, 6
      %v7804 = vsel %vm2414, %v7791, %v7803
      %v7805 = vrot.slane %v7580, 6
      %v7806 = vsel %vm2414, %v7793, %v7805
      %v7807 = vrot.slane %v7581, 6
      %v7808 = vsel %vm2414, %v7795, %v7807
      %v7809 = vrot.slane %v7582, 6
      %v7810 = vsel %vm2414, %v7797, %v7809
      %v7811 = vrot.slane %v7583, 6
      %v7812 = vsel %vm2414, %v7799, %v7811
      %v7813 = vrot.slane %v7584, 6
      %v7814 = vsel %vm2414, %v7801, %v7813
      %v7815 = vrot.slane %v7585, 6
      %v7816 = vsel %vm2414, %v7803, %v7815
      %v7817 = vrot.slane %v7586, 6
      %v7818 = vsel %vm2414, %v7805, %v7817
      %v7819 = vrot.slane %v7587, 6
      %v7820 = vsel %vm2414, %v7807, %v7819
      %v7821 = vrot.slane %v7588, 6
      %v7822 = vsel %vm2414, %v7809, %v7821
      %v7823 = vrot.slane %v7589, 6
      %v7824 = vsel %vm2414, %v7811, %v7823
      %v7825 = vrot.slane %v7590, 6
      %v7826 = vsel %vm2414, %v7813, %v7825
      %v7827 = vrot.slane %v7591, 6
      %v7828 = vsel %vm2414, %v7815, %v7827
      %v7829 = vrot.slane %v7592, 6
      %v7830 = vsel %vm2414, %v7817, %v7829
      %v7831 = vrot.slane %v7593, 6
      %v7832 = vsel %vm2414, %v7819, %v7831
      %v7833 = vrot.slane %v7594, 6
      %v7834 = vsel %vm2414, %v7821, %v7833
      %v7835 = vrot.slane %v7595, 6
      %v7836 = vsel %vm2414, %v7823, %v7835
      %v7837 = vrot.slane %v7596, 6
      %v7838 = vsel %vm2414, %v7825, %v7837
      %v7839 = vrot.slane %v7597, 6
      %v7840 = vsel %vm2414, %v7827, %v7839
      %v7841 = vrot.slane %v7598, 6
      %v7842 = vsel %vm2414, %v7829, %v7841
      %v7843 = vrot.slane %v7599, 6
      %v7844 = vsel %vm2414, %v7831, %v7843
      %v7845 = vrot.slane %v7600, 6
      %v7846 = vsel %vm2414, %v7833, %v7845
      %7925 = vrot.lane.b32.xlu0 %v7687, 6
      %v7926 = vpop.permute.xlu0 %7925
      %7927 = vrot.lane.b32.xlu0 %v7704, 6
      %v7928 = vpop.permute.xlu0 %7927
      %7929 = vrot.lane.b32.xlu0 %v7716, 6
      %v7930 = vpop.permute.xlu0 %7929
      %7931 = vrot.lane.b32.xlu0 %v7728, 6
      %v7932 = vpop.permute.xlu0 %7931
      %7933 = vrot.lane.b32.xlu0 %v7740, 6
      %v7934 = vpop.permute.xlu0 %7933
      %7935 = vrot.lane.b32.xlu0 %v7752, 6
      %v7936 = vpop.permute.xlu0 %7935
      %7937 = vrot.lane.b32.xlu0 %v7764, 6
      %v7938 = vpop.permute.xlu0 %7937
      %7939 = vrot.lane.b32.xlu0 %v7776, 6
      %v7940 = vpop.permute.xlu0 %7939
      %7941 = vrot.lane.b32.xlu0 %v7788, 6
      %v7942 = vpop.permute.xlu0 %7941
      %7943 = vrot.lane.b32.xlu0 %v7800, 6
      %v7944 = vpop.permute.xlu0 %7943
      %7945 = vrot.lane.b32.xlu0 %v7812, 6
      %v7946 = vpop.permute.xlu0 %7945
      %7947 = vrot.lane.b32.xlu0 %v7824, 6
      %v7948 = vpop.permute.xlu0 %7947
      %7949 = vrot.lane.b32.xlu0 %v7836, 6
      %v7950 = vpop.permute.xlu0 %7949
      %7951 = vrot.lane.b32.xlu0 %v7690, 6
      %v7952 = vpop.permute.xlu0 %7951
      %7953 = vrot.lane.b32.xlu0 %v7706, 6
      %v7954 = vpop.permute.xlu0 %7953
      %7955 = vrot.lane.b32.xlu0 %v7718, 6
      %v7956 = vpop.permute.xlu0 %7955
      %7957 = vrot.lane.b32.xlu0 %v7730, 6
      %v7958 = vpop.permute.xlu0 %7957
      %7959 = vrot.lane.b32.xlu0 %v7742, 6
      %v7960 = vpop.permute.xlu0 %7959
      %7961 = vrot.lane.b32.xlu0 %v7754, 6
      %v7962 = vpop.permute.xlu0 %7961
      %7963 = vrot.lane.b32.xlu0 %v7766, 6
      %v7964 = vpop.permute.xlu0 %7963
      %7965 = vrot.lane.b32.xlu0 %v7778, 6
      %v7966 = vpop.permute.xlu0 %7965
      %7967 = vrot.lane.b32.xlu0 %v7790, 6
      %v7968 = vpop.permute.xlu0 %7967
      %7969 = vrot.lane.b32.xlu0 %v7802, 6
      %v7970 = vpop.permute.xlu0 %7969
      %7971 = vrot.lane.b32.xlu0 %v7814, 6
      %v7972 = vpop.permute.xlu0 %7971
      %7973 = vrot.lane.b32.xlu0 %v7826, 6
      %v7974 = vpop.permute.xlu0 %7973
      %7975 = vrot.lane.b32.xlu0 %v7838, 6
      %v7976 = vpop.permute.xlu0 %7975
      %7977 = vrot.lane.b32.xlu0 %v7693, 6
      %v7978 = vpop.permute.xlu0 %7977
      %7979 = vrot.lane.b32.xlu0 %v7708, 6
      %v7980 = vpop.permute.xlu0 %7979
      %7981 = vrot.lane.b32.xlu0 %v7720, 6
      %v7982 = vpop.permute.xlu0 %7981
      %7983 = vrot.lane.b32.xlu0 %v7732, 6
      %v7984 = vpop.permute.xlu0 %7983
      %7985 = vrot.lane.b32.xlu0 %v7744, 6
      %v7986 = vpop.permute.xlu0 %7985
      %7987 = vrot.lane.b32.xlu0 %v7756, 6
      %v7988 = vpop.permute.xlu0 %7987
      %7989 = vrot.lane.b32.xlu0 %v7768, 6
      %v7990 = vpop.permute.xlu0 %7989
      %7991 = vrot.lane.b32.xlu0 %v7780, 6
      %v7992 = vpop.permute.xlu0 %7991
      %7993 = vrot.lane.b32.xlu0 %v7792, 6
      %v7994 = vpop.permute.xlu0 %7993
      %7995 = vrot.lane.b32.xlu0 %v7804, 6
      %v7996 = vpop.permute.xlu0 %7995
      %7997 = vrot.lane.b32.xlu0 %v7816, 6
      %v7998 = vpop.permute.xlu0 %7997
      %7999 = vrot.lane.b32.xlu0 %v7828, 6
      %v8000 = vpop.permute.xlu0 %7999
      %8001 = vrot.lane.b32.xlu0 %v7840, 6
      %v8002 = vpop.permute.xlu0 %8001
      %8003 = vrot.lane.b32.xlu0 %v7696, 6
      %v8004 = vpop.permute.xlu0 %8003
      %8005 = vrot.lane.b32.xlu0 %v7710, 6
      %v8006 = vpop.permute.xlu0 %8005
      %8007 = vrot.lane.b32.xlu0 %v7722, 6
      %v8008 = vpop.permute.xlu0 %8007
      %8009 = vrot.lane.b32.xlu0 %v7734, 6
      %v8010 = vpop.permute.xlu0 %8009
      %8011 = vrot.lane.b32.xlu0 %v7746, 6
      %v8012 = vpop.permute.xlu0 %8011
      %8013 = vrot.lane.b32.xlu0 %v7758, 6
      %v8014 = vpop.permute.xlu0 %8013
      %8015 = vrot.lane.b32.xlu0 %v7770, 6
      %v8016 = vpop.permute.xlu0 %8015
      %8017 = vrot.lane.b32.xlu0 %v7782, 6
      %v8018 = vpop.permute.xlu0 %8017
      %8019 = vrot.lane.b32.xlu0 %v7794, 6
      %v8020 = vpop.permute.xlu0 %8019
      %8021 = vrot.lane.b32.xlu0 %v7806, 6
      %v8022 = vpop.permute.xlu0 %8021
      %8023 = vrot.lane.b32.xlu0 %v7818, 6
      %v8024 = vpop.permute.xlu0 %8023
      %8025 = vrot.lane.b32.xlu0 %v7830, 6
      %v8026 = vpop.permute.xlu0 %8025
      %8027 = vrot.lane.b32.xlu0 %v7842, 6
      %v8028 = vpop.permute.xlu0 %8027
      %8029 = vrot.lane.b32.xlu0 %v7699, 6
      %v8030 = vpop.permute.xlu0 %8029
      %8031 = vrot.lane.b32.xlu0 %v7712, 6
      %v8032 = vpop.permute.xlu0 %8031
      %8033 = vrot.lane.b32.xlu0 %v7724, 6
      %v8034 = vpop.permute.xlu0 %8033
      %8035 = vrot.lane.b32.xlu0 %v7736, 6
      %v8036 = vpop.permute.xlu0 %8035
      %8037 = vrot.lane.b32.xlu0 %v7748, 6
      %v8038 = vpop.permute.xlu0 %8037
      %8039 = vrot.lane.b32.xlu0 %v7760, 6
      %v8040 = vpop.permute.xlu0 %8039
      %8041 = vrot.lane.b32.xlu0 %v7772, 6
      %v8042 = vpop.permute.xlu0 %8041
      %8043 = vrot.lane.b32.xlu0 %v7784, 6
      %v8044 = vpop.permute.xlu0 %8043
      %8045 = vrot.lane.b32.xlu0 %v7796, 6
      %v8046 = vpop.permute.xlu0 %8045
      %8047 = vrot.lane.b32.xlu0 %v7808, 6
      %v8048 = vpop.permute.xlu0 %8047
      %8049 = vrot.lane.b32.xlu0 %v7820, 6
      %v8050 = vpop.permute.xlu0 %8049
      %8051 = vrot.lane.b32.xlu0 %v7832, 6
      %v8052 = vpop.permute.xlu0 %8051
      %8053 = vrot.lane.b32.xlu0 %v7844, 6
      %v8054 = vpop.permute.xlu0 %8053
      %8055 = vrot.lane.b32.xlu0 %v7702, 6
      %v8056 = vpop.permute.xlu0 %8055
      %8057 = vrot.lane.b32.xlu0 %v7714, 6
      %v8058 = vpop.permute.xlu0 %8057
      %8059 = vrot.lane.b32.xlu0 %v7726, 6
      %v8060 = vpop.permute.xlu0 %8059
      %8061 = vrot.lane.b32.xlu0 %v7738, 6
      %v8062 = vpop.permute.xlu0 %8061
      %8063 = vrot.lane.b32.xlu0 %v7750, 6
      %v8064 = vpop.permute.xlu0 %8063
      %8065 = vrot.lane.b32.xlu0 %v7762, 6
      %v8066 = vpop.permute.xlu0 %8065
      %8067 = vrot.lane.b32.xlu0 %v7774, 6
      %v8068 = vpop.permute.xlu0 %8067
      %8069 = vrot.lane.b32.xlu0 %v7786, 6
      %v8070 = vpop.permute.xlu0 %8069
      %8071 = vrot.lane.b32.xlu0 %v7798, 6
      %v8072 = vpop.permute.xlu0 %8071
      %8073 = vrot.lane.b32.xlu0 %v7810, 6
      %v8074 = vpop.permute.xlu0 %8073
      %8075 = vrot.lane.b32.xlu0 %v7822, 6
      %v8076 = vpop.permute.xlu0 %8075
      %8077 = vrot.lane.b32.xlu0 %v7834, 6
      %v8078 = vpop.permute.xlu0 %8077
      %8079 = vrot.lane.b32.xlu0 %v7846, 6
      %v8080 = vpop.permute.xlu0 %8079
      %vm8081 = vcmp.lt.s32.totalorder %v4594, 6
      %v8082 = vsel %vm8081, %v8030, %v8056
      %v8083 = vsel %vm8081, %v8032, %v8058
      %v8084 = vsel %vm8081, %v8034, %v8060
      %v8085 = vsel %vm8081, %v8036, %v8062
      %v8086 = vsel %vm8081, %v8038, %v8064
      %v8087 = vsel %vm8081, %v8040, %v8066
      %v8088 = vsel %vm8081, %v8042, %v8068
      %v8089 = vsel %vm8081, %v8044, %v8070
      %v8090 = vsel %vm8081, %v8046, %v8072
      %v8091 = vsel %vm8081, %v8048, %v8074
      %v8092 = vsel %vm8081, %v8050, %v8076
      %v8093 = vsel %vm8081, %v8052, %v8078
      %v8094 = vsel %vm8081, %v8054, %v8080
      %v8095 = vsel %vm8081, %v8004, %v8030
      %v8096 = vsel %vm8081, %v8006, %v8032
      %v8097 = vsel %vm8081, %v8008, %v8034
      %v8098 = vsel %vm8081, %v8010, %v8036
      %v8099 = vsel %vm8081, %v8012, %v8038
      %v8100 = vsel %vm8081, %v8014, %v8040
      %v8101 = vsel %vm8081, %v8016, %v8042
      %v8102 = vsel %vm8081, %v8018, %v8044
      %v8103 = vsel %vm8081, %v8020, %v8046
      %v8104 = vsel %vm8081, %v8022, %v8048
      %v8105 = vsel %vm8081, %v8024, %v8050
      %v8106 = vsel %vm8081, %v8026, %v8052
      %v8107 = vsel %vm8081, %v8028, %v8054
      %v8108 = vsel %vm8081, %v7978, %v8004
      %v8109 = vsel %vm8081, %v7980, %v8006
      %v8110 = vsel %vm8081, %v7982, %v8008
      %v8111 = vsel %vm8081, %v7984, %v8010
      %v8112 = vsel %vm8081, %v7986, %v8012
      %v8113 = vsel %vm8081, %v7988, %v8014
      %v8114 = vsel %vm8081, %v7990, %v8016
      %v8115 = vsel %vm8081, %v7992, %v8018
      %v8116 = vsel %vm8081, %v7994, %v8020
      %v8117 = vsel %vm8081, %v7996, %v8022
      %v8118 = vsel %vm8081, %v7998, %v8024
      %v8119 = vsel %vm8081, %v8000, %v8026
      %v8120 = vsel %vm8081, %v8002, %v8028
      %v8121 = vsel %vm8081, %v7952, %v7978
      %v8122 = vsel %vm8081, %v7954, %v7980
      %v8123 = vsel %vm8081, %v7956, %v7982
      %v8124 = vsel %vm8081, %v7958, %v7984
      %v8125 = vsel %vm8081, %v7960, %v7986
      %v8126 = vsel %vm8081, %v7962, %v7988
      %v8127 = vsel %vm8081, %v7964, %v7990
      %v8128 = vsel %vm8081, %v7966, %v7992
      %v8129 = vsel %vm8081, %v7968, %v7994
      %v8130 = vsel %vm8081, %v7970, %v7996
      %v8131 = vsel %vm8081, %v7972, %v7998
      %v8132 = vsel %vm8081, %v7974, %v8000
      %v8133 = vsel %vm8081, %v7976, %v8002
      %v8134 = vsel %vm8081, %v7926, %v7952
      %v8135 = vsel %vm8081, %v7928, %v7954
      %v8136 = vsel %vm8081, %v7930, %v7956
      %v8137 = vsel %vm8081, %v7932, %v7958
      %v8138 = vsel %vm8081, %v7934, %v7960
      %v8139 = vsel %vm8081, %v7936, %v7962
      %v8140 = vsel %vm8081, %v7938, %v7964
      %v8141 = vsel %vm8081, %v7940, %v7966
      %v8142 = vsel %vm8081, %v7942, %v7968
      %v8143 = vsel %vm8081, %v7944, %v7970
      %v8144 = vsel %vm8081, %v7946, %v7972
      %v8145 = vsel %vm8081, %v7948, %v7974
      %v8146 = vsel %vm8081, %v7950, %v7976
      %v8147 = vsel %vm8081, %v8056, %v7926
      %v8148 = vsel %vm8081, %v8058, %v7928
      %v8149 = vsel %vm8081, %v8060, %v7930
      %v8150 = vsel %vm8081, %v8062, %v7932
      %v8151 = vsel %vm8081, %v8064, %v7934
      %v8152 = vsel %vm8081, %v8066, %v7936
      %v8153 = vsel %vm8081, %v8068, %v7938
      %v8154 = vsel %vm8081, %v8070, %v7940
      %v8155 = vsel %vm8081, %v8072, %v7942
      %v8156 = vsel %vm8081, %v8074, %v7944
      %v8157 = vsel %vm8081, %v8076, %v7946
      %v8158 = vsel %vm8081, %v8078, %v7948
      %v8159 = vsel %vm8081, %v8080, %v7950
      %v8160 = vld [vmem:[#allocation2] sm:$0x80]
      %v8161 = vld [vmem:[#allocation2 + $0x8] sm:$0x80]
      %v8162 = vld [vmem:[#allocation2 + $0x10] sm:$0x80]
      %v8163 = vld [vmem:[#allocation2 + $0x18] sm:$0x80]
      %v8164 = vld [vmem:[#allocation2 + $0x20] sm:$0x80]
      %v8165 = vld [vmem:[#allocation2 + $0x28] sm:$0x80]
      %v8166 = vld [vmem:[#allocation2 + $0x270] sm:$0xf]
      %v8167 = vld [vmem:[#allocation2 + $0x278] sm:$0xf]
      %v8168 = vld [vmem:[#allocation2 + $0x280] sm:$0xf]
      %v8169 = vld [vmem:[#allocation2 + $0x288] sm:$0xf]
      %v8170 = vld [vmem:[#allocation2 + $0x290] sm:$0xf]
      %v8171 = vld [vmem:[#allocation2 + $0x298] sm:$0xf]
      %v8184 = vrot.slane %v8160, 7
      %v8185 = vrot.slane %v7523, 7
      %v8186 = vsel %vm2457, %v8184, %v8185
      %v8187 = vrot.slane %v8161, 7
      %v8188 = vrot.slane %v7524, 7
      %v8189 = vsel %vm2457, %v8187, %v8188
      %v8190 = vrot.slane %v8162, 7
      %v8191 = vrot.slane %v7525, 7
      %v8192 = vsel %vm2457, %v8190, %v8191
      %v8193 = vrot.slane %v8163, 7
      %v8194 = vrot.slane %v7526, 7
      %v8195 = vsel %vm2457, %v8193, %v8194
      %v8196 = vrot.slane %v8164, 7
      %v8197 = vrot.slane %v7527, 7
      %v8198 = vsel %vm2457, %v8196, %v8197
      %v8199 = vrot.slane %v8165, 7
      %v8200 = vrot.slane %v7528, 7
      %v8201 = vsel %vm2457, %v8199, %v8200
      %v8202 = vrot.slane %v7529, 7
      %v8203 = vsel %vm2457, %v8185, %v8202
      %v8204 = vrot.slane %v7530, 7
      %v8205 = vsel %vm2457, %v8188, %v8204
      %v8206 = vrot.slane %v7531, 7
      %v8207 = vsel %vm2457, %v8191, %v8206
      %v8208 = vrot.slane %v7532, 7
      %v8209 = vsel %vm2457, %v8194, %v8208
      %v8210 = vrot.slane %v7533, 7
      %v8211 = vsel %vm2457, %v8197, %v8210
      %v8212 = vrot.slane %v7534, 7
      %v8213 = vsel %vm2457, %v8200, %v8212
      %v8214 = vrot.slane %v7535, 7
      %v8215 = vsel %vm2457, %v8202, %v8214
      %v8216 = vrot.slane %v7536, 7
      %v8217 = vsel %vm2457, %v8204, %v8216
      %v8218 = vrot.slane %v7537, 7
      %v8219 = vsel %vm2457, %v8206, %v8218
      %v8220 = vrot.slane %v7538, 7
      %v8221 = vsel %vm2457, %v8208, %v8220
      %v8222 = vrot.slane %v7539, 7
      %v8223 = vsel %vm2457, %v8210, %v8222
      %v8224 = vrot.slane %v7540, 7
      %v8225 = vsel %vm2457, %v8212, %v8224
      %v8226 = vrot.slane %v7541, 7
      %v8227 = vsel %vm2457, %v8214, %v8226
      %v8228 = vrot.slane %v7542, 7
      %v8229 = vsel %vm2457, %v8216, %v8228
      %v8230 = vrot.slane %v7543, 7
      %v8231 = vsel %vm2457, %v8218, %v8230
      %v8232 = vrot.slane %v7544, 7
      %v8233 = vsel %vm2457, %v8220, %v8232
      %v8234 = vrot.slane %v7545, 7
      %v8235 = vsel %vm2457, %v8222, %v8234
      %v8236 = vrot.slane %v7546, 7
      %v8237 = vsel %vm2457, %v8224, %v8236
      %v8238 = vrot.slane %v7547, 7
      %v8239 = vsel %vm2457, %v8226, %v8238
      %v8240 = vrot.slane %v7548, 7
      %v8241 = vsel %vm2457, %v8228, %v8240
      %v8242 = vrot.slane %v7549, 7
      %v8243 = vsel %vm2457, %v8230, %v8242
      %v8244 = vrot.slane %v7550, 7
      %v8245 = vsel %vm2457, %v8232, %v8244
      %v8246 = vrot.slane %v7551, 7
      %v8247 = vsel %vm2457, %v8234, %v8246
      %v8248 = vrot.slane %v7552, 7
      %v8249 = vsel %vm2457, %v8236, %v8248
      %v8250 = vrot.slane %v7553, 7
      %v8251 = vsel %vm2457, %v8238, %v8250
      %v8252 = vrot.slane %v7554, 7
      %v8253 = vsel %vm2457, %v8240, %v8252
      %v8254 = vrot.slane %v7555, 7
      %v8255 = vsel %vm2457, %v8242, %v8254
      %v8256 = vrot.slane %v7556, 7
      %v8257 = vsel %vm2457, %v8244, %v8256
      %v8258 = vrot.slane %v7557, 7
      %v8259 = vsel %vm2457, %v8246, %v8258
      %v8260 = vrot.slane %v7558, 7
      %v8261 = vsel %vm2457, %v8248, %v8260
      %v8262 = vrot.slane %v7559, 7
      %v8263 = vsel %vm2457, %v8250, %v8262
      %v8264 = vrot.slane %v7560, 7
      %v8265 = vsel %vm2457, %v8252, %v8264
      %v8266 = vrot.slane %v7561, 7
      %v8267 = vsel %vm2457, %v8254, %v8266
      %v8268 = vrot.slane %v7562, 7
      %v8269 = vsel %vm2457, %v8256, %v8268
      %v8270 = vrot.slane %v7563, 7
      %v8271 = vsel %vm2457, %v8258, %v8270
      %v8272 = vrot.slane %v7564, 7
      %v8273 = vsel %vm2457, %v8260, %v8272
      %v8274 = vrot.slane %v7565, 7
      %v8275 = vsel %vm2457, %v8262, %v8274
      %v8276 = vrot.slane %v7566, 7
      %v8277 = vsel %vm2457, %v8264, %v8276
      %v8278 = vrot.slane %v7567, 7
      %v8279 = vsel %vm2457, %v8266, %v8278
      %v8280 = vrot.slane %v7568, 7
      %v8281 = vsel %vm2457, %v8268, %v8280
      %v8282 = vrot.slane %v7569, 7
      %v8283 = vsel %vm2457, %v8270, %v8282
      %v8284 = vrot.slane %v7570, 7
      %v8285 = vsel %vm2457, %v8272, %v8284
      %v8286 = vrot.slane %v7571, 7
      %v8287 = vsel %vm2457, %v8274, %v8286
      %v8288 = vrot.slane %v7572, 7
      %v8289 = vsel %vm2457, %v8276, %v8288
      %v8290 = vrot.slane %v7573, 7
      %v8291 = vsel %vm2457, %v8278, %v8290
      %v8292 = vrot.slane %v7574, 7
      %v8293 = vsel %vm2457, %v8280, %v8292
      %v8294 = vrot.slane %v7575, 7
      %v8295 = vsel %vm2457, %v8282, %v8294
      %v8296 = vrot.slane %v7576, 7
      %v8297 = vsel %vm2457, %v8284, %v8296
      %v8298 = vrot.slane %v7577, 7
      %v8299 = vsel %vm2457, %v8286, %v8298
      %v8300 = vrot.slane %v7578, 7
      %v8301 = vsel %vm2457, %v8288, %v8300
      %v8302 = vrot.slane %v7579, 7
      %v8303 = vsel %vm2457, %v8290, %v8302
      %v8304 = vrot.slane %v7580, 7
      %v8305 = vsel %vm2457, %v8292, %v8304
      %v8306 = vrot.slane %v7581, 7
      %v8307 = vsel %vm2457, %v8294, %v8306
      %v8308 = vrot.slane %v7582, 7
      %v8309 = vsel %vm2457, %v8296, %v8308
      %v8310 = vrot.slane %v7583, 7
      %v8311 = vsel %vm2457, %v8298, %v8310
      %v8312 = vrot.slane %v7584, 7
      %v8313 = vsel %vm2457, %v8300, %v8312
      %v8314 = vrot.slane %v7585, 7
      %v8315 = vsel %vm2457, %v8302, %v8314
      %v8316 = vrot.slane %v7586, 7
      %v8317 = vsel %vm2457, %v8304, %v8316
      %v8318 = vrot.slane %v7587, 7
      %v8319 = vsel %vm2457, %v8306, %v8318
      %v8320 = vrot.slane %v7588, 7
      %v8321 = vsel %vm2457, %v8308, %v8320
      %v8322 = vrot.slane %v7589, 7
      %v8323 = vsel %vm2457, %v8310, %v8322
      %v8324 = vrot.slane %v7590, 7
      %v8325 = vsel %vm2457, %v8312, %v8324
      %v8326 = vrot.slane %v7591, 7
      %v8327 = vsel %vm2457, %v8314, %v8326
      %v8328 = vrot.slane %v7592, 7
      %v8329 = vsel %vm2457, %v8316, %v8328
      %v8330 = vrot.slane %v7593, 7
      %v8331 = vsel %vm2457, %v8318, %v8330
      %v8332 = vrot.slane %v7594, 7
      %v8333 = vsel %vm2457, %v8320, %v8332
      %v8334 = vrot.slane %v8166, 7
      %v8335 = vsel %vm2457, %v8322, %v8334
      %v8336 = vrot.slane %v8167, 7
      %v8337 = vsel %vm2457, %v8324, %v8336
      %v8338 = vrot.slane %v8168, 7
      %v8339 = vsel %vm2457, %v8326, %v8338
      %v8340 = vrot.slane %v8169, 7
      %v8341 = vsel %vm2457, %v8328, %v8340
      %v8342 = vrot.slane %v8170, 7
      %v8343 = vsel %vm2457, %v8330, %v8342
      %v8344 = vrot.slane %v8171, 7
      %v8345 = vsel %vm2457, %v8332, %v8344
      %8424 = vrot.lane.b32.xlu0 %v8186, 7
      %v8425 = vpop.permute.xlu0 %8424
      %8426 = vrot.lane.b32.xlu0 %v8203, 7
      %v8427 = vpop.permute.xlu0 %8426
      %8428 = vrot.lane.b32.xlu0 %v8215, 7
      %v8429 = vpop.permute.xlu0 %8428
      %8430 = vrot.lane.b32.xlu0 %v8227, 7
      %v8431 = vpop.permute.xlu0 %8430
      %8432 = vrot.lane.b32.xlu0 %v8239, 7
      %v8433 = vpop.permute.xlu0 %8432
      %8434 = vrot.lane.b32.xlu0 %v8251, 7
      %v8435 = vpop.permute.xlu0 %8434
      %8436 = vrot.lane.b32.xlu0 %v8263, 7
      %v8437 = vpop.permute.xlu0 %8436
      %8438 = vrot.lane.b32.xlu0 %v8275, 7
      %v8439 = vpop.permute.xlu0 %8438
      %8440 = vrot.lane.b32.xlu0 %v8287, 7
      %v8441 = vpop.permute.xlu0 %8440
      %8442 = vrot.lane.b32.xlu0 %v8299, 7
      %v8443 = vpop.permute.xlu0 %8442
      %8444 = vrot.lane.b32.xlu0 %v8311, 7
      %v8445 = vpop.permute.xlu0 %8444
      %8446 = vrot.lane.b32.xlu0 %v8323, 7
      %v8447 = vpop.permute.xlu0 %8446
      %8448 = vrot.lane.b32.xlu0 %v8335, 7
      %v8449 = vpop.permute.xlu0 %8448
      %8450 = vrot.lane.b32.xlu0 %v8189, 7
      %v8451 = vpop.permute.xlu0 %8450
      %8452 = vrot.lane.b32.xlu0 %v8205, 7
      %v8453 = vpop.permute.xlu0 %8452
      %8454 = vrot.lane.b32.xlu0 %v8217, 7
      %v8455 = vpop.permute.xlu0 %8454
      %8456 = vrot.lane.b32.xlu0 %v8229, 7
      %v8457 = vpop.permute.xlu0 %8456
      %8458 = vrot.lane.b32.xlu0 %v8241, 7
      %v8459 = vpop.permute.xlu0 %8458
      %8460 = vrot.lane.b32.xlu0 %v8253, 7
      %v8461 = vpop.permute.xlu0 %8460
      %8462 = vrot.lane.b32.xlu0 %v8265, 7
      %v8463 = vpop.permute.xlu0 %8462
      %8464 = vrot.lane.b32.xlu0 %v8277, 7
      %v8465 = vpop.permute.xlu0 %8464
      %8466 = vrot.lane.b32.xlu0 %v8289, 7
      %v8467 = vpop.permute.xlu0 %8466
      %8468 = vrot.lane.b32.xlu0 %v8301, 7
      %v8469 = vpop.permute.xlu0 %8468
      %8470 = vrot.lane.b32.xlu0 %v8313, 7
      %v8471 = vpop.permute.xlu0 %8470
      %8472 = vrot.lane.b32.xlu0 %v8325, 7
      %v8473 = vpop.permute.xlu0 %8472
      %8474 = vrot.lane.b32.xlu0 %v8337, 7
      %v8475 = vpop.permute.xlu0 %8474
      %8476 = vrot.lane.b32.xlu0 %v8192, 7
      %v8477 = vpop.permute.xlu0 %8476
      %8478 = vrot.lane.b32.xlu0 %v8207, 7
      %v8479 = vpop.permute.xlu0 %8478
      %8480 = vrot.lane.b32.xlu0 %v8219, 7
      %v8481 = vpop.permute.xlu0 %8480
      %8482 = vrot.lane.b32.xlu0 %v8231, 7
      %v8483 = vpop.permute.xlu0 %8482
      %8484 = vrot.lane.b32.xlu0 %v8243, 7
      %v8485 = vpop.permute.xlu0 %8484
      %8486 = vrot.lane.b32.xlu0 %v8255, 7
      %v8487 = vpop.permute.xlu0 %8486
      %8488 = vrot.lane.b32.xlu0 %v8267, 7
      %v8489 = vpop.permute.xlu0 %8488
      %8490 = vrot.lane.b32.xlu0 %v8279, 7
      %v8491 = vpop.permute.xlu0 %8490
      %8492 = vrot.lane.b32.xlu0 %v8291, 7
      %v8493 = vpop.permute.xlu0 %8492
      %8494 = vrot.lane.b32.xlu0 %v8303, 7
      %v8495 = vpop.permute.xlu0 %8494
      %8496 = vrot.lane.b32.xlu0 %v8315, 7
      %v8497 = vpop.permute.xlu0 %8496
      %8498 = vrot.lane.b32.xlu0 %v8327, 7
      %v8499 = vpop.permute.xlu0 %8498
      %8500 = vrot.lane.b32.xlu0 %v8339, 7
      %v8501 = vpop.permute.xlu0 %8500
      %8502 = vrot.lane.b32.xlu0 %v8195, 7
      %v8503 = vpop.permute.xlu0 %8502
      %8504 = vrot.lane.b32.xlu0 %v8209, 7
      %v8505 = vpop.permute.xlu0 %8504
      %8506 = vrot.lane.b32.xlu0 %v8221, 7
      %v8507 = vpop.permute.xlu0 %8506
      %8508 = vrot.lane.b32.xlu0 %v8233, 7
      %v8509 = vpop.permute.xlu0 %8508
      %8510 = vrot.lane.b32.xlu0 %v8245, 7
      %v8511 = vpop.permute.xlu0 %8510
      %8512 = vrot.lane.b32.xlu0 %v8257, 7
      %v8513 = vpop.permute.xlu0 %8512
      %8514 = vrot.lane.b32.xlu0 %v8269, 7
      %v8515 = vpop.permute.xlu0 %8514
      %8516 = vrot.lane.b32.xlu0 %v8281, 7
      %v8517 = vpop.permute.xlu0 %8516
      %8518 = vrot.lane.b32.xlu0 %v8293, 7
      %v8519 = vpop.permute.xlu0 %8518
      %8520 = vrot.lane.b32.xlu0 %v8305, 7
      %v8521 = vpop.permute.xlu0 %8520
      %8522 = vrot.lane.b32.xlu0 %v8317, 7
      %v8523 = vpop.permute.xlu0 %8522
      %8524 = vrot.lane.b32.xlu0 %v8329, 7
      %v8525 = vpop.permute.xlu0 %8524
      %8526 = vrot.lane.b32.xlu0 %v8341, 7
      %v8527 = vpop.permute.xlu0 %8526
      %8528 = vrot.lane.b32.xlu0 %v8198, 7
      %v8529 = vpop.permute.xlu0 %8528
      %8530 = vrot.lane.b32.xlu0 %v8211, 7
      %v8531 = vpop.permute.xlu0 %8530
      %8532 = vrot.lane.b32.xlu0 %v8223, 7
      %v8533 = vpop.permute.xlu0 %8532
      %8534 = vrot.lane.b32.xlu0 %v8235, 7
      %v8535 = vpop.permute.xlu0 %8534
      %8536 = vrot.lane.b32.xlu0 %v8247, 7
      %v8537 = vpop.permute.xlu0 %8536
      %8538 = vrot.lane.b32.xlu0 %v8259, 7
      %v8539 = vpop.permute.xlu0 %8538
      %8540 = vrot.lane.b32.xlu0 %v8271, 7
      %v8541 = vpop.permute.xlu0 %8540
      %8542 = vrot.lane.b32.xlu0 %v8283, 7
      %v8543 = vpop.permute.xlu0 %8542
      %8544 = vrot.lane.b32.xlu0 %v8295, 7
      %v8545 = vpop.permute.xlu0 %8544
      %8546 = vrot.lane.b32.xlu0 %v8307, 7
      %v8547 = vpop.permute.xlu0 %8546
      %8548 = vrot.lane.b32.xlu0 %v8319, 7
      %v8549 = vpop.permute.xlu0 %8548
      %8550 = vrot.lane.b32.xlu0 %v8331, 7
      %v8551 = vpop.permute.xlu0 %8550
      %8552 = vrot.lane.b32.xlu0 %v8343, 7
      %v8553 = vpop.permute.xlu0 %8552
      %8554 = vrot.lane.b32.xlu0 %v8201, 7
      %v8555 = vpop.permute.xlu0 %8554
      %8556 = vrot.lane.b32.xlu0 %v8213, 7
      %v8557 = vpop.permute.xlu0 %8556
      %8558 = vrot.lane.b32.xlu0 %v8225, 7
      %v8559 = vpop.permute.xlu0 %8558
      %8560 = vrot.lane.b32.xlu0 %v8237, 7
      %v8561 = vpop.permute.xlu0 %8560
      %8562 = vrot.lane.b32.xlu0 %v8249, 7
      %v8563 = vpop.permute.xlu0 %8562
      %8564 = vrot.lane.b32.xlu0 %v8261, 7
      %v8565 = vpop.permute.xlu0 %8564
      %8566 = vrot.lane.b32.xlu0 %v8273, 7
      %v8567 = vpop.permute.xlu0 %8566
      %8568 = vrot.lane.b32.xlu0 %v8285, 7
      %v8569 = vpop.permute.xlu0 %8568
      %8570 = vrot.lane.b32.xlu0 %v8297, 7
      %v8571 = vpop.permute.xlu0 %8570
      %8572 = vrot.lane.b32.xlu0 %v8309, 7
      %v8573 = vpop.permute.xlu0 %8572
      %8574 = vrot.lane.b32.xlu0 %v8321, 7
      %v8575 = vpop.permute.xlu0 %8574
      %8576 = vrot.lane.b32.xlu0 %v8333, 7
      %v8577 = vpop.permute.xlu0 %8576
      %8578 = vrot.lane.b32.xlu0 %v8345, 7
      %v8579 = vpop.permute.xlu0 %8578
      %vm8580 = vcmp.lt.s32.totalorder %v4594, 7
      %v8581 = vsel %vm8580, %v8529, %v8555
      %v8582 = vsel %vm8580, %v8531, %v8557
      %v8583 = vsel %vm8580, %v8533, %v8559
      %v8584 = vsel %vm8580, %v8535, %v8561
      %v8585 = vsel %vm8580, %v8537, %v8563
      %v8586 = vsel %vm8580, %v8539, %v8565
      %v8587 = vsel %vm8580, %v8541, %v8567
      %v8588 = vsel %vm8580, %v8543, %v8569
      %v8589 = vsel %vm8580, %v8545, %v8571
      %v8590 = vsel %vm8580, %v8547, %v8573
      %v8591 = vsel %vm8580, %v8549, %v8575
      %v8592 = vsel %vm8580, %v8551, %v8577
      %v8593 = vsel %vm8580, %v8553, %v8579
      %v8594 = vsel %vm8580, %v8503, %v8529
      %v8595 = vsel %vm8580, %v8505, %v8531
      %v8596 = vsel %vm8580, %v8507, %v8533
      %v8597 = vsel %vm8580, %v8509, %v8535
      %v8598 = vsel %vm8580, %v8511, %v8537
      %v8599 = vsel %vm8580, %v8513, %v8539
      %v8600 = vsel %vm8580, %v8515, %v8541
      %v8601 = vsel %vm8580, %v8517, %v8543
      %v8602 = vsel %vm8580, %v8519, %v8545
      %v8603 = vsel %vm8580, %v8521, %v8547
      %v8604 = vsel %vm8580, %v8523, %v8549
      %v8605 = vsel %vm8580, %v8525, %v8551
      %v8606 = vsel %vm8580, %v8527, %v8553
      %v8607 = vsel %vm8580, %v8477, %v8503
      %v8608 = vsel %vm8580, %v8479, %v8505
      %v8609 = vsel %vm8580, %v8481, %v8507
      %v8610 = vsel %vm8580, %v8483, %v8509
      %v8611 = vsel %vm8580, %v8485, %v8511
      %v8612 = vsel %vm8580, %v8487, %v8513
      %v8613 = vsel %vm8580, %v8489, %v8515
      %v8614 = vsel %vm8580, %v8491, %v8517
      %v8615 = vsel %vm8580, %v8493, %v8519
      %v8616 = vsel %vm8580, %v8495, %v8521
      %v8617 = vsel %vm8580, %v8497, %v8523
      %v8618 = vsel %vm8580, %v8499, %v8525
      %v8619 = vsel %vm8580, %v8501, %v8527
      %v8620 = vsel %vm8580, %v8451, %v8477
      %v8621 = vsel %vm8580, %v8453, %v8479
      %v8622 = vsel %vm8580, %v8455, %v8481
      %v8623 = vsel %vm8580, %v8457, %v8483
      %v8624 = vsel %vm8580, %v8459, %v8485
      %v8625 = vsel %vm8580, %v8461, %v8487
      %v8626 = vsel %vm8580, %v8463, %v8489
      %v8627 = vsel %vm8580, %v8465, %v8491
      %v8628 = vsel %vm8580, %v8467, %v8493
      %v8629 = vsel %vm8580, %v8469, %v8495
      %v8630 = vsel %vm8580, %v8471, %v8497
      %v8631 = vsel %vm8580, %v8473, %v8499
      %v8632 = vsel %vm8580, %v8475, %v8501
      %v8633 = vsel %vm8580, %v8425, %v8451
      %v8634 = vsel %vm8580, %v8427, %v8453
      %v8635 = vsel %vm8580, %v8429, %v8455
      %v8636 = vsel %vm8580, %v8431, %v8457
      %v8637 = vsel %vm8580, %v8433, %v8459
      %v8638 = vsel %vm8580, %v8435, %v8461
      %v8639 = vsel %vm8580, %v8437, %v8463
      %v8640 = vsel %vm8580, %v8439, %v8465
      %v8641 = vsel %vm8580, %v8441, %v8467
      %v8642 = vsel %vm8580, %v8443, %v8469
      %v8643 = vsel %vm8580, %v8445, %v8471
      %v8644 = vsel %vm8580, %v8447, %v8473
      %v8645 = vsel %vm8580, %v8449, %v8475
      %v8646 = vsel %vm8580, %v8555, %v8425
      %v8647 = vsel %vm8580, %v8557, %v8427
      %v8648 = vsel %vm8580, %v8559, %v8429
      %v8649 = vsel %vm8580, %v8561, %v8431
      %v8650 = vsel %vm8580, %v8563, %v8433
      %v8651 = vsel %vm8580, %v8565, %v8435
      %v8652 = vsel %vm8580, %v8567, %v8437
      %v8653 = vsel %vm8580, %v8569, %v8439
      %v8654 = vsel %vm8580, %v8571, %v8441
      %v8655 = vsel %vm8580, %v8573, %v8443
      %v8656 = vsel %vm8580, %v8575, %v8445
      %v8657 = vsel %vm8580, %v8577, %v8447
      %v8658 = vsel %vm8580, %v8579, %v8449
      %v8659 = vadd.f32 %v8147, %v8646
      %v8660 = vadd.f32 %v8134, %v8633
      %v8661 = vadd.f32 %v8121, %v8620
      %v8662 = vadd.f32 %v8108, %v8607
      %v8663 = vadd.f32 %v8095, %v8594
      %v8664 = vadd.f32 %v8082, %v8581
      %v8665 = vadd.f32 %v8148, %v8647
      %v8666 = vadd.f32 %v8135, %v8634
      %v8667 = vadd.f32 %v8122, %v8621
      %v8668 = vadd.f32 %v8109, %v8608
      %v8669 = vadd.f32 %v8096, %v8595
      %v8670 = vadd.f32 %v8083, %v8582
      %v8671 = vadd.f32 %v8149, %v8648
      %v8672 = vadd.f32 %v8136, %v8635
      %v8673 = vadd.f32 %v8123, %v8622
      %v8674 = vadd.f32 %v8110, %v8609
      %v8675 = vadd.f32 %v8097, %v8596
      %v8676 = vadd.f32 %v8084, %v8583
      %v8677 = vadd.f32 %v8150, %v8649
      %v8678 = vadd.f32 %v8137, %v8636
      %v8679 = vadd.f32 %v8124, %v8623
      %v8680 = vadd.f32 %v8111, %v8610
      %v8681 = vadd.f32 %v8098, %v8597
      %v8682 = vadd.f32 %v8085, %v8584
      %v8683 = vadd.f32 %v8151, %v8650
      %v8684 = vadd.f32 %v8138, %v8637
      %v8685 = vadd.f32 %v8125, %v8624
      %v8686 = vadd.f32 %v8112, %v8611
      %v8687 = vadd.f32 %v8099, %v8598
      %v8688 = vadd.f32 %v8086, %v8585
      %v8689 = vadd.f32 %v8152, %v8651
      %v8690 = vadd.f32 %v8139, %v8638
      %v8691 = vadd.f32 %v8126, %v8625
      %v8692 = vadd.f32 %v8113, %v8612
      %v8693 = vadd.f32 %v8100, %v8599
      %v8694 = vadd.f32 %v8087, %v8586
      %v8695 = vadd.f32 %v8153, %v8652
      %v8696 = vadd.f32 %v8140, %v8639
      %v8697 = vadd.f32 %v8127, %v8626
      %v8698 = vadd.f32 %v8114, %v8613
      %v8699 = vadd.f32 %v8101, %v8600
      %v8700 = vadd.f32 %v8088, %v8587
      %v8701 = vadd.f32 %v8154, %v8653
      %v8702 = vadd.f32 %v8141, %v8640
      %v8703 = vadd.f32 %v8128, %v8627
      %v8704 = vadd.f32 %v8115, %v8614
      %v8705 = vadd.f32 %v8102, %v8601
      %v8706 = vadd.f32 %v8089, %v8588
      %v8707 = vadd.f32 %v8155, %v8654
      %v8708 = vadd.f32 %v8142, %v8641
      %v8709 = vadd.f32 %v8129, %v8628
      %v8710 = vadd.f32 %v8116, %v8615
      %v8711 = vadd.f32 %v8103, %v8602
      %v8712 = vadd.f32 %v8090, %v8589
      %v8713 = vadd.f32 %v8156, %v8655
      %v8714 = vadd.f32 %v8143, %v8642
      %v8715 = vadd.f32 %v8130, %v8629
      %v8716 = vadd.f32 %v8117, %v8616
      %v8717 = vadd.f32 %v8104, %v8603
      %v8718 = vadd.f32 %v8091, %v8590
      %v8719 = vadd.f32 %v8157, %v8656
      %v8720 = vadd.f32 %v8144, %v8643
      %v8721 = vadd.f32 %v8131, %v8630
      %v8722 = vadd.f32 %v8118, %v8617
      %v8723 = vadd.f32 %v8105, %v8604
      %v8724 = vadd.f32 %v8092, %v8591
      %v8725 = vadd.f32 %v8158, %v8657
      %v8726 = vadd.f32 %v8145, %v8644
      %v8727 = vadd.f32 %v8132, %v8631
      %v8728 = vadd.f32 %v8119, %v8618
      %v8729 = vadd.f32 %v8106, %v8605
      %v8730 = vadd.f32 %v8093, %v8592
      %v8731 = vadd.f32 %v8159, %v8658
      %v8732 = vadd.f32 %v8146, %v8645
      %v8733 = vadd.f32 %v8133, %v8632
      %v8734 = vadd.f32 %v8120, %v8619
      %v8735 = vadd.f32 %v8107, %v8606
      %v8736 = vadd.f32 %v8094, %v8593
      %v8737 = vadd.f32 %v7439, %v8659
      %v8738 = vadd.f32 %v7440, %v8660
      %v8739 = vadd.f32 %v7441, %v8661
      %v8740 = vadd.f32 %v7442, %v8662
      %v8741 = vadd.f32 %v7443, %v8663
      %v8742 = vadd.f32 %v7444, %v8664
      %v8743 = vadd.f32 %v7445, %v8665
      %v8744 = vadd.f32 %v7446, %v8666
      %v8745 = vadd.f32 %v7447, %v8667
      %v8746 = vadd.f32 %v7448, %v8668
      %v8747 = vadd.f32 %v7449, %v8669
      %v8748 = vadd.f32 %v7450, %v8670
      %v8749 = vadd.f32 %v7451, %v8671
      %v8750 = vadd.f32 %v7452, %v8672
      %v8751 = vadd.f32 %v7453, %v8673
      %v8752 = vadd.f32 %v7454, %v8674
      %v8753 = vadd.f32 %v7455, %v8675
      %v8754 = vadd.f32 %v7456, %v8676
      %v8755 = vadd.f32 %v7457, %v8677
      %v8756 = vadd.f32 %v7458, %v8678
      %v8757 = vadd.f32 %v7459, %v8679
      %v8758 = vadd.f32 %v7460, %v8680
      %v8759 = vadd.f32 %v7461, %v8681
      %v8760 = vadd.f32 %v7462, %v8682
      %v8761 = vadd.f32 %v7463, %v8683
      %v8762 = vadd.f32 %v7464, %v8684
      %v8763 = vadd.f32 %v7465, %v8685
      %v8764 = vadd.f32 %v7466, %v8686
      %v8765 = vadd.f32 %v7467, %v8687
      %v8766 = vadd.f32 %v7468, %v8688
      %v8767 = vadd.f32 %v7469, %v8689
      %v8768 = vadd.f32 %v7470, %v8690
      %v8769 = vadd.f32 %v7471, %v8691
      %v8770 = vadd.f32 %v7472, %v8692
      %v8771 = vadd.f32 %v7473, %v8693
      %v8772 = vadd.f32 %v7474, %v8694
      %v8773 = vadd.f32 %v7475, %v8695
      %v8774 = vadd.f32 %v7476, %v8696
      %v8775 = vadd.f32 %v7477, %v8697
      %v8776 = vadd.f32 %v7478, %v8698
      %v8777 = vadd.f32 %v7479, %v8699
      %v8778 = vadd.f32 %v7480, %v8700
      %v8779 = vadd.f32 %v7481, %v8701
      %v8780 = vadd.f32 %v7482, %v8702
      %v8781 = vadd.f32 %v7483, %v8703
      %v8782 = vadd.f32 %v7484, %v8704
      %v8783 = vadd.f32 %v7485, %v8705
      %v8784 = vadd.f32 %v7486, %v8706
      %v8785 = vadd.f32 %v7487, %v8707
      %v8786 = vadd.f32 %v7488, %v8708
      %v8787 = vadd.f32 %v7489, %v8709
      %v8788 = vadd.f32 %v7490, %v8710
      %v8789 = vadd.f32 %v7491, %v8711
      %v8790 = vadd.f32 %v7492, %v8712
      %v8791 = vadd.f32 %v7493, %v8713
      %v8792 = vadd.f32 %v7494, %v8714
      %v8793 = vadd.f32 %v7495, %v8715
      %v8794 = vadd.f32 %v7496, %v8716
      %v8795 = vadd.f32 %v7497, %v8717
      %v8796 = vadd.f32 %v7498, %v8718
      %v8797 = vadd.f32 %v7499, %v8719
      %v8798 = vadd.f32 %v7500, %v8720
      %v8799 = vadd.f32 %v7501, %v8721
      %v8800 = vadd.f32 %v7502, %v8722
      %v8801 = vadd.f32 %v7503, %v8723
      %v8802 = vadd.f32 %v7504, %v8724
      %v8803 = vadd.f32 %v7505, %v8725
      %v8804 = vadd.f32 %v7506, %v8726
      %v8805 = vadd.f32 %v7507, %v8727
      %v8806 = vadd.f32 %v7508, %v8728
      %v8807 = vadd.f32 %v7509, %v8729
      %v8808 = vadd.f32 %v7510, %v8730
      %v8809 = vadd.f32 %v7511, %v8731
      %v8810 = vadd.f32 %v7512, %v8732
      %v8811 = vadd.f32 %v7513, %v8733
      %v8812 = vadd.f32 %v7514, %v8734
      %v8813 = vadd.f32 %v7515, %v8735
      %v8814 = vadd.f32 %v7516, %v8736
      %8815 = vst [vmem:[%s224] sm:$0xff] %v8737
      %8816 = vst [vmem:[%s224 + $0x8] sm:$0xff] %v8738
      %8817 = vst [vmem:[%s224 + $0x10] sm:$0xff] %v8739
      %8818 = vst [vmem:[%s224 + $0x18] sm:$0xff] %v8740
      %8819 = vst [vmem:[%s224 + $0x20] sm:$0xff] %v8741
      %8820 = vst.msk [vmem:[%s224 + $0x28] sm:$0xff] %vm3069, %v8742
      %8821 = vst [vmem:[%s224 + $0x30] sm:$0xff] %v8743
      %8822 = vst [vmem:[%s224 + $0x38] sm:$0xff] %v8744
      %8823 = vst [vmem:[%s224 + $0x40] sm:$0xff] %v8745
      %8824 = vst [vmem:[%s224 + $0x48] sm:$0xff] %v8746
      %8825 = vst [vmem:[%s224 + $0x50] sm:$0xff] %v8747
      %8826 = vst.msk [vmem:[%s224 + $0x58] sm:$0xff] %vm3069, %v8748
      %8827 = vst [vmem:[%s224 + $0x60] sm:$0xff] %v8749
      %8828 = vst [vmem:[%s224 + $0x68] sm:$0xff] %v8750
      %8829 = vst [vmem:[%s224 + $0x70] sm:$0xff] %v8751
      %8830 = vst [vmem:[%s224 + $0x78] sm:$0xff] %v8752
      %8831 = vst [vmem:[%s224 + $0x80] sm:$0xff] %v8753
      %8832 = vst.msk [vmem:[%s224 + $0x88] sm:$0xff] %vm3069, %v8754
      %8833 = vst [vmem:[%s224 + $0x90] sm:$0xff] %v8755
      %8834 = vst [vmem:[%s224 + $0x98] sm:$0xff] %v8756
      %8835 = vst [vmem:[%s224 + $0xa0] sm:$0xff] %v8757
      %8836 = vst [vmem:[%s224 + $0xa8] sm:$0xff] %v8758
      %8837 = vst [vmem:[%s224 + $0xb0] sm:$0xff] %v8759
      %8838 = vst.msk [vmem:[%s224 + $0xb8] sm:$0xff] %vm3069, %v8760
      %8839 = vst [vmem:[%s224 + $0xc0] sm:$0xff] %v8761
      %8840 = vst [vmem:[%s224 + $0xc8] sm:$0xff] %v8762
      %8841 = vst [vmem:[%s224 + $0xd0] sm:$0xff] %v8763
      %8842 = vst [vmem:[%s224 + $0xd8] sm:$0xff] %v8764
      %8843 = vst [vmem:[%s224 + $0xe0] sm:$0xff] %v8765
      %8844 = vst.msk [vmem:[%s224 + $0xe8] sm:$0xff] %vm3069, %v8766
      %8845 = vst [vmem:[%s224 + $0xf0] sm:$0xff] %v8767
      %8846 = vst [vmem:[%s224 + $0xf8] sm:$0xff] %v8768
      %8847 = vst [vmem:[%s224 + $0x100] sm:$0xff] %v8769
      %8848 = vst [vmem:[%s224 + $0x108] sm:$0xff] %v8770
      %8849 = vst [vmem:[%s224 + $0x110] sm:$0xff] %v8771
      %8850 = vst.msk [vmem:[%s224 + $0x118] sm:$0xff] %vm3069, %v8772
      %8851 = vst [vmem:[%s224 + $0x120] sm:$0xff] %v8773
      %8852 = vst [vmem:[%s224 + $0x128] sm:$0xff] %v8774
      %8853 = vst [vmem:[%s224 + $0x130] sm:$0xff] %v8775
      %8854 = vst [vmem:[%s224 + $0x138] sm:$0xff] %v8776
      %8855 = vst [vmem:[%s224 + $0x140] sm:$0xff] %v8777
      %8856 = vst.msk [vmem:[%s224 + $0x148] sm:$0xff] %vm3069, %v8778
      %8857 = vst [vmem:[%s224 + $0x150] sm:$0xff] %v8779
      %8858 = vst [vmem:[%s224 + $0x158] sm:$0xff] %v8780
      %8859 = vst [vmem:[%s224 + $0x160] sm:$0xff] %v8781
      %8860 = vst [vmem:[%s224 + $0x168] sm:$0xff] %v8782
      %8861 = vst [vmem:[%s224 + $0x170] sm:$0xff] %v8783
      %8862 = vst.msk [vmem:[%s224 + $0x178] sm:$0xff] %vm3069, %v8784
      %8863 = vst [vmem:[%s224 + $0x180] sm:$0xff] %v8785
      %8864 = vst [vmem:[%s224 + $0x188] sm:$0xff] %v8786
      %8865 = vst [vmem:[%s224 + $0x190] sm:$0xff] %v8787
      %8866 = vst [vmem:[%s224 + $0x198] sm:$0xff] %v8788
      %8867 = vst [vmem:[%s224 + $0x1a0] sm:$0xff] %v8789
      %8868 = vst.msk [vmem:[%s224 + $0x1a8] sm:$0xff] %vm3069, %v8790
      %8869 = vst [vmem:[%s224 + $0x1b0] sm:$0xff] %v8791
      %8870 = vst [vmem:[%s224 + $0x1b8] sm:$0xff] %v8792
      %8871 = vst [vmem:[%s224 + $0x1c0] sm:$0xff] %v8793
      %8872 = vst [vmem:[%s224 + $0x1c8] sm:$0xff] %v8794
      %8873 = vst [vmem:[%s224 + $0x1d0] sm:$0xff] %v8795
      %8874 = vst.msk [vmem:[%s224 + $0x1d8] sm:$0xff] %vm3069, %v8796
      %8875 = vst [vmem:[%s224 + $0x1e0] sm:$0xff] %v8797
      %8876 = vst [vmem:[%s224 + $0x1e8] sm:$0xff] %v8798
      %8877 = vst [vmem:[%s224 + $0x1f0] sm:$0xff] %v8799
      %8878 = vst [vmem:[%s224 + $0x1f8] sm:$0xff] %v8800
      %8879 = vst [vmem:[%s224 + $0x200] sm:$0xff] %v8801
      %8880 = vst.msk [vmem:[%s224 + $0x208] sm:$0xff] %vm3069, %v8802
      %8881 = vst [vmem:[%s224 + $0x210] sm:$0xff] %v8803
      %8882 = vst [vmem:[%s224 + $0x218] sm:$0xff] %v8804
      %8883 = vst [vmem:[%s224 + $0x220] sm:$0xff] %v8805
      %8884 = vst [vmem:[%s224 + $0x228] sm:$0xff] %v8806
      %8885 = vst [vmem:[%s224 + $0x230] sm:$0xff] %v8807
      %8886 = vst.msk [vmem:[%s224 + $0x238] sm:$0xff] %vm3069, %v8808
      %8887 = vst [vmem:[%s224 + $0x240] sm:$0x1f] %v8809
      %8888 = vst [vmem:[%s224 + $0x248] sm:$0x1f] %v8810
      %8889 = vst [vmem:[%s224 + $0x250] sm:$0x1f] %v8811
      %8890 = vst [vmem:[%s224 + $0x258] sm:$0x1f] %v8812
      %8891 = vst [vmem:[%s224 + $0x260] sm:$0x1f] %v8813
      %8892 = vst.msk [vmem:[%s224 + $0x268] sm:$0x1f] %vm4829, %v8814
      %v8893 = vld [vmem:[%s224] sm:$0xff]
      %v8894 = vld [vmem:[%s224 + $0x8] sm:$0xff]
      %v8895 = vld [vmem:[%s224 + $0x10] sm:$0xff]
      %v8896 = vld [vmem:[%s224 + $0x18] sm:$0xff]
      %v8897 = vld [vmem:[%s224 + $0x20] sm:$0xff]
      %v8898 = vld [vmem:[%s224 + $0x28] sm:$0xff]
      %v8899 = vld [vmem:[%s224 + $0x30] sm:$0xff]
      %v8900 = vld [vmem:[%s224 + $0x38] sm:$0xff]
      %v8901 = vld [vmem:[%s224 + $0x40] sm:$0xff]
      %v8902 = vld [vmem:[%s224 + $0x48] sm:$0xff]
      %v8903 = vld [vmem:[%s224 + $0x50] sm:$0xff]
      %v8904 = vld [vmem:[%s224 + $0x58] sm:$0xff]
      %v8905 = vld [vmem:[%s224 + $0x60] sm:$0xff]
      %v8906 = vld [vmem:[%s224 + $0x68] sm:$0xff]
      %v8907 = vld [vmem:[%s224 + $0x70] sm:$0xff]
      %v8908 = vld [vmem:[%s224 + $0x78] sm:$0xff]
      %v8909 = vld [vmem:[%s224 + $0x80] sm:$0xff]
      %v8910 = vld [vmem:[%s224 + $0x88] sm:$0xff]
      %v8911 = vld [vmem:[%s224 + $0x90] sm:$0xff]
      %v8912 = vld [vmem:[%s224 + $0x98] sm:$0xff]
      %v8913 = vld [vmem:[%s224 + $0xa0] sm:$0xff]
      %v8914 = vld [vmem:[%s224 + $0xa8] sm:$0xff]
      %v8915 = vld [vmem:[%s224 + $0xb0] sm:$0xff]
      %v8916 = vld [vmem:[%s224 + $0xb8] sm:$0xff]
      %v8917 = vld [vmem:[%s224 + $0xc0] sm:$0xff]
      %v8918 = vld [vmem:[%s224 + $0xc8] sm:$0xff]
      %v8919 = vld [vmem:[%s224 + $0xd0] sm:$0xff]
      %v8920 = vld [vmem:[%s224 + $0xd8] sm:$0xff]
      %v8921 = vld [vmem:[%s224 + $0xe0] sm:$0xff]
      %v8922 = vld [vmem:[%s224 + $0xe8] sm:$0xff]
      %v8923 = vld [vmem:[%s224 + $0xf0] sm:$0xff]
      %v8924 = vld [vmem:[%s224 + $0xf8] sm:$0xff]
      %v8925 = vld [vmem:[%s224 + $0x100] sm:$0xff]
      %v8926 = vld [vmem:[%s224 + $0x108] sm:$0xff]
      %v8927 = vld [vmem:[%s224 + $0x110] sm:$0xff]
      %v8928 = vld [vmem:[%s224 + $0x118] sm:$0xff]
      %v8929 = vld [vmem:[%s224 + $0x120] sm:$0xff]
      %v8930 = vld [vmem:[%s224 + $0x128] sm:$0xff]
      %v8931 = vld [vmem:[%s224 + $0x130] sm:$0xff]
      %v8932 = vld [vmem:[%s224 + $0x138] sm:$0xff]
      %v8933 = vld [vmem:[%s224 + $0x140] sm:$0xff]
      %v8934 = vld [vmem:[%s224 + $0x148] sm:$0xff]
      %v8935 = vld [vmem:[%s224 + $0x150] sm:$0xff]
      %v8936 = vld [vmem:[%s224 + $0x158] sm:$0xff]
      %v8937 = vld [vmem:[%s224 + $0x160] sm:$0xff]
      %v8938 = vld [vmem:[%s224 + $0x168] sm:$0xff]
      %v8939 = vld [vmem:[%s224 + $0x170] sm:$0xff]
      %v8940 = vld [vmem:[%s224 + $0x178] sm:$0xff]
      %v8941 = vld [vmem:[%s224 + $0x180] sm:$0xff]
      %v8942 = vld [vmem:[%s224 + $0x188] sm:$0xff]
      %v8943 = vld [vmem:[%s224 + $0x190] sm:$0xff]
      %v8944 = vld [vmem:[%s224 + $0x198] sm:$0xff]
      %v8945 = vld [vmem:[%s224 + $0x1a0] sm:$0xff]
      %v8946 = vld [vmem:[%s224 + $0x1a8] sm:$0xff]
      %v8947 = vld [vmem:[%s224 + $0x1b0] sm:$0xff]
      %v8948 = vld [vmem:[%s224 + $0x1b8] sm:$0xff]
      %v8949 = vld [vmem:[%s224 + $0x1c0] sm:$0xff]
      %v8950 = vld [vmem:[%s224 + $0x1c8] sm:$0xff]
      %v8951 = vld [vmem:[%s224 + $0x1d0] sm:$0xff]
      %v8952 = vld [vmem:[%s224 + $0x1d8] sm:$0xff]
      %v8953 = vld [vmem:[%s224 + $0x1e0] sm:$0xff]
      %v8954 = vld [vmem:[%s224 + $0x1e8] sm:$0xff]
      %v8955 = vld [vmem:[%s224 + $0x1f0] sm:$0xff]
      %v8956 = vld [vmem:[%s224 + $0x1f8] sm:$0xff]
      %v8957 = vld [vmem:[%s224 + $0x200] sm:$0xff]
      %v8958 = vld [vmem:[%s224 + $0x208] sm:$0xff]
      %v8959 = vld [vmem:[%s224 + $0x210] sm:$0xff]
      %v8960 = vld [vmem:[%s224 + $0x218] sm:$0xff]
      %v8961 = vld [vmem:[%s224 + $0x220] sm:$0xff]
      %v8962 = vld [vmem:[%s224 + $0x228] sm:$0xff]
      %v8963 = vld [vmem:[%s224 + $0x230] sm:$0xff]
      %v8964 = vld [vmem:[%s224 + $0x238] sm:$0xff]
      %v8965 = vld [vmem:[%s224 + $0x240] sm:$0x1f]
      %v8966 = vld [vmem:[%s224 + $0x248] sm:$0x1f]
      %v8967 = vld [vmem:[%s224 + $0x250] sm:$0x1f]
      %v8968 = vld [vmem:[%s224 + $0x258] sm:$0x1f]
      %v8969 = vld [vmem:[%s224 + $0x260] sm:$0x1f]
      %v8970 = vld [vmem:[%s224 + $0x268] sm:$0x1f]
      %v8971 = vld [vmem:[#allocation2 + $0x30] sm:$0xff]
      %v8972 = vld [vmem:[#allocation2 + $0x38] sm:$0xff]
      %v8973 = vld [vmem:[#allocation2 + $0x40] sm:$0xff]
      %v8974 = vld [vmem:[#allocation2 + $0x48] sm:$0xff]
      %v8975 = vld [vmem:[#allocation2 + $0x50] sm:$0xff]
      %v8976 = vld [vmem:[#allocation2 + $0x58] sm:$0xff]
      %v8977 = vld [vmem:[#allocation2 + $0x60] sm:$0xff]
      %v8978 = vld [vmem:[#allocation2 + $0x68] sm:$0xff]
      %v8979 = vld [vmem:[#allocation2 + $0x70] sm:$0xff]
      %v8980 = vld [vmem:[#allocation2 + $0x78] sm:$0xff]
      %v8981 = vld [vmem:[#allocation2 + $0x80] sm:$0xff]
      %v8982 = vld [vmem:[#allocation2 + $0x88] sm:$0xff]
      %v8983 = vld [vmem:[#allocation2 + $0x90] sm:$0xff]
      %v8984 = vld [vmem:[#allocation2 + $0x98] sm:$0xff]
      %v8985 = vld [vmem:[#allocation2 + $0xa0] sm:$0xff]
      %v8986 = vld [vmem:[#allocation2 + $0xa8] sm:$0xff]
      %v8987 = vld [vmem:[#allocation2 + $0xb0] sm:$0xff]
      %v8988 = vld [vmem:[#allocation2 + $0xb8] sm:$0xff]
      %v8989 = vld [vmem:[#allocation2 + $0xc0] sm:$0xff]
      %v8990 = vld [vmem:[#allocation2 + $0xc8] sm:$0xff]
      %v8991 = vld [vmem:[#allocation2 + $0xd0] sm:$0xff]
      %v8992 = vld [vmem:[#allocation2 + $0xd8] sm:$0xff]
      %v8993 = vld [vmem:[#allocation2 + $0xe0] sm:$0xff]
      %v8994 = vld [vmem:[#allocation2 + $0xe8] sm:$0xff]
      %v8995 = vld [vmem:[#allocation2 + $0xf0] sm:$0xff]
      %v8996 = vld [vmem:[#allocation2 + $0xf8] sm:$0xff]
      %v8997 = vld [vmem:[#allocation2 + $0x100] sm:$0xff]
      %v8998 = vld [vmem:[#allocation2 + $0x108] sm:$0xff]
      %v8999 = vld [vmem:[#allocation2 + $0x110] sm:$0xff]
      %v9000 = vld [vmem:[#allocation2 + $0x118] sm:$0xff]
      %v9001 = vld [vmem:[#allocation2 + $0x120] sm:$0xff]
      %v9002 = vld [vmem:[#allocation2 + $0x128] sm:$0xff]
      %v9003 = vld [vmem:[#allocation2 + $0x130] sm:$0xff]
      %v9004 = vld [vmem:[#allocation2 + $0x138] sm:$0xff]
      %v9005 = vld [vmem:[#allocation2 + $0x140] sm:$0xff]
      %v9006 = vld [vmem:[#allocation2 + $0x148] sm:$0xff]
      %v9007 = vld [vmem:[#allocation2 + $0x150] sm:$0xff]
      %v9008 = vld [vmem:[#allocation2 + $0x158] sm:$0xff]
      %v9009 = vld [vmem:[#allocation2 + $0x160] sm:$0xff]
      %v9010 = vld [vmem:[#allocation2 + $0x168] sm:$0xff]
      %v9011 = vld [vmem:[#allocation2 + $0x170] sm:$0xff]
      %v9012 = vld [vmem:[#allocation2 + $0x178] sm:$0xff]
      %v9013 = vld [vmem:[#allocation2 + $0x180] sm:$0xff]
      %v9014 = vld [vmem:[#allocation2 + $0x188] sm:$0xff]
      %v9015 = vld [vmem:[#allocation2 + $0x190] sm:$0xff]
      %v9016 = vld [vmem:[#allocation2 + $0x198] sm:$0xff]
      %v9017 = vld [vmem:[#allocation2 + $0x1a0] sm:$0xff]
      %v9018 = vld [vmem:[#allocation2 + $0x1a8] sm:$0xff]
      %v9019 = vld [vmem:[#allocation2 + $0x1b0] sm:$0xff]
      %v9020 = vld [vmem:[#allocation2 + $0x1b8] sm:$0xff]
      %v9021 = vld [vmem:[#allocation2 + $0x1c0] sm:$0xff]
      %v9022 = vld [vmem:[#allocation2 + $0x1c8] sm:$0xff]
      %v9023 = vld [vmem:[#allocation2 + $0x1d0] sm:$0xff]
      %v9024 = vld [vmem:[#allocation2 + $0x1d8] sm:$0xff]
      %v9025 = vld [vmem:[#allocation2 + $0x1e0] sm:$0xff]
      %v9026 = vld [vmem:[#allocation2 + $0x1e8] sm:$0xff]
      %v9027 = vld [vmem:[#allocation2 + $0x1f0] sm:$0xff]
      %v9028 = vld [vmem:[#allocation2 + $0x1f8] sm:$0xff]
      %v9029 = vld [vmem:[#allocation2 + $0x200] sm:$0xff]
      %v9030 = vld [vmem:[#allocation2 + $0x208] sm:$0xff]
      %v9031 = vld [vmem:[#allocation2 + $0x210] sm:$0xff]
      %v9032 = vld [vmem:[#allocation2 + $0x218] sm:$0xff]
      %v9033 = vld [vmem:[#allocation2 + $0x220] sm:$0xff]
      %v9034 = vld [vmem:[#allocation2 + $0x228] sm:$0xff]
      %v9035 = vld [vmem:[#allocation2 + $0x230] sm:$0xff]
      %v9036 = vld [vmem:[#allocation2 + $0x238] sm:$0xff]
      %v9037 = vld [vmem:[#allocation2 + $0x240] sm:$0xff]
      %v9038 = vld [vmem:[#allocation2 + $0x248] sm:$0xff]
      %v9039 = vld [vmem:[#allocation2 + $0x250] sm:$0xff]
      %v9040 = vld [vmem:[#allocation2 + $0x258] sm:$0xff]
      %v9041 = vld [vmem:[#allocation2 + $0x260] sm:$0xff]
      %v9042 = vld [vmem:[#allocation2 + $0x268] sm:$0xff]
      %v9043 = vld [vmem:[#allocation2 + $0x270] sm:$0x1f]
      %v9044 = vld [vmem:[#allocation2 + $0x278] sm:$0x1f]
      %v9045 = vld [vmem:[#allocation2 + $0x280] sm:$0x1f]
      %v9046 = vld [vmem:[#allocation2 + $0x288] sm:$0x1f]
      %v9047 = vld [vmem:[#allocation2 + $0x290] sm:$0x1f]
      %v9048 = vld [vmem:[#allocation2 + $0x298] sm:$0x1f]
      %9049 = vrot.lane.b32.xlu0 %v8971, 8
      %v9050 = vpop.permute.xlu0 %9049
      %9051 = vrot.lane.b32.xlu0 %v8977, 8
      %v9052 = vpop.permute.xlu0 %9051
      %9053 = vrot.lane.b32.xlu0 %v8983, 8
      %v9054 = vpop.permute.xlu0 %9053
      %9055 = vrot.lane.b32.xlu0 %v8989, 8
      %v9056 = vpop.permute.xlu0 %9055
      %9057 = vrot.lane.b32.xlu0 %v8995, 8
      %v9058 = vpop.permute.xlu0 %9057
      %9059 = vrot.lane.b32.xlu0 %v9001, 8
      %v9060 = vpop.permute.xlu0 %9059
      %9061 = vrot.lane.b32.xlu0 %v9007, 8
      %v9062 = vpop.permute.xlu0 %9061
      %9063 = vrot.lane.b32.xlu0 %v9013, 8
      %v9064 = vpop.permute.xlu0 %9063
      %9065 = vrot.lane.b32.xlu0 %v9019, 8
      %v9066 = vpop.permute.xlu0 %9065
      %9067 = vrot.lane.b32.xlu0 %v9025, 8
      %v9068 = vpop.permute.xlu0 %9067
      %9069 = vrot.lane.b32.xlu0 %v9031, 8
      %v9070 = vpop.permute.xlu0 %9069
      %9071 = vrot.lane.b32.xlu0 %v9037, 8
      %v9072 = vpop.permute.xlu0 %9071
      %9073 = vrot.lane.b32.xlu0 %v9043, 8
      %v9074 = vpop.permute.xlu0 %9073
      %9075 = vrot.lane.b32.xlu0 %v8972, 8
      %v9076 = vpop.permute.xlu0 %9075
      %9077 = vrot.lane.b32.xlu0 %v8978, 8
      %v9078 = vpop.permute.xlu0 %9077
      %9079 = vrot.lane.b32.xlu0 %v8984, 8
      %v9080 = vpop.permute.xlu0 %9079
      %9081 = vrot.lane.b32.xlu0 %v8990, 8
      %v9082 = vpop.permute.xlu0 %9081
      %9083 = vrot.lane.b32.xlu0 %v8996, 8
      %v9084 = vpop.permute.xlu0 %9083
      %9085 = vrot.lane.b32.xlu0 %v9002, 8
      %v9086 = vpop.permute.xlu0 %9085
      %9087 = vrot.lane.b32.xlu0 %v9008, 8
      %v9088 = vpop.permute.xlu0 %9087
      %9089 = vrot.lane.b32.xlu0 %v9014, 8
      %v9090 = vpop.permute.xlu0 %9089
      %9091 = vrot.lane.b32.xlu0 %v9020, 8
      %v9092 = vpop.permute.xlu0 %9091
      %9093 = vrot.lane.b32.xlu0 %v9026, 8
      %v9094 = vpop.permute.xlu0 %9093
      %9095 = vrot.lane.b32.xlu0 %v9032, 8
      %v9096 = vpop.permute.xlu0 %9095
      %9097 = vrot.lane.b32.xlu0 %v9038, 8
      %v9098 = vpop.permute.xlu0 %9097
      %9099 = vrot.lane.b32.xlu0 %v9044, 8
      %v9100 = vpop.permute.xlu0 %9099
      %9101 = vrot.lane.b32.xlu0 %v8973, 8
      %v9102 = vpop.permute.xlu0 %9101
      %9103 = vrot.lane.b32.xlu0 %v8979, 8
      %v9104 = vpop.permute.xlu0 %9103
      %9105 = vrot.lane.b32.xlu0 %v8985, 8
      %v9106 = vpop.permute.xlu0 %9105
      %9107 = vrot.lane.b32.xlu0 %v8991, 8
      %v9108 = vpop.permute.xlu0 %9107
      %9109 = vrot.lane.b32.xlu0 %v8997, 8
      %v9110 = vpop.permute.xlu0 %9109
      %9111 = vrot.lane.b32.xlu0 %v9003, 8
      %v9112 = vpop.permute.xlu0 %9111
      %9113 = vrot.lane.b32.xlu0 %v9009, 8
      %v9114 = vpop.permute.xlu0 %9113
      %9115 = vrot.lane.b32.xlu0 %v9015, 8
      %v9116 = vpop.permute.xlu0 %9115
      %9117 = vrot.lane.b32.xlu0 %v9021, 8
      %v9118 = vpop.permute.xlu0 %9117
      %9119 = vrot.lane.b32.xlu0 %v9027, 8
      %v9120 = vpop.permute.xlu0 %9119
      %9121 = vrot.lane.b32.xlu0 %v9033, 8
      %v9122 = vpop.permute.xlu0 %9121
      %9123 = vrot.lane.b32.xlu0 %v9039, 8
      %v9124 = vpop.permute.xlu0 %9123
      %9125 = vrot.lane.b32.xlu0 %v9045, 8
      %v9126 = vpop.permute.xlu0 %9125
      %9127 = vrot.lane.b32.xlu0 %v8974, 8
      %v9128 = vpop.permute.xlu0 %9127
      %9129 = vrot.lane.b32.xlu0 %v8980, 8
      %v9130 = vpop.permute.xlu0 %9129
      %9131 = vrot.lane.b32.xlu0 %v8986, 8
      %v9132 = vpop.permute.xlu0 %9131
      %9133 = vrot.lane.b32.xlu0 %v8992, 8
      %v9134 = vpop.permute.xlu0 %9133
      %9135 = vrot.lane.b32.xlu0 %v8998, 8
      %v9136 = vpop.permute.xlu0 %9135
      %9137 = vrot.lane.b32.xlu0 %v9004, 8
      %v9138 = vpop.permute.xlu0 %9137
      %9139 = vrot.lane.b32.xlu0 %v9010, 8
      %v9140 = vpop.permute.xlu0 %9139
      %9141 = vrot.lane.b32.xlu0 %v9016, 8
      %v9142 = vpop.permute.xlu0 %9141
      %9143 = vrot.lane.b32.xlu0 %v9022, 8
      %v9144 = vpop.permute.xlu0 %9143
      %9145 = vrot.lane.b32.xlu0 %v9028, 8
      %v9146 = vpop.permute.xlu0 %9145
      %9147 = vrot.lane.b32.xlu0 %v9034, 8
      %v9148 = vpop.permute.xlu0 %9147
      %9149 = vrot.lane.b32.xlu0 %v9040, 8
      %v9150 = vpop.permute.xlu0 %9149
      %9151 = vrot.lane.b32.xlu0 %v9046, 8
      %v9152 = vpop.permute.xlu0 %9151
      %9153 = vrot.lane.b32.xlu0 %v8975, 8
      %v9154 = vpop.permute.xlu0 %9153
      %9155 = vrot.lane.b32.xlu0 %v8981, 8
      %v9156 = vpop.permute.xlu0 %9155
      %9157 = vrot.lane.b32.xlu0 %v8987, 8
      %v9158 = vpop.permute.xlu0 %9157
      %9159 = vrot.lane.b32.xlu0 %v8993, 8
      %v9160 = vpop.permute.xlu0 %9159
      %9161 = vrot.lane.b32.xlu0 %v8999, 8
      %v9162 = vpop.permute.xlu0 %9161
      %9163 = vrot.lane.b32.xlu0 %v9005, 8
      %v9164 = vpop.permute.xlu0 %9163
      %9165 = vrot.lane.b32.xlu0 %v9011, 8
      %v9166 = vpop.permute.xlu0 %9165
      %9167 = vrot.lane.b32.xlu0 %v9017, 8
      %v9168 = vpop.permute.xlu0 %9167
      %9169 = vrot.lane.b32.xlu0 %v9023, 8
      %v9170 = vpop.permute.xlu0 %9169
      %9171 = vrot.lane.b32.xlu0 %v9029, 8
      %v9172 = vpop.permute.xlu0 %9171
      %9173 = vrot.lane.b32.xlu0 %v9035, 8
      %v9174 = vpop.permute.xlu0 %9173
      %9175 = vrot.lane.b32.xlu0 %v9041, 8
      %v9176 = vpop.permute.xlu0 %9175
      %9177 = vrot.lane.b32.xlu0 %v9047, 8
      %v9178 = vpop.permute.xlu0 %9177
      %9179 = vrot.lane.b32.xlu0 %v8976, 8
      %v9180 = vpop.permute.xlu0 %9179
      %9181 = vrot.lane.b32.xlu0 %v8982, 8
      %v9182 = vpop.permute.xlu0 %9181
      %9183 = vrot.lane.b32.xlu0 %v8988, 8
      %v9184 = vpop.permute.xlu0 %9183
      %9185 = vrot.lane.b32.xlu0 %v8994, 8
      %v9186 = vpop.permute.xlu0 %9185
      %9187 = vrot.lane.b32.xlu0 %v9000, 8
      %v9188 = vpop.permute.xlu0 %9187
      %9189 = vrot.lane.b32.xlu0 %v9006, 8
      %v9190 = vpop.permute.xlu0 %9189
      %9191 = vrot.lane.b32.xlu0 %v9012, 8
      %v9192 = vpop.permute.xlu0 %9191
      %9193 = vrot.lane.b32.xlu0 %v9018, 8
      %v9194 = vpop.permute.xlu0 %9193
      %9195 = vrot.lane.b32.xlu0 %v9024, 8
      %v9196 = vpop.permute.xlu0 %9195
      %9197 = vrot.lane.b32.xlu0 %v9030, 8
      %v9198 = vpop.permute.xlu0 %9197
      %9199 = vrot.lane.b32.xlu0 %v9036, 8
      %v9200 = vpop.permute.xlu0 %9199
      %9201 = vrot.lane.b32.xlu0 %v9042, 8
      %v9202 = vpop.permute.xlu0 %9201
      %9203 = vrot.lane.b32.xlu0 %v9048, 8
      %v9204 = vpop.permute.xlu0 %9203
      %vm9205 = vcmp.lt.s32.totalorder %v4594, 8
      %v9206 = vsel %vm9205, %v9154, %v9180
      %v9207 = vsel %vm9205, %v9156, %v9182
      %v9208 = vsel %vm9205, %v9158, %v9184
      %v9209 = vsel %vm9205, %v9160, %v9186
      %v9210 = vsel %vm9205, %v9162, %v9188
      %v9211 = vsel %vm9205, %v9164, %v9190
      %v9212 = vsel %vm9205, %v9166, %v9192
      %v9213 = vsel %vm9205, %v9168, %v9194
      %v9214 = vsel %vm9205, %v9170, %v9196
      %v9215 = vsel %vm9205, %v9172, %v9198
      %v9216 = vsel %vm9205, %v9174, %v9200
      %v9217 = vsel %vm9205, %v9176, %v9202
      %v9218 = vsel %vm9205, %v9178, %v9204
      %v9219 = vsel %vm9205, %v9128, %v9154
      %v9220 = vsel %vm9205, %v9130, %v9156
      %v9221 = vsel %vm9205, %v9132, %v9158
      %v9222 = vsel %vm9205, %v9134, %v9160
      %v9223 = vsel %vm9205, %v9136, %v9162
      %v9224 = vsel %vm9205, %v9138, %v9164
      %v9225 = vsel %vm9205, %v9140, %v9166
      %v9226 = vsel %vm9205, %v9142, %v9168
      %v9227 = vsel %vm9205, %v9144, %v9170
      %v9228 = vsel %vm9205, %v9146, %v9172
      %v9229 = vsel %vm9205, %v9148, %v9174
      %v9230 = vsel %vm9205, %v9150, %v9176
      %v9231 = vsel %vm9205, %v9152, %v9178
      %v9232 = vsel %vm9205, %v9102, %v9128
      %v9233 = vsel %vm9205, %v9104, %v9130
      %v9234 = vsel %vm9205, %v9106, %v9132
      %v9235 = vsel %vm9205, %v9108, %v9134
      %v9236 = vsel %vm9205, %v9110, %v9136
      %v9237 = vsel %vm9205, %v9112, %v9138
      %v9238 = vsel %vm9205, %v9114, %v9140
      %v9239 = vsel %vm9205, %v9116, %v9142
      %v9240 = vsel %vm9205, %v9118, %v9144
      %v9241 = vsel %vm9205, %v9120, %v9146
      %v9242 = vsel %vm9205, %v9122, %v9148
      %v9243 = vsel %vm9205, %v9124, %v9150
      %v9244 = vsel %vm9205, %v9126, %v9152
      %v9245 = vsel %vm9205, %v9076, %v9102
      %v9246 = vsel %vm9205, %v9078, %v9104
      %v9247 = vsel %vm9205, %v9080, %v9106
      %v9248 = vsel %vm9205, %v9082, %v9108
      %v9249 = vsel %vm9205, %v9084, %v9110
      %v9250 = vsel %vm9205, %v9086, %v9112
      %v9251 = vsel %vm9205, %v9088, %v9114
      %v9252 = vsel %vm9205, %v9090, %v9116
      %v9253 = vsel %vm9205, %v9092, %v9118
      %v9254 = vsel %vm9205, %v9094, %v9120
      %v9255 = vsel %vm9205, %v9096, %v9122
      %v9256 = vsel %vm9205, %v9098, %v9124
      %v9257 = vsel %vm9205, %v9100, %v9126
      %v9258 = vsel %vm9205, %v9050, %v9076
      %v9259 = vsel %vm9205, %v9052, %v9078
      %v9260 = vsel %vm9205, %v9054, %v9080
      %v9261 = vsel %vm9205, %v9056, %v9082
      %v9262 = vsel %vm9205, %v9058, %v9084
      %v9263 = vsel %vm9205, %v9060, %v9086
      %v9264 = vsel %vm9205, %v9062, %v9088
      %v9265 = vsel %vm9205, %v9064, %v9090
      %v9266 = vsel %vm9205, %v9066, %v9092
      %v9267 = vsel %vm9205, %v9068, %v9094
      %v9268 = vsel %vm9205, %v9070, %v9096
      %v9269 = vsel %vm9205, %v9072, %v9098
      %v9270 = vsel %vm9205, %v9074, %v9100
      %v9271 = vsel %vm9205, %v9180, %v9050
      %v9272 = vsel %vm9205, %v9182, %v9052
      %v9273 = vsel %vm9205, %v9184, %v9054
      %v9274 = vsel %vm9205, %v9186, %v9056
      %v9275 = vsel %vm9205, %v9188, %v9058
      %v9276 = vsel %vm9205, %v9190, %v9060
      %v9277 = vsel %vm9205, %v9192, %v9062
      %v9278 = vsel %vm9205, %v9194, %v9064
      %v9279 = vsel %vm9205, %v9196, %v9066
      %v9280 = vsel %vm9205, %v9198, %v9068
      %v9281 = vsel %vm9205, %v9200, %v9070
      %v9282 = vsel %vm9205, %v9202, %v9072
      %v9283 = vsel %vm9205, %v9204, %v9074
      %v9284 = vld [vmem:[#allocation2 + $0x30] sm:$0xfe]
      %v9285 = vld [vmem:[#allocation2 + $0x38] sm:$0xfe]
      %v9286 = vld [vmem:[#allocation2 + $0x40] sm:$0xfe]
      %v9287 = vld [vmem:[#allocation2 + $0x48] sm:$0xfe]
      %v9288 = vld [vmem:[#allocation2 + $0x50] sm:$0xfe]
      %v9289 = vld [vmem:[#allocation2 + $0x58] sm:$0xfe]
      %v9290 = vld [vmem:[#allocation2 + $0x270] sm:$0x3f]
      %v9291 = vld [vmem:[#allocation2 + $0x278] sm:$0x3f]
      %v9292 = vld [vmem:[#allocation2 + $0x280] sm:$0x3f]
      %v9293 = vld [vmem:[#allocation2 + $0x288] sm:$0x3f]
      %v9294 = vld [vmem:[#allocation2 + $0x290] sm:$0x3f]
      %v9295 = vld [vmem:[#allocation2 + $0x298] sm:$0x3f]
      %v9374 = vrot.slane %v9284, 1
      %v9375 = vrot.slane %v8977, 1
      %v9376 = vsel %vm2265, %v9374, %v9375
      %v9377 = vrot.slane %v9285, 1
      %v9378 = vrot.slane %v8978, 1
      %v9379 = vsel %vm2265, %v9377, %v9378
      %v9380 = vrot.slane %v9286, 1
      %v9381 = vrot.slane %v8979, 1
      %v9382 = vsel %vm2265, %v9380, %v9381
      %v9383 = vrot.slane %v9287, 1
      %v9384 = vrot.slane %v8980, 1
      %v9385 = vsel %vm2265, %v9383, %v9384
      %v9386 = vrot.slane %v9288, 1
      %v9387 = vrot.slane %v8981, 1
      %v9388 = vsel %vm2265, %v9386, %v9387
      %v9389 = vrot.slane %v9289, 1
      %v9390 = vrot.slane %v8982, 1
      %v9391 = vsel %vm2265, %v9389, %v9390
      %v9392 = vrot.slane %v8983, 1
      %v9393 = vsel %vm2265, %v9375, %v9392
      %v9394 = vrot.slane %v8984, 1
      %v9395 = vsel %vm2265, %v9378, %v9394
      %v9396 = vrot.slane %v8985, 1
      %v9397 = vsel %vm2265, %v9381, %v9396
      %v9398 = vrot.slane %v8986, 1
      %v9399 = vsel %vm2265, %v9384, %v9398
      %v9400 = vrot.slane %v8987, 1
      %v9401 = vsel %vm2265, %v9387, %v9400
      %v9402 = vrot.slane %v8988, 1
      %v9403 = vsel %vm2265, %v9390, %v9402
      %v9404 = vrot.slane %v8989, 1
      %v9405 = vsel %vm2265, %v9392, %v9404
      %v9406 = vrot.slane %v8990, 1
      %v9407 = vsel %vm2265, %v9394, %v9406
      %v9408 = vrot.slane %v8991, 1
      %v9409 = vsel %vm2265, %v9396, %v9408
      %v9410 = vrot.slane %v8992, 1
      %v9411 = vsel %vm2265, %v9398, %v9410
      %v9412 = vrot.slane %v8993, 1
      %v9413 = vsel %vm2265, %v9400, %v9412
      %v9414 = vrot.slane %v8994, 1
      %v9415 = vsel %vm2265, %v9402, %v9414
      %v9416 = vrot.slane %v8995, 1
      %v9417 = vsel %vm2265, %v9404, %v9416
      %v9418 = vrot.slane %v8996, 1
      %v9419 = vsel %vm2265, %v9406, %v9418
      %v9420 = vrot.slane %v8997, 1
      %v9421 = vsel %vm2265, %v9408, %v9420
      %v9422 = vrot.slane %v8998, 1
      %v9423 = vsel %vm2265, %v9410, %v9422
      %v9424 = vrot.slane %v8999, 1
      %v9425 = vsel %vm2265, %v9412, %v9424
      %v9426 = vrot.slane %v9000, 1
      %v9427 = vsel %vm2265, %v9414, %v9426
      %v9428 = vrot.slane %v9001, 1
      %v9429 = vsel %vm2265, %v9416, %v9428
      %v9430 = vrot.slane %v9002, 1
      %v9431 = vsel %vm2265, %v9418, %v9430
      %v9432 = vrot.slane %v9003, 1
      %v9433 = vsel %vm2265, %v9420, %v9432
      %v9434 = vrot.slane %v9004, 1
      %v9435 = vsel %vm2265, %v9422, %v9434
      %v9436 = vrot.slane %v9005, 1
      %v9437 = vsel %vm2265, %v9424, %v9436
      %v9438 = vrot.slane %v9006, 1
      %v9439 = vsel %vm2265, %v9426, %v9438
      %v9440 = vrot.slane %v9007, 1
      %v9441 = vsel %vm2265, %v9428, %v9440
      %v9442 = vrot.slane %v9008, 1
      %v9443 = vsel %vm2265, %v9430, %v9442
      %v9444 = vrot.slane %v9009, 1
      %v9445 = vsel %vm2265, %v9432, %v9444
      %v9446 = vrot.slane %v9010, 1
      %v9447 = vsel %vm2265, %v9434, %v9446
      %v9448 = vrot.slane %v9011, 1
      %v9449 = vsel %vm2265, %v9436, %v9448
      %v9450 = vrot.slane %v9012, 1
      %v9451 = vsel %vm2265, %v9438, %v9450
      %v9452 = vrot.slane %v9013, 1
      %v9453 = vsel %vm2265, %v9440, %v9452
      %v9454 = vrot.slane %v9014, 1
      %v9455 = vsel %vm2265, %v9442, %v9454
      %v9456 = vrot.slane %v9015, 1
      %v9457 = vsel %vm2265, %v9444, %v9456
      %v9458 = vrot.slane %v9016, 1
      %v9459 = vsel %vm2265, %v9446, %v9458
      %v9460 = vrot.slane %v9017, 1
      %v9461 = vsel %vm2265, %v9448, %v9460
      %v9462 = vrot.slane %v9018, 1
      %v9463 = vsel %vm2265, %v9450, %v9462
      %v9464 = vrot.slane %v9019, 1
      %v9465 = vsel %vm2265, %v9452, %v9464
      %v9466 = vrot.slane %v9020, 1
      %v9467 = vsel %vm2265, %v9454, %v9466
      %v9468 = vrot.slane %v9021, 1
      %v9469 = vsel %vm2265, %v9456, %v9468
      %v9470 = vrot.slane %v9022, 1
      %v9471 = vsel %vm2265, %v9458, %v9470
      %v9472 = vrot.slane %v9023, 1
      %v9473 = vsel %vm2265, %v9460, %v9472
      %v9474 = vrot.slane %v9024, 1
      %v9475 = vsel %vm2265, %v9462, %v9474
      %v9476 = vrot.slane %v9025, 1
      %v9477 = vsel %vm2265, %v9464, %v9476
      %v9478 = vrot.slane %v9026, 1
      %v9479 = vsel %vm2265, %v9466, %v9478
      %v9480 = vrot.slane %v9027, 1
      %v9481 = vsel %vm2265, %v9468, %v9480
      %v9482 = vrot.slane %v9028, 1
      %v9483 = vsel %vm2265, %v9470, %v9482
      %v9484 = vrot.slane %v9029, 1
      %v9485 = vsel %vm2265, %v9472, %v9484
      %v9486 = vrot.slane %v9030, 1
      %v9487 = vsel %vm2265, %v9474, %v9486
      %v9488 = vrot.slane %v9031, 1
      %v9489 = vsel %vm2265, %v9476, %v9488
      %v9490 = vrot.slane %v9032, 1
      %v9491 = vsel %vm2265, %v9478, %v9490
      %v9492 = vrot.slane %v9033, 1
      %v9493 = vsel %vm2265, %v9480, %v9492
      %v9494 = vrot.slane %v9034, 1
      %v9495 = vsel %vm2265, %v9482, %v9494
      %v9496 = vrot.slane %v9035, 1
      %v9497 = vsel %vm2265, %v9484, %v9496
      %v9498 = vrot.slane %v9036, 1
      %v9499 = vsel %vm2265, %v9486, %v9498
      %v9500 = vrot.slane %v9037, 1
      %v9501 = vsel %vm2265, %v9488, %v9500
      %v9502 = vrot.slane %v9038, 1
      %v9503 = vsel %vm2265, %v9490, %v9502
      %v9504 = vrot.slane %v9039, 1
      %v9505 = vsel %vm2265, %v9492, %v9504
      %v9506 = vrot.slane %v9040, 1
      %v9507 = vsel %vm2265, %v9494, %v9506
      %v9508 = vrot.slane %v9041, 1
      %v9509 = vsel %vm2265, %v9496, %v9508
      %v9510 = vrot.slane %v9042, 1
      %v9511 = vsel %vm2265, %v9498, %v9510
      %v9512 = vrot.slane %v9290, 1
      %v9513 = vsel %vm2265, %v9500, %v9512
      %v9514 = vrot.slane %v9291, 1
      %v9515 = vsel %vm2265, %v9502, %v9514
      %v9516 = vrot.slane %v9292, 1
      %v9517 = vsel %vm2265, %v9504, %v9516
      %v9518 = vrot.slane %v9293, 1
      %v9519 = vsel %vm2265, %v9506, %v9518
      %v9520 = vrot.slane %v9294, 1
      %v9521 = vsel %vm2265, %v9508, %v9520
      %v9522 = vrot.slane %v9295, 1
      %v9523 = vsel %vm2265, %v9510, %v9522
      %9602 = vrot.lane.b32.xlu0 %v9376, 9
      %v9603 = vpop.permute.xlu0 %9602
      %9604 = vrot.lane.b32.xlu0 %v9393, 9
      %v9605 = vpop.permute.xlu0 %9604
      %9606 = vrot.lane.b32.xlu0 %v9405, 9
      %v9607 = vpop.permute.xlu0 %9606
      %9608 = vrot.lane.b32.xlu0 %v9417, 9
      %v9609 = vpop.permute.xlu0 %9608
      %9610 = vrot.lane.b32.xlu0 %v9429, 9
      %v9611 = vpop.permute.xlu0 %9610
      %9612 = vrot.lane.b32.xlu0 %v9441, 9
      %v9613 = vpop.permute.xlu0 %9612
      %9614 = vrot.lane.b32.xlu0 %v9453, 9
      %v9615 = vpop.permute.xlu0 %9614
      %9616 = vrot.lane.b32.xlu0 %v9465, 9
      %v9617 = vpop.permute.xlu0 %9616
      %9618 = vrot.lane.b32.xlu0 %v9477, 9
      %v9619 = vpop.permute.xlu0 %9618
      %9620 = vrot.lane.b32.xlu0 %v9489, 9
      %v9621 = vpop.permute.xlu0 %9620
      %9622 = vrot.lane.b32.xlu0 %v9501, 9
      %v9623 = vpop.permute.xlu0 %9622
      %9624 = vrot.lane.b32.xlu0 %v9513, 9
      %v9625 = vpop.permute.xlu0 %9624
      %9626 = vrot.lane.b32.xlu0 %v9512, 9
      %v9627 = vpop.permute.xlu0 %9626
      %9628 = vrot.lane.b32.xlu0 %v9379, 9
      %v9629 = vpop.permute.xlu0 %9628
      %9630 = vrot.lane.b32.xlu0 %v9395, 9
      %v9631 = vpop.permute.xlu0 %9630
      %9632 = vrot.lane.b32.xlu0 %v9407, 9
      %v9633 = vpop.permute.xlu0 %9632
      %9634 = vrot.lane.b32.xlu0 %v9419, 9
      %v9635 = vpop.permute.xlu0 %9634
      %9636 = vrot.lane.b32.xlu0 %v9431, 9
      %v9637 = vpop.permute.xlu0 %9636
      %9638 = vrot.lane.b32.xlu0 %v9443, 9
      %v9639 = vpop.permute.xlu0 %9638
      %9640 = vrot.lane.b32.xlu0 %v9455, 9
      %v9641 = vpop.permute.xlu0 %9640
      %9642 = vrot.lane.b32.xlu0 %v9467, 9
      %v9643 = vpop.permute.xlu0 %9642
      %9644 = vrot.lane.b32.xlu0 %v9479, 9
      %v9645 = vpop.permute.xlu0 %9644
      %9646 = vrot.lane.b32.xlu0 %v9491, 9
      %v9647 = vpop.permute.xlu0 %9646
      %9648 = vrot.lane.b32.xlu0 %v9503, 9
      %v9649 = vpop.permute.xlu0 %9648
      %9650 = vrot.lane.b32.xlu0 %v9515, 9
      %v9651 = vpop.permute.xlu0 %9650
      %9652 = vrot.lane.b32.xlu0 %v9514, 9
      %v9653 = vpop.permute.xlu0 %9652
      %9654 = vrot.lane.b32.xlu0 %v9382, 9
      %v9655 = vpop.permute.xlu0 %9654
      %9656 = vrot.lane.b32.xlu0 %v9397, 9
      %v9657 = vpop.permute.xlu0 %9656
      %9658 = vrot.lane.b32.xlu0 %v9409, 9
      %v9659 = vpop.permute.xlu0 %9658
      %9660 = vrot.lane.b32.xlu0 %v9421, 9
      %v9661 = vpop.permute.xlu0 %9660
      %9662 = vrot.lane.b32.xlu0 %v9433, 9
      %v9663 = vpop.permute.xlu0 %9662
      %9664 = vrot.lane.b32.xlu0 %v9445, 9
      %v9665 = vpop.permute.xlu0 %9664
      %9666 = vrot.lane.b32.xlu0 %v9457, 9
      %v9667 = vpop.permute.xlu0 %9666
      %9668 = vrot.lane.b32.xlu0 %v9469, 9
      %v9669 = vpop.permute.xlu0 %9668
      %9670 = vrot.lane.b32.xlu0 %v9481, 9
      %v9671 = vpop.permute.xlu0 %9670
      %9672 = vrot.lane.b32.xlu0 %v9493, 9
      %v9673 = vpop.permute.xlu0 %9672
      %9674 = vrot.lane.b32.xlu0 %v9505, 9
      %v9675 = vpop.permute.xlu0 %9674
      %9676 = vrot.lane.b32.xlu0 %v9517, 9
      %v9677 = vpop.permute.xlu0 %9676
      %9678 = vrot.lane.b32.xlu0 %v9516, 9
      %v9679 = vpop.permute.xlu0 %9678
      %9680 = vrot.lane.b32.xlu0 %v9385, 9
      %v9681 = vpop.permute.xlu0 %9680
      %9682 = vrot.lane.b32.xlu0 %v9399, 9
      %v9683 = vpop.permute.xlu0 %9682
      %9684 = vrot.lane.b32.xlu0 %v9411, 9
      %v9685 = vpop.permute.xlu0 %9684
      %9686 = vrot.lane.b32.xlu0 %v9423, 9
      %v9687 = vpop.permute.xlu0 %9686
      %9688 = vrot.lane.b32.xlu0 %v9435, 9
      %v9689 = vpop.permute.xlu0 %9688
      %9690 = vrot.lane.b32.xlu0 %v9447, 9
      %v9691 = vpop.permute.xlu0 %9690
      %9692 = vrot.lane.b32.xlu0 %v9459, 9
      %v9693 = vpop.permute.xlu0 %9692
      %9694 = vrot.lane.b32.xlu0 %v9471, 9
      %v9695 = vpop.permute.xlu0 %9694
      %9696 = vrot.lane.b32.xlu0 %v9483, 9
      %v9697 = vpop.permute.xlu0 %9696
      %9698 = vrot.lane.b32.xlu0 %v9495, 9
      %v9699 = vpop.permute.xlu0 %9698
      %9700 = vrot.lane.b32.xlu0 %v9507, 9
      %v9701 = vpop.permute.xlu0 %9700
      %9702 = vrot.lane.b32.xlu0 %v9519, 9
      %v9703 = vpop.permute.xlu0 %9702
      %9704 = vrot.lane.b32.xlu0 %v9518, 9
      %v9705 = vpop.permute.xlu0 %9704
      %9706 = vrot.lane.b32.xlu0 %v9388, 9
      %v9707 = vpop.permute.xlu0 %9706
      %9708 = vrot.lane.b32.xlu0 %v9401, 9
      %v9709 = vpop.permute.xlu0 %9708
      %9710 = vrot.lane.b32.xlu0 %v9413, 9
      %v9711 = vpop.permute.xlu0 %9710
      %9712 = vrot.lane.b32.xlu0 %v9425, 9
      %v9713 = vpop.permute.xlu0 %9712
      %9714 = vrot.lane.b32.xlu0 %v9437, 9
      %v9715 = vpop.permute.xlu0 %9714
      %9716 = vrot.lane.b32.xlu0 %v9449, 9
      %v9717 = vpop.permute.xlu0 %9716
      %9718 = vrot.lane.b32.xlu0 %v9461, 9
      %v9719 = vpop.permute.xlu0 %9718
      %9720 = vrot.lane.b32.xlu0 %v9473, 9
      %v9721 = vpop.permute.xlu0 %9720
      %9722 = vrot.lane.b32.xlu0 %v9485, 9
      %v9723 = vpop.permute.xlu0 %9722
      %9724 = vrot.lane.b32.xlu0 %v9497, 9
      %v9725 = vpop.permute.xlu0 %9724
      %9726 = vrot.lane.b32.xlu0 %v9509, 9
      %v9727 = vpop.permute.xlu0 %9726
      %9728 = vrot.lane.b32.xlu0 %v9521, 9
      %v9729 = vpop.permute.xlu0 %9728
      %9730 = vrot.lane.b32.xlu0 %v9520, 9
      %v9731 = vpop.permute.xlu0 %9730
      %9732 = vrot.lane.b32.xlu0 %v9391, 9
      %v9733 = vpop.permute.xlu0 %9732
      %9734 = vrot.lane.b32.xlu0 %v9403, 9
      %v9735 = vpop.permute.xlu0 %9734
      %9736 = vrot.lane.b32.xlu0 %v9415, 9
      %v9737 = vpop.permute.xlu0 %9736
      %9738 = vrot.lane.b32.xlu0 %v9427, 9
      %v9739 = vpop.permute.xlu0 %9738
      %9740 = vrot.lane.b32.xlu0 %v9439, 9
      %v9741 = vpop.permute.xlu0 %9740
      %9742 = vrot.lane.b32.xlu0 %v9451, 9
      %v9743 = vpop.permute.xlu0 %9742
      %9744 = vrot.lane.b32.xlu0 %v9463, 9
      %v9745 = vpop.permute.xlu0 %9744
      %9746 = vrot.lane.b32.xlu0 %v9475, 9
      %v9747 = vpop.permute.xlu0 %9746
      %9748 = vrot.lane.b32.xlu0 %v9487, 9
      %v9749 = vpop.permute.xlu0 %9748
      %9750 = vrot.lane.b32.xlu0 %v9499, 9
      %v9751 = vpop.permute.xlu0 %9750
      %9752 = vrot.lane.b32.xlu0 %v9511, 9
      %v9753 = vpop.permute.xlu0 %9752
      %9754 = vrot.lane.b32.xlu0 %v9523, 9
      %v9755 = vpop.permute.xlu0 %9754
      %9756 = vrot.lane.b32.xlu0 %v9522, 9
      %v9757 = vpop.permute.xlu0 %9756
      %vm9758 = vcmp.lt.s32.totalorder %v4594, 9
      %v9759 = vsel %vm9758, %v9707, %v9733
      %v9760 = vsel %vm9758, %v9709, %v9735
      %v9761 = vsel %vm9758, %v9711, %v9737
      %v9762 = vsel %vm9758, %v9713, %v9739
      %v9763 = vsel %vm9758, %v9715, %v9741
      %v9764 = vsel %vm9758, %v9717, %v9743
      %v9765 = vsel %vm9758, %v9719, %v9745
      %v9766 = vsel %vm9758, %v9721, %v9747
      %v9767 = vsel %vm9758, %v9723, %v9749
      %v9768 = vsel %vm9758, %v9725, %v9751
      %v9769 = vsel %vm9758, %v9727, %v9753
      %v9770 = vsel %vm9758, %v9729, %v9755
      %v9771 = vsel %vm9758, %v9731, %v9757
      %v9772 = vsel %vm9758, %v9681, %v9707
      %v9773 = vsel %vm9758, %v9683, %v9709
      %v9774 = vsel %vm9758, %v9685, %v9711
      %v9775 = vsel %vm9758, %v9687, %v9713
      %v9776 = vsel %vm9758, %v9689, %v9715
      %v9777 = vsel %vm9758, %v9691, %v9717
      %v9778 = vsel %vm9758, %v9693, %v9719
      %v9779 = vsel %vm9758, %v9695, %v9721
      %v9780 = vsel %vm9758, %v9697, %v9723
      %v9781 = vsel %vm9758, %v9699, %v9725
      %v9782 = vsel %vm9758, %v9701, %v9727
      %v9783 = vsel %vm9758, %v9703, %v9729
      %v9784 = vsel %vm9758, %v9705, %v9731
      %v9785 = vsel %vm9758, %v9655, %v9681
      %v9786 = vsel %vm9758, %v9657, %v9683
      %v9787 = vsel %vm9758, %v9659, %v9685
      %v9788 = vsel %vm9758, %v9661, %v9687
      %v9789 = vsel %vm9758, %v9663, %v9689
      %v9790 = vsel %vm9758, %v9665, %v9691
      %v9791 = vsel %vm9758, %v9667, %v9693
      %v9792 = vsel %vm9758, %v9669, %v9695
      %v9793 = vsel %vm9758, %v9671, %v9697
      %v9794 = vsel %vm9758, %v9673, %v9699
      %v9795 = vsel %vm9758, %v9675, %v9701
      %v9796 = vsel %vm9758, %v9677, %v9703
      %v9797 = vsel %vm9758, %v9679, %v9705
      %v9798 = vsel %vm9758, %v9629, %v9655
      %v9799 = vsel %vm9758, %v9631, %v9657
      %v9800 = vsel %vm9758, %v9633, %v9659
      %v9801 = vsel %vm9758, %v9635, %v9661
      %v9802 = vsel %vm9758, %v9637, %v9663
      %v9803 = vsel %vm9758, %v9639, %v9665
      %v9804 = vsel %vm9758, %v9641, %v9667
      %v9805 = vsel %vm9758, %v9643, %v9669
      %v9806 = vsel %vm9758, %v9645, %v9671
      %v9807 = vsel %vm9758, %v9647, %v9673
      %v9808 = vsel %vm9758, %v9649, %v9675
      %v9809 = vsel %vm9758, %v9651, %v9677
      %v9810 = vsel %vm9758, %v9653, %v9679
      %v9811 = vsel %vm9758, %v9603, %v9629
      %v9812 = vsel %vm9758, %v9605, %v9631
      %v9813 = vsel %vm9758, %v9607, %v9633
      %v9814 = vsel %vm9758, %v9609, %v9635
      %v9815 = vsel %vm9758, %v9611, %v9637
      %v9816 = vsel %vm9758, %v9613, %v9639
      %v9817 = vsel %vm9758, %v9615, %v9641
      %v9818 = vsel %vm9758, %v9617, %v9643
      %v9819 = vsel %vm9758, %v9619, %v9645
      %v9820 = vsel %vm9758, %v9621, %v9647
      %v9821 = vsel %vm9758, %v9623, %v9649
      %v9822 = vsel %vm9758, %v9625, %v9651
      %v9823 = vsel %vm9758, %v9627, %v9653
      %v9824 = vsel %vm9758, %v9733, %v9603
      %v9825 = vsel %vm9758, %v9735, %v9605
      %v9826 = vsel %vm9758, %v9737, %v9607
      %v9827 = vsel %vm9758, %v9739, %v9609
      %v9828 = vsel %vm9758, %v9741, %v9611
      %v9829 = vsel %vm9758, %v9743, %v9613
      %v9830 = vsel %vm9758, %v9745, %v9615
      %v9831 = vsel %vm9758, %v9747, %v9617
      %v9832 = vsel %vm9758, %v9749, %v9619
      %v9833 = vsel %vm9758, %v9751, %v9621
      %v9834 = vsel %vm9758, %v9753, %v9623
      %v9835 = vsel %vm9758, %v9755, %v9625
      %v9836 = vsel %vm9758, %v9757, %v9627
      %v9837 = vadd.f32 %v9271, %v9824
      %v9838 = vadd.f32 %v9258, %v9811
      %v9839 = vadd.f32 %v9245, %v9798
      %v9840 = vadd.f32 %v9232, %v9785
      %v9841 = vadd.f32 %v9219, %v9772
      %v9842 = vadd.f32 %v9206, %v9759
      %v9843 = vadd.f32 %v9272, %v9825
      %v9844 = vadd.f32 %v9259, %v9812
      %v9845 = vadd.f32 %v9246, %v9799
      %v9846 = vadd.f32 %v9233, %v9786
      %v9847 = vadd.f32 %v9220, %v9773
      %v9848 = vadd.f32 %v9207, %v9760
      %v9849 = vadd.f32 %v9273, %v9826
      %v9850 = vadd.f32 %v9260, %v9813
      %v9851 = vadd.f32 %v9247, %v9800
      %v9852 = vadd.f32 %v9234, %v9787
      %v9853 = vadd.f32 %v9221, %v9774
      %v9854 = vadd.f32 %v9208, %v9761
      %v9855 = vadd.f32 %v9274, %v9827
      %v9856 = vadd.f32 %v9261, %v9814
      %v9857 = vadd.f32 %v9248, %v9801
      %v9858 = vadd.f32 %v9235, %v9788
      %v9859 = vadd.f32 %v9222, %v9775
      %v9860 = vadd.f32 %v9209, %v9762
      %v9861 = vadd.f32 %v9275, %v9828
      %v9862 = vadd.f32 %v9262, %v9815
      %v9863 = vadd.f32 %v9249, %v9802
      %v9864 = vadd.f32 %v9236, %v9789
      %v9865 = vadd.f32 %v9223, %v9776
      %v9866 = vadd.f32 %v9210, %v9763
      %v9867 = vadd.f32 %v9276, %v9829
      %v9868 = vadd.f32 %v9263, %v9816
      %v9869 = vadd.f32 %v9250, %v9803
      %v9870 = vadd.f32 %v9237, %v9790
      %v9871 = vadd.f32 %v9224, %v9777
      %v9872 = vadd.f32 %v9211, %v9764
      %v9873 = vadd.f32 %v9277, %v9830
      %v9874 = vadd.f32 %v9264, %v9817
      %v9875 = vadd.f32 %v9251, %v9804
      %v9876 = vadd.f32 %v9238, %v9791
      %v9877 = vadd.f32 %v9225, %v9778
      %v9878 = vadd.f32 %v9212, %v9765
      %v9879 = vadd.f32 %v9278, %v9831
      %v9880 = vadd.f32 %v9265, %v9818
      %v9881 = vadd.f32 %v9252, %v9805
      %v9882 = vadd.f32 %v9239, %v9792
      %v9883 = vadd.f32 %v9226, %v9779
      %v9884 = vadd.f32 %v9213, %v9766
      %v9885 = vadd.f32 %v9279, %v9832
      %v9886 = vadd.f32 %v9266, %v9819
      %v9887 = vadd.f32 %v9253, %v9806
      %v9888 = vadd.f32 %v9240, %v9793
      %v9889 = vadd.f32 %v9227, %v9780
      %v9890 = vadd.f32 %v9214, %v9767
      %v9891 = vadd.f32 %v9280, %v9833
      %v9892 = vadd.f32 %v9267, %v9820
      %v9893 = vadd.f32 %v9254, %v9807
      %v9894 = vadd.f32 %v9241, %v9794
      %v9895 = vadd.f32 %v9228, %v9781
      %v9896 = vadd.f32 %v9215, %v9768
      %v9897 = vadd.f32 %v9281, %v9834
      %v9898 = vadd.f32 %v9268, %v9821
      %v9899 = vadd.f32 %v9255, %v9808
      %v9900 = vadd.f32 %v9242, %v9795
      %v9901 = vadd.f32 %v9229, %v9782
      %v9902 = vadd.f32 %v9216, %v9769
      %v9903 = vadd.f32 %v9282, %v9835
      %v9904 = vadd.f32 %v9269, %v9822
      %v9905 = vadd.f32 %v9256, %v9809
      %v9906 = vadd.f32 %v9243, %v9796
      %v9907 = vadd.f32 %v9230, %v9783
      %v9908 = vadd.f32 %v9217, %v9770
      %v9909 = vadd.f32 %v9283, %v9836
      %v9910 = vadd.f32 %v9270, %v9823
      %v9911 = vadd.f32 %v9257, %v9810
      %v9912 = vadd.f32 %v9244, %v9797
      %v9913 = vadd.f32 %v9231, %v9784
      %v9914 = vadd.f32 %v9218, %v9771
      %v9915 = vadd.f32 %v8893, %v9837
      %v9916 = vadd.f32 %v8894, %v9838
      %v9917 = vadd.f32 %v8895, %v9839
      %v9918 = vadd.f32 %v8896, %v9840
      %v9919 = vadd.f32 %v8897, %v9841
      %v9920 = vadd.f32 %v8898, %v9842
      %v9921 = vadd.f32 %v8899, %v9843
      %v9922 = vadd.f32 %v8900, %v9844
      %v9923 = vadd.f32 %v8901, %v9845
      %v9924 = vadd.f32 %v8902, %v9846
      %v9925 = vadd.f32 %v8903, %v9847
      %v9926 = vadd.f32 %v8904, %v9848
      %v9927 = vadd.f32 %v8905, %v9849
      %v9928 = vadd.f32 %v8906, %v9850
      %v9929 = vadd.f32 %v8907, %v9851
      %v9930 = vadd.f32 %v8908, %v9852
      %v9931 = vadd.f32 %v8909, %v9853
      %v9932 = vadd.f32 %v8910, %v9854
      %v9933 = vadd.f32 %v8911, %v9855
      %v9934 = vadd.f32 %v8912, %v9856
      %v9935 = vadd.f32 %v8913, %v9857
      %v9936 = vadd.f32 %v8914, %v9858
      %v9937 = vadd.f32 %v8915, %v9859
      %v9938 = vadd.f32 %v8916, %v9860
      %v9939 = vadd.f32 %v8917, %v9861
      %v9940 = vadd.f32 %v8918, %v9862
      %v9941 = vadd.f32 %v8919, %v9863
      %v9942 = vadd.f32 %v8920, %v9864
      %v9943 = vadd.f32 %v8921, %v9865
      %v9944 = vadd.f32 %v8922, %v9866
      %v9945 = vadd.f32 %v8923, %v9867
      %v9946 = vadd.f32 %v8924, %v9868
      %v9947 = vadd.f32 %v8925, %v9869
      %v9948 = vadd.f32 %v8926, %v9870
      %v9949 = vadd.f32 %v8927, %v9871
      %v9950 = vadd.f32 %v8928, %v9872
      %v9951 = vadd.f32 %v8929, %v9873
      %v9952 = vadd.f32 %v8930, %v9874
      %v9953 = vadd.f32 %v8931, %v9875
      %v9954 = vadd.f32 %v8932, %v9876
      %v9955 = vadd.f32 %v8933, %v9877
      %v9956 = vadd.f32 %v8934, %v9878
      %v9957 = vadd.f32 %v8935, %v9879
      %v9958 = vadd.f32 %v8936, %v9880
      %v9959 = vadd.f32 %v8937, %v9881
      %v9960 = vadd.f32 %v8938, %v9882
      %v9961 = vadd.f32 %v8939, %v9883
      %v9962 = vadd.f32 %v8940, %v9884
      %v9963 = vadd.f32 %v8941, %v9885
      %v9964 = vadd.f32 %v8942, %v9886
      %v9965 = vadd.f32 %v8943, %v9887
      %v9966 = vadd.f32 %v8944, %v9888
      %v9967 = vadd.f32 %v8945, %v9889
      %v9968 = vadd.f32 %v8946, %v9890
      %v9969 = vadd.f32 %v8947, %v9891
      %v9970 = vadd.f32 %v8948, %v9892
      %v9971 = vadd.f32 %v8949, %v9893
      %v9972 = vadd.f32 %v8950, %v9894
      %v9973 = vadd.f32 %v8951, %v9895
      %v9974 = vadd.f32 %v8952, %v9896
      %v9975 = vadd.f32 %v8953, %v9897
      %v9976 = vadd.f32 %v8954, %v9898
      %v9977 = vadd.f32 %v8955, %v9899
      %v9978 = vadd.f32 %v8956, %v9900
      %v9979 = vadd.f32 %v8957, %v9901
      %v9980 = vadd.f32 %v8958, %v9902
      %v9981 = vadd.f32 %v8959, %v9903
      %v9982 = vadd.f32 %v8960, %v9904
      %v9983 = vadd.f32 %v8961, %v9905
      %v9984 = vadd.f32 %v8962, %v9906
      %v9985 = vadd.f32 %v8963, %v9907
      %v9986 = vadd.f32 %v8964, %v9908
      %v9987 = vadd.f32 %v8965, %v9909
      %v9988 = vadd.f32 %v8966, %v9910
      %v9989 = vadd.f32 %v8967, %v9911
      %v9990 = vadd.f32 %v8968, %v9912
      %v9991 = vadd.f32 %v8969, %v9913
      %v9992 = vadd.f32 %v8970, %v9914
      %9993 = vst [vmem:[%s224] sm:$0xff] %v9915
      %9994 = vst [vmem:[%s224 + $0x8] sm:$0xff] %v9916
      %9995 = vst [vmem:[%s224 + $0x10] sm:$0xff] %v9917
      %9996 = vst [vmem:[%s224 + $0x18] sm:$0xff] %v9918
      %9997 = vst [vmem:[%s224 + $0x20] sm:$0xff] %v9919
      %9998 = vst.msk [vmem:[%s224 + $0x28] sm:$0xff] %vm3069, %v9920
      %9999 = vst [vmem:[%s224 + $0x30] sm:$0xff] %v9921
      %10000 = vst [vmem:[%s224 + $0x38] sm:$0xff] %v9922
      %10001 = vst [vmem:[%s224 + $0x40] sm:$0xff] %v9923
      %10002 = vst [vmem:[%s224 + $0x48] sm:$0xff] %v9924
      %10003 = vst [vmem:[%s224 + $0x50] sm:$0xff] %v9925
      %10004 = vst.msk [vmem:[%s224 + $0x58] sm:$0xff] %vm3069, %v9926
      %10005 = vst [vmem:[%s224 + $0x60] sm:$0xff] %v9927
      %10006 = vst [vmem:[%s224 + $0x68] sm:$0xff] %v9928
      %10007 = vst [vmem:[%s224 + $0x70] sm:$0xff] %v9929
      %10008 = vst [vmem:[%s224 + $0x78] sm:$0xff] %v9930
      %10009 = vst [vmem:[%s224 + $0x80] sm:$0xff] %v9931
      %10010 = vst.msk [vmem:[%s224 + $0x88] sm:$0xff] %vm3069, %v9932
      %10011 = vst [vmem:[%s224 + $0x90] sm:$0xff] %v9933
      %10012 = vst [vmem:[%s224 + $0x98] sm:$0xff] %v9934
      %10013 = vst [vmem:[%s224 + $0xa0] sm:$0xff] %v9935
      %10014 = vst [vmem:[%s224 + $0xa8] sm:$0xff] %v9936
      %10015 = vst [vmem:[%s224 + $0xb0] sm:$0xff] %v9937
      %10016 = vst.msk [vmem:[%s224 + $0xb8] sm:$0xff] %vm3069, %v9938
      %10017 = vst [vmem:[%s224 + $0xc0] sm:$0xff] %v9939
      %10018 = vst [vmem:[%s224 + $0xc8] sm:$0xff] %v9940
      %10019 = vst [vmem:[%s224 + $0xd0] sm:$0xff] %v9941
      %10020 = vst [vmem:[%s224 + $0xd8] sm:$0xff] %v9942
      %10021 = vst [vmem:[%s224 + $0xe0] sm:$0xff] %v9943
      %10022 = vst.msk [vmem:[%s224 + $0xe8] sm:$0xff] %vm3069, %v9944
      %10023 = vst [vmem:[%s224 + $0xf0] sm:$0xff] %v9945
      %10024 = vst [vmem:[%s224 + $0xf8] sm:$0xff] %v9946
      %10025 = vst [vmem:[%s224 + $0x100] sm:$0xff] %v9947
      %10026 = vst [vmem:[%s224 + $0x108] sm:$0xff] %v9948
      %10027 = vst [vmem:[%s224 + $0x110] sm:$0xff] %v9949
      %10028 = vst.msk [vmem:[%s224 + $0x118] sm:$0xff] %vm3069, %v9950
      %10029 = vst [vmem:[%s224 + $0x120] sm:$0xff] %v9951
      %10030 = vst [vmem:[%s224 + $0x128] sm:$0xff] %v9952
      %10031 = vst [vmem:[%s224 + $0x130] sm:$0xff] %v9953
      %10032 = vst [vmem:[%s224 + $0x138] sm:$0xff] %v9954
      %10033 = vst [vmem:[%s224 + $0x140] sm:$0xff] %v9955
      %10034 = vst.msk [vmem:[%s224 + $0x148] sm:$0xff] %vm3069, %v9956
      %10035 = vst [vmem:[%s224 + $0x150] sm:$0xff] %v9957
      %10036 = vst [vmem:[%s224 + $0x158] sm:$0xff] %v9958
      %10037 = vst [vmem:[%s224 + $0x160] sm:$0xff] %v9959
      %10038 = vst [vmem:[%s224 + $0x168] sm:$0xff] %v9960
      %10039 = vst [vmem:[%s224 + $0x170] sm:$0xff] %v9961
      %10040 = vst.msk [vmem:[%s224 + $0x178] sm:$0xff] %vm3069, %v9962
      %10041 = vst [vmem:[%s224 + $0x180] sm:$0xff] %v9963
      %10042 = vst [vmem:[%s224 + $0x188] sm:$0xff] %v9964
      %10043 = vst [vmem:[%s224 + $0x190] sm:$0xff] %v9965
      %10044 = vst [vmem:[%s224 + $0x198] sm:$0xff] %v9966
      %10045 = vst [vmem:[%s224 + $0x1a0] sm:$0xff] %v9967
      %10046 = vst.msk [vmem:[%s224 + $0x1a8] sm:$0xff] %vm3069, %v9968
      %10047 = vst [vmem:[%s224 + $0x1b0] sm:$0xff] %v9969
      %10048 = vst [vmem:[%s224 + $0x1b8] sm:$0xff] %v9970
      %10049 = vst [vmem:[%s224 + $0x1c0] sm:$0xff] %v9971
      %10050 = vst [vmem:[%s224 + $0x1c8] sm:$0xff] %v9972
      %10051 = vst [vmem:[%s224 + $0x1d0] sm:$0xff] %v9973
      %10052 = vst.msk [vmem:[%s224 + $0x1d8] sm:$0xff] %vm3069, %v9974
      %10053 = vst [vmem:[%s224 + $0x1e0] sm:$0xff] %v9975
      %10054 = vst [vmem:[%s224 + $0x1e8] sm:$0xff] %v9976
      %10055 = vst [vmem:[%s224 + $0x1f0] sm:$0xff] %v9977
      %10056 = vst [vmem:[%s224 + $0x1f8] sm:$0xff] %v9978
      %10057 = vst [vmem:[%s224 + $0x200] sm:$0xff] %v9979
      %10058 = vst.msk [vmem:[%s224 + $0x208] sm:$0xff] %vm3069, %v9980
      %10059 = vst [vmem:[%s224 + $0x210] sm:$0xff] %v9981
      %10060 = vst [vmem:[%s224 + $0x218] sm:$0xff] %v9982
      %10061 = vst [vmem:[%s224 + $0x220] sm:$0xff] %v9983
      %10062 = vst [vmem:[%s224 + $0x228] sm:$0xff] %v9984
      %10063 = vst [vmem:[%s224 + $0x230] sm:$0xff] %v9985
      %10064 = vst.msk [vmem:[%s224 + $0x238] sm:$0xff] %vm3069, %v9986
      %10065 = vst [vmem:[%s224 + $0x240] sm:$0x1f] %v9987
      %10066 = vst [vmem:[%s224 + $0x248] sm:$0x1f] %v9988
      %10067 = vst [vmem:[%s224 + $0x250] sm:$0x1f] %v9989
      %10068 = vst [vmem:[%s224 + $0x258] sm:$0x1f] %v9990
      %10069 = vst [vmem:[%s224 + $0x260] sm:$0x1f] %v9991
      %10070 = vst.msk [vmem:[%s224 + $0x268] sm:$0x1f] %vm4829, %v9992
      %v10071 = vld [vmem:[%s224] sm:$0xff]
      %v10072 = vld [vmem:[%s224 + $0x8] sm:$0xff]
      %v10073 = vld [vmem:[%s224 + $0x10] sm:$0xff]
      %v10074 = vld [vmem:[%s224 + $0x18] sm:$0xff]
      %v10075 = vld [vmem:[%s224 + $0x20] sm:$0xff]
      %v10076 = vld [vmem:[%s224 + $0x28] sm:$0xff]
      %v10077 = vld [vmem:[%s224 + $0x30] sm:$0xff]
      %v10078 = vld [vmem:[%s224 + $0x38] sm:$0xff]
      %v10079 = vld [vmem:[%s224 + $0x40] sm:$0xff]
      %v10080 = vld [vmem:[%s224 + $0x48] sm:$0xff]
      %v10081 = vld [vmem:[%s224 + $0x50] sm:$0xff]
      %v10082 = vld [vmem:[%s224 + $0x58] sm:$0xff]
      %v10083 = vld [vmem:[%s224 + $0x60] sm:$0xff]
      %v10084 = vld [vmem:[%s224 + $0x68] sm:$0xff]
      %v10085 = vld [vmem:[%s224 + $0x70] sm:$0xff]
      %v10086 = vld [vmem:[%s224 + $0x78] sm:$0xff]
      %v10087 = vld [vmem:[%s224 + $0x80] sm:$0xff]
      %v10088 = vld [vmem:[%s224 + $0x88] sm:$0xff]
      %v10089 = vld [vmem:[%s224 + $0x90] sm:$0xff]
      %v10090 = vld [vmem:[%s224 + $0x98] sm:$0xff]
      %v10091 = vld [vmem:[%s224 + $0xa0] sm:$0xff]
      %v10092 = vld [vmem:[%s224 + $0xa8] sm:$0xff]
      %v10093 = vld [vmem:[%s224 + $0xb0] sm:$0xff]
      %v10094 = vld [vmem:[%s224 + $0xb8] sm:$0xff]
      %v10095 = vld [vmem:[%s224 + $0xc0] sm:$0xff]
      %v10096 = vld [vmem:[%s224 + $0xc8] sm:$0xff]
      %v10097 = vld [vmem:[%s224 + $0xd0] sm:$0xff]
      %v10098 = vld [vmem:[%s224 + $0xd8] sm:$0xff]
      %v10099 = vld [vmem:[%s224 + $0xe0] sm:$0xff]
      %v10100 = vld [vmem:[%s224 + $0xe8] sm:$0xff]
      %v10101 = vld [vmem:[%s224 + $0xf0] sm:$0xff]
      %v10102 = vld [vmem:[%s224 + $0xf8] sm:$0xff]
      %v10103 = vld [vmem:[%s224 + $0x100] sm:$0xff]
      %v10104 = vld [vmem:[%s224 + $0x108] sm:$0xff]
      %v10105 = vld [vmem:[%s224 + $0x110] sm:$0xff]
      %v10106 = vld [vmem:[%s224 + $0x118] sm:$0xff]
      %v10107 = vld [vmem:[%s224 + $0x120] sm:$0xff]
      %v10108 = vld [vmem:[%s224 + $0x128] sm:$0xff]
      %v10109 = vld [vmem:[%s224 + $0x130] sm:$0xff]
      %v10110 = vld [vmem:[%s224 + $0x138] sm:$0xff]
      %v10111 = vld [vmem:[%s224 + $0x140] sm:$0xff]
      %v10112 = vld [vmem:[%s224 + $0x148] sm:$0xff]
      %v10113 = vld [vmem:[%s224 + $0x150] sm:$0xff]
      %v10114 = vld [vmem:[%s224 + $0x158] sm:$0xff]
      %v10115 = vld [vmem:[%s224 + $0x160] sm:$0xff]
      %v10116 = vld [vmem:[%s224 + $0x168] sm:$0xff]
      %v10117 = vld [vmem:[%s224 + $0x170] sm:$0xff]
      %v10118 = vld [vmem:[%s224 + $0x178] sm:$0xff]
      %v10119 = vld [vmem:[%s224 + $0x180] sm:$0xff]
      %v10120 = vld [vmem:[%s224 + $0x188] sm:$0xff]
      %v10121 = vld [vmem:[%s224 + $0x190] sm:$0xff]
      %v10122 = vld [vmem:[%s224 + $0x198] sm:$0xff]
      %v10123 = vld [vmem:[%s224 + $0x1a0] sm:$0xff]
      %v10124 = vld [vmem:[%s224 + $0x1a8] sm:$0xff]
      %v10125 = vld [vmem:[%s224 + $0x1b0] sm:$0xff]
      %v10126 = vld [vmem:[%s224 + $0x1b8] sm:$0xff]
      %v10127 = vld [vmem:[%s224 + $0x1c0] sm:$0xff]
      %v10128 = vld [vmem:[%s224 + $0x1c8] sm:$0xff]
      %v10129 = vld [vmem:[%s224 + $0x1d0] sm:$0xff]
      %v10130 = vld [vmem:[%s224 + $0x1d8] sm:$0xff]
      %v10131 = vld [vmem:[%s224 + $0x1e0] sm:$0xff]
      %v10132 = vld [vmem:[%s224 + $0x1e8] sm:$0xff]
      %v10133 = vld [vmem:[%s224 + $0x1f0] sm:$0xff]
      %v10134 = vld [vmem:[%s224 + $0x1f8] sm:$0xff]
      %v10135 = vld [vmem:[%s224 + $0x200] sm:$0xff]
      %v10136 = vld [vmem:[%s224 + $0x208] sm:$0xff]
      %v10137 = vld [vmem:[%s224 + $0x210] sm:$0xff]
      %v10138 = vld [vmem:[%s224 + $0x218] sm:$0xff]
      %v10139 = vld [vmem:[%s224 + $0x220] sm:$0xff]
      %v10140 = vld [vmem:[%s224 + $0x228] sm:$0xff]
      %v10141 = vld [vmem:[%s224 + $0x230] sm:$0xff]
      %v10142 = vld [vmem:[%s224 + $0x238] sm:$0xff]
      %v10143 = vld [vmem:[%s224 + $0x240] sm:$0x1f]
      %v10144 = vld [vmem:[%s224 + $0x248] sm:$0x1f]
      %v10145 = vld [vmem:[%s224 + $0x250] sm:$0x1f]
      %v10146 = vld [vmem:[%s224 + $0x258] sm:$0x1f]
      %v10147 = vld [vmem:[%s224 + $0x260] sm:$0x1f]
      %v10148 = vld [vmem:[%s224 + $0x268] sm:$0x1f]
      %v10149 = vld [vmem:[#allocation2 + $0x30] sm:$0xfc]
      %v10150 = vld [vmem:[#allocation2 + $0x38] sm:$0xfc]
      %v10151 = vld [vmem:[#allocation2 + $0x40] sm:$0xfc]
      %v10152 = vld [vmem:[#allocation2 + $0x48] sm:$0xfc]
      %v10153 = vld [vmem:[#allocation2 + $0x50] sm:$0xfc]
      %v10154 = vld [vmem:[#allocation2 + $0x58] sm:$0xfc]
      %v10155 = vld [vmem:[#allocation2 + $0x60] sm:$0xff]
      %v10156 = vld [vmem:[#allocation2 + $0x68] sm:$0xff]
      %v10157 = vld [vmem:[#allocation2 + $0x70] sm:$0xff]
      %v10158 = vld [vmem:[#allocation2 + $0x78] sm:$0xff]
      %v10159 = vld [vmem:[#allocation2 + $0x80] sm:$0xff]
      %v10160 = vld [vmem:[#allocation2 + $0x88] sm:$0xff]
      %v10161 = vld [vmem:[#allocation2 + $0x90] sm:$0xff]
      %v10162 = vld [vmem:[#allocation2 + $0x98] sm:$0xff]
      %v10163 = vld [vmem:[#allocation2 + $0xa0] sm:$0xff]
      %v10164 = vld [vmem:[#allocation2 + $0xa8] sm:$0xff]
      %v10165 = vld [vmem:[#allocation2 + $0xb0] sm:$0xff]
      %v10166 = vld [vmem:[#allocation2 + $0xb8] sm:$0xff]
      %v10167 = vld [vmem:[#allocation2 + $0xc0] sm:$0xff]
      %v10168 = vld [vmem:[#allocation2 + $0xc8] sm:$0xff]
      %v10169 = vld [vmem:[#allocation2 + $0xd0] sm:$0xff]
      %v10170 = vld [vmem:[#allocation2 + $0xd8] sm:$0xff]
      %v10171 = vld [vmem:[#allocation2 + $0xe0] sm:$0xff]
      %v10172 = vld [vmem:[#allocation2 + $0xe8] sm:$0xff]
      %v10173 = vld [vmem:[#allocation2 + $0xf0] sm:$0xff]
      %v10174 = vld [vmem:[#allocation2 + $0xf8] sm:$0xff]
      %v10175 = vld [vmem:[#allocation2 + $0x100] sm:$0xff]
      %v10176 = vld [vmem:[#allocation2 + $0x108] sm:$0xff]
      %v10177 = vld [vmem:[#allocation2 + $0x110] sm:$0xff]
      %v10178 = vld [vmem:[#allocation2 + $0x118] sm:$0xff]
      %v10179 = vld [vmem:[#allocation2 + $0x120] sm:$0xff]
      %v10180 = vld [vmem:[#allocation2 + $0x128] sm:$0xff]
      %v10181 = vld [vmem:[#allocation2 + $0x130] sm:$0xff]
      %v10182 = vld [vmem:[#allocation2 + $0x138] sm:$0xff]
      %v10183 = vld [vmem:[#allocation2 + $0x140] sm:$0xff]
      %v10184 = vld [vmem:[#allocation2 + $0x148] sm:$0xff]
      %v10185 = vld [vmem:[#allocation2 + $0x150] sm:$0xff]
      %v10186 = vld [vmem:[#allocation2 + $0x158] sm:$0xff]
      %v10187 = vld [vmem:[#allocation2 + $0x160] sm:$0xff]
      %v10188 = vld [vmem:[#allocation2 + $0x168] sm:$0xff]
      %v10189 = vld [vmem:[#allocation2 + $0x170] sm:$0xff]
      %v10190 = vld [vmem:[#allocation2 + $0x178] sm:$0xff]
      %v10191 = vld [vmem:[#allocation2 + $0x180] sm:$0xff]
      %v10192 = vld [vmem:[#allocation2 + $0x188] sm:$0xff]
      %v10193 = vld [vmem:[#allocation2 + $0x190] sm:$0xff]
      %v10194 = vld [vmem:[#allocation2 + $0x198] sm:$0xff]
      %v10195 = vld [vmem:[#allocation2 + $0x1a0] sm:$0xff]
      %v10196 = vld [vmem:[#allocation2 + $0x1a8] sm:$0xff]
      %v10197 = vld [vmem:[#allocation2 + $0x1b0] sm:$0xff]
      %v10198 = vld [vmem:[#allocation2 + $0x1b8] sm:$0xff]
      %v10199 = vld [vmem:[#allocation2 + $0x1c0] sm:$0xff]
      %v10200 = vld [vmem:[#allocation2 + $0x1c8] sm:$0xff]
      %v10201 = vld [vmem:[#allocation2 + $0x1d0] sm:$0xff]
      %v10202 = vld [vmem:[#allocation2 + $0x1d8] sm:$0xff]
      %v10203 = vld [vmem:[#allocation2 + $0x1e0] sm:$0xff]
      %v10204 = vld [vmem:[#allocation2 + $0x1e8] sm:$0xff]
      %v10205 = vld [vmem:[#allocation2 + $0x1f0] sm:$0xff]
      %v10206 = vld [vmem:[#allocation2 + $0x1f8] sm:$0xff]
      %v10207 = vld [vmem:[#allocation2 + $0x200] sm:$0xff]
      %v10208 = vld [vmem:[#allocation2 + $0x208] sm:$0xff]
      %v10209 = vld [vmem:[#allocation2 + $0x210] sm:$0xff]
      %v10210 = vld [vmem:[#allocation2 + $0x218] sm:$0xff]
      %v10211 = vld [vmem:[#allocation2 + $0x220] sm:$0xff]
      %v10212 = vld [vmem:[#allocation2 + $0x228] sm:$0xff]
      %v10213 = vld [vmem:[#allocation2 + $0x230] sm:$0xff]
      %v10214 = vld [vmem:[#allocation2 + $0x238] sm:$0xff]
      %v10215 = vld [vmem:[#allocation2 + $0x240] sm:$0xff]
      %v10216 = vld [vmem:[#allocation2 + $0x248] sm:$0xff]
      %v10217 = vld [vmem:[#allocation2 + $0x250] sm:$0xff]
      %v10218 = vld [vmem:[#allocation2 + $0x258] sm:$0xff]
      %v10219 = vld [vmem:[#allocation2 + $0x260] sm:$0xff]
      %v10220 = vld [vmem:[#allocation2 + $0x268] sm:$0xff]
      %v10221 = vld [vmem:[#allocation2 + $0x270] sm:$0x7f]
      %v10222 = vld [vmem:[#allocation2 + $0x278] sm:$0x7f]
      %v10223 = vld [vmem:[#allocation2 + $0x280] sm:$0x7f]
      %v10224 = vld [vmem:[#allocation2 + $0x288] sm:$0x7f]
      %v10225 = vld [vmem:[#allocation2 + $0x290] sm:$0x7f]
      %v10226 = vld [vmem:[#allocation2 + $0x298] sm:$0x7f]
      %v10305 = vrot.slane %v10149, 2
      %v10306 = vrot.slane %v10155, 2
      %v10307 = vsel %vm2679, %v10305, %v10306
      %v10308 = vrot.slane %v10150, 2
      %v10309 = vrot.slane %v10156, 2
      %v10310 = vsel %vm2679, %v10308, %v10309
      %v10311 = vrot.slane %v10151, 2
      %v10312 = vrot.slane %v10157, 2
      %v10313 = vsel %vm2679, %v10311, %v10312
      %v10314 = vrot.slane %v10152, 2
      %v10315 = vrot.slane %v10158, 2
      %v10316 = vsel %vm2679, %v10314, %v10315
      %v10317 = vrot.slane %v10153, 2
      %v10318 = vrot.slane %v10159, 2
      %v10319 = vsel %vm2679, %v10317, %v10318
      %v10320 = vrot.slane %v10154, 2
      %v10321 = vrot.slane %v10160, 2
      %v10322 = vsel %vm2679, %v10320, %v10321
      %v10323 = vrot.slane %v10161, 2
      %v10324 = vsel %vm2679, %v10306, %v10323
      %v10325 = vrot.slane %v10162, 2
      %v10326 = vsel %vm2679, %v10309, %v10325
      %v10327 = vrot.slane %v10163, 2
      %v10328 = vsel %vm2679, %v10312, %v10327
      %v10329 = vrot.slane %v10164, 2
      %v10330 = vsel %vm2679, %v10315, %v10329
      %v10331 = vrot.slane %v10165, 2
      %v10332 = vsel %vm2679, %v10318, %v10331
      %v10333 = vrot.slane %v10166, 2
      %v10334 = vsel %vm2679, %v10321, %v10333
      %v10335 = vrot.slane %v10167, 2
      %v10336 = vsel %vm2679, %v10323, %v10335
      %v10337 = vrot.slane %v10168, 2
      %v10338 = vsel %vm2679, %v10325, %v10337
      %v10339 = vrot.slane %v10169, 2
      %v10340 = vsel %vm2679, %v10327, %v10339
      %v10341 = vrot.slane %v10170, 2
      %v10342 = vsel %vm2679, %v10329, %v10341
      %v10343 = vrot.slane %v10171, 2
      %v10344 = vsel %vm2679, %v10331, %v10343
      %v10345 = vrot.slane %v10172, 2
      %v10346 = vsel %vm2679, %v10333, %v10345
      %v10347 = vrot.slane %v10173, 2
      %v10348 = vsel %vm2679, %v10335, %v10347
      %v10349 = vrot.slane %v10174, 2
      %v10350 = vsel %vm2679, %v10337, %v10349
      %v10351 = vrot.slane %v10175, 2
      %v10352 = vsel %vm2679, %v10339, %v10351
      %v10353 = vrot.slane %v10176, 2
      %v10354 = vsel %vm2679, %v10341, %v10353
      %v10355 = vrot.slane %v10177, 2
      %v10356 = vsel %vm2679, %v10343, %v10355
      %v10357 = vrot.slane %v10178, 2
      %v10358 = vsel %vm2679, %v10345, %v10357
      %v10359 = vrot.slane %v10179, 2
      %v10360 = vsel %vm2679, %v10347, %v10359
      %v10361 = vrot.slane %v10180, 2
      %v10362 = vsel %vm2679, %v10349, %v10361
      %v10363 = vrot.slane %v10181, 2
      %v10364 = vsel %vm2679, %v10351, %v10363
      %v10365 = vrot.slane %v10182, 2
      %v10366 = vsel %vm2679, %v10353, %v10365
      %v10367 = vrot.slane %v10183, 2
      %v10368 = vsel %vm2679, %v10355, %v10367
      %v10369 = vrot.slane %v10184, 2
      %v10370 = vsel %vm2679, %v10357, %v10369
      %v10371 = vrot.slane %v10185, 2
      %v10372 = vsel %vm2679, %v10359, %v10371
      %v10373 = vrot.slane %v10186, 2
      %v10374 = vsel %vm2679, %v10361, %v10373
      %v10375 = vrot.slane %v10187, 2
      %v10376 = vsel %vm2679, %v10363, %v10375
      %v10377 = vrot.slane %v10188, 2
      %v10378 = vsel %vm2679, %v10365, %v10377
      %v10379 = vrot.slane %v10189, 2
      %v10380 = vsel %vm2679, %v10367, %v10379
      %v10381 = vrot.slane %v10190, 2
      %v10382 = vsel %vm2679, %v10369, %v10381
      %v10383 = vrot.slane %v10191, 2
      %v10384 = vsel %vm2679, %v10371, %v10383
      %v10385 = vrot.slane %v10192, 2
      %v10386 = vsel %vm2679, %v10373, %v10385
      %v10387 = vrot.slane %v10193, 2
      %v10388 = vsel %vm2679, %v10375, %v10387
      %v10389 = vrot.slane %v10194, 2
      %v10390 = vsel %vm2679, %v10377, %v10389
      %v10391 = vrot.slane %v10195, 2
      %v10392 = vsel %vm2679, %v10379, %v10391
      %v10393 = vrot.slane %v10196, 2
      %v10394 = vsel %vm2679, %v10381, %v10393
      %v10395 = vrot.slane %v10197, 2
      %v10396 = vsel %vm2679, %v10383, %v10395
      %v10397 = vrot.slane %v10198, 2
      %v10398 = vsel %vm2679, %v10385, %v10397
      %v10399 = vrot.slane %v10199, 2
      %v10400 = vsel %vm2679, %v10387, %v10399
      %v10401 = vrot.slane %v10200, 2
      %v10402 = vsel %vm2679, %v10389, %v10401
      %v10403 = vrot.slane %v10201, 2
      %v10404 = vsel %vm2679, %v10391, %v10403
      %v10405 = vrot.slane %v10202, 2
      %v10406 = vsel %vm2679, %v10393, %v10405
      %v10407 = vrot.slane %v10203, 2
      %v10408 = vsel %vm2679, %v10395, %v10407
      %v10409 = vrot.slane %v10204, 2
      %v10410 = vsel %vm2679, %v10397, %v10409
      %v10411 = vrot.slane %v10205, 2
      %v10412 = vsel %vm2679, %v10399, %v10411
      %v10413 = vrot.slane %v10206, 2
      %v10414 = vsel %vm2679, %v10401, %v10413
      %v10415 = vrot.slane %v10207, 2
      %v10416 = vsel %vm2679, %v10403, %v10415
      %v10417 = vrot.slane %v10208, 2
      %v10418 = vsel %vm2679, %v10405, %v10417
      %v10419 = vrot.slane %v10209, 2
      %v10420 = vsel %vm2679, %v10407, %v10419
      %v10421 = vrot.slane %v10210, 2
      %v10422 = vsel %vm2679, %v10409, %v10421
      %v10423 = vrot.slane %v10211, 2
      %v10424 = vsel %vm2679, %v10411, %v10423
      %v10425 = vrot.slane %v10212, 2
      %v10426 = vsel %vm2679, %v10413, %v10425
      %v10427 = vrot.slane %v10213, 2
      %v10428 = vsel %vm2679, %v10415, %v10427
      %v10429 = vrot.slane %v10214, 2
      %v10430 = vsel %vm2679, %v10417, %v10429
      %v10431 = vrot.slane %v10215, 2
      %v10432 = vsel %vm2679, %v10419, %v10431
      %v10433 = vrot.slane %v10216, 2
      %v10434 = vsel %vm2679, %v10421, %v10433
      %v10435 = vrot.slane %v10217, 2
      %v10436 = vsel %vm2679, %v10423, %v10435
      %v10437 = vrot.slane %v10218, 2
      %v10438 = vsel %vm2679, %v10425, %v10437
      %v10439 = vrot.slane %v10219, 2
      %v10440 = vsel %vm2679, %v10427, %v10439
      %v10441 = vrot.slane %v10220, 2
      %v10442 = vsel %vm2679, %v10429, %v10441
      %v10443 = vrot.slane %v10221, 2
      %v10444 = vsel %vm2679, %v10431, %v10443
      %v10445 = vrot.slane %v10222, 2
      %v10446 = vsel %vm2679, %v10433, %v10445
      %v10447 = vrot.slane %v10223, 2
      %v10448 = vsel %vm2679, %v10435, %v10447
      %v10449 = vrot.slane %v10224, 2
      %v10450 = vsel %vm2679, %v10437, %v10449
      %v10451 = vrot.slane %v10225, 2
      %v10452 = vsel %vm2679, %v10439, %v10451
      %v10453 = vrot.slane %v10226, 2
      %v10454 = vsel %vm2679, %v10441, %v10453
      %10533 = vrot.lane.b32.xlu0 %v10307, 10
      %v10534 = vpop.permute.xlu0 %10533
      %10535 = vrot.lane.b32.xlu0 %v10324, 10
      %v10536 = vpop.permute.xlu0 %10535
      %10537 = vrot.lane.b32.xlu0 %v10336, 10
      %v10538 = vpop.permute.xlu0 %10537
      %10539 = vrot.lane.b32.xlu0 %v10348, 10
      %v10540 = vpop.permute.xlu0 %10539
      %10541 = vrot.lane.b32.xlu0 %v10360, 10
      %v10542 = vpop.permute.xlu0 %10541
      %10543 = vrot.lane.b32.xlu0 %v10372, 10
      %v10544 = vpop.permute.xlu0 %10543
      %10545 = vrot.lane.b32.xlu0 %v10384, 10
      %v10546 = vpop.permute.xlu0 %10545
      %10547 = vrot.lane.b32.xlu0 %v10396, 10
      %v10548 = vpop.permute.xlu0 %10547
      %10549 = vrot.lane.b32.xlu0 %v10408, 10
      %v10550 = vpop.permute.xlu0 %10549
      %10551 = vrot.lane.b32.xlu0 %v10420, 10
      %v10552 = vpop.permute.xlu0 %10551
      %10553 = vrot.lane.b32.xlu0 %v10432, 10
      %v10554 = vpop.permute.xlu0 %10553
      %10555 = vrot.lane.b32.xlu0 %v10444, 10
      %v10556 = vpop.permute.xlu0 %10555
      %10557 = vrot.lane.b32.xlu0 %v10443, 10
      %v10558 = vpop.permute.xlu0 %10557
      %10559 = vrot.lane.b32.xlu0 %v10310, 10
      %v10560 = vpop.permute.xlu0 %10559
      %10561 = vrot.lane.b32.xlu0 %v10326, 10
      %v10562 = vpop.permute.xlu0 %10561
      %10563 = vrot.lane.b32.xlu0 %v10338, 10
      %v10564 = vpop.permute.xlu0 %10563
      %10565 = vrot.lane.b32.xlu0 %v10350, 10
      %v10566 = vpop.permute.xlu0 %10565
      %10567 = vrot.lane.b32.xlu0 %v10362, 10
      %v10568 = vpop.permute.xlu0 %10567
      %10569 = vrot.lane.b32.xlu0 %v10374, 10
      %v10570 = vpop.permute.xlu0 %10569
      %10571 = vrot.lane.b32.xlu0 %v10386, 10
      %v10572 = vpop.permute.xlu0 %10571
      %10573 = vrot.lane.b32.xlu0 %v10398, 10
      %v10574 = vpop.permute.xlu0 %10573
      %10575 = vrot.lane.b32.xlu0 %v10410, 10
      %v10576 = vpop.permute.xlu0 %10575
      %10577 = vrot.lane.b32.xlu0 %v10422, 10
      %v10578 = vpop.permute.xlu0 %10577
      %10579 = vrot.lane.b32.xlu0 %v10434, 10
      %v10580 = vpop.permute.xlu0 %10579
      %10581 = vrot.lane.b32.xlu0 %v10446, 10
      %v10582 = vpop.permute.xlu0 %10581
      %10583 = vrot.lane.b32.xlu0 %v10445, 10
      %v10584 = vpop.permute.xlu0 %10583
      %10585 = vrot.lane.b32.xlu0 %v10313, 10
      %v10586 = vpop.permute.xlu0 %10585
      %10587 = vrot.lane.b32.xlu0 %v10328, 10
      %v10588 = vpop.permute.xlu0 %10587
      %10589 = vrot.lane.b32.xlu0 %v10340, 10
      %v10590 = vpop.permute.xlu0 %10589
      %10591 = vrot.lane.b32.xlu0 %v10352, 10
      %v10592 = vpop.permute.xlu0 %10591
      %10593 = vrot.lane.b32.xlu0 %v10364, 10
      %v10594 = vpop.permute.xlu0 %10593
      %10595 = vrot.lane.b32.xlu0 %v10376, 10
      %v10596 = vpop.permute.xlu0 %10595
      %10597 = vrot.lane.b32.xlu0 %v10388, 10
      %v10598 = vpop.permute.xlu0 %10597
      %10599 = vrot.lane.b32.xlu0 %v10400, 10
      %v10600 = vpop.permute.xlu0 %10599
      %10601 = vrot.lane.b32.xlu0 %v10412, 10
      %v10602 = vpop.permute.xlu0 %10601
      %10603 = vrot.lane.b32.xlu0 %v10424, 10
      %v10604 = vpop.permute.xlu0 %10603
      %10605 = vrot.lane.b32.xlu0 %v10436, 10
      %v10606 = vpop.permute.xlu0 %10605
      %10607 = vrot.lane.b32.xlu0 %v10448, 10
      %v10608 = vpop.permute.xlu0 %10607
      %10609 = vrot.lane.b32.xlu0 %v10447, 10
      %v10610 = vpop.permute.xlu0 %10609
      %10611 = vrot.lane.b32.xlu0 %v10316, 10
      %v10612 = vpop.permute.xlu0 %10611
      %10613 = vrot.lane.b32.xlu0 %v10330, 10
      %v10614 = vpop.permute.xlu0 %10613
      %10615 = vrot.lane.b32.xlu0 %v10342, 10
      %v10616 = vpop.permute.xlu0 %10615
      %10617 = vrot.lane.b32.xlu0 %v10354, 10
      %v10618 = vpop.permute.xlu0 %10617
      %10619 = vrot.lane.b32.xlu0 %v10366, 10
      %v10620 = vpop.permute.xlu0 %10619
      %10621 = vrot.lane.b32.xlu0 %v10378, 10
      %v10622 = vpop.permute.xlu0 %10621
      %10623 = vrot.lane.b32.xlu0 %v10390, 10
      %v10624 = vpop.permute.xlu0 %10623
      %10625 = vrot.lane.b32.xlu0 %v10402, 10
      %v10626 = vpop.permute.xlu0 %10625
      %10627 = vrot.lane.b32.xlu0 %v10414, 10
      %v10628 = vpop.permute.xlu0 %10627
      %10629 = vrot.lane.b32.xlu0 %v10426, 10
      %v10630 = vpop.permute.xlu0 %10629
      %10631 = vrot.lane.b32.xlu0 %v10438, 10
      %v10632 = vpop.permute.xlu0 %10631
      %10633 = vrot.lane.b32.xlu0 %v10450, 10
      %v10634 = vpop.permute.xlu0 %10633
      %10635 = vrot.lane.b32.xlu0 %v10449, 10
      %v10636 = vpop.permute.xlu0 %10635
      %10637 = vrot.lane.b32.xlu0 %v10319, 10
      %v10638 = vpop.permute.xlu0 %10637
      %10639 = vrot.lane.b32.xlu0 %v10332, 10
      %v10640 = vpop.permute.xlu0 %10639
      %10641 = vrot.lane.b32.xlu0 %v10344, 10
      %v10642 = vpop.permute.xlu0 %10641
      %10643 = vrot.lane.b32.xlu0 %v10356, 10
      %v10644 = vpop.permute.xlu0 %10643
      %10645 = vrot.lane.b32.xlu0 %v10368, 10
      %v10646 = vpop.permute.xlu0 %10645
      %10647 = vrot.lane.b32.xlu0 %v10380, 10
      %v10648 = vpop.permute.xlu0 %10647
      %10649 = vrot.lane.b32.xlu0 %v10392, 10
      %v10650 = vpop.permute.xlu0 %10649
      %10651 = vrot.lane.b32.xlu0 %v10404, 10
      %v10652 = vpop.permute.xlu0 %10651
      %10653 = vrot.lane.b32.xlu0 %v10416, 10
      %v10654 = vpop.permute.xlu0 %10653
      %10655 = vrot.lane.b32.xlu0 %v10428, 10
      %v10656 = vpop.permute.xlu0 %10655
      %10657 = vrot.lane.b32.xlu0 %v10440, 10
      %v10658 = vpop.permute.xlu0 %10657
      %10659 = vrot.lane.b32.xlu0 %v10452, 10
      %v10660 = vpop.permute.xlu0 %10659
      %10661 = vrot.lane.b32.xlu0 %v10451, 10
      %v10662 = vpop.permute.xlu0 %10661
      %10663 = vrot.lane.b32.xlu0 %v10322, 10
      %v10664 = vpop.permute.xlu0 %10663
      %10665 = vrot.lane.b32.xlu0 %v10334, 10
      %v10666 = vpop.permute.xlu0 %10665
      %10667 = vrot.lane.b32.xlu0 %v10346, 10
      %v10668 = vpop.permute.xlu0 %10667
      %10669 = vrot.lane.b32.xlu0 %v10358, 10
      %v10670 = vpop.permute.xlu0 %10669
      %10671 = vrot.lane.b32.xlu0 %v10370, 10
      %v10672 = vpop.permute.xlu0 %10671
      %10673 = vrot.lane.b32.xlu0 %v10382, 10
      %v10674 = vpop.permute.xlu0 %10673
      %10675 = vrot.lane.b32.xlu0 %v10394, 10
      %v10676 = vpop.permute.xlu0 %10675
      %10677 = vrot.lane.b32.xlu0 %v10406, 10
      %v10678 = vpop.permute.xlu0 %10677
      %10679 = vrot.lane.b32.xlu0 %v10418, 10
      %v10680 = vpop.permute.xlu0 %10679
      %10681 = vrot.lane.b32.xlu0 %v10430, 10
      %v10682 = vpop.permute.xlu0 %10681
      %10683 = vrot.lane.b32.xlu0 %v10442, 10
      %v10684 = vpop.permute.xlu0 %10683
      %10685 = vrot.lane.b32.xlu0 %v10454, 10
      %v10686 = vpop.permute.xlu0 %10685
      %10687 = vrot.lane.b32.xlu0 %v10453, 10
      %v10688 = vpop.permute.xlu0 %10687
      %vm10689 = vcmp.lt.s32.totalorder %v4594, 10
      %v10690 = vsel %vm10689, %v10638, %v10664
      %v10691 = vsel %vm10689, %v10640, %v10666
      %v10692 = vsel %vm10689, %v10642, %v10668
      %v10693 = vsel %vm10689, %v10644, %v10670
      %v10694 = vsel %vm10689, %v10646, %v10672
      %v10695 = vsel %vm10689, %v10648, %v10674
      %v10696 = vsel %vm10689, %v10650, %v10676
      %v10697 = vsel %vm10689, %v10652, %v10678
      %v10698 = vsel %vm10689, %v10654, %v10680
      %v10699 = vsel %vm10689, %v10656, %v10682
      %v10700 = vsel %vm10689, %v10658, %v10684
      %v10701 = vsel %vm10689, %v10660, %v10686
      %v10702 = vsel %vm10689, %v10662, %v10688
      %v10703 = vsel %vm10689, %v10612, %v10638
      %v10704 = vsel %vm10689, %v10614, %v10640
      %v10705 = vsel %vm10689, %v10616, %v10642
      %v10706 = vsel %vm10689, %v10618, %v10644
      %v10707 = vsel %vm10689, %v10620, %v10646
      %v10708 = vsel %vm10689, %v10622, %v10648
      %v10709 = vsel %vm10689, %v10624, %v10650
      %v10710 = vsel %vm10689, %v10626, %v10652
      %v10711 = vsel %vm10689, %v10628, %v10654
      %v10712 = vsel %vm10689, %v10630, %v10656
      %v10713 = vsel %vm10689, %v10632, %v10658
      %v10714 = vsel %vm10689, %v10634, %v10660
      %v10715 = vsel %vm10689, %v10636, %v10662
      %v10716 = vsel %vm10689, %v10586, %v10612
      %v10717 = vsel %vm10689, %v10588, %v10614
      %v10718 = vsel %vm10689, %v10590, %v10616
      %v10719 = vsel %vm10689, %v10592, %v10618
      %v10720 = vsel %vm10689, %v10594, %v10620
      %v10721 = vsel %vm10689, %v10596, %v10622
      %v10722 = vsel %vm10689, %v10598, %v10624
      %v10723 = vsel %vm10689, %v10600, %v10626
      %v10724 = vsel %vm10689, %v10602, %v10628
      %v10725 = vsel %vm10689, %v10604, %v10630
      %v10726 = vsel %vm10689, %v10606, %v10632
      %v10727 = vsel %vm10689, %v10608, %v10634
      %v10728 = vsel %vm10689, %v10610, %v10636
      %v10729 = vsel %vm10689, %v10560, %v10586
      %v10730 = vsel %vm10689, %v10562, %v10588
      %v10731 = vsel %vm10689, %v10564, %v10590
      %v10732 = vsel %vm10689, %v10566, %v10592
      %v10733 = vsel %vm10689, %v10568, %v10594
      %v10734 = vsel %vm10689, %v10570, %v10596
      %v10735 = vsel %vm10689, %v10572, %v10598
      %v10736 = vsel %vm10689, %v10574, %v10600
      %v10737 = vsel %vm10689, %v10576, %v10602
      %v10738 = vsel %vm10689, %v10578, %v10604
      %v10739 = vsel %vm10689, %v10580, %v10606
      %v10740 = vsel %vm10689, %v10582, %v10608
      %v10741 = vsel %vm10689, %v10584, %v10610
      %v10742 = vsel %vm10689, %v10534, %v10560
      %v10743 = vsel %vm10689, %v10536, %v10562
      %v10744 = vsel %vm10689, %v10538, %v10564
      %v10745 = vsel %vm10689, %v10540, %v10566
      %v10746 = vsel %vm10689, %v10542, %v10568
      %v10747 = vsel %vm10689, %v10544, %v10570
      %v10748 = vsel %vm10689, %v10546, %v10572
      %v10749 = vsel %vm10689, %v10548, %v10574
      %v10750 = vsel %vm10689, %v10550, %v10576
      %v10751 = vsel %vm10689, %v10552, %v10578
      %v10752 = vsel %vm10689, %v10554, %v10580
      %v10753 = vsel %vm10689, %v10556, %v10582
      %v10754 = vsel %vm10689, %v10558, %v10584
      %v10755 = vsel %vm10689, %v10664, %v10534
      %v10756 = vsel %vm10689, %v10666, %v10536
      %v10757 = vsel %vm10689, %v10668, %v10538
      %v10758 = vsel %vm10689, %v10670, %v10540
      %v10759 = vsel %vm10689, %v10672, %v10542
      %v10760 = vsel %vm10689, %v10674, %v10544
      %v10761 = vsel %vm10689, %v10676, %v10546
      %v10762 = vsel %vm10689, %v10678, %v10548
      %v10763 = vsel %vm10689, %v10680, %v10550
      %v10764 = vsel %vm10689, %v10682, %v10552
      %v10765 = vsel %vm10689, %v10684, %v10554
      %v10766 = vsel %vm10689, %v10686, %v10556
      %v10767 = vsel %vm10689, %v10688, %v10558
      %v10768 = vadd.f32 %v10071, %v10755
      %v10769 = vadd.f32 %v10072, %v10742
      %v10770 = vadd.f32 %v10073, %v10729
      %v10771 = vadd.f32 %v10074, %v10716
      %v10772 = vadd.f32 %v10075, %v10703
      %v10773 = vadd.f32 %v10076, %v10690
      %v10774 = vadd.f32 %v10077, %v10756
      %v10775 = vadd.f32 %v10078, %v10743
      %v10776 = vadd.f32 %v10079, %v10730
      %v10777 = vadd.f32 %v10080, %v10717
      %v10778 = vadd.f32 %v10081, %v10704
      %v10779 = vadd.f32 %v10082, %v10691
      %v10780 = vadd.f32 %v10083, %v10757
      %v10781 = vadd.f32 %v10084, %v10744
      %v10782 = vadd.f32 %v10085, %v10731
      %v10783 = vadd.f32 %v10086, %v10718
      %v10784 = vadd.f32 %v10087, %v10705
      %v10785 = vadd.f32 %v10088, %v10692
      %v10786 = vadd.f32 %v10089, %v10758
      %v10787 = vadd.f32 %v10090, %v10745
      %v10788 = vadd.f32 %v10091, %v10732
      %v10789 = vadd.f32 %v10092, %v10719
      %v10790 = vadd.f32 %v10093, %v10706
      %v10791 = vadd.f32 %v10094, %v10693
      %v10792 = vadd.f32 %v10095, %v10759
      %v10793 = vadd.f32 %v10096, %v10746
      %v10794 = vadd.f32 %v10097, %v10733
      %v10795 = vadd.f32 %v10098, %v10720
      %v10796 = vadd.f32 %v10099, %v10707
      %v10797 = vadd.f32 %v10100, %v10694
      %v10798 = vadd.f32 %v10101, %v10760
      %v10799 = vadd.f32 %v10102, %v10747
      %v10800 = vadd.f32 %v10103, %v10734
      %v10801 = vadd.f32 %v10104, %v10721
      %v10802 = vadd.f32 %v10105, %v10708
      %v10803 = vadd.f32 %v10106, %v10695
      %v10804 = vadd.f32 %v10107, %v10761
      %v10805 = vadd.f32 %v10108, %v10748
      %v10806 = vadd.f32 %v10109, %v10735
      %v10807 = vadd.f32 %v10110, %v10722
      %v10808 = vadd.f32 %v10111, %v10709
      %v10809 = vadd.f32 %v10112, %v10696
      %v10810 = vadd.f32 %v10113, %v10762
      %v10811 = vadd.f32 %v10114, %v10749
      %v10812 = vadd.f32 %v10115, %v10736
      %v10813 = vadd.f32 %v10116, %v10723
      %v10814 = vadd.f32 %v10117, %v10710
      %v10815 = vadd.f32 %v10118, %v10697
      %v10816 = vadd.f32 %v10119, %v10763
      %v10817 = vadd.f32 %v10120, %v10750
      %v10818 = vadd.f32 %v10121, %v10737
      %v10819 = vadd.f32 %v10122, %v10724
      %v10820 = vadd.f32 %v10123, %v10711
      %v10821 = vadd.f32 %v10124, %v10698
      %v10822 = vadd.f32 %v10125, %v10764
      %v10823 = vadd.f32 %v10126, %v10751
      %v10824 = vadd.f32 %v10127, %v10738
      %v10825 = vadd.f32 %v10128, %v10725
      %v10826 = vadd.f32 %v10129, %v10712
      %v10827 = vadd.f32 %v10130, %v10699
      %v10828 = vadd.f32 %v10131, %v10765
      %v10829 = vadd.f32 %v10132, %v10752
      %v10830 = vadd.f32 %v10133, %v10739
      %v10831 = vadd.f32 %v10134, %v10726
      %v10832 = vadd.f32 %v10135, %v10713
      %v10833 = vadd.f32 %v10136, %v10700
      %v10834 = vadd.f32 %v10137, %v10766
      %v10835 = vadd.f32 %v10138, %v10753
      %v10836 = vadd.f32 %v10139, %v10740
      %v10837 = vadd.f32 %v10140, %v10727
      %v10838 = vadd.f32 %v10141, %v10714
      %v10839 = vadd.f32 %v10142, %v10701
      %v10840 = vadd.f32 %v10143, %v10767
      %v10841 = vadd.f32 %v10144, %v10754
      %v10842 = vadd.f32 %v10145, %v10741
      %v10843 = vadd.f32 %v10146, %v10728
      %v10844 = vadd.f32 %v10147, %v10715
      %v10845 = vadd.f32 %v10148, %v10702
      %10846 = vst [vmem:[%s224] sm:$0xff] %v10768
      %10847 = vst [vmem:[%s224 + $0x8] sm:$0xff] %v10769
      %10848 = vst [vmem:[%s224 + $0x10] sm:$0xff] %v10770
      %10849 = vst [vmem:[%s224 + $0x18] sm:$0xff] %v10771
      %10850 = vst [vmem:[%s224 + $0x20] sm:$0xff] %v10772
      %10851 = vst.msk [vmem:[%s224 + $0x28] sm:$0xff] %vm3069, %v10773
      %10852 = vst [vmem:[%s224 + $0x30] sm:$0xff] %v10774
      %10853 = vst [vmem:[%s224 + $0x38] sm:$0xff] %v10775
      %10854 = vst [vmem:[%s224 + $0x40] sm:$0xff] %v10776
      %10855 = vst [vmem:[%s224 + $0x48] sm:$0xff] %v10777
      %10856 = vst [vmem:[%s224 + $0x50] sm:$0xff] %v10778
      %10857 = vst.msk [vmem:[%s224 + $0x58] sm:$0xff] %vm3069, %v10779
      %10858 = vst [vmem:[%s224 + $0x60] sm:$0xff] %v10780
      %10859 = vst [vmem:[%s224 + $0x68] sm:$0xff] %v10781
      %10860 = vst [vmem:[%s224 + $0x70] sm:$0xff] %v10782
      %10861 = vst [vmem:[%s224 + $0x78] sm:$0xff] %v10783
      %10862 = vst [vmem:[%s224 + $0x80] sm:$0xff] %v10784
      %10863 = vst.msk [vmem:[%s224 + $0x88] sm:$0xff] %vm3069, %v10785
      %10864 = vst [vmem:[%s224 + $0x90] sm:$0xff] %v10786
      %10865 = vst [vmem:[%s224 + $0x98] sm:$0xff] %v10787
      %10866 = vst [vmem:[%s224 + $0xa0] sm:$0xff] %v10788
      %10867 = vst [vmem:[%s224 + $0xa8] sm:$0xff] %v10789
      %10868 = vst [vmem:[%s224 + $0xb0] sm:$0xff] %v10790
      %10869 = vst.msk [vmem:[%s224 + $0xb8] sm:$0xff] %vm3069, %v10791
      %10870 = vst [vmem:[%s224 + $0xc0] sm:$0xff] %v10792
      %10871 = vst [vmem:[%s224 + $0xc8] sm:$0xff] %v10793
      %10872 = vst [vmem:[%s224 + $0xd0] sm:$0xff] %v10794
      %10873 = vst [vmem:[%s224 + $0xd8] sm:$0xff] %v10795
      %10874 = vst [vmem:[%s224 + $0xe0] sm:$0xff] %v10796
      %10875 = vst.msk [vmem:[%s224 + $0xe8] sm:$0xff] %vm3069, %v10797
      %10876 = vst [vmem:[%s224 + $0xf0] sm:$0xff] %v10798
      %10877 = vst [vmem:[%s224 + $0xf8] sm:$0xff] %v10799
      %10878 = vst [vmem:[%s224 + $0x100] sm:$0xff] %v10800
      %10879 = vst [vmem:[%s224 + $0x108] sm:$0xff] %v10801
      %10880 = vst [vmem:[%s224 + $0x110] sm:$0xff] %v10802
      %10881 = vst.msk [vmem:[%s224 + $0x118] sm:$0xff] %vm3069, %v10803
      %10882 = vst [vmem:[%s224 + $0x120] sm:$0xff] %v10804
      %10883 = vst [vmem:[%s224 + $0x128] sm:$0xff] %v10805
      %10884 = vst [vmem:[%s224 + $0x130] sm:$0xff] %v10806
      %10885 = vst [vmem:[%s224 + $0x138] sm:$0xff] %v10807
      %10886 = vst [vmem:[%s224 + $0x140] sm:$0xff] %v10808
      %10887 = vst.msk [vmem:[%s224 + $0x148] sm:$0xff] %vm3069, %v10809
      %10888 = vst [vmem:[%s224 + $0x150] sm:$0xff] %v10810
      %10889 = vst [vmem:[%s224 + $0x158] sm:$0xff] %v10811
      %10890 = vst [vmem:[%s224 + $0x160] sm:$0xff] %v10812
      %10891 = vst [vmem:[%s224 + $0x168] sm:$0xff] %v10813
      %10892 = vst [vmem:[%s224 + $0x170] sm:$0xff] %v10814
      %10893 = vst.msk [vmem:[%s224 + $0x178] sm:$0xff] %vm3069, %v10815
      %10894 = vst [vmem:[%s224 + $0x180] sm:$0xff] %v10816
      %10895 = vst [vmem:[%s224 + $0x188] sm:$0xff] %v10817
      %10896 = vst [vmem:[%s224 + $0x190] sm:$0xff] %v10818
      %10897 = vst [vmem:[%s224 + $0x198] sm:$0xff] %v10819
      %10898 = vst [vmem:[%s224 + $0x1a0] sm:$0xff] %v10820
      %10899 = vst.msk [vmem:[%s224 + $0x1a8] sm:$0xff] %vm3069, %v10821
      %10900 = vst [vmem:[%s224 + $0x1b0] sm:$0xff] %v10822
      %10901 = vst [vmem:[%s224 + $0x1b8] sm:$0xff] %v10823
      %10902 = vst [vmem:[%s224 + $0x1c0] sm:$0xff] %v10824
      %10903 = vst [vmem:[%s224 + $0x1c8] sm:$0xff] %v10825
      %10904 = vst [vmem:[%s224 + $0x1d0] sm:$0xff] %v10826
      %10905 = vst.msk [vmem:[%s224 + $0x1d8] sm:$0xff] %vm3069, %v10827
      %10906 = vst [vmem:[%s224 + $0x1e0] sm:$0xff] %v10828
      %10907 = vst [vmem:[%s224 + $0x1e8] sm:$0xff] %v10829
      %10908 = vst [vmem:[%s224 + $0x1f0] sm:$0xff] %v10830
      %10909 = vst [vmem:[%s224 + $0x1f8] sm:$0xff] %v10831
      %10910 = vst [vmem:[%s224 + $0x200] sm:$0xff] %v10832
      %10911 = vst.msk [vmem:[%s224 + $0x208] sm:$0xff] %vm3069, %v10833
      %10912 = vst [vmem:[%s224 + $0x210] sm:$0xff] %v10834
      %10913 = vst [vmem:[%s224 + $0x218] sm:$0xff] %v10835
      %10914 = vst [vmem:[%s224 + $0x220] sm:$0xff] %v10836
      %10915 = vst [vmem:[%s224 + $0x228] sm:$0xff] %v10837
      %10916 = vst [vmem:[%s224 + $0x230] sm:$0xff] %v10838
      %10917 = vst.msk [vmem:[%s224 + $0x238] sm:$0xff] %vm3069, %v10839
      %10918 = vst [vmem:[%s224 + $0x240] sm:$0x1f] %v10840
      %10919 = vst [vmem:[%s224 + $0x248] sm:$0x1f] %v10841
      %10920 = vst [vmem:[%s224 + $0x250] sm:$0x1f] %v10842
      %10921 = vst [vmem:[%s224 + $0x258] sm:$0x1f] %v10843
      %10922 = vst [vmem:[%s224 + $0x260] sm:$0x1f] %v10844
      %10923 = vst.msk [vmem:[%s224 + $0x268] sm:$0x1f] %vm4829, %v10845
      %p10924 = scmp.lt.s32.totalorder %s16, 1
      %s10925 = scalar_select %p10924, %s16, 1
      %s10926 = smul.addr %s10925, 78
      %s10927 = smul.addr %s10926, 8
      %s10928 = scalar_lea.vmem %s5, %s10927
      // Predicated region
      $region41: #{mfcc_pallas.1} parent=39 // pred_check
        %p10929 = pneg %p144
      $region42: #{mfcc_pallas.1} parent=39 // pred_check_branch
        %10931 = sbr.rel (%p10929) target = $region44
      $region43: #{mfcc_pallas.1} parent=39 // pred_region
        _
      $region44: #{mfcc_pallas.1} parent=39 // pred_fallthru
        _
    $region40: #{mfcc_pallas.1} parent=5 // pred_fallthru
      _
    %p10932 = scmp.le.s32.totalorder 2, %s11
    // Predicated region
    $region45: #{mfcc_pallas.1} parent=5 // pred_check
      %p10933 = pneg %p10932
    $region46: #{mfcc_pallas.1} parent=5 // pred_check_branch
      %10935 = sbr.rel (%p10933) target = $region48
    $region47: #{mfcc_pallas.1} parent=5 // pred_region
      %s10936 = ssub.s32 %s11, 2
      // Predicated region
      $region49: #{mfcc_pallas.1} parent=47 // pred_check
        %p10937 = pneg %p150
      $region50: #{mfcc_pallas.1} parent=47 // pred_check_branch
        %10939 = sbr.rel (%p10937) target = $region52
      $region51: #{mfcc_pallas.1} parent=47 // pred_region
        %p10940 = scmp.lt.s32.totalorder %s17, 1
        %s10941 = scalar_select %p10940, %s17, 1
        %s10942 = smul.addr %s10941, 78
        %s10943 = smul.addr %s10942, 8
        %s10944 = scalar_lea.vmem %s5, %s10943
      $region52: #{mfcc_pallas.1} parent=47 // pred_fallthru
        _
    $region48: #{mfcc_pallas.1} parent=5 // pred_fallthru
      _
  $region6: #{mfcc_pallas.1} parent=0 // loop_footer
    %s15 = sadd.s32 1, %s11
  $region7: #{mfcc_pallas.1} parent=0 // loop_footer_branch
    %10 = sbr.rel target = $region3
  $region8: #{mfcc_pallas.1} parent=0 // loop_exit
    _

</llo_original>
